<compile_context>
chip_gen: v7x
topology: tpu7x:2x2x1
jax: 0.10.0
libtpu: 0.0.40
codegen_flags: <defaults>
</compile_context>

<pallas_src>
import jax
import jax.numpy as jnp
from jax.experimental import pallas as pl
from jax.experimental.pallas import tpu as pltpu

IN_DIM = 100 + 43       # 143
IN_PAD = 144            # contraction dim padded to a multiple of 16 (bf16 sublanes)
HID_DIM = 1024
OUT_DIM = 512
LEAKY_SLOPE = 0.01      # F.leaky_relu default negative_slope


def _round_up(n, m):
    return (n + m - 1) // m * m


def sdmg_kernel(x_ref, w1_ref, b1_ref, w2_ref, b2_ref, w4_ref, b4_ref, o_ref):
    bf16 = jnp.bfloat16

    # fc1 + leaky_relu  (x already bf16; f32 accumulate, f32 bias/activation)
    h = jnp.dot(x_ref[...], w1_ref[...],
                preferred_element_type=jnp.float32) + b1_ref[...]
    h = jnp.maximum(h, LEAKY_SLOPE * h)

    # fc2 + leaky_relu
    h = jnp.dot(h.astype(bf16), w2_ref[...],
                preferred_element_type=jnp.float32) + b2_ref[...]
    h = jnp.maximum(h, LEAKY_SLOPE * h)

    # fc4 + (identity dropout) + tanh
    h = jnp.dot(h.astype(bf16), w4_ref[...],
                preferred_element_type=jnp.float32) + b4_ref[...]
    o_ref[...] = jnp.tanh(h).astype(o_ref.dtype)


def prepare_params(w1, b1, w2, b2, w4, b4):
    """Cast weights to bf16 and pad the fc1 contraction dim once (do this offline
    in production so the per-call weight stream is already bf16).
    TODO(synk): this is where int8 (v5e/v6e) / fp8-e4m3 (v7x) weight quantization
    with per-output-channel scales would live."""
    w1 = w1.astype(jnp.bfloat16)
    w1p = jnp.zeros((IN_PAD, HID_DIM), jnp.bfloat16).at[:IN_DIM, :].set(w1)
    return (
        w1p,
        b1.astype(jnp.float32).reshape(1, HID_DIM),
        w2.astype(jnp.bfloat16),
        b2.astype(jnp.float32).reshape(1, HID_DIM),
        w4.astype(jnp.bfloat16),
        b4.astype(jnp.float32).reshape(1, OUT_DIM),
    )


def _build_in_specs(tb, single_buffer_weights):
    """Input BlockSpecs. Weights/biases use constant index_maps (stay resident
    across grid steps); optionally request single-buffering for them since a
    never-changing block gains nothing from a second VMEM buffer."""
    const = lambda i: (0, 0)
    if single_buffer_weights:
        wkw = dict(pipeline_mode=pl.Buffered(1))
    else:
        wkw = {}
    return [
        pl.BlockSpec((tb, IN_PAD), lambda i: (i, 0)),
        pl.BlockSpec((IN_PAD, HID_DIM), const, **wkw),
        pl.BlockSpec((1, HID_DIM), const, **wkw),
        pl.BlockSpec((HID_DIM, HID_DIM), const, **wkw),
        pl.BlockSpec((1, HID_DIM), const, **wkw),
        pl.BlockSpec((HID_DIM, OUT_DIM), const, **wkw),
        pl.BlockSpec((1, OUT_DIM), const, **wkw),
    ]


def _call(xp, params, tb, bp, semantics, out_dtype, single_buffer_weights):
    grid = (bp // tb,)
    return pl.pallas_call(
        sdmg_kernel,
        out_shape=jax.ShapeDtypeStruct((bp, OUT_DIM), out_dtype),
        grid=grid,
        in_specs=_build_in_specs(tb, single_buffer_weights),
        out_specs=pl.BlockSpec((tb, OUT_DIM), lambda i: (i, 0)),
        compiler_params=pltpu.CompilerParams(
            dimension_semantics=semantics,
            vmem_limit_bytes=32 << 20,
        ),
    )(xp, *params)


def sdmg_forward(x, params, *, batch_block=256, out_dtype=jnp.float32):
    B = x.shape[0]

    # Batch tile: up to `batch_block` rows, multiple of 16 (bf16 sublane packing).
    batch_block = _round_up(batch_block, 16)
    TB = min(batch_block, _round_up(B, 16))
    Bp = _round_up(B, TB)

    # Pad batch to a whole number of tiles and K to the 16-aligned width, and cast
    # to bf16 once here (halves x HBM traffic; no in-kernel cast).
    xp = jnp.zeros((Bp, IN_PAD), jnp.bfloat16).at[:B, :IN_DIM].set(
        x.astype(jnp.bfloat16))

    # Megacore: with "parallel" each v7x TensorCore streams its own ~3.3 MiB weight
    # copy. Only shard the batch axis across cores when there are enough steps that
    # per-core compute amortizes that duplicated DMA; otherwise keep a single stream.
    steps = Bp // TB
    semantics = ("parallel",) if steps >= 4 else ("arbitrary",)

    try:
        out = _call(xp, params, TB, Bp, semantics, out_dtype,
                    single_buffer_weights=True)
    except Exception:
        # TODO(synk): pl.Buffered(1) per-operand buffering not supported by this
        # JAX build; fall back to default double-buffered weights (same numerics,
        # ~3.3 MiB more VMEM).
        out = _call(xp, params, TB, Bp, semantics, out_dtype,
                    single_buffer_weights=False)

    return out[:B]


def _ref_forward(x, w1, b1, w2, b2, w4, b4):
    """Pure-JAX reference mimicking the kernel's precision (bf16 matmul inputs,
    f32 accumulation), so the comparison isolates kernel correctness."""
    bf16 = jnp.bfloat16
    h = jnp.dot(x.astype(bf16), w1.astype(bf16),
                preferred_element_type=jnp.float32) + b1.reshape(1, -1)
    h = jnp.maximum(h, LEAKY_SLOPE * h)
    h = jnp.dot(h.astype(bf16), w2.astype(bf16),
                preferred_element_type=jnp.float32) + b2.reshape(1, -1)
    h = jnp.maximum(h, LEAKY_SLOPE * h)
    h = jnp.dot(h.astype(bf16), w4.astype(bf16),
                preferred_element_type=jnp.float32) + b4.reshape(1, -1)
    return jnp.tanh(h)


if __name__ == "__main__":
    key = jax.random.PRNGKey(0)
    kx, k1, k2, k3, k4, k5, k6 = jax.random.split(key, 7)

    B = 8
    x = jax.random.normal(kx, (B, IN_DIM), dtype=jnp.float32)

    # Deterministic synthetic parameters (small scale so tanh isn't saturated).
    w1 = jax.random.normal(k1, (IN_DIM, HID_DIM), dtype=jnp.float32) * 0.05
    b1 = jax.random.normal(k2, (1, HID_DIM), dtype=jnp.float32) * 0.05
    w2 = jax.random.normal(k3, (HID_DIM, HID_DIM), dtype=jnp.float32) * 0.02
    b2 = jax.random.normal(k4, (1, HID_DIM), dtype=jnp.float32) * 0.02
    w4 = jax.random.normal(k5, (HID_DIM, OUT_DIM), dtype=jnp.float32) * 0.02
    b4 = jax.random.normal(k6, (1, OUT_DIM), dtype=jnp.float32) * 0.02

    params = prepare_params(w1, b1, w2, b2, w4, b4)

    out = sdmg_forward(x, params)
    out = jax.block_until_ready(out)

    ref = _ref_forward(x, w1, b1, w2, b2, w4, b4)
    assert out.shape == (B, OUT_DIM), out.shape
    assert jnp.allclose(out, ref, atol=2e-3, rtol=2e-3), "mismatch vs reference"

    print("KERNEL_OK")
</pallas_src>

<mosaic_0001>
module attributes {stable_mosaic.version = 11 : i64} {
  func.func @sdmg_kernel(%arg0: i32, %arg1: memref<16x144xbf16, #tpu.memory_space<vmem>>, %arg2: memref<144x1024xbf16, #tpu.memory_space<vmem>>, %arg3: memref<1x1024xf32, #tpu.memory_space<vmem>>, %arg4: memref<1024x1024xbf16, #tpu.memory_space<vmem>>, %arg5: memref<1x1024xf32, #tpu.memory_space<vmem>>, %arg6: memref<1024x512xbf16, #tpu.memory_space<vmem>>, %arg7: memref<1x512xf32, #tpu.memory_space<vmem>>, %arg8: memref<16x512xf32, #tpu.memory_space<vmem>>) attributes {dimension_semantics = [#tpu.dimension_semantics<arbitrary>], iteration_bounds = array<i64: 1>, scalar_prefetch = 0 : i64, scratch_operands = 0 : i64, tpu.core_type = #tpu.core_type<tc>, window_params = [{transform_indices = @transform_0, window_bounds = array<i64: 16, 144>}, {pipeline_mode = #tpu.pipeline_mode<synchronous>, transform_indices = @transform_1, window_bounds = array<i64: 144, 1024>}, {pipeline_mode = #tpu.pipeline_mode<synchronous>, transform_indices = @transform_2, window_bounds = array<i64: 1, 1024>}, {pipeline_mode = #tpu.pipeline_mode<synchronous>, transform_indices = @transform_3, window_bounds = array<i64: 1024, 1024>}, {pipeline_mode = #tpu.pipeline_mode<synchronous>, transform_indices = @transform_4, window_bounds = array<i64: 1, 1024>}, {pipeline_mode = #tpu.pipeline_mode<synchronous>, transform_indices = @transform_5, window_bounds = array<i64: 1024, 512>}, {pipeline_mode = #tpu.pipeline_mode<synchronous>, transform_indices = @transform_6, window_bounds = array<i64: 1, 512>}, {transform_indices = @transform_7, window_bounds = array<i64: 16, 512>}]} {
    %c0 = arith.constant 0 : index
    %c0_0 = arith.constant 0 : index
    %0 = vector.load %arg1[%c0, %c0_0] : memref<16x144xbf16, #tpu.memory_space<vmem>>, vector<16x144xbf16>
    %c0_1 = arith.constant 0 : index
    %c0_2 = arith.constant 0 : index
    %1 = vector.load %arg2[%c0_1, %c0_2] : memref<144x1024xbf16, #tpu.memory_space<vmem>>, vector<144x1024xbf16>
    %cst = arith.constant dense<0.000000e+00> : vector<16x1024xf32>
    %2 = tpu.matmul %0, %1, %cst {dimension_numbers = #tpu.dot_dimension_numbers<[1], [0], [0], [1], [0, 0, 1, 1], [], []>} : vector<16x144xbf16>, vector<144x1024xbf16>, vector<16x1024xf32> -> vector<16x1024xf32>
    %c0_3 = arith.constant 0 : index
    %c0_4 = arith.constant 0 : index
    %3 = vector.load %arg3[%c0_3, %c0_4] : memref<1x1024xf32, #tpu.memory_space<vmem>>, vector<1x1024xf32>
    %4 = vector.broadcast %3 : vector<1x1024xf32> to vector<16x1024xf32>
    %5 = arith.addf %2, %4 : vector<16x1024xf32>
    %cst_5 = arith.constant 0.00999999977 : f32
    %6 = vector.broadcast %cst_5 : f32 to vector<16x1024xf32>
    %7 = arith.mulf %6, %5 : vector<16x1024xf32>
    %8 = arith.maximumf %5, %7 : vector<16x1024xf32>
    %9 = arith.truncf %8 : vector<16x1024xf32> to vector<16x1024xbf16>
    %c0_6 = arith.constant 0 : index
    %c0_7 = arith.constant 0 : index
    %10 = vector.load %arg4[%c0_6, %c0_7] : memref<1024x1024xbf16, #tpu.memory_space<vmem>>, vector<1024x1024xbf16>
    %cst_8 = arith.constant dense<0.000000e+00> : vector<16x1024xf32>
    %11 = tpu.matmul %9, %10, %cst_8 {dimension_numbers = #tpu.dot_dimension_numbers<[1], [0], [0], [1], [0, 0, 1, 1], [], []>} : vector<16x1024xbf16>, vector<1024x1024xbf16>, vector<16x1024xf32> -> vector<16x1024xf32>
    %c0_9 = arith.constant 0 : index
    %c0_10 = arith.constant 0 : index
    %12 = vector.load %arg5[%c0_9, %c0_10] : memref<1x1024xf32, #tpu.memory_space<vmem>>, vector<1x1024xf32>
    %13 = vector.broadcast %12 : vector<1x1024xf32> to vector<16x1024xf32>
    %14 = arith.addf %11, %13 : vector<16x1024xf32>
    %cst_11 = arith.constant 0.00999999977 : f32
    %15 = vector.broadcast %cst_11 : f32 to vector<16x1024xf32>
    %16 = arith.mulf %15, %14 : vector<16x1024xf32>
    %17 = arith.maximumf %14, %16 : vector<16x1024xf32>
    %18 = arith.truncf %17 : vector<16x1024xf32> to vector<16x1024xbf16>
    %c0_12 = arith.constant 0 : index
    %c0_13 = arith.constant 0 : index
    %19 = vector.load %arg6[%c0_12, %c0_13] : memref<1024x512xbf16, #tpu.memory_space<vmem>>, vector<1024x512xbf16>
    %cst_14 = arith.constant dense<0.000000e+00> : vector<16x512xf32>
    %20 = tpu.matmul %18, %19, %cst_14 {dimension_numbers = #tpu.dot_dimension_numbers<[1], [0], [0], [1], [0, 0, 1, 1], [], []>} : vector<16x1024xbf16>, vector<1024x512xbf16>, vector<16x512xf32> -> vector<16x512xf32>
    %c0_15 = arith.constant 0 : index
    %c0_16 = arith.constant 0 : index
    %21 = vector.load %arg7[%c0_15, %c0_16] : memref<1x512xf32, #tpu.memory_space<vmem>>, vector<1x512xf32>
    %22 = vector.broadcast %21 : vector<1x512xf32> to vector<16x512xf32>
    %23 = arith.addf %20, %22 : vector<16x512xf32>
    %24 = math.tanh %23 : vector<16x512xf32>
    %c0_17 = arith.constant 0 : index
    %c0_18 = arith.constant 0 : index
    %25 = vector.load %arg8[%c0_17, %c0_18] : memref<16x512xf32, #tpu.memory_space<vmem>>, vector<16x512xf32>
    tpu.vector_store %arg8[%c0_17, %c0_18], %24 {strides = array<i32>} : memref<16x512xf32, #tpu.memory_space<vmem>>, vector<16x512xf32>,
    return
  }
  func.func @transform_0(%arg0: i32) -> (i32, i32) {
    %c0_i32 = arith.constant 0 : i32
    %c0_i32_0 = arith.constant 0 : i32
    return %arg0, %c0_i32 : i32, i32
  }
  func.func @transform_1(%arg0: i32) -> (i32, i32) {
    %c0_i32 = arith.constant 0 : i32
    %c0_i32_0 = arith.constant 0 : i32
    %c0_i32_1 = arith.constant 0 : i32
    return %c0_i32, %c0_i32_0 : i32, i32
  }
  func.func @transform_2(%arg0: i32) -> (i32, i32) {
    %c0_i32 = arith.constant 0 : i32
    %c0_i32_0 = arith.constant 0 : i32
    %c0_i32_1 = arith.constant 0 : i32
    return %c0_i32, %c0_i32_0 : i32, i32
  }
  func.func @transform_3(%arg0: i32) -> (i32, i32) {
    %c0_i32 = arith.constant 0 : i32
    %c0_i32_0 = arith.constant 0 : i32
    %c0_i32_1 = arith.constant 0 : i32
    return %c0_i32, %c0_i32_0 : i32, i32
  }
  func.func @transform_4(%arg0: i32) -> (i32, i32) {
    %c0_i32 = arith.constant 0 : i32
    %c0_i32_0 = arith.constant 0 : i32
    %c0_i32_1 = arith.constant 0 : i32
    return %c0_i32, %c0_i32_0 : i32, i32
  }
  func.func @transform_5(%arg0: i32) -> (i32, i32) {
    %c0_i32 = arith.constant 0 : i32
    %c0_i32_0 = arith.constant 0 : i32
    %c0_i32_1 = arith.constant 0 : i32
    return %c0_i32, %c0_i32_0 : i32, i32
  }
  func.func @transform_6(%arg0: i32) -> (i32, i32) {
    %c0_i32 = arith.constant 0 : i32
    %c0_i32_0 = arith.constant 0 : i32
    %c0_i32_1 = arith.constant 0 : i32
    return %c0_i32, %c0_i32_0 : i32, i32
  }
  func.func @transform_7(%arg0: i32) -> (i32, i32) {
    %c0_i32 = arith.constant 0 : i32
    %c0_i32_0 = arith.constant 0 : i32
    return %arg0, %c0_i32 : i32, i32
  }
}

module attributes {stable_mosaic.version = 11 : i64} {
  func.func @sdmg_kernel(%arg0: i32, %arg1: memref<16x144xbf16, #tpu.memory_space<vmem>>, %arg2: memref<144x1024xbf16, #tpu.memory_space<vmem>>, %arg3: memref<1x1024xf32, #tpu.memory_space<vmem>>, %arg4: memref<1024x1024xbf16, #tpu.memory_space<vmem>>, %arg5: memref<1x1024xf32, #tpu.memory_space<vmem>>, %arg6: memref<1024x512xbf16, #tpu.memory_space<vmem>>, %arg7: memref<1x512xf32, #tpu.memory_space<vmem>>, %arg8: memref<16x512xf32, #tpu.memory_space<vmem>>) attributes {dimension_semantics = [#tpu.dimension_semantics<arbitrary>], iteration_bounds = array<i64: 1>, scalar_prefetch = 0 : i64, scratch_operands = 0 : i64, tpu.core_type = #tpu.core_type<tc>, window_params = [{transform_indices = @transform_0, window_bounds = array<i64: 16, 144>}, {pipeline_mode = #tpu.pipeline_mode<synchronous>, transform_indices = @transform_1, window_bounds = array<i64: 144, 1024>}, {pipeline_mode = #tpu.pipeline_mode<synchronous>, transform_indices = @transform_2, window_bounds = array<i64: 1, 1024>}, {pipeline_mode = #tpu.pipeline_mode<synchronous>, transform_indices = @transform_3, window_bounds = array<i64: 1024, 1024>}, {pipeline_mode = #tpu.pipeline_mode<synchronous>, transform_indices = @transform_4, window_bounds = array<i64: 1, 1024>}, {pipeline_mode = #tpu.pipeline_mode<synchronous>, transform_indices = @transform_5, window_bounds = array<i64: 1024, 512>}, {pipeline_mode = #tpu.pipeline_mode<synchronous>, transform_indices = @transform_6, window_bounds = array<i64: 1, 512>}, {transform_indices = @transform_7, window_bounds = array<i64: 16, 512>}]} {
    %c0 = arith.constant 0 : index
    %c0_0 = arith.constant 0 : index
    %0 = vector.load %arg1[%c0, %c0_0] : memref<16x144xbf16, #tpu.memory_space<vmem>>, vector<16x144xbf16>
    %c0_1 = arith.constant 0 : index
    %c0_2 = arith.constant 0 : index
    %1 = vector.load %arg2[%c0_1, %c0_2] : memref<144x1024xbf16, #tpu.memory_space<vmem>>, vector<144x1024xbf16>
    %cst = arith.constant dense<0.000000e+00> : vector<16x1024xf32>
    %2 = tpu.matmul %0, %1, %cst {dimension_numbers = #tpu.dot_dimension_numbers<[1], [0], [0], [1], [0, 0, 1, 1], [], []>} : vector<16x144xbf16>, vector<144x1024xbf16>, vector<16x1024xf32> -> vector<16x1024xf32>
    %c0_3 = arith.constant 0 : index
    %c0_4 = arith.constant 0 : index
    %3 = vector.load %arg3[%c0_3, %c0_4] : memref<1x1024xf32, #tpu.memory_space<vmem>>, vector<1x1024xf32>
    %4 = vector.broadcast %3 : vector<1x1024xf32> to vector<16x1024xf32>
    %5 = arith.addf %2, %4 : vector<16x1024xf32>
    %cst_5 = arith.constant 0.00999999977 : f32
    %6 = vector.broadcast %cst_5 : f32 to vector<16x1024xf32>
    %7 = arith.mulf %6, %5 : vector<16x1024xf32>
    %8 = arith.maximumf %5, %7 : vector<16x1024xf32>
    %9 = arith.truncf %8 : vector<16x1024xf32> to vector<16x1024xbf16>
    %c0_6 = arith.constant 0 : index
    %c0_7 = arith.constant 0 : index
    %10 = vector.load %arg4[%c0_6, %c0_7] : memref<1024x1024xbf16, #tpu.memory_space<vmem>>, vector<1024x1024xbf16>
    %cst_8 = arith.constant dense<0.000000e+00> : vector<16x1024xf32>
    %11 = tpu.matmul %9, %10, %cst_8 {dimension_numbers = #tpu.dot_dimension_numbers<[1], [0], [0], [1], [0, 0, 1, 1], [], []>} : vector<16x1024xbf16>, vector<1024x1024xbf16>, vector<16x1024xf32> -> vector<16x1024xf32>
    %c0_9 = arith.constant 0 : index
    %c0_10 = arith.constant 0 : index
    %12 = vector.load %arg5[%c0_9, %c0_10] : memref<1x1024xf32, #tpu.memory_space<vmem>>, vector<1x1024xf32>
    %13 = vector.broadcast %12 : vector<1x1024xf32> to vector<16x1024xf32>
    %14 = arith.addf %11, %13 : vector<16x1024xf32>
    %cst_11 = arith.constant 0.00999999977 : f32
    %15 = vector.broadcast %cst_11 : f32 to vector<16x1024xf32>
    %16 = arith.mulf %15, %14 : vector<16x1024xf32>
    %17 = arith.maximumf %14, %16 : vector<16x1024xf32>
    %18 = arith.truncf %17 : vector<16x1024xf32> to vector<16x1024xbf16>
    %c0_12 = arith.constant 0 : index
    %c0_13 = arith.constant 0 : index
    %19 = vector.load %arg6[%c0_12, %c0_13] : memref<1024x512xbf16, #tpu.memory_space<vmem>>, vector<1024x512xbf16>
    %cst_14 = arith.constant dense<0.000000e+00> : vector<16x512xf32>
    %20 = tpu.matmul %18, %19, %cst_14 {dimension_numbers = #tpu.dot_dimension_numbers<[1], [0], [0], [1], [0, 0, 1, 1], [], []>} : vector<16x1024xbf16>, vector<1024x512xbf16>, vector<16x512xf32> -> vector<16x512xf32>
    %c0_15 = arith.constant 0 : index
    %c0_16 = arith.constant 0 : index
    %21 = vector.load %arg7[%c0_15, %c0_16] : memref<1x512xf32, #tpu.memory_space<vmem>>, vector<1x512xf32>
    %22 = vector.broadcast %21 : vector<1x512xf32> to vector<16x512xf32>
    %23 = arith.addf %20, %22 : vector<16x512xf32>
    %24 = math.tanh %23 : vector<16x512xf32>
    %c0_17 = arith.constant 0 : index
    %c0_18 = arith.constant 0 : index
    %25 = vector.load %arg8[%c0_17, %c0_18] : memref<16x512xf32, #tpu.memory_space<vmem>>, vector<16x512xf32>
    tpu.vector_store %arg8[%c0_17, %c0_18], %24 {strides = array<i32>} : memref<16x512xf32, #tpu.memory_space<vmem>>, vector<16x512xf32>,
    return
  }
  func.func @transform_0(%arg0: i32) -> (i32, i32) {
    %c0_i32 = arith.constant 0 : i32
    %c0_i32_0 = arith.constant 0 : i32
    return %arg0, %c0_i32 : i32, i32
  }
  func.func @transform_1(%arg0: i32) -> (i32, i32) {
    %c0_i32 = arith.constant 0 : i32
    %c0_i32_0 = arith.constant 0 : i32
    %c0_i32_1 = arith.constant 0 : i32
    return %c0_i32, %c0_i32_0 : i32, i32
  }
  func.func @transform_2(%arg0: i32) -> (i32, i32) {
    %c0_i32 = arith.constant 0 : i32
    %c0_i32_0 = arith.constant 0 : i32
    %c0_i32_1 = arith.constant 0 : i32
    return %c0_i32, %c0_i32_0 : i32, i32
  }
  func.func @transform_3(%arg0: i32) -> (i32, i32) {
    %c0_i32 = arith.constant 0 : i32
    %c0_i32_0 = arith.constant 0 : i32
    %c0_i32_1 = arith.constant 0 : i32
    return %c0_i32, %c0_i32_0 : i32, i32
  }
  func.func @transform_4(%arg0: i32) -> (i32, i32) {
    %c0_i32 = arith.constant 0 : i32
    %c0_i32_0 = arith.constant 0 : i32
    %c0_i32_1 = arith.constant 0 : i32
    return %c0_i32, %c0_i32_0 : i32, i32
  }
  func.func @transform_5(%arg0: i32) -> (i32, i32) {
    %c0_i32 = arith.constant 0 : i32
    %c0_i32_0 = arith.constant 0 : i32
    %c0_i32_1 = arith.constant 0 : i32
    return %c0_i32, %c0_i32_0 : i32, i32
  }
  func.func @transform_6(%arg0: i32) -> (i32, i32) {
    %c0_i32 = arith.constant 0 : i32
    %c0_i32_0 = arith.constant 0 : i32
    %c0_i32_1 = arith.constant 0 : i32
    return %c0_i32, %c0_i32_0 : i32, i32
  }
  func.func @transform_7(%arg0: i32) -> (i32, i32) {
    %c0_i32 = arith.constant 0 : i32
    %c0_i32_0 = arith.constant 0 : i32
    return %arg0, %c0_i32 : i32, i32
  }
}

</mosaic_0001>

<llo_original>
// kernel: tpu_custom_call.1
$region0: #{tpu_custom_call.1}
  #allocation0 [shape = 'u32[]', space=smem, size = 0x4, offset = 0x4, fixed_abs, tag = 'smem constant byte address 0x4 - core index']
  #allocation1 [shape = 'u32[144,128]{1,0:T(1,128)}', space=vmem, size = 0x12000, scoped, tag = 'internal scratch']
  %s0 = inlined_call_operand.hbm [shape: bf16[16,144], index: 0, kind: input, shape index: {}]
  %s1 = inlined_call_operand.hbm [shape: bf16[144,1024], index: 1, kind: input, shape index: {}]
  %s2 = inlined_call_operand.hbm [shape: f32[1,1024], index: 2, kind: input, shape index: {}]
  %s3 = inlined_call_operand.hbm [shape: bf16[1024,1024], index: 3, kind: input, shape index: {}]
  %s4 = inlined_call_operand.hbm [shape: f32[1,1024], index: 4, kind: input, shape index: {}]
  %s5 = inlined_call_operand.hbm [shape: bf16[1024,512], index: 5, kind: input, shape index: {}]
  %s6 = inlined_call_operand.hbm [shape: f32[1,512], index: 6, kind: input, shape index: {}]
  %s7 = inlined_call_operand.hbm [shape: f32[16,512], index: 7, kind: output, shape index: {}]
  %s8 = sld [smem:[#allocation0]]
  $region66: #{tpu_custom_call.1} parent=0
    _
  %s10 = ssub.s32 1, %s8
  %s11 = scalar_select 0, %s10, %s8
  $region1: #{tpu_custom_call.1} parent=0
    #allocation2 [shape = 'u8[8192]{0}', space=vmem, size = 0x2000, scoped, tag = 'input window, operand 0, single buffered']
    #allocation3 [shape = 's32[1]{0}', space=sflag, size = 0x4, scoped, tag = 'scoped memory for tpu_custom_call.1']
    #allocation4 [shape = 's32[1]{0}', space=sflag, size = 0x4, scoped, tag = 'scoped memory for tpu_custom_call.1']
    #allocation5 [shape = 'u8[294912]{0}', space=vmem, size = 0x48000, scoped, tag = 'input window, operand 1, single buffered']
    #allocation6 [shape = 's32[1]{0}', space=sflag, size = 0x4, scoped, tag = 'scoped memory for tpu_custom_call.1']
    #allocation7 [shape = 'u8[4096]{0}', space=vmem, size = 0x1000, scoped, tag = 'input window, operand 2, single buffered']
    #allocation8 [shape = 'u8[2097152]{0}', space=vmem, size = 0x200000, scoped, tag = 'input window, operand 3, single buffered']
    #allocation9 [shape = 's32[1]{0}', space=sflag, size = 0x4, scoped, tag = 'scoped memory for tpu_custom_call.1']
    #allocation10 [shape = 'u8[4096]{0}', space=vmem, size = 0x1000, scoped, tag = 'input window, operand 4, single buffered']
    #allocation11 [shape = 'u8[1048576]{0}', space=vmem, size = 0x100000, scoped, tag = 'input window, operand 5, single buffered']
    #allocation12 [shape = 's32[1]{0}', space=sflag, size = 0x4, scoped, tag = 'scoped memory for tpu_custom_call.1']
    #allocation13 [shape = 'u8[2048]{0}', space=vmem, size = 0x800, scoped, tag = 'input window, operand 6, single buffered']
    #allocation14 [shape = 'u8[32768]{0}', space=vmem, size = 0x8000, scoped, tag = 'output window, operand 0, single buffered']
    %12 = vsyncpa [#allocation3], 0
    %13 = vsyncpa [#allocation6], 0
    %14 = vsyncpa [#allocation9], 0
    %15 = vsyncpa [#allocation12], 0
    %16 = vsyncpa [#allocation4], 0
    // Predicated region
    $region2: #{tpu_custom_call.1} parent=1 // pred_check
      _
    $region3: #{tpu_custom_call.1} parent=1 // pred_check_branch
      %18 = sbr.rel (0) target = $region5
    $region4: #{tpu_custom_call.1} parent=1 // pred_region
      %s20 = ssub.s32 256, 256
      %21 = vsyncadd [#allocation3], %s20
      %s22 = sshll.u32 [#allocation2], 4
      %s23 = int_to_ptr.vmem [resolvable:$true] %s22
      %28 = dma.hbm_to_vmem [thread:$0]  %s0, 256, %s23, [#allocation3], 128, 128, 8
    $region5: #{tpu_custom_call.1} parent=1 // pred_fallthru
      _
    // Predicated region
    $region6: #{tpu_custom_call.1} parent=1 // pred_check
      _
    $region7: #{tpu_custom_call.1} parent=1 // pred_check_branch
      %30 = sbr.rel (0) target = $region9
    $region8: #{tpu_custom_call.1} parent=1 // pred_region
      %s32 = ssub.s32 9216, 9216
      %33 = vsyncadd [#allocation6], %s32
      %s34 = sshll.u32 [#allocation5], 4
      %s35 = int_to_ptr.vmem [resolvable:$true] %s34
      %40 = dma.hbm_to_vmem [thread:$0]  %s1, 9216, %s35, [#allocation6], 512, 512, 32
    $region9: #{tpu_custom_call.1} parent=1 // pred_fallthru
      _
    // Predicated region
    $region10: #{tpu_custom_call.1} parent=1 // pred_check
      _
    $region11: #{tpu_custom_call.1} parent=1 // pred_check_branch
      %42 = sbr.rel (0) target = $region13
    $region12: #{tpu_custom_call.1} parent=1 // pred_region
      %s44 = ssub.s32 128, 128
      %45 = vsyncadd [#allocation6], %s44
      %s47 = sshll.u32 [#allocation7], 4
      %s48 = int_to_ptr.vmem [resolvable:$true] %s47
      %50 = dma.hbm_to_vmem [thread:$0]  %s2, 128, %s48, [#allocation6]
    $region13: #{tpu_custom_call.1} parent=1 // pred_fallthru
      _
    // Predicated region
    $region14: #{tpu_custom_call.1} parent=1 // pred_check
      _
    $region15: #{tpu_custom_call.1} parent=1 // pred_check_branch
      %52 = sbr.rel (0) target = $region17
    $region16: #{tpu_custom_call.1} parent=1 // pred_region
      %s54 = ssub.s32 65536, 65536
      %55 = vsyncadd [#allocation9], %s54
      %s56 = sshll.u32 [#allocation8], 4
      %s57 = int_to_ptr.vmem [resolvable:$true] %s56
      %62 = dma.hbm_to_vmem [thread:$0]  %s3, 65536, %s57, [#allocation9], 512, 512, 32
    $region17: #{tpu_custom_call.1} parent=1 // pred_fallthru
      _
    // Predicated region
    $region18: #{tpu_custom_call.1} parent=1 // pred_check
      _
    $region19: #{tpu_custom_call.1} parent=1 // pred_check_branch
      %64 = sbr.rel (0) target = $region21
    $region20: #{tpu_custom_call.1} parent=1 // pred_region
      %s66 = ssub.s32 128, 128
      %67 = vsyncadd [#allocation9], %s66
      %s69 = sshll.u32 [#allocation10], 4
      %s70 = int_to_ptr.vmem [resolvable:$true] %s69
      %72 = dma.hbm_to_vmem [thread:$0]  %s4, 128, %s70, [#allocation9]
    $region21: #{tpu_custom_call.1} parent=1 // pred_fallthru
      _
    // Predicated region
    $region22: #{tpu_custom_call.1} parent=1 // pred_check
      _
    $region23: #{tpu_custom_call.1} parent=1 // pred_check_branch
      %74 = sbr.rel (0) target = $region25
    $region24: #{tpu_custom_call.1} parent=1 // pred_region
      %s76 = ssub.s32 32768, 32768
      %77 = vsyncadd [#allocation12], %s76
      %s78 = sshll.u32 [#allocation11], 4
      %s79 = int_to_ptr.vmem [resolvable:$true] %s78
      %84 = dma.hbm_to_vmem [thread:$0]  %s5, 32768, %s79, [#allocation12], 256, 256, 16
    $region25: #{tpu_custom_call.1} parent=1 // pred_fallthru
      _
    // Predicated region
    $region26: #{tpu_custom_call.1} parent=1 // pred_check
      _
    $region27: #{tpu_custom_call.1} parent=1 // pred_check_branch
      %86 = sbr.rel (0) target = $region29
    $region28: #{tpu_custom_call.1} parent=1 // pred_region
      %s88 = ssub.s32 64, 64
      %89 = vsyncadd [#allocation12], %s88
      %s91 = sshll.u32 [#allocation13], 4
      %s92 = int_to_ptr.vmem [resolvable:$true] %s91
      %94 = dma.hbm_to_vmem [thread:$0]  %s6, 64, %s92, [#allocation12]
    $region29: #{tpu_custom_call.1} parent=1 // pred_fallthru
      _
    // Predicated region
    $region30: #{tpu_custom_call.1} parent=1 // pred_check
      _
    $region31: #{tpu_custom_call.1} parent=1 // pred_check_branch
      %96 = sbr.rel (0) target = $region33
    $region32: #{tpu_custom_call.1} parent=1 // pred_region
      %97 = dma.done [#allocation3], 256
    $region33: #{tpu_custom_call.1} parent=1 // pred_fallthru
      _
    // Predicated region
    $region34: #{tpu_custom_call.1} parent=1 // pred_check
      _
    $region35: #{tpu_custom_call.1} parent=1 // pred_check_branch
      %99 = sbr.rel (0) target = $region37
    $region36: #{tpu_custom_call.1} parent=1 // pred_region
      %100 = dma.done [#allocation6], 9216
    $region37: #{tpu_custom_call.1} parent=1 // pred_fallthru
      _
    // Predicated region
    $region38: #{tpu_custom_call.1} parent=1 // pred_check
      _
    $region39: #{tpu_custom_call.1} parent=1 // pred_check_branch
      %102 = sbr.rel (0) target = $region41
    $region40: #{tpu_custom_call.1} parent=1 // pred_region
      %103 = dma.done [#allocation6], 128
    $region41: #{tpu_custom_call.1} parent=1 // pred_fallthru
      _
    // Predicated region
    $region42: #{tpu_custom_call.1} parent=1 // pred_check
      _
    $region43: #{tpu_custom_call.1} parent=1 // pred_check_branch
      %105 = sbr.rel (0) target = $region45
    $region44: #{tpu_custom_call.1} parent=1 // pred_region
      %106 = dma.done [#allocation9], 65536
    $region45: #{tpu_custom_call.1} parent=1 // pred_fallthru
      _
    // Predicated region
    $region46: #{tpu_custom_call.1} parent=1 // pred_check
      _
    $region47: #{tpu_custom_call.1} parent=1 // pred_check_branch
      %108 = sbr.rel (0) target = $region49
    $region48: #{tpu_custom_call.1} parent=1 // pred_region
      %109 = dma.done [#allocation9], 128
    $region49: #{tpu_custom_call.1} parent=1 // pred_fallthru
      _
    // Predicated region
    $region50: #{tpu_custom_call.1} parent=1 // pred_check
      _
    $region51: #{tpu_custom_call.1} parent=1 // pred_check_branch
      %111 = sbr.rel (0) target = $region53
    $region52: #{tpu_custom_call.1} parent=1 // pred_region
      %112 = dma.done [#allocation12], 32768
    $region53: #{tpu_custom_call.1} parent=1 // pred_fallthru
      _
    // Predicated region
    $region54: #{tpu_custom_call.1} parent=1 // pred_check
      _
    $region55: #{tpu_custom_call.1} parent=1 // pred_check_branch
      %114 = sbr.rel (0) target = $region57
    $region56: #{tpu_custom_call.1} parent=1 // pred_region
      %115 = dma.done [#allocation12], 64
    $region57: #{tpu_custom_call.1} parent=1 // pred_fallthru
      _
    %v117 = vld [vmem:[#allocation2] sm:$0xff]
    %v118 = vld [vmem:[#allocation2 + $0x8] sm:$0xff]
    %v119 = vld [vmem:[#allocation5] sm:$0xff]
    %v120 = vld [vmem:[#allocation5 + $0x8] sm:$0xff]
    %v121 = vld [vmem:[#allocation5 + $0x10] sm:$0xff]
    %v122 = vld [vmem:[#allocation5 + $0x18] sm:$0xff]
    %v123 = vld [vmem:[#allocation5 + $0x20] sm:$0xff]
    %v124 = vld [vmem:[#allocation5 + $0x28] sm:$0xff]
    %v125 = vld [vmem:[#allocation5 + $0x30] sm:$0xff]
    %v126 = vld [vmem:[#allocation5 + $0x38] sm:$0xff]
    %v127 = vld [vmem:[#allocation5 + $0x40] sm:$0xff]
    %v128 = vld [vmem:[#allocation5 + $0x48] sm:$0xff]
    %v129 = vld [vmem:[#allocation5 + $0x50] sm:$0xff]
    %v130 = vld [vmem:[#allocation5 + $0x58] sm:$0xff]
    %v131 = vld [vmem:[#allocation5 + $0x60] sm:$0xff]
    %v132 = vld [vmem:[#allocation5 + $0x68] sm:$0xff]
    %v133 = vld [vmem:[#allocation5 + $0x70] sm:$0xff]
    %v134 = vld [vmem:[#allocation5 + $0x78] sm:$0xff]
    %v135 = vld [vmem:[#allocation5 + $0x80] sm:$0xff]
    %v136 = vld [vmem:[#allocation5 + $0x88] sm:$0xff]
    %v137 = vld [vmem:[#allocation5 + $0x90] sm:$0xff]
    %v138 = vld [vmem:[#allocation5 + $0x98] sm:$0xff]
    %v139 = vld [vmem:[#allocation5 + $0xa0] sm:$0xff]
    %v140 = vld [vmem:[#allocation5 + $0xa8] sm:$0xff]
    %v141 = vld [vmem:[#allocation5 + $0xb0] sm:$0xff]
    %v142 = vld [vmem:[#allocation5 + $0xb8] sm:$0xff]
    %v143 = vld [vmem:[#allocation5 + $0xc0] sm:$0xff]
    %v144 = vld [vmem:[#allocation5 + $0xc8] sm:$0xff]
    %v145 = vld [vmem:[#allocation5 + $0xd0] sm:$0xff]
    %v146 = vld [vmem:[#allocation5 + $0xd8] sm:$0xff]
    %v147 = vld [vmem:[#allocation5 + $0xe0] sm:$0xff]
    %v148 = vld [vmem:[#allocation5 + $0xe8] sm:$0xff]
    %v149 = vld [vmem:[#allocation5 + $0xf0] sm:$0xff]
    %v150 = vld [vmem:[#allocation5 + $0xf8] sm:$0xff]
    %v151 = vld [vmem:[#allocation5 + $0x100] sm:$0xff]
    %v152 = vld [vmem:[#allocation5 + $0x108] sm:$0xff]
    %v153 = vld [vmem:[#allocation5 + $0x110] sm:$0xff]
    %v154 = vld [vmem:[#allocation5 + $0x118] sm:$0xff]
    %v155 = vld [vmem:[#allocation5 + $0x120] sm:$0xff]
    %v156 = vld [vmem:[#allocation5 + $0x128] sm:$0xff]
    %v157 = vld [vmem:[#allocation5 + $0x130] sm:$0xff]
    %v158 = vld [vmem:[#allocation5 + $0x138] sm:$0xff]
    %v159 = vld [vmem:[#allocation5 + $0x140] sm:$0xff]
    %v160 = vld [vmem:[#allocation5 + $0x148] sm:$0xff]
    %v161 = vld [vmem:[#allocation5 + $0x150] sm:$0xff]
    %v162 = vld [vmem:[#allocation5 + $0x158] sm:$0xff]
    %v163 = vld [vmem:[#allocation5 + $0x160] sm:$0xff]
    %v164 = vld [vmem:[#allocation5 + $0x168] sm:$0xff]
    %v165 = vld [vmem:[#allocation5 + $0x170] sm:$0xff]
    %v166 = vld [vmem:[#allocation5 + $0x178] sm:$0xff]
    %v167 = vld [vmem:[#allocation5 + $0x180] sm:$0xff]
    %v168 = vld [vmem:[#allocation5 + $0x188] sm:$0xff]
    %v169 = vld [vmem:[#allocation5 + $0x190] sm:$0xff]
    %v170 = vld [vmem:[#allocation5 + $0x198] sm:$0xff]
    %v171 = vld [vmem:[#allocation5 + $0x1a0] sm:$0xff]
    %v172 = vld [vmem:[#allocation5 + $0x1a8] sm:$0xff]
    %v173 = vld [vmem:[#allocation5 + $0x1b0] sm:$0xff]
    %v174 = vld [vmem:[#allocation5 + $0x1b8] sm:$0xff]
    %v175 = vld [vmem:[#allocation5 + $0x1c0] sm:$0xff]
    %v176 = vld [vmem:[#allocation5 + $0x1c8] sm:$0xff]
    %v177 = vld [vmem:[#allocation5 + $0x1d0] sm:$0xff]
    %v178 = vld [vmem:[#allocation5 + $0x1d8] sm:$0xff]
    %v179 = vld [vmem:[#allocation5 + $0x1e0] sm:$0xff]
    %v180 = vld [vmem:[#allocation5 + $0x1e8] sm:$0xff]
    %v181 = vld [vmem:[#allocation5 + $0x1f0] sm:$0xff]
    %v182 = vld [vmem:[#allocation5 + $0x1f8] sm:$0xff]
    %v183 = vld [vmem:[#allocation5 + $0x200] sm:$0xff]
    %v184 = vld [vmem:[#allocation5 + $0x208] sm:$0xff]
    %v185 = vld [vmem:[#allocation5 + $0x210] sm:$0xff]
    %v186 = vld [vmem:[#allocation5 + $0x218] sm:$0xff]
    %v187 = vld [vmem:[#allocation5 + $0x220] sm:$0xff]
    %v188 = vld [vmem:[#allocation5 + $0x228] sm:$0xff]
    %v189 = vld [vmem:[#allocation5 + $0x230] sm:$0xff]
    %v190 = vld [vmem:[#allocation5 + $0x238] sm:$0xff]
    %v191 = vld [vmem:[#allocation7] sm:$0xff]
    %v193 = vlaneseq
    %v194 = vshrl.u32 %v193, 7
    %v195 = vsub.s32 0, %v194
    %v196 = vrot.slane %v191, %v195
    %v197 = vlaneseq
    %v198 = vshrl.u32 %v197, 7
    %v199 = vsub.s32 1, %v198
    %v200 = vrot.slane %v191, %v199
    %v201 = vlaneseq
    %v202 = vshrl.u32 %v201, 7
    %v203 = vsub.s32 2, %v202
    %v204 = vrot.slane %v191, %v203
    %v205 = vlaneseq
    %v206 = vshrl.u32 %v205, 7
    %v207 = vsub.s32 3, %v206
    %v208 = vrot.slane %v191, %v207
    %v209 = vlaneseq
    %v210 = vshrl.u32 %v209, 7
    %v211 = vsub.s32 4, %v210
    %v212 = vrot.slane %v191, %v211
    %v213 = vlaneseq
    %v214 = vshrl.u32 %v213, 7
    %v215 = vsub.s32 5, %v214
    %v216 = vrot.slane %v191, %v215
    %v217 = vlaneseq
    %v218 = vshrl.u32 %v217, 7
    %v219 = vsub.s32 6, %v218
    %v220 = vrot.slane %v191, %v219
    %v221 = vlaneseq
    %v222 = vshrl.u32 %v221, 7
    %v223 = vsub.s32 7, %v222
    %v224 = vrot.slane %v191, %v223
    %v235 = vunpack.c.l.b16 %v117
    %v236 = vunpack.c.h.b16 %v117
    %v237 = vunpack.c.l.b16 %v118
    %v238 = vunpack.c.h.b16 %v118
    %v239 = vpack.c.b16 %v237, %v235
    %v240 = vpack.c.b16 %v238, %v236
    %v314 = vunpack.c.l.b16 %v119
    %v315 = vunpack.c.h.b16 %v119
    %v316 = vunpack.c.l.b16 %v120
    %v317 = vunpack.c.h.b16 %v120
    %v318 = vunpack.c.l.b16 %v121
    %v319 = vunpack.c.h.b16 %v121
    %v320 = vunpack.c.l.b16 %v122
    %v321 = vunpack.c.h.b16 %v122
    %v322 = vunpack.c.l.b16 %v123
    %v323 = vunpack.c.h.b16 %v123
    %v324 = vunpack.c.l.b16 %v124
    %v325 = vunpack.c.h.b16 %v124
    %v326 = vunpack.c.l.b16 %v125
    %v327 = vunpack.c.h.b16 %v125
    %v328 = vunpack.c.l.b16 %v126
    %v329 = vunpack.c.h.b16 %v126
    %v330 = vunpack.c.l.b16 %v127
    %v331 = vunpack.c.h.b16 %v127
    %v332 = vunpack.c.l.b16 %v128
    %v333 = vunpack.c.h.b16 %v128
    %v334 = vunpack.c.l.b16 %v129
    %v335 = vunpack.c.h.b16 %v129
    %v336 = vunpack.c.l.b16 %v130
    %v337 = vunpack.c.h.b16 %v130
    %v338 = vunpack.c.l.b16 %v131
    %v339 = vunpack.c.h.b16 %v131
    %v340 = vunpack.c.l.b16 %v132
    %v341 = vunpack.c.h.b16 %v132
    %v342 = vunpack.c.l.b16 %v133
    %v343 = vunpack.c.h.b16 %v133
    %v344 = vunpack.c.l.b16 %v134
    %v345 = vunpack.c.h.b16 %v134
    %v346 = vunpack.c.l.b16 %v135
    %v347 = vunpack.c.h.b16 %v135
    %v348 = vunpack.c.l.b16 %v136
    %v349 = vunpack.c.h.b16 %v136
    %v350 = vunpack.c.l.b16 %v137
    %v351 = vunpack.c.h.b16 %v137
    %v352 = vunpack.c.l.b16 %v138
    %v353 = vunpack.c.h.b16 %v138
    %v354 = vunpack.c.l.b16 %v139
    %v355 = vunpack.c.h.b16 %v139
    %v356 = vunpack.c.l.b16 %v140
    %v357 = vunpack.c.h.b16 %v140
    %v358 = vunpack.c.l.b16 %v141
    %v359 = vunpack.c.h.b16 %v141
    %v360 = vunpack.c.l.b16 %v142
    %v361 = vunpack.c.h.b16 %v142
    %v362 = vunpack.c.l.b16 %v143
    %v363 = vunpack.c.h.b16 %v143
    %v364 = vunpack.c.l.b16 %v144
    %v365 = vunpack.c.h.b16 %v144
    %v366 = vunpack.c.l.b16 %v145
    %v367 = vunpack.c.h.b16 %v145
    %v368 = vunpack.c.l.b16 %v146
    %v369 = vunpack.c.h.b16 %v146
    %v370 = vunpack.c.l.b16 %v147
    %v371 = vunpack.c.h.b16 %v147
    %v372 = vunpack.c.l.b16 %v148
    %v373 = vunpack.c.h.b16 %v148
    %v374 = vunpack.c.l.b16 %v149
    %v375 = vunpack.c.h.b16 %v149
    %v376 = vunpack.c.l.b16 %v150
    %v377 = vunpack.c.h.b16 %v150
    %v378 = vunpack.c.l.b16 %v151
    %v379 = vunpack.c.h.b16 %v151
    %v380 = vunpack.c.l.b16 %v152
    %v381 = vunpack.c.h.b16 %v152
    %v382 = vunpack.c.l.b16 %v153
    %v383 = vunpack.c.h.b16 %v153
    %v384 = vunpack.c.l.b16 %v154
    %v385 = vunpack.c.h.b16 %v154
    %v386 = vunpack.c.l.b16 %v155
    %v387 = vunpack.c.h.b16 %v155
    %v388 = vunpack.c.l.b16 %v156
    %v389 = vunpack.c.h.b16 %v156
    %v390 = vunpack.c.l.b16 %v157
    %v391 = vunpack.c.h.b16 %v157
    %v392 = vunpack.c.l.b16 %v158
    %v393 = vunpack.c.h.b16 %v158
    %v394 = vunpack.c.l.b16 %v159
    %v395 = vunpack.c.h.b16 %v159
    %v396 = vunpack.c.l.b16 %v160
    %v397 = vunpack.c.h.b16 %v160
    %v398 = vunpack.c.l.b16 %v161
    %v399 = vunpack.c.h.b16 %v161
    %v400 = vunpack.c.l.b16 %v162
    %v401 = vunpack.c.h.b16 %v162
    %v402 = vunpack.c.l.b16 %v163
    %v403 = vunpack.c.h.b16 %v163
    %v404 = vunpack.c.l.b16 %v164
    %v405 = vunpack.c.h.b16 %v164
    %v406 = vunpack.c.l.b16 %v165
    %v407 = vunpack.c.h.b16 %v165
    %v408 = vunpack.c.l.b16 %v166
    %v409 = vunpack.c.h.b16 %v166
    %v410 = vunpack.c.l.b16 %v167
    %v411 = vunpack.c.h.b16 %v167
    %v412 = vunpack.c.l.b16 %v168
    %v413 = vunpack.c.h.b16 %v168
    %v414 = vunpack.c.l.b16 %v169
    %v415 = vunpack.c.h.b16 %v169
    %v416 = vunpack.c.l.b16 %v170
    %v417 = vunpack.c.h.b16 %v170
    %v418 = vunpack.c.l.b16 %v171
    %v419 = vunpack.c.h.b16 %v171
    %v420 = vunpack.c.l.b16 %v172
    %v421 = vunpack.c.h.b16 %v172
    %v422 = vunpack.c.l.b16 %v173
    %v423 = vunpack.c.h.b16 %v173
    %v424 = vunpack.c.l.b16 %v174
    %v425 = vunpack.c.h.b16 %v174
    %v426 = vunpack.c.l.b16 %v175
    %v427 = vunpack.c.h.b16 %v175
    %v428 = vunpack.c.l.b16 %v176
    %v429 = vunpack.c.h.b16 %v176
    %v430 = vunpack.c.l.b16 %v177
    %v431 = vunpack.c.h.b16 %v177
    %v432 = vunpack.c.l.b16 %v178
    %v433 = vunpack.c.h.b16 %v178
    %v434 = vunpack.c.l.b16 %v179
    %v435 = vunpack.c.h.b16 %v179
    %v436 = vunpack.c.l.b16 %v180
    %v437 = vunpack.c.h.b16 %v180
    %v438 = vunpack.c.l.b16 %v181
    %v439 = vunpack.c.h.b16 %v181
    %v440 = vunpack.c.l.b16 %v182
    %v441 = vunpack.c.h.b16 %v182
    %v442 = vunpack.c.l.b16 %v183
    %v443 = vunpack.c.h.b16 %v183
    %v444 = vunpack.c.l.b16 %v184
    %v445 = vunpack.c.h.b16 %v184
    %v446 = vunpack.c.l.b16 %v185
    %v447 = vunpack.c.h.b16 %v185
    %v448 = vunpack.c.l.b16 %v186
    %v449 = vunpack.c.h.b16 %v186
    %v450 = vunpack.c.l.b16 %v187
    %v451 = vunpack.c.h.b16 %v187
    %v452 = vunpack.c.l.b16 %v188
    %v453 = vunpack.c.h.b16 %v188
    %v454 = vunpack.c.l.b16 %v189
    %v455 = vunpack.c.h.b16 %v189
    %v456 = vunpack.c.l.b16 %v190
    %v457 = vunpack.c.h.b16 %v190
    %v458 = vpack.c.b16 %v322, %v314
    %v459 = vpack.c.b16 %v323, %v315
    %v460 = vpack.c.b16 %v324, %v316
    %v461 = vpack.c.b16 %v325, %v317
    %v462 = vpack.c.b16 %v326, %v318
    %v463 = vpack.c.b16 %v327, %v319
    %v464 = vpack.c.b16 %v328, %v320
    %v465 = vpack.c.b16 %v329, %v321
    %v466 = vpack.c.b16 %v338, %v330
    %v467 = vpack.c.b16 %v339, %v331
    %v468 = vpack.c.b16 %v340, %v332
    %v469 = vpack.c.b16 %v341, %v333
    %v470 = vpack.c.b16 %v342, %v334
    %v471 = vpack.c.b16 %v343, %v335
    %v472 = vpack.c.b16 %v344, %v336
    %v473 = vpack.c.b16 %v345, %v337
    %v474 = vpack.c.b16 %v354, %v346
    %v475 = vpack.c.b16 %v355, %v347
    %v476 = vpack.c.b16 %v356, %v348
    %v477 = vpack.c.b16 %v357, %v349
    %v478 = vpack.c.b16 %v358, %v350
    %v479 = vpack.c.b16 %v359, %v351
    %v480 = vpack.c.b16 %v360, %v352
    %v481 = vpack.c.b16 %v361, %v353
    %v482 = vpack.c.b16 %v370, %v362
    %v483 = vpack.c.b16 %v371, %v363
    %v484 = vpack.c.b16 %v372, %v364
    %v485 = vpack.c.b16 %v373, %v365
    %v486 = vpack.c.b16 %v374, %v366
    %v487 = vpack.c.b16 %v375, %v367
    %v488 = vpack.c.b16 %v376, %v368
    %v489 = vpack.c.b16 %v377, %v369
    %v490 = vpack.c.b16 %v386, %v378
    %v491 = vpack.c.b16 %v387, %v379
    %v492 = vpack.c.b16 %v388, %v380
    %v493 = vpack.c.b16 %v389, %v381
    %v494 = vpack.c.b16 %v390, %v382
    %v495 = vpack.c.b16 %v391, %v383
    %v496 = vpack.c.b16 %v392, %v384
    %v497 = vpack.c.b16 %v393, %v385
    %v498 = vpack.c.b16 %v402, %v394
    %v499 = vpack.c.b16 %v403, %v395
    %v500 = vpack.c.b16 %v404, %v396
    %v501 = vpack.c.b16 %v405, %v397
    %v502 = vpack.c.b16 %v406, %v398
    %v503 = vpack.c.b16 %v407, %v399
    %v504 = vpack.c.b16 %v408, %v400
    %v505 = vpack.c.b16 %v409, %v401
    %v506 = vpack.c.b16 %v418, %v410
    %v507 = vpack.c.b16 %v419, %v411
    %v508 = vpack.c.b16 %v420, %v412
    %v509 = vpack.c.b16 %v421, %v413
    %v510 = vpack.c.b16 %v422, %v414
    %v511 = vpack.c.b16 %v423, %v415
    %v512 = vpack.c.b16 %v424, %v416
    %v513 = vpack.c.b16 %v425, %v417
    %v514 = vpack.c.b16 %v434, %v426
    %v515 = vpack.c.b16 %v435, %v427
    %v516 = vpack.c.b16 %v436, %v428
    %v517 = vpack.c.b16 %v437, %v429
    %v518 = vpack.c.b16 %v438, %v430
    %v519 = vpack.c.b16 %v439, %v431
    %v520 = vpack.c.b16 %v440, %v432
    %v521 = vpack.c.b16 %v441, %v433
    %v522 = vpack.c.b16 %v450, %v442
    %v523 = vpack.c.b16 %v451, %v443
    %v524 = vpack.c.b16 %v452, %v444
    %v525 = vpack.c.b16 %v453, %v445
    %v526 = vpack.c.b16 %v454, %v446
    %v527 = vpack.c.b16 %v455, %v447
    %v528 = vpack.c.b16 %v456, %v448
    %v529 = vpack.c.b16 %v457, %v449
    %vm602 = vcmask 130048
    %v604 = vsel %vm602, %v240, 0
    %606 = vmatprep.subr.bf16.mxu0 %v459
    %607 = vmatpush1.bf16.msra.mxu0 %v458
    %608 = vmatprep.subr.bf16.mxu0 %v467
    %609 = vmatpush1.bf16.msra.mxu0 %v466
    %610 = vmatprep.subr.bf16.mxu0 %v475
    %611 = vmatpush1.bf16.msra.mxu0 %v474
    %612 = vmatprep.subr.bf16.mxu0 %v483
    %613 = vmatpush1.bf16.msra.mxu0 %v482
    %614 = vmatprep.subr.bf16.mxu0 %v491
    %615 = vmatpush1.bf16.msra.mxu0 %v490
    %616 = vmatprep.subr.bf16.mxu0 %v499
    %617 = vmatpush1.bf16.msra.mxu0 %v498
    %618 = vmatprep.subr.bf16.mxu0 %v507
    %619 = vmatpush1.bf16.msra.mxu0 %v506
    %620 = vmatprep.subr.bf16.mxu0 %v515
    %621 = vmatpush1.bf16.msra.mxu0 %v514
    %622 = vmatprep.subr.bf16.mxu0 %v523
    %623 = vmatpush1.bf16.msra.mxu0 %v522
    %624 = vmatprep.subr.bf16.mxu0 0
    %625 = vmatpush1.bf16.msra.mxu0 0
    %626 = vmatprep.subr.bf16.mxu0 0
    %627 = vmatpush1.bf16.msra.mxu0 0
    %628 = vmatprep.subr.bf16.mxu0 0
    %629 = vmatpush1.bf16.msra.mxu0 0
    %630 = vmatprep.subr.bf16.mxu0 0
    %631 = vmatpush1.bf16.msra.mxu0 0
    %632 = vmatprep.subr.bf16.mxu0 0
    %633 = vmatpush1.bf16.msra.mxu0 0
    %634 = vmatprep.subr.bf16.mxu0 0
    %635 = vmatpush1.bf16.msra.mxu0 0
    %636 = vmatprep.subr.bf16.mxu0 0
    %637 = vmatpush1.bf16.msra.mxu0 0
    %638 = vmatprep.mubr.bf16.mxu0 %v604
    %639 = vmatmul.mubr.bf16.gmra.mrb[0].mxu0 %v239
    %v640 = vpop.f32.mrb[0].mxu0
    %v641 = vadd.f32 %v196, %v640
    %v642 = vpop.f32.mrb[0].mxu0
    %v643 = vadd.f32 %v200, %v642
    %v644 = vpop.f32.mrb[0].mxu0
    %v645 = vadd.f32 %v196, %v644
    %v646 = vpop.f32.mrb[0].mxu0
    %v647 = vadd.f32 %v200, %v646
    %648 = vdwg.mxu0
    %649 = vmatprep.subr.bf16.mxu0 %v461
    %650 = vmatpush1.bf16.msra.mxu0 %v460
    %651 = vmatprep.subr.bf16.mxu0 %v469
    %652 = vmatpush1.bf16.msra.mxu0 %v468
    %653 = vmatprep.subr.bf16.mxu0 %v477
    %654 = vmatpush1.bf16.msra.mxu0 %v476
    %655 = vmatprep.subr.bf16.mxu0 %v485
    %656 = vmatpush1.bf16.msra.mxu0 %v484
    %657 = vmatprep.subr.bf16.mxu0 %v493
    %658 = vmatpush1.bf16.msra.mxu0 %v492
    %659 = vmatprep.subr.bf16.mxu0 %v501
    %660 = vmatpush1.bf16.msra.mxu0 %v500
    %661 = vmatprep.subr.bf16.mxu0 %v509
    %662 = vmatpush1.bf16.msra.mxu0 %v508
    %663 = vmatprep.subr.bf16.mxu0 %v517
    %664 = vmatpush1.bf16.msra.mxu0 %v516
    %665 = vmatprep.subr.bf16.mxu0 %v525
    %666 = vmatpush1.bf16.msra.mxu0 %v524
    %667 = vmatprep.subr.bf16.mxu0 0
    %668 = vmatpush1.bf16.msra.mxu0 0
    %669 = vmatprep.subr.bf16.mxu0 0
    %670 = vmatpush1.bf16.msra.mxu0 0
    %671 = vmatprep.subr.bf16.mxu0 0
    %672 = vmatpush1.bf16.msra.mxu0 0
    %673 = vmatprep.subr.bf16.mxu0 0
    %674 = vmatpush1.bf16.msra.mxu0 0
    %675 = vmatprep.subr.bf16.mxu0 0
    %676 = vmatpush1.bf16.msra.mxu0 0
    %677 = vmatprep.subr.bf16.mxu0 0
    %678 = vmatpush1.bf16.msra.mxu0 0
    %679 = vmatprep.subr.bf16.mxu0 0
    %680 = vmatpush1.bf16.msra.mxu0 0
    %681 = vmatprep.mubr.bf16.mxu0 %v604
    %682 = vmatmul.mubr.bf16.gmra.mrb[0].mxu0 %v239
    %v683 = vpop.f32.mrb[0].mxu0
    %v684 = vadd.f32 %v204, %v683
    %v685 = vpop.f32.mrb[0].mxu0
    %v686 = vadd.f32 %v208, %v685
    %v687 = vpop.f32.mrb[0].mxu0
    %v688 = vadd.f32 %v204, %v687
    %v689 = vpop.f32.mrb[0].mxu0
    %v690 = vadd.f32 %v208, %v689
    %691 = vdwg.mxu0
    %692 = vmatprep.subr.bf16.mxu0 %v463
    %693 = vmatpush1.bf16.msra.mxu0 %v462
    %694 = vmatprep.subr.bf16.mxu0 %v471
    %695 = vmatpush1.bf16.msra.mxu0 %v470
    %696 = vmatprep.subr.bf16.mxu0 %v479
    %697 = vmatpush1.bf16.msra.mxu0 %v478
    %698 = vmatprep.subr.bf16.mxu0 %v487
    %699 = vmatpush1.bf16.msra.mxu0 %v486
    %700 = vmatprep.subr.bf16.mxu0 %v495
    %701 = vmatpush1.bf16.msra.mxu0 %v494
    %702 = vmatprep.subr.bf16.mxu0 %v503
    %703 = vmatpush1.bf16.msra.mxu0 %v502
    %704 = vmatprep.subr.bf16.mxu0 %v511
    %705 = vmatpush1.bf16.msra.mxu0 %v510
    %706 = vmatprep.subr.bf16.mxu0 %v519
    %707 = vmatpush1.bf16.msra.mxu0 %v518
    %708 = vmatprep.subr.bf16.mxu0 %v527
    %709 = vmatpush1.bf16.msra.mxu0 %v526
    %710 = vmatprep.subr.bf16.mxu0 0
    %711 = vmatpush1.bf16.msra.mxu0 0
    %712 = vmatprep.subr.bf16.mxu0 0
    %713 = vmatpush1.bf16.msra.mxu0 0
    %714 = vmatprep.subr.bf16.mxu0 0
    %715 = vmatpush1.bf16.msra.mxu0 0
    %716 = vmatprep.subr.bf16.mxu0 0
    %717 = vmatpush1.bf16.msra.mxu0 0
    %718 = vmatprep.subr.bf16.mxu0 0
    %719 = vmatpush1.bf16.msra.mxu0 0
    %720 = vmatprep.subr.bf16.mxu0 0
    %721 = vmatpush1.bf16.msra.mxu0 0
    %722 = vmatprep.subr.bf16.mxu0 0
    %723 = vmatpush1.bf16.msra.mxu0 0
    %724 = vmatprep.mubr.bf16.mxu0 %v604
    %725 = vmatmul.mubr.bf16.gmra.mrb[0].mxu0 %v239
    %v726 = vpop.f32.mrb[0].mxu0
    %v727 = vadd.f32 %v212, %v726
    %v728 = vpop.f32.mrb[0].mxu0
    %v729 = vadd.f32 %v216, %v728
    %v730 = vpop.f32.mrb[0].mxu0
    %v731 = vadd.f32 %v212, %v730
    %v732 = vpop.f32.mrb[0].mxu0
    %v733 = vadd.f32 %v216, %v732
    %734 = vdwg.mxu0
    %735 = vmatprep.subr.bf16.mxu0 %v465
    %736 = vmatpush1.bf16.msra.mxu0 %v464
    %737 = vmatprep.subr.bf16.mxu0 %v473
    %738 = vmatpush1.bf16.msra.mxu0 %v472
    %739 = vmatprep.subr.bf16.mxu0 %v481
    %740 = vmatpush1.bf16.msra.mxu0 %v480
    %741 = vmatprep.subr.bf16.mxu0 %v489
    %742 = vmatpush1.bf16.msra.mxu0 %v488
    %743 = vmatprep.subr.bf16.mxu0 %v497
    %744 = vmatpush1.bf16.msra.mxu0 %v496
    %745 = vmatprep.subr.bf16.mxu0 %v505
    %746 = vmatpush1.bf16.msra.mxu0 %v504
    %747 = vmatprep.subr.bf16.mxu0 %v513
    %748 = vmatpush1.bf16.msra.mxu0 %v512
    %749 = vmatprep.subr.bf16.mxu0 %v521
    %750 = vmatpush1.bf16.msra.mxu0 %v520
    %751 = vmatprep.subr.bf16.mxu0 %v529
    %752 = vmatpush1.bf16.msra.mxu0 %v528
    %753 = vmatprep.subr.bf16.mxu0 0
    %754 = vmatpush1.bf16.msra.mxu0 0
    %755 = vmatprep.subr.bf16.mxu0 0
    %756 = vmatpush1.bf16.msra.mxu0 0
    %757 = vmatprep.subr.bf16.mxu0 0
    %758 = vmatpush1.bf16.msra.mxu0 0
    %759 = vmatprep.subr.bf16.mxu0 0
    %760 = vmatpush1.bf16.msra.mxu0 0
    %761 = vmatprep.subr.bf16.mxu0 0
    %762 = vmatpush1.bf16.msra.mxu0 0
    %763 = vmatprep.subr.bf16.mxu0 0
    %764 = vmatpush1.bf16.msra.mxu0 0
    %765 = vmatprep.subr.bf16.mxu0 0
    %766 = vmatpush1.bf16.msra.mxu0 0
    %767 = vmatprep.mubr.bf16.mxu0 %v604
    %768 = vmatmul.mubr.bf16.gmra.mrb[0].mxu0 %v239
    %v769 = vpop.f32.mrb[0].mxu0
    %v770 = vadd.f32 %v220, %v769
    %v771 = vpop.f32.mrb[0].mxu0
    %v772 = vadd.f32 %v224, %v771
    %v773 = vpop.f32.mrb[0].mxu0
    %v774 = vadd.f32 %v220, %v773
    %v775 = vpop.f32.mrb[0].mxu0
    %v776 = vadd.f32 %v224, %v775
    %777 = vdwg.mxu0
    %v778 = vmul.f32 %v641, 0.01
    %v779 = vmul.f32 %v643, 0.01
    %v780 = vmul.f32 %v684, 0.01
    %v781 = vmul.f32 %v686, 0.01
    %v782 = vmul.f32 %v727, 0.01
    %v783 = vmul.f32 %v729, 0.01
    %v784 = vmul.f32 %v770, 0.01
    %v785 = vmul.f32 %v772, 0.01
    %v786 = vmul.f32 %v645, 0.01
    %v787 = vmul.f32 %v647, 0.01
    %v788 = vmul.f32 %v688, 0.01
    %v789 = vmul.f32 %v690, 0.01
    %v790 = vmul.f32 %v731, 0.01
    %v791 = vmul.f32 %v733, 0.01
    %v792 = vmul.f32 %v774, 0.01
    %v793 = vmul.f32 %v776, 0.01
    %v794 = vmax.f32 %v641, %v778
    %v795 = vmax.f32 %v643, %v779
    %v796 = vmax.f32 %v684, %v780
    %v797 = vmax.f32 %v686, %v781
    %v798 = vmax.f32 %v727, %v782
    %v799 = vmax.f32 %v729, %v783
    %v800 = vmax.f32 %v770, %v784
    %v801 = vmax.f32 %v772, %v785
    %v802 = vmax.f32 %v645, %v786
    %v803 = vmax.f32 %v647, %v787
    %v804 = vmax.f32 %v688, %v788
    %v805 = vmax.f32 %v690, %v789
    %v806 = vmax.f32 %v731, %v790
    %v807 = vmax.f32 %v733, %v791
    %v808 = vmax.f32 %v774, %v792
    %v809 = vmax.f32 %v776, %v793
    %v810 = vpack.c.bf16 %v802, %v794
    %v811 = vpack.c.bf16 %v803, %v795
    %v812 = vpack.c.bf16 %v804, %v796
    %v813 = vpack.c.bf16 %v805, %v797
    %v814 = vpack.c.bf16 %v806, %v798
    %v815 = vpack.c.bf16 %v807, %v799
    %v816 = vpack.c.bf16 %v808, %v800
    %v817 = vpack.c.bf16 %v809, %v801
    %v818 = vld [vmem:[#allocation8] sm:$0xff]
    %v819 = vld [vmem:[#allocation8 + $0x8] sm:$0xff]
    %v820 = vld [vmem:[#allocation8 + $0x10] sm:$0xff]
    %v821 = vld [vmem:[#allocation8 + $0x18] sm:$0xff]
    %v822 = vld [vmem:[#allocation8 + $0x20] sm:$0xff]
    %v823 = vld [vmem:[#allocation8 + $0x28] sm:$0xff]
    %v824 = vld [vmem:[#allocation8 + $0x30] sm:$0xff]
    %v825 = vld [vmem:[#allocation8 + $0x38] sm:$0xff]
    %v826 = vld [vmem:[#allocation8 + $0x40] sm:$0xff]
    %v827 = vld [vmem:[#allocation8 + $0x48] sm:$0xff]
    %v828 = vld [vmem:[#allocation8 + $0x50] sm:$0xff]
    %v829 = vld [vmem:[#allocation8 + $0x58] sm:$0xff]
    %v830 = vld [vmem:[#allocation8 + $0x60] sm:$0xff]
    %v831 = vld [vmem:[#allocation8 + $0x68] sm:$0xff]
    %v832 = vld [vmem:[#allocation8 + $0x70] sm:$0xff]
    %v833 = vld [vmem:[#allocation8 + $0x78] sm:$0xff]
    %v834 = vld [vmem:[#allocation8 + $0x80] sm:$0xff]
    %v835 = vld [vmem:[#allocation8 + $0x88] sm:$0xff]
    %v836 = vld [vmem:[#allocation8 + $0x90] sm:$0xff]
    %v837 = vld [vmem:[#allocation8 + $0x98] sm:$0xff]
    %v838 = vld [vmem:[#allocation8 + $0xa0] sm:$0xff]
    %v839 = vld [vmem:[#allocation8 + $0xa8] sm:$0xff]
    %v840 = vld [vmem:[#allocation8 + $0xb0] sm:$0xff]
    %v841 = vld [vmem:[#allocation8 + $0xb8] sm:$0xff]
    %v842 = vld [vmem:[#allocation8 + $0xc0] sm:$0xff]
    %v843 = vld [vmem:[#allocation8 + $0xc8] sm:$0xff]
    %v844 = vld [vmem:[#allocation8 + $0xd0] sm:$0xff]
    %v845 = vld [vmem:[#allocation8 + $0xd8] sm:$0xff]
    %v846 = vld [vmem:[#allocation8 + $0xe0] sm:$0xff]
    %v847 = vld [vmem:[#allocation8 + $0xe8] sm:$0xff]
    %v848 = vld [vmem:[#allocation8 + $0xf0] sm:$0xff]
    %v849 = vld [vmem:[#allocation8 + $0xf8] sm:$0xff]
    %v850 = vld [vmem:[#allocation8 + $0x100] sm:$0xff]
    %v851 = vld [vmem:[#allocation8 + $0x108] sm:$0xff]
    %v852 = vld [vmem:[#allocation8 + $0x110] sm:$0xff]
    %v853 = vld [vmem:[#allocation8 + $0x118] sm:$0xff]
    %v854 = vld [vmem:[#allocation8 + $0x120] sm:$0xff]
    %v855 = vld [vmem:[#allocation8 + $0x128] sm:$0xff]
    %v856 = vld [vmem:[#allocation8 + $0x130] sm:$0xff]
    %v857 = vld [vmem:[#allocation8 + $0x138] sm:$0xff]
    %v858 = vld [vmem:[#allocation8 + $0x140] sm:$0xff]
    %v859 = vld [vmem:[#allocation8 + $0x148] sm:$0xff]
    %v860 = vld [vmem:[#allocation8 + $0x150] sm:$0xff]
    %v861 = vld [vmem:[#allocation8 + $0x158] sm:$0xff]
    %v862 = vld [vmem:[#allocation8 + $0x160] sm:$0xff]
    %v863 = vld [vmem:[#allocation8 + $0x168] sm:$0xff]
    %v864 = vld [vmem:[#allocation8 + $0x170] sm:$0xff]
    %v865 = vld [vmem:[#allocation8 + $0x178] sm:$0xff]
    %v866 = vld [vmem:[#allocation8 + $0x180] sm:$0xff]
    %v867 = vld [vmem:[#allocation8 + $0x188] sm:$0xff]
    %v868 = vld [vmem:[#allocation8 + $0x190] sm:$0xff]
    %v869 = vld [vmem:[#allocation8 + $0x198] sm:$0xff]
    %v870 = vld [vmem:[#allocation8 + $0x1a0] sm:$0xff]
    %v871 = vld [vmem:[#allocation8 + $0x1a8] sm:$0xff]
    %v872 = vld [vmem:[#allocation8 + $0x1b0] sm:$0xff]
    %v873 = vld [vmem:[#allocation8 + $0x1b8] sm:$0xff]
    %v874 = vld [vmem:[#allocation8 + $0x1c0] sm:$0xff]
    %v875 = vld [vmem:[#allocation8 + $0x1c8] sm:$0xff]
    %v876 = vld [vmem:[#allocation8 + $0x1d0] sm:$0xff]
    %v877 = vld [vmem:[#allocation8 + $0x1d8] sm:$0xff]
    %v878 = vld [vmem:[#allocation8 + $0x1e0] sm:$0xff]
    %v879 = vld [vmem:[#allocation8 + $0x1e8] sm:$0xff]
    %v880 = vld [vmem:[#allocation8 + $0x1f0] sm:$0xff]
    %v881 = vld [vmem:[#allocation8 + $0x1f8] sm:$0xff]
    %v882 = vld [vmem:[#allocation8 + $0x200] sm:$0xff]
    %v883 = vld [vmem:[#allocation8 + $0x208] sm:$0xff]
    %v884 = vld [vmem:[#allocation8 + $0x210] sm:$0xff]
    %v885 = vld [vmem:[#allocation8 + $0x218] sm:$0xff]
    %v886 = vld [vmem:[#allocation8 + $0x220] sm:$0xff]
    %v887 = vld [vmem:[#allocation8 + $0x228] sm:$0xff]
    %v888 = vld [vmem:[#allocation8 + $0x230] sm:$0xff]
    %v889 = vld [vmem:[#allocation8 + $0x238] sm:$0xff]
    %v890 = vld [vmem:[#allocation8 + $0x240] sm:$0xff]
    %v891 = vld [vmem:[#allocation8 + $0x248] sm:$0xff]
    %v892 = vld [vmem:[#allocation8 + $0x250] sm:$0xff]
    %v893 = vld [vmem:[#allocation8 + $0x258] sm:$0xff]
    %v894 = vld [vmem:[#allocation8 + $0x260] sm:$0xff]
    %v895 = vld [vmem:[#allocation8 + $0x268] sm:$0xff]
    %v896 = vld [vmem:[#allocation8 + $0x270] sm:$0xff]
    %v897 = vld [vmem:[#allocation8 + $0x278] sm:$0xff]
    %v898 = vld [vmem:[#allocation8 + $0x280] sm:$0xff]
    %v899 = vld [vmem:[#allocation8 + $0x288] sm:$0xff]
    %v900 = vld [vmem:[#allocation8 + $0x290] sm:$0xff]
    %v901 = vld [vmem:[#allocation8 + $0x298] sm:$0xff]
    %v902 = vld [vmem:[#allocation8 + $0x2a0] sm:$0xff]
    %v903 = vld [vmem:[#allocation8 + $0x2a8] sm:$0xff]
    %v904 = vld [vmem:[#allocation8 + $0x2b0] sm:$0xff]
    %v905 = vld [vmem:[#allocation8 + $0x2b8] sm:$0xff]
    %v906 = vld [vmem:[#allocation8 + $0x2c0] sm:$0xff]
    %v907 = vld [vmem:[#allocation8 + $0x2c8] sm:$0xff]
    %v908 = vld [vmem:[#allocation8 + $0x2d0] sm:$0xff]
    %v909 = vld [vmem:[#allocation8 + $0x2d8] sm:$0xff]
    %v910 = vld [vmem:[#allocation8 + $0x2e0] sm:$0xff]
    %v911 = vld [vmem:[#allocation8 + $0x2e8] sm:$0xff]
    %v912 = vld [vmem:[#allocation8 + $0x2f0] sm:$0xff]
    %v913 = vld [vmem:[#allocation8 + $0x2f8] sm:$0xff]
    %v914 = vld [vmem:[#allocation8 + $0x300] sm:$0xff]
    %v915 = vld [vmem:[#allocation8 + $0x308] sm:$0xff]
    %v916 = vld [vmem:[#allocation8 + $0x310] sm:$0xff]
    %v917 = vld [vmem:[#allocation8 + $0x318] sm:$0xff]
    %v918 = vld [vmem:[#allocation8 + $0x320] sm:$0xff]
    %v919 = vld [vmem:[#allocation8 + $0x328] sm:$0xff]
    %v920 = vld [vmem:[#allocation8 + $0x330] sm:$0xff]
    %v921 = vld [vmem:[#allocation8 + $0x338] sm:$0xff]
    %v922 = vld [vmem:[#allocation8 + $0x340] sm:$0xff]
    %v923 = vld [vmem:[#allocation8 + $0x348] sm:$0xff]
    %v924 = vld [vmem:[#allocation8 + $0x350] sm:$0xff]
    %v925 = vld [vmem:[#allocation8 + $0x358] sm:$0xff]
    %v926 = vld [vmem:[#allocation8 + $0x360] sm:$0xff]
    %v927 = vld [vmem:[#allocation8 + $0x368] sm:$0xff]
    %v928 = vld [vmem:[#allocation8 + $0x370] sm:$0xff]
    %v929 = vld [vmem:[#allocation8 + $0x378] sm:$0xff]
    %v930 = vld [vmem:[#allocation8 + $0x380] sm:$0xff]
    %v931 = vld [vmem:[#allocation8 + $0x388] sm:$0xff]
    %v932 = vld [vmem:[#allocation8 + $0x390] sm:$0xff]
    %v933 = vld [vmem:[#allocation8 + $0x398] sm:$0xff]
    %v934 = vld [vmem:[#allocation8 + $0x3a0] sm:$0xff]
    %v935 = vld [vmem:[#allocation8 + $0x3a8] sm:$0xff]
    %v936 = vld [vmem:[#allocation8 + $0x3b0] sm:$0xff]
    %v937 = vld [vmem:[#allocation8 + $0x3b8] sm:$0xff]
    %v938 = vld [vmem:[#allocation8 + $0x3c0] sm:$0xff]
    %v939 = vld [vmem:[#allocation8 + $0x3c8] sm:$0xff]
    %v940 = vld [vmem:[#allocation8 + $0x3d0] sm:$0xff]
    %v941 = vld [vmem:[#allocation8 + $0x3d8] sm:$0xff]
    %v942 = vld [vmem:[#allocation8 + $0x3e0] sm:$0xff]
    %v943 = vld [vmem:[#allocation8 + $0x3e8] sm:$0xff]
    %v944 = vld [vmem:[#allocation8 + $0x3f0] sm:$0xff]
    %v945 = vld [vmem:[#allocation8 + $0x3f8] sm:$0xff]
    %v946 = vld [vmem:[#allocation8 + $0x400] sm:$0xff]
    %v947 = vld [vmem:[#allocation8 + $0x408] sm:$0xff]
    %v948 = vld [vmem:[#allocation8 + $0x410] sm:$0xff]
    %v949 = vld [vmem:[#allocation8 + $0x418] sm:$0xff]
    %v950 = vld [vmem:[#allocation8 + $0x420] sm:$0xff]
    %v951 = vld [vmem:[#allocation8 + $0x428] sm:$0xff]
    %v952 = vld [vmem:[#allocation8 + $0x430] sm:$0xff]
    %v953 = vld [vmem:[#allocation8 + $0x438] sm:$0xff]
    %v954 = vld [vmem:[#allocation8 + $0x440] sm:$0xff]
    %v955 = vld [vmem:[#allocation8 + $0x448] sm:$0xff]
    %v956 = vld [vmem:[#allocation8 + $0x450] sm:$0xff]
    %v957 = vld [vmem:[#allocation8 + $0x458] sm:$0xff]
    %v958 = vld [vmem:[#allocation8 + $0x460] sm:$0xff]
    %v959 = vld [vmem:[#allocation8 + $0x468] sm:$0xff]
    %v960 = vld [vmem:[#allocation8 + $0x470] sm:$0xff]
    %v961 = vld [vmem:[#allocation8 + $0x478] sm:$0xff]
    %v962 = vld [vmem:[#allocation8 + $0x480] sm:$0xff]
    %v963 = vld [vmem:[#allocation8 + $0x488] sm:$0xff]
    %v964 = vld [vmem:[#allocation8 + $0x490] sm:$0xff]
    %v965 = vld [vmem:[#allocation8 + $0x498] sm:$0xff]
    %v966 = vld [vmem:[#allocation8 + $0x4a0] sm:$0xff]
    %v967 = vld [vmem:[#allocation8 + $0x4a8] sm:$0xff]
    %v968 = vld [vmem:[#allocation8 + $0x4b0] sm:$0xff]
    %v969 = vld [vmem:[#allocation8 + $0x4b8] sm:$0xff]
    %v970 = vld [vmem:[#allocation8 + $0x4c0] sm:$0xff]
    %v971 = vld [vmem:[#allocation8 + $0x4c8] sm:$0xff]
    %v972 = vld [vmem:[#allocation8 + $0x4d0] sm:$0xff]
    %v973 = vld [vmem:[#allocation8 + $0x4d8] sm:$0xff]
    %v974 = vld [vmem:[#allocation8 + $0x4e0] sm:$0xff]
    %v975 = vld [vmem:[#allocation8 + $0x4e8] sm:$0xff]
    %v976 = vld [vmem:[#allocation8 + $0x4f0] sm:$0xff]
    %v977 = vld [vmem:[#allocation8 + $0x4f8] sm:$0xff]
    %v978 = vld [vmem:[#allocation8 + $0x500] sm:$0xff]
    %v979 = vld [vmem:[#allocation8 + $0x508] sm:$0xff]
    %v980 = vld [vmem:[#allocation8 + $0x510] sm:$0xff]
    %v981 = vld [vmem:[#allocation8 + $0x518] sm:$0xff]
    %v982 = vld [vmem:[#allocation8 + $0x520] sm:$0xff]
    %v983 = vld [vmem:[#allocation8 + $0x528] sm:$0xff]
    %v984 = vld [vmem:[#allocation8 + $0x530] sm:$0xff]
    %v985 = vld [vmem:[#allocation8 + $0x538] sm:$0xff]
    %v986 = vld [vmem:[#allocation8 + $0x540] sm:$0xff]
    %v987 = vld [vmem:[#allocation8 + $0x548] sm:$0xff]
    %v988 = vld [vmem:[#allocation8 + $0x550] sm:$0xff]
    %v989 = vld [vmem:[#allocation8 + $0x558] sm:$0xff]
    %v990 = vld [vmem:[#allocation8 + $0x560] sm:$0xff]
    %v991 = vld [vmem:[#allocation8 + $0x568] sm:$0xff]
    %v992 = vld [vmem:[#allocation8 + $0x570] sm:$0xff]
    %v993 = vld [vmem:[#allocation8 + $0x578] sm:$0xff]
    %v994 = vld [vmem:[#allocation8 + $0x580] sm:$0xff]
    %v995 = vld [vmem:[#allocation8 + $0x588] sm:$0xff]
    %v996 = vld [vmem:[#allocation8 + $0x590] sm:$0xff]
    %v997 = vld [vmem:[#allocation8 + $0x598] sm:$0xff]
    %v998 = vld [vmem:[#allocation8 + $0x5a0] sm:$0xff]
    %v999 = vld [vmem:[#allocation8 + $0x5a8] sm:$0xff]
    %v1000 = vld [vmem:[#allocation8 + $0x5b0] sm:$0xff]
    %v1001 = vld [vmem:[#allocation8 + $0x5b8] sm:$0xff]
    %v1002 = vld [vmem:[#allocation8 + $0x5c0] sm:$0xff]
    %v1003 = vld [vmem:[#allocation8 + $0x5c8] sm:$0xff]
    %v1004 = vld [vmem:[#allocation8 + $0x5d0] sm:$0xff]
    %v1005 = vld [vmem:[#allocation8 + $0x5d8] sm:$0xff]
    %v1006 = vld [vmem:[#allocation8 + $0x5e0] sm:$0xff]
    %v1007 = vld [vmem:[#allocation8 + $0x5e8] sm:$0xff]
    %v1008 = vld [vmem:[#allocation8 + $0x5f0] sm:$0xff]
    %v1009 = vld [vmem:[#allocation8 + $0x5f8] sm:$0xff]
    %v1010 = vld [vmem:[#allocation8 + $0x600] sm:$0xff]
    %v1011 = vld [vmem:[#allocation8 + $0x608] sm:$0xff]
    %v1012 = vld [vmem:[#allocation8 + $0x610] sm:$0xff]
    %v1013 = vld [vmem:[#allocation8 + $0x618] sm:$0xff]
    %v1014 = vld [vmem:[#allocation8 + $0x620] sm:$0xff]
    %v1015 = vld [vmem:[#allocation8 + $0x628] sm:$0xff]
    %v1016 = vld [vmem:[#allocation8 + $0x630] sm:$0xff]
    %v1017 = vld [vmem:[#allocation8 + $0x638] sm:$0xff]
    %v1018 = vld [vmem:[#allocation8 + $0x640] sm:$0xff]
    %v1019 = vld [vmem:[#allocation8 + $0x648] sm:$0xff]
    %v1020 = vld [vmem:[#allocation8 + $0x650] sm:$0xff]
    %v1021 = vld [vmem:[#allocation8 + $0x658] sm:$0xff]
    %v1022 = vld [vmem:[#allocation8 + $0x660] sm:$0xff]
    %v1023 = vld [vmem:[#allocation8 + $0x668] sm:$0xff]
    %v1024 = vld [vmem:[#allocation8 + $0x670] sm:$0xff]
    %v1025 = vld [vmem:[#allocation8 + $0x678] sm:$0xff]
    %v1026 = vld [vmem:[#allocation8 + $0x680] sm:$0xff]
    %v1027 = vld [vmem:[#allocation8 + $0x688] sm:$0xff]
    %v1028 = vld [vmem:[#allocation8 + $0x690] sm:$0xff]
    %v1029 = vld [vmem:[#allocation8 + $0x698] sm:$0xff]
    %v1030 = vld [vmem:[#allocation8 + $0x6a0] sm:$0xff]
    %v1031 = vld [vmem:[#allocation8 + $0x6a8] sm:$0xff]
    %v1032 = vld [vmem:[#allocation8 + $0x6b0] sm:$0xff]
    %v1033 = vld [vmem:[#allocation8 + $0x6b8] sm:$0xff]
    %v1034 = vld [vmem:[#allocation8 + $0x6c0] sm:$0xff]
    %v1035 = vld [vmem:[#allocation8 + $0x6c8] sm:$0xff]
    %v1036 = vld [vmem:[#allocation8 + $0x6d0] sm:$0xff]
    %v1037 = vld [vmem:[#allocation8 + $0x6d8] sm:$0xff]
    %v1038 = vld [vmem:[#allocation8 + $0x6e0] sm:$0xff]
    %v1039 = vld [vmem:[#allocation8 + $0x6e8] sm:$0xff]
    %v1040 = vld [vmem:[#allocation8 + $0x6f0] sm:$0xff]
    %v1041 = vld [vmem:[#allocation8 + $0x6f8] sm:$0xff]
    %v1042 = vld [vmem:[#allocation8 + $0x700] sm:$0xff]
    %v1043 = vld [vmem:[#allocation8 + $0x708] sm:$0xff]
    %v1044 = vld [vmem:[#allocation8 + $0x710] sm:$0xff]
    %v1045 = vld [vmem:[#allocation8 + $0x718] sm:$0xff]
    %v1046 = vld [vmem:[#allocation8 + $0x720] sm:$0xff]
    %v1047 = vld [vmem:[#allocation8 + $0x728] sm:$0xff]
    %v1048 = vld [vmem:[#allocation8 + $0x730] sm:$0xff]
    %v1049 = vld [vmem:[#allocation8 + $0x738] sm:$0xff]
    %v1050 = vld [vmem:[#allocation8 + $0x740] sm:$0xff]
    %v1051 = vld [vmem:[#allocation8 + $0x748] sm:$0xff]
    %v1052 = vld [vmem:[#allocation8 + $0x750] sm:$0xff]
    %v1053 = vld [vmem:[#allocation8 + $0x758] sm:$0xff]
    %v1054 = vld [vmem:[#allocation8 + $0x760] sm:$0xff]
    %v1055 = vld [vmem:[#allocation8 + $0x768] sm:$0xff]
    %v1056 = vld [vmem:[#allocation8 + $0x770] sm:$0xff]
    %v1057 = vld [vmem:[#allocation8 + $0x778] sm:$0xff]
    %v1058 = vld [vmem:[#allocation8 + $0x780] sm:$0xff]
    %v1059 = vld [vmem:[#allocation8 + $0x788] sm:$0xff]
    %v1060 = vld [vmem:[#allocation8 + $0x790] sm:$0xff]
    %v1061 = vld [vmem:[#allocation8 + $0x798] sm:$0xff]
    %v1062 = vld [vmem:[#allocation8 + $0x7a0] sm:$0xff]
    %v1063 = vld [vmem:[#allocation8 + $0x7a8] sm:$0xff]
    %v1064 = vld [vmem:[#allocation8 + $0x7b0] sm:$0xff]
    %v1065 = vld [vmem:[#allocation8 + $0x7b8] sm:$0xff]
    %v1066 = vld [vmem:[#allocation8 + $0x7c0] sm:$0xff]
    %v1067 = vld [vmem:[#allocation8 + $0x7c8] sm:$0xff]
    %v1068 = vld [vmem:[#allocation8 + $0x7d0] sm:$0xff]
    %v1069 = vld [vmem:[#allocation8 + $0x7d8] sm:$0xff]
    %v1070 = vld [vmem:[#allocation8 + $0x7e0] sm:$0xff]
    %v1071 = vld [vmem:[#allocation8 + $0x7e8] sm:$0xff]
    %v1072 = vld [vmem:[#allocation8 + $0x7f0] sm:$0xff]
    %v1073 = vld [vmem:[#allocation8 + $0x7f8] sm:$0xff]
    %v1074 = vld [vmem:[#allocation8 + $0x800] sm:$0xff]
    %v1075 = vld [vmem:[#allocation8 + $0x808] sm:$0xff]
    %v1076 = vld [vmem:[#allocation8 + $0x810] sm:$0xff]
    %v1077 = vld [vmem:[#allocation8 + $0x818] sm:$0xff]
    %v1078 = vld [vmem:[#allocation8 + $0x820] sm:$0xff]
    %v1079 = vld [vmem:[#allocation8 + $0x828] sm:$0xff]
    %v1080 = vld [vmem:[#allocation8 + $0x830] sm:$0xff]
    %v1081 = vld [vmem:[#allocation8 + $0x838] sm:$0xff]
    %v1082 = vld [vmem:[#allocation8 + $0x840] sm:$0xff]
    %v1083 = vld [vmem:[#allocation8 + $0x848] sm:$0xff]
    %v1084 = vld [vmem:[#allocation8 + $0x850] sm:$0xff]
    %v1085 = vld [vmem:[#allocation8 + $0x858] sm:$0xff]
    %v1086 = vld [vmem:[#allocation8 + $0x860] sm:$0xff]
    %v1087 = vld [vmem:[#allocation8 + $0x868] sm:$0xff]
    %v1088 = vld [vmem:[#allocation8 + $0x870] sm:$0xff]
    %v1089 = vld [vmem:[#allocation8 + $0x878] sm:$0xff]
    %v1090 = vld [vmem:[#allocation8 + $0x880] sm:$0xff]
    %v1091 = vld [vmem:[#allocation8 + $0x888] sm:$0xff]
    %v1092 = vld [vmem:[#allocation8 + $0x890] sm:$0xff]
    %v1093 = vld [vmem:[#allocation8 + $0x898] sm:$0xff]
    %v1094 = vld [vmem:[#allocation8 + $0x8a0] sm:$0xff]
    %v1095 = vld [vmem:[#allocation8 + $0x8a8] sm:$0xff]
    %v1096 = vld [vmem:[#allocation8 + $0x8b0] sm:$0xff]
    %v1097 = vld [vmem:[#allocation8 + $0x8b8] sm:$0xff]
    %v1098 = vld [vmem:[#allocation8 + $0x8c0] sm:$0xff]
    %v1099 = vld [vmem:[#allocation8 + $0x8c8] sm:$0xff]
    %v1100 = vld [vmem:[#allocation8 + $0x8d0] sm:$0xff]
    %v1101 = vld [vmem:[#allocation8 + $0x8d8] sm:$0xff]
    %v1102 = vld [vmem:[#allocation8 + $0x8e0] sm:$0xff]
    %v1103 = vld [vmem:[#allocation8 + $0x8e8] sm:$0xff]
    %v1104 = vld [vmem:[#allocation8 + $0x8f0] sm:$0xff]
    %v1105 = vld [vmem:[#allocation8 + $0x8f8] sm:$0xff]
    %v1106 = vld [vmem:[#allocation8 + $0x900] sm:$0xff]
    %v1107 = vld [vmem:[#allocation8 + $0x908] sm:$0xff]
    %v1108 = vld [vmem:[#allocation8 + $0x910] sm:$0xff]
    %v1109 = vld [vmem:[#allocation8 + $0x918] sm:$0xff]
    %v1110 = vld [vmem:[#allocation8 + $0x920] sm:$0xff]
    %v1111 = vld [vmem:[#allocation8 + $0x928] sm:$0xff]
    %v1112 = vld [vmem:[#allocation8 + $0x930] sm:$0xff]
    %v1113 = vld [vmem:[#allocation8 + $0x938] sm:$0xff]
    %v1114 = vld [vmem:[#allocation8 + $0x940] sm:$0xff]
    %v1115 = vld [vmem:[#allocation8 + $0x948] sm:$0xff]
    %v1116 = vld [vmem:[#allocation8 + $0x950] sm:$0xff]
    %v1117 = vld [vmem:[#allocation8 + $0x958] sm:$0xff]
    %v1118 = vld [vmem:[#allocation8 + $0x960] sm:$0xff]
    %v1119 = vld [vmem:[#allocation8 + $0x968] sm:$0xff]
    %v1120 = vld [vmem:[#allocation8 + $0x970] sm:$0xff]
    %v1121 = vld [vmem:[#allocation8 + $0x978] sm:$0xff]
    %v1122 = vld [vmem:[#allocation8 + $0x980] sm:$0xff]
    %v1123 = vld [vmem:[#allocation8 + $0x988] sm:$0xff]
    %v1124 = vld [vmem:[#allocation8 + $0x990] sm:$0xff]
    %v1125 = vld [vmem:[#allocation8 + $0x998] sm:$0xff]
    %v1126 = vld [vmem:[#allocation8 + $0x9a0] sm:$0xff]
    %v1127 = vld [vmem:[#allocation8 + $0x9a8] sm:$0xff]
    %v1128 = vld [vmem:[#allocation8 + $0x9b0] sm:$0xff]
    %v1129 = vld [vmem:[#allocation8 + $0x9b8] sm:$0xff]
    %v1130 = vld [vmem:[#allocation8 + $0x9c0] sm:$0xff]
    %v1131 = vld [vmem:[#allocation8 + $0x9c8] sm:$0xff]
    %v1132 = vld [vmem:[#allocation8 + $0x9d0] sm:$0xff]
    %v1133 = vld [vmem:[#allocation8 + $0x9d8] sm:$0xff]
    %v1134 = vld [vmem:[#allocation8 + $0x9e0] sm:$0xff]
    %v1135 = vld [vmem:[#allocation8 + $0x9e8] sm:$0xff]
    %v1136 = vld [vmem:[#allocation8 + $0x9f0] sm:$0xff]
    %v1137 = vld [vmem:[#allocation8 + $0x9f8] sm:$0xff]
    %v1138 = vld [vmem:[#allocation8 + $0xa00] sm:$0xff]
    %v1139 = vld [vmem:[#allocation8 + $0xa08] sm:$0xff]
    %v1140 = vld [vmem:[#allocation8 + $0xa10] sm:$0xff]
    %v1141 = vld [vmem:[#allocation8 + $0xa18] sm:$0xff]
    %v1142 = vld [vmem:[#allocation8 + $0xa20] sm:$0xff]
    %v1143 = vld [vmem:[#allocation8 + $0xa28] sm:$0xff]
    %v1144 = vld [vmem:[#allocation8 + $0xa30] sm:$0xff]
    %v1145 = vld [vmem:[#allocation8 + $0xa38] sm:$0xff]
    %v1146 = vld [vmem:[#allocation8 + $0xa40] sm:$0xff]
    %v1147 = vld [vmem:[#allocation8 + $0xa48] sm:$0xff]
    %v1148 = vld [vmem:[#allocation8 + $0xa50] sm:$0xff]
    %v1149 = vld [vmem:[#allocation8 + $0xa58] sm:$0xff]
    %v1150 = vld [vmem:[#allocation8 + $0xa60] sm:$0xff]
    %v1151 = vld [vmem:[#allocation8 + $0xa68] sm:$0xff]
    %v1152 = vld [vmem:[#allocation8 + $0xa70] sm:$0xff]
    %v1153 = vld [vmem:[#allocation8 + $0xa78] sm:$0xff]
    %v1154 = vld [vmem:[#allocation8 + $0xa80] sm:$0xff]
    %v1155 = vld [vmem:[#allocation8 + $0xa88] sm:$0xff]
    %v1156 = vld [vmem:[#allocation8 + $0xa90] sm:$0xff]
    %v1157 = vld [vmem:[#allocation8 + $0xa98] sm:$0xff]
    %v1158 = vld [vmem:[#allocation8 + $0xaa0] sm:$0xff]
    %v1159 = vld [vmem:[#allocation8 + $0xaa8] sm:$0xff]
    %v1160 = vld [vmem:[#allocation8 + $0xab0] sm:$0xff]
    %v1161 = vld [vmem:[#allocation8 + $0xab8] sm:$0xff]
    %v1162 = vld [vmem:[#allocation8 + $0xac0] sm:$0xff]
    %v1163 = vld [vmem:[#allocation8 + $0xac8] sm:$0xff]
    %v1164 = vld [vmem:[#allocation8 + $0xad0] sm:$0xff]
    %v1165 = vld [vmem:[#allocation8 + $0xad8] sm:$0xff]
    %v1166 = vld [vmem:[#allocation8 + $0xae0] sm:$0xff]
    %v1167 = vld [vmem:[#allocation8 + $0xae8] sm:$0xff]
    %v1168 = vld [vmem:[#allocation8 + $0xaf0] sm:$0xff]
    %v1169 = vld [vmem:[#allocation8 + $0xaf8] sm:$0xff]
    %v1170 = vld [vmem:[#allocation8 + $0xb00] sm:$0xff]
    %v1171 = vld [vmem:[#allocation8 + $0xb08] sm:$0xff]
    %v1172 = vld [vmem:[#allocation8 + $0xb10] sm:$0xff]
    %v1173 = vld [vmem:[#allocation8 + $0xb18] sm:$0xff]
    %v1174 = vld [vmem:[#allocation8 + $0xb20] sm:$0xff]
    %v1175 = vld [vmem:[#allocation8 + $0xb28] sm:$0xff]
    %v1176 = vld [vmem:[#allocation8 + $0xb30] sm:$0xff]
    %v1177 = vld [vmem:[#allocation8 + $0xb38] sm:$0xff]
    %v1178 = vld [vmem:[#allocation8 + $0xb40] sm:$0xff]
    %v1179 = vld [vmem:[#allocation8 + $0xb48] sm:$0xff]
    %v1180 = vld [vmem:[#allocation8 + $0xb50] sm:$0xff]
    %v1181 = vld [vmem:[#allocation8 + $0xb58] sm:$0xff]
    %v1182 = vld [vmem:[#allocation8 + $0xb60] sm:$0xff]
    %v1183 = vld [vmem:[#allocation8 + $0xb68] sm:$0xff]
    %v1184 = vld [vmem:[#allocation8 + $0xb70] sm:$0xff]
    %v1185 = vld [vmem:[#allocation8 + $0xb78] sm:$0xff]
    %v1186 = vld [vmem:[#allocation8 + $0xb80] sm:$0xff]
    %v1187 = vld [vmem:[#allocation8 + $0xb88] sm:$0xff]
    %v1188 = vld [vmem:[#allocation8 + $0xb90] sm:$0xff]
    %v1189 = vld [vmem:[#allocation8 + $0xb98] sm:$0xff]
    %v1190 = vld [vmem:[#allocation8 + $0xba0] sm:$0xff]
    %v1191 = vld [vmem:[#allocation8 + $0xba8] sm:$0xff]
    %v1192 = vld [vmem:[#allocation8 + $0xbb0] sm:$0xff]
    %v1193 = vld [vmem:[#allocation8 + $0xbb8] sm:$0xff]
    %v1194 = vld [vmem:[#allocation8 + $0xbc0] sm:$0xff]
    %v1195 = vld [vmem:[#allocation8 + $0xbc8] sm:$0xff]
    %v1196 = vld [vmem:[#allocation8 + $0xbd0] sm:$0xff]
    %v1197 = vld [vmem:[#allocation8 + $0xbd8] sm:$0xff]
    %v1198 = vld [vmem:[#allocation8 + $0xbe0] sm:$0xff]
    %v1199 = vld [vmem:[#allocation8 + $0xbe8] sm:$0xff]
    %v1200 = vld [vmem:[#allocation8 + $0xbf0] sm:$0xff]
    %v1201 = vld [vmem:[#allocation8 + $0xbf8] sm:$0xff]
    %v1202 = vld [vmem:[#allocation8 + $0xc00] sm:$0xff]
    %v1203 = vld [vmem:[#allocation8 + $0xc08] sm:$0xff]
    %v1204 = vld [vmem:[#allocation8 + $0xc10] sm:$0xff]
    %v1205 = vld [vmem:[#allocation8 + $0xc18] sm:$0xff]
    %v1206 = vld [vmem:[#allocation8 + $0xc20] sm:$0xff]
    %v1207 = vld [vmem:[#allocation8 + $0xc28] sm:$0xff]
    %v1208 = vld [vmem:[#allocation8 + $0xc30] sm:$0xff]
    %v1209 = vld [vmem:[#allocation8 + $0xc38] sm:$0xff]
    %v1210 = vld [vmem:[#allocation8 + $0xc40] sm:$0xff]
    %v1211 = vld [vmem:[#allocation8 + $0xc48] sm:$0xff]
    %v1212 = vld [vmem:[#allocation8 + $0xc50] sm:$0xff]
    %v1213 = vld [vmem:[#allocation8 + $0xc58] sm:$0xff]
    %v1214 = vld [vmem:[#allocation8 + $0xc60] sm:$0xff]
    %v1215 = vld [vmem:[#allocation8 + $0xc68] sm:$0xff]
    %v1216 = vld [vmem:[#allocation8 + $0xc70] sm:$0xff]
    %v1217 = vld [vmem:[#allocation8 + $0xc78] sm:$0xff]
    %v1218 = vld [vmem:[#allocation8 + $0xc80] sm:$0xff]
    %v1219 = vld [vmem:[#allocation8 + $0xc88] sm:$0xff]
    %v1220 = vld [vmem:[#allocation8 + $0xc90] sm:$0xff]
    %v1221 = vld [vmem:[#allocation8 + $0xc98] sm:$0xff]
    %v1222 = vld [vmem:[#allocation8 + $0xca0] sm:$0xff]
    %v1223 = vld [vmem:[#allocation8 + $0xca8] sm:$0xff]
    %v1224 = vld [vmem:[#allocation8 + $0xcb0] sm:$0xff]
    %v1225 = vld [vmem:[#allocation8 + $0xcb8] sm:$0xff]
    %v1226 = vld [vmem:[#allocation8 + $0xcc0] sm:$0xff]
    %v1227 = vld [vmem:[#allocation8 + $0xcc8] sm:$0xff]
    %v1228 = vld [vmem:[#allocation8 + $0xcd0] sm:$0xff]
    %v1229 = vld [vmem:[#allocation8 + $0xcd8] sm:$0xff]
    %v1230 = vld [vmem:[#allocation8 + $0xce0] sm:$0xff]
    %v1231 = vld [vmem:[#allocation8 + $0xce8] sm:$0xff]
    %v1232 = vld [vmem:[#allocation8 + $0xcf0] sm:$0xff]
    %v1233 = vld [vmem:[#allocation8 + $0xcf8] sm:$0xff]
    %v1234 = vld [vmem:[#allocation8 + $0xd00] sm:$0xff]
    %v1235 = vld [vmem:[#allocation8 + $0xd08] sm:$0xff]
    %v1236 = vld [vmem:[#allocation8 + $0xd10] sm:$0xff]
    %v1237 = vld [vmem:[#allocation8 + $0xd18] sm:$0xff]
    %v1238 = vld [vmem:[#allocation8 + $0xd20] sm:$0xff]
    %v1239 = vld [vmem:[#allocation8 + $0xd28] sm:$0xff]
    %v1240 = vld [vmem:[#allocation8 + $0xd30] sm:$0xff]
    %v1241 = vld [vmem:[#allocation8 + $0xd38] sm:$0xff]
    %v1242 = vld [vmem:[#allocation8 + $0xd40] sm:$0xff]
    %v1243 = vld [vmem:[#allocation8 + $0xd48] sm:$0xff]
    %v1244 = vld [vmem:[#allocation8 + $0xd50] sm:$0xff]
    %v1245 = vld [vmem:[#allocation8 + $0xd58] sm:$0xff]
    %v1246 = vld [vmem:[#allocation8 + $0xd60] sm:$0xff]
    %v1247 = vld [vmem:[#allocation8 + $0xd68] sm:$0xff]
    %v1248 = vld [vmem:[#allocation8 + $0xd70] sm:$0xff]
    %v1249 = vld [vmem:[#allocation8 + $0xd78] sm:$0xff]
    %v1250 = vld [vmem:[#allocation8 + $0xd80] sm:$0xff]
    %v1251 = vld [vmem:[#allocation8 + $0xd88] sm:$0xff]
    %v1252 = vld [vmem:[#allocation8 + $0xd90] sm:$0xff]
    %v1253 = vld [vmem:[#allocation8 + $0xd98] sm:$0xff]
    %v1254 = vld [vmem:[#allocation8 + $0xda0] sm:$0xff]
    %v1255 = vld [vmem:[#allocation8 + $0xda8] sm:$0xff]
    %v1256 = vld [vmem:[#allocation8 + $0xdb0] sm:$0xff]
    %v1257 = vld [vmem:[#allocation8 + $0xdb8] sm:$0xff]
    %v1258 = vld [vmem:[#allocation8 + $0xdc0] sm:$0xff]
    %v1259 = vld [vmem:[#allocation8 + $0xdc8] sm:$0xff]
    %v1260 = vld [vmem:[#allocation8 + $0xdd0] sm:$0xff]
    %v1261 = vld [vmem:[#allocation8 + $0xdd8] sm:$0xff]
    %v1262 = vld [vmem:[#allocation8 + $0xde0] sm:$0xff]
    %v1263 = vld [vmem:[#allocation8 + $0xde8] sm:$0xff]
    %v1264 = vld [vmem:[#allocation8 + $0xdf0] sm:$0xff]
    %v1265 = vld [vmem:[#allocation8 + $0xdf8] sm:$0xff]
    %v1266 = vld [vmem:[#allocation8 + $0xe00] sm:$0xff]
    %v1267 = vld [vmem:[#allocation8 + $0xe08] sm:$0xff]
    %v1268 = vld [vmem:[#allocation8 + $0xe10] sm:$0xff]
    %v1269 = vld [vmem:[#allocation8 + $0xe18] sm:$0xff]
    %v1270 = vld [vmem:[#allocation8 + $0xe20] sm:$0xff]
    %v1271 = vld [vmem:[#allocation8 + $0xe28] sm:$0xff]
    %v1272 = vld [vmem:[#allocation8 + $0xe30] sm:$0xff]
    %v1273 = vld [vmem:[#allocation8 + $0xe38] sm:$0xff]
    %v1274 = vld [vmem:[#allocation8 + $0xe40] sm:$0xff]
    %v1275 = vld [vmem:[#allocation8 + $0xe48] sm:$0xff]
    %v1276 = vld [vmem:[#allocation8 + $0xe50] sm:$0xff]
    %v1277 = vld [vmem:[#allocation8 + $0xe58] sm:$0xff]
    %v1278 = vld [vmem:[#allocation8 + $0xe60] sm:$0xff]
    %v1279 = vld [vmem:[#allocation8 + $0xe68] sm:$0xff]
    %v1280 = vld [vmem:[#allocation8 + $0xe70] sm:$0xff]
    %v1281 = vld [vmem:[#allocation8 + $0xe78] sm:$0xff]
    %v1282 = vld [vmem:[#allocation8 + $0xe80] sm:$0xff]
    %v1283 = vld [vmem:[#allocation8 + $0xe88] sm:$0xff]
    %v1284 = vld [vmem:[#allocation8 + $0xe90] sm:$0xff]
    %v1285 = vld [vmem:[#allocation8 + $0xe98] sm:$0xff]
    %v1286 = vld [vmem:[#allocation8 + $0xea0] sm:$0xff]
    %v1287 = vld [vmem:[#allocation8 + $0xea8] sm:$0xff]
    %v1288 = vld [vmem:[#allocation8 + $0xeb0] sm:$0xff]
    %v1289 = vld [vmem:[#allocation8 + $0xeb8] sm:$0xff]
    %v1290 = vld [vmem:[#allocation8 + $0xec0] sm:$0xff]
    %v1291 = vld [vmem:[#allocation8 + $0xec8] sm:$0xff]
    %v1292 = vld [vmem:[#allocation8 + $0xed0] sm:$0xff]
    %v1293 = vld [vmem:[#allocation8 + $0xed8] sm:$0xff]
    %v1294 = vld [vmem:[#allocation8 + $0xee0] sm:$0xff]
    %v1295 = vld [vmem:[#allocation8 + $0xee8] sm:$0xff]
    %v1296 = vld [vmem:[#allocation8 + $0xef0] sm:$0xff]
    %v1297 = vld [vmem:[#allocation8 + $0xef8] sm:$0xff]
    %v1298 = vld [vmem:[#allocation8 + $0xf00] sm:$0xff]
    %v1299 = vld [vmem:[#allocation8 + $0xf08] sm:$0xff]
    %v1300 = vld [vmem:[#allocation8 + $0xf10] sm:$0xff]
    %v1301 = vld [vmem:[#allocation8 + $0xf18] sm:$0xff]
    %v1302 = vld [vmem:[#allocation8 + $0xf20] sm:$0xff]
    %v1303 = vld [vmem:[#allocation8 + $0xf28] sm:$0xff]
    %v1304 = vld [vmem:[#allocation8 + $0xf30] sm:$0xff]
    %v1305 = vld [vmem:[#allocation8 + $0xf38] sm:$0xff]
    %v1306 = vld [vmem:[#allocation8 + $0xf40] sm:$0xff]
    %v1307 = vld [vmem:[#allocation8 + $0xf48] sm:$0xff]
    %v1308 = vld [vmem:[#allocation8 + $0xf50] sm:$0xff]
    %v1309 = vld [vmem:[#allocation8 + $0xf58] sm:$0xff]
    %v1310 = vld [vmem:[#allocation8 + $0xf60] sm:$0xff]
    %v1311 = vld [vmem:[#allocation8 + $0xf68] sm:$0xff]
    %v1312 = vld [vmem:[#allocation8 + $0xf70] sm:$0xff]
    %v1313 = vld [vmem:[#allocation8 + $0xf78] sm:$0xff]
    %v1314 = vld [vmem:[#allocation8 + $0xf80] sm:$0xff]
    %v1315 = vld [vmem:[#allocation8 + $0xf88] sm:$0xff]
    %v1316 = vld [vmem:[#allocation8 + $0xf90] sm:$0xff]
    %v1317 = vld [vmem:[#allocation8 + $0xf98] sm:$0xff]
    %v1318 = vld [vmem:[#allocation8 + $0xfa0] sm:$0xff]
    %v1319 = vld [vmem:[#allocation8 + $0xfa8] sm:$0xff]
    %v1320 = vld [vmem:[#allocation8 + $0xfb0] sm:$0xff]
    %v1321 = vld [vmem:[#allocation8 + $0xfb8] sm:$0xff]
    %v1322 = vld [vmem:[#allocation8 + $0xfc0] sm:$0xff]
    %v1323 = vld [vmem:[#allocation8 + $0xfc8] sm:$0xff]
    %v1324 = vld [vmem:[#allocation8 + $0xfd0] sm:$0xff]
    %v1325 = vld [vmem:[#allocation8 + $0xfd8] sm:$0xff]
    %v1326 = vld [vmem:[#allocation8 + $0xfe0] sm:$0xff]
    %v1327 = vld [vmem:[#allocation8 + $0xfe8] sm:$0xff]
    %v1328 = vld [vmem:[#allocation8 + $0xff0] sm:$0xff]
    %v1329 = vld [vmem:[#allocation8 + $0xff8] sm:$0xff]
    %v1330 = vld [vmem:[#allocation10] sm:$0xff]
    %v1332 = vlaneseq
    %v1333 = vshrl.u32 %v1332, 7
    %v1334 = vsub.s32 0, %v1333
    %v1335 = vrot.slane %v1330, %v1334
    %v1336 = vlaneseq
    %v1337 = vshrl.u32 %v1336, 7
    %v1338 = vsub.s32 1, %v1337
    %v1339 = vrot.slane %v1330, %v1338
    %v1340 = vlaneseq
    %v1341 = vshrl.u32 %v1340, 7
    %v1342 = vsub.s32 2, %v1341
    %v1343 = vrot.slane %v1330, %v1342
    %v1344 = vlaneseq
    %v1345 = vshrl.u32 %v1344, 7
    %v1346 = vsub.s32 3, %v1345
    %v1347 = vrot.slane %v1330, %v1346
    %v1348 = vlaneseq
    %v1349 = vshrl.u32 %v1348, 7
    %v1350 = vsub.s32 4, %v1349
    %v1351 = vrot.slane %v1330, %v1350
    %v1352 = vlaneseq
    %v1353 = vshrl.u32 %v1352, 7
    %v1354 = vsub.s32 5, %v1353
    %v1355 = vrot.slane %v1330, %v1354
    %v1356 = vlaneseq
    %v1357 = vshrl.u32 %v1356, 7
    %v1358 = vsub.s32 6, %v1357
    %v1359 = vrot.slane %v1330, %v1358
    %v1360 = vlaneseq
    %v1361 = vshrl.u32 %v1360, 7
    %v1362 = vsub.s32 7, %v1361
    %v1363 = vrot.slane %v1330, %v1362
    %v1884 = vunpack.c.l.b16 %v818
    %v1885 = vunpack.c.h.b16 %v818
    %v1886 = vunpack.c.l.b16 %v819
    %v1887 = vunpack.c.h.b16 %v819
    %v1888 = vunpack.c.l.b16 %v820
    %v1889 = vunpack.c.h.b16 %v820
    %v1890 = vunpack.c.l.b16 %v821
    %v1891 = vunpack.c.h.b16 %v821
    %v1892 = vunpack.c.l.b16 %v822
    %v1893 = vunpack.c.h.b16 %v822
    %v1894 = vunpack.c.l.b16 %v823
    %v1895 = vunpack.c.h.b16 %v823
    %v1896 = vunpack.c.l.b16 %v824
    %v1897 = vunpack.c.h.b16 %v824
    %v1898 = vunpack.c.l.b16 %v825
    %v1899 = vunpack.c.h.b16 %v825
    %v1900 = vunpack.c.l.b16 %v826
    %v1901 = vunpack.c.h.b16 %v826
    %v1902 = vunpack.c.l.b16 %v827
    %v1903 = vunpack.c.h.b16 %v827
    %v1904 = vunpack.c.l.b16 %v828
    %v1905 = vunpack.c.h.b16 %v828
    %v1906 = vunpack.c.l.b16 %v829
    %v1907 = vunpack.c.h.b16 %v829
    %v1908 = vunpack.c.l.b16 %v830
    %v1909 = vunpack.c.h.b16 %v830
    %v1910 = vunpack.c.l.b16 %v831
    %v1911 = vunpack.c.h.b16 %v831
    %v1912 = vunpack.c.l.b16 %v832
    %v1913 = vunpack.c.h.b16 %v832
    %v1914 = vunpack.c.l.b16 %v833
    %v1915 = vunpack.c.h.b16 %v833
    %v1916 = vunpack.c.l.b16 %v834
    %v1917 = vunpack.c.h.b16 %v834
    %v1918 = vunpack.c.l.b16 %v835
    %v1919 = vunpack.c.h.b16 %v835
    %v1920 = vunpack.c.l.b16 %v836
    %v1921 = vunpack.c.h.b16 %v836
    %v1922 = vunpack.c.l.b16 %v837
    %v1923 = vunpack.c.h.b16 %v837
    %v1924 = vunpack.c.l.b16 %v838
    %v1925 = vunpack.c.h.b16 %v838
    %v1926 = vunpack.c.l.b16 %v839
    %v1927 = vunpack.c.h.b16 %v839
    %v1928 = vunpack.c.l.b16 %v840
    %v1929 = vunpack.c.h.b16 %v840
    %v1930 = vunpack.c.l.b16 %v841
    %v1931 = vunpack.c.h.b16 %v841
    %v1932 = vunpack.c.l.b16 %v842
    %v1933 = vunpack.c.h.b16 %v842
    %v1934 = vunpack.c.l.b16 %v843
    %v1935 = vunpack.c.h.b16 %v843
    %v1936 = vunpack.c.l.b16 %v844
    %v1937 = vunpack.c.h.b16 %v844
    %v1938 = vunpack.c.l.b16 %v845
    %v1939 = vunpack.c.h.b16 %v845
    %v1940 = vunpack.c.l.b16 %v846
    %v1941 = vunpack.c.h.b16 %v846
    %v1942 = vunpack.c.l.b16 %v847
    %v1943 = vunpack.c.h.b16 %v847
    %v1944 = vunpack.c.l.b16 %v848
    %v1945 = vunpack.c.h.b16 %v848
    %v1946 = vunpack.c.l.b16 %v849
    %v1947 = vunpack.c.h.b16 %v849
    %v1948 = vunpack.c.l.b16 %v850
    %v1949 = vunpack.c.h.b16 %v850
    %v1950 = vunpack.c.l.b16 %v851
    %v1951 = vunpack.c.h.b16 %v851
    %v1952 = vunpack.c.l.b16 %v852
    %v1953 = vunpack.c.h.b16 %v852
    %v1954 = vunpack.c.l.b16 %v853
    %v1955 = vunpack.c.h.b16 %v853
    %v1956 = vunpack.c.l.b16 %v854
    %v1957 = vunpack.c.h.b16 %v854
    %v1958 = vunpack.c.l.b16 %v855
    %v1959 = vunpack.c.h.b16 %v855
    %v1960 = vunpack.c.l.b16 %v856
    %v1961 = vunpack.c.h.b16 %v856
    %v1962 = vunpack.c.l.b16 %v857
    %v1963 = vunpack.c.h.b16 %v857
    %v1964 = vunpack.c.l.b16 %v858
    %v1965 = vunpack.c.h.b16 %v858
    %v1966 = vunpack.c.l.b16 %v859
    %v1967 = vunpack.c.h.b16 %v859
    %v1968 = vunpack.c.l.b16 %v860
    %v1969 = vunpack.c.h.b16 %v860
    %v1970 = vunpack.c.l.b16 %v861
    %v1971 = vunpack.c.h.b16 %v861
    %v1972 = vunpack.c.l.b16 %v862
    %v1973 = vunpack.c.h.b16 %v862
    %v1974 = vunpack.c.l.b16 %v863
    %v1975 = vunpack.c.h.b16 %v863
    %v1976 = vunpack.c.l.b16 %v864
    %v1977 = vunpack.c.h.b16 %v864
    %v1978 = vunpack.c.l.b16 %v865
    %v1979 = vunpack.c.h.b16 %v865
    %v1980 = vunpack.c.l.b16 %v866
    %v1981 = vunpack.c.h.b16 %v866
    %v1982 = vunpack.c.l.b16 %v867
    %v1983 = vunpack.c.h.b16 %v867
    %v1984 = vunpack.c.l.b16 %v868
    %v1985 = vunpack.c.h.b16 %v868
    %v1986 = vunpack.c.l.b16 %v869
    %v1987 = vunpack.c.h.b16 %v869
    %v1988 = vunpack.c.l.b16 %v870
    %v1989 = vunpack.c.h.b16 %v870
    %v1990 = vunpack.c.l.b16 %v871
    %v1991 = vunpack.c.h.b16 %v871
    %v1992 = vunpack.c.l.b16 %v872
    %v1993 = vunpack.c.h.b16 %v872
    %v1994 = vunpack.c.l.b16 %v873
    %v1995 = vunpack.c.h.b16 %v873
    %v1996 = vunpack.c.l.b16 %v874
    %v1997 = vunpack.c.h.b16 %v874
    %v1998 = vunpack.c.l.b16 %v875
    %v1999 = vunpack.c.h.b16 %v875
    %v2000 = vunpack.c.l.b16 %v876
    %v2001 = vunpack.c.h.b16 %v876
    %v2002 = vunpack.c.l.b16 %v877
    %v2003 = vunpack.c.h.b16 %v877
    %v2004 = vunpack.c.l.b16 %v878
    %v2005 = vunpack.c.h.b16 %v878
    %v2006 = vunpack.c.l.b16 %v879
    %v2007 = vunpack.c.h.b16 %v879
    %v2008 = vunpack.c.l.b16 %v880
    %v2009 = vunpack.c.h.b16 %v880
    %v2010 = vunpack.c.l.b16 %v881
    %v2011 = vunpack.c.h.b16 %v881
    %v2012 = vunpack.c.l.b16 %v882
    %v2013 = vunpack.c.h.b16 %v882
    %v2014 = vunpack.c.l.b16 %v883
    %v2015 = vunpack.c.h.b16 %v883
    %v2016 = vunpack.c.l.b16 %v884
    %v2017 = vunpack.c.h.b16 %v884
    %v2018 = vunpack.c.l.b16 %v885
    %v2019 = vunpack.c.h.b16 %v885
    %v2020 = vunpack.c.l.b16 %v886
    %v2021 = vunpack.c.h.b16 %v886
    %v2022 = vunpack.c.l.b16 %v887
    %v2023 = vunpack.c.h.b16 %v887
    %v2024 = vunpack.c.l.b16 %v888
    %v2025 = vunpack.c.h.b16 %v888
    %v2026 = vunpack.c.l.b16 %v889
    %v2027 = vunpack.c.h.b16 %v889
    %v2028 = vunpack.c.l.b16 %v890
    %v2029 = vunpack.c.h.b16 %v890
    %v2030 = vunpack.c.l.b16 %v891
    %v2031 = vunpack.c.h.b16 %v891
    %v2032 = vunpack.c.l.b16 %v892
    %v2033 = vunpack.c.h.b16 %v892
    %v2034 = vunpack.c.l.b16 %v893
    %v2035 = vunpack.c.h.b16 %v893
    %v2036 = vunpack.c.l.b16 %v894
    %v2037 = vunpack.c.h.b16 %v894
    %v2038 = vunpack.c.l.b16 %v895
    %v2039 = vunpack.c.h.b16 %v895
    %v2040 = vunpack.c.l.b16 %v896
    %v2041 = vunpack.c.h.b16 %v896
    %v2042 = vunpack.c.l.b16 %v897
    %v2043 = vunpack.c.h.b16 %v897
    %v2044 = vunpack.c.l.b16 %v898
    %v2045 = vunpack.c.h.b16 %v898
    %v2046 = vunpack.c.l.b16 %v899
    %v2047 = vunpack.c.h.b16 %v899
    %v2048 = vunpack.c.l.b16 %v900
    %v2049 = vunpack.c.h.b16 %v900
    %v2050 = vunpack.c.l.b16 %v901
    %v2051 = vunpack.c.h.b16 %v901
    %v2052 = vunpack.c.l.b16 %v902
    %v2053 = vunpack.c.h.b16 %v902
    %v2054 = vunpack.c.l.b16 %v903
    %v2055 = vunpack.c.h.b16 %v903
    %v2056 = vunpack.c.l.b16 %v904
    %v2057 = vunpack.c.h.b16 %v904
    %v2058 = vunpack.c.l.b16 %v905
    %v2059 = vunpack.c.h.b16 %v905
    %v2060 = vunpack.c.l.b16 %v906
    %v2061 = vunpack.c.h.b16 %v906
    %v2062 = vunpack.c.l.b16 %v907
    %v2063 = vunpack.c.h.b16 %v907
    %v2064 = vunpack.c.l.b16 %v908
    %v2065 = vunpack.c.h.b16 %v908
    %v2066 = vunpack.c.l.b16 %v909
    %v2067 = vunpack.c.h.b16 %v909
    %v2068 = vunpack.c.l.b16 %v910
    %v2069 = vunpack.c.h.b16 %v910
    %v2070 = vunpack.c.l.b16 %v911
    %v2071 = vunpack.c.h.b16 %v911
    %v2072 = vunpack.c.l.b16 %v912
    %v2073 = vunpack.c.h.b16 %v912
    %v2074 = vunpack.c.l.b16 %v913
    %v2075 = vunpack.c.h.b16 %v913
    %v2076 = vunpack.c.l.b16 %v914
    %v2077 = vunpack.c.h.b16 %v914
    %v2078 = vunpack.c.l.b16 %v915
    %v2079 = vunpack.c.h.b16 %v915
    %v2080 = vunpack.c.l.b16 %v916
    %v2081 = vunpack.c.h.b16 %v916
    %v2082 = vunpack.c.l.b16 %v917
    %v2083 = vunpack.c.h.b16 %v917
    %v2084 = vunpack.c.l.b16 %v918
    %v2085 = vunpack.c.h.b16 %v918
    %v2086 = vunpack.c.l.b16 %v919
    %v2087 = vunpack.c.h.b16 %v919
    %v2088 = vunpack.c.l.b16 %v920
    %v2089 = vunpack.c.h.b16 %v920
    %v2090 = vunpack.c.l.b16 %v921
    %v2091 = vunpack.c.h.b16 %v921
    %v2092 = vunpack.c.l.b16 %v922
    %v2093 = vunpack.c.h.b16 %v922
    %v2094 = vunpack.c.l.b16 %v923
    %v2095 = vunpack.c.h.b16 %v923
    %v2096 = vunpack.c.l.b16 %v924
    %v2097 = vunpack.c.h.b16 %v924
    %v2098 = vunpack.c.l.b16 %v925
    %v2099 = vunpack.c.h.b16 %v925
    %v2100 = vunpack.c.l.b16 %v926
    %v2101 = vunpack.c.h.b16 %v926
    %v2102 = vunpack.c.l.b16 %v927
    %v2103 = vunpack.c.h.b16 %v927
    %v2104 = vunpack.c.l.b16 %v928
    %v2105 = vunpack.c.h.b16 %v928
    %v2106 = vunpack.c.l.b16 %v929
    %v2107 = vunpack.c.h.b16 %v929
    %v2108 = vunpack.c.l.b16 %v930
    %v2109 = vunpack.c.h.b16 %v930
    %v2110 = vunpack.c.l.b16 %v931
    %v2111 = vunpack.c.h.b16 %v931
    %v2112 = vunpack.c.l.b16 %v932
    %v2113 = vunpack.c.h.b16 %v932
    %v2114 = vunpack.c.l.b16 %v933
    %v2115 = vunpack.c.h.b16 %v933
    %v2116 = vunpack.c.l.b16 %v934
    %v2117 = vunpack.c.h.b16 %v934
    %v2118 = vunpack.c.l.b16 %v935
    %v2119 = vunpack.c.h.b16 %v935
    %v2120 = vunpack.c.l.b16 %v936
    %v2121 = vunpack.c.h.b16 %v936
    %v2122 = vunpack.c.l.b16 %v937
    %v2123 = vunpack.c.h.b16 %v937
    %v2124 = vunpack.c.l.b16 %v938
    %v2125 = vunpack.c.h.b16 %v938
    %v2126 = vunpack.c.l.b16 %v939
    %v2127 = vunpack.c.h.b16 %v939
    %v2128 = vunpack.c.l.b16 %v940
    %v2129 = vunpack.c.h.b16 %v940
    %v2130 = vunpack.c.l.b16 %v941
    %v2131 = vunpack.c.h.b16 %v941
    %v2132 = vunpack.c.l.b16 %v942
    %v2133 = vunpack.c.h.b16 %v942
    %v2134 = vunpack.c.l.b16 %v943
    %v2135 = vunpack.c.h.b16 %v943
    %v2136 = vunpack.c.l.b16 %v944
    %v2137 = vunpack.c.h.b16 %v944
    %v2138 = vunpack.c.l.b16 %v945
    %v2139 = vunpack.c.h.b16 %v945
    %v2140 = vunpack.c.l.b16 %v946
    %v2141 = vunpack.c.h.b16 %v946
    %v2142 = vunpack.c.l.b16 %v947
    %v2143 = vunpack.c.h.b16 %v947
    %v2144 = vunpack.c.l.b16 %v948
    %v2145 = vunpack.c.h.b16 %v948
    %v2146 = vunpack.c.l.b16 %v949
    %v2147 = vunpack.c.h.b16 %v949
    %v2148 = vunpack.c.l.b16 %v950
    %v2149 = vunpack.c.h.b16 %v950
    %v2150 = vunpack.c.l.b16 %v951
    %v2151 = vunpack.c.h.b16 %v951
    %v2152 = vunpack.c.l.b16 %v952
    %v2153 = vunpack.c.h.b16 %v952
    %v2154 = vunpack.c.l.b16 %v953
    %v2155 = vunpack.c.h.b16 %v953
    %v2156 = vunpack.c.l.b16 %v954
    %v2157 = vunpack.c.h.b16 %v954
    %v2158 = vunpack.c.l.b16 %v955
    %v2159 = vunpack.c.h.b16 %v955
    %v2160 = vunpack.c.l.b16 %v956
    %v2161 = vunpack.c.h.b16 %v956
    %v2162 = vunpack.c.l.b16 %v957
    %v2163 = vunpack.c.h.b16 %v957
    %v2164 = vunpack.c.l.b16 %v958
    %v2165 = vunpack.c.h.b16 %v958
    %v2166 = vunpack.c.l.b16 %v959
    %v2167 = vunpack.c.h.b16 %v959
    %v2168 = vunpack.c.l.b16 %v960
    %v2169 = vunpack.c.h.b16 %v960
    %v2170 = vunpack.c.l.b16 %v961
    %v2171 = vunpack.c.h.b16 %v961
    %v2172 = vunpack.c.l.b16 %v962
    %v2173 = vunpack.c.h.b16 %v962
    %v2174 = vunpack.c.l.b16 %v963
    %v2175 = vunpack.c.h.b16 %v963
    %v2176 = vunpack.c.l.b16 %v964
    %v2177 = vunpack.c.h.b16 %v964
    %v2178 = vunpack.c.l.b16 %v965
    %v2179 = vunpack.c.h.b16 %v965
    %v2180 = vunpack.c.l.b16 %v966
    %v2181 = vunpack.c.h.b16 %v966
    %v2182 = vunpack.c.l.b16 %v967
    %v2183 = vunpack.c.h.b16 %v967
    %v2184 = vunpack.c.l.b16 %v968
    %v2185 = vunpack.c.h.b16 %v968
    %v2186 = vunpack.c.l.b16 %v969
    %v2187 = vunpack.c.h.b16 %v969
    %v2188 = vunpack.c.l.b16 %v970
    %v2189 = vunpack.c.h.b16 %v970
    %v2190 = vunpack.c.l.b16 %v971
    %v2191 = vunpack.c.h.b16 %v971
    %v2192 = vunpack.c.l.b16 %v972
    %v2193 = vunpack.c.h.b16 %v972
    %v2194 = vunpack.c.l.b16 %v973
    %v2195 = vunpack.c.h.b16 %v973
    %v2196 = vunpack.c.l.b16 %v974
    %v2197 = vunpack.c.h.b16 %v974
    %v2198 = vunpack.c.l.b16 %v975
    %v2199 = vunpack.c.h.b16 %v975
    %v2200 = vunpack.c.l.b16 %v976
    %v2201 = vunpack.c.h.b16 %v976
    %v2202 = vunpack.c.l.b16 %v977
    %v2203 = vunpack.c.h.b16 %v977
    %v2204 = vunpack.c.l.b16 %v978
    %v2205 = vunpack.c.h.b16 %v978
    %v2206 = vunpack.c.l.b16 %v979
    %v2207 = vunpack.c.h.b16 %v979
    %v2208 = vunpack.c.l.b16 %v980
    %v2209 = vunpack.c.h.b16 %v980
    %v2210 = vunpack.c.l.b16 %v981
    %v2211 = vunpack.c.h.b16 %v981
    %v2212 = vunpack.c.l.b16 %v982
    %v2213 = vunpack.c.h.b16 %v982
    %v2214 = vunpack.c.l.b16 %v983
    %v2215 = vunpack.c.h.b16 %v983
    %v2216 = vunpack.c.l.b16 %v984
    %v2217 = vunpack.c.h.b16 %v984
    %v2218 = vunpack.c.l.b16 %v985
    %v2219 = vunpack.c.h.b16 %v985
    %v2220 = vunpack.c.l.b16 %v986
    %v2221 = vunpack.c.h.b16 %v986
    %v2222 = vunpack.c.l.b16 %v987
    %v2223 = vunpack.c.h.b16 %v987
    %v2224 = vunpack.c.l.b16 %v988
    %v2225 = vunpack.c.h.b16 %v988
    %v2226 = vunpack.c.l.b16 %v989
    %v2227 = vunpack.c.h.b16 %v989
    %v2228 = vunpack.c.l.b16 %v990
    %v2229 = vunpack.c.h.b16 %v990
    %v2230 = vunpack.c.l.b16 %v991
    %v2231 = vunpack.c.h.b16 %v991
    %v2232 = vunpack.c.l.b16 %v992
    %v2233 = vunpack.c.h.b16 %v992
    %v2234 = vunpack.c.l.b16 %v993
    %v2235 = vunpack.c.h.b16 %v993
    %v2236 = vunpack.c.l.b16 %v994
    %v2237 = vunpack.c.h.b16 %v994
    %v2238 = vunpack.c.l.b16 %v995
    %v2239 = vunpack.c.h.b16 %v995
    %v2240 = vunpack.c.l.b16 %v996
    %v2241 = vunpack.c.h.b16 %v996
    %v2242 = vunpack.c.l.b16 %v997
    %v2243 = vunpack.c.h.b16 %v997
    %v2244 = vunpack.c.l.b16 %v998
    %v2245 = vunpack.c.h.b16 %v998
    %v2246 = vunpack.c.l.b16 %v999
    %v2247 = vunpack.c.h.b16 %v999
    %v2248 = vunpack.c.l.b16 %v1000
    %v2249 = vunpack.c.h.b16 %v1000
    %v2250 = vunpack.c.l.b16 %v1001
    %v2251 = vunpack.c.h.b16 %v1001
    %v2252 = vunpack.c.l.b16 %v1002
    %v2253 = vunpack.c.h.b16 %v1002
    %v2254 = vunpack.c.l.b16 %v1003
    %v2255 = vunpack.c.h.b16 %v1003
    %v2256 = vunpack.c.l.b16 %v1004
    %v2257 = vunpack.c.h.b16 %v1004
    %v2258 = vunpack.c.l.b16 %v1005
    %v2259 = vunpack.c.h.b16 %v1005
    %v2260 = vunpack.c.l.b16 %v1006
    %v2261 = vunpack.c.h.b16 %v1006
    %v2262 = vunpack.c.l.b16 %v1007
    %v2263 = vunpack.c.h.b16 %v1007
    %v2264 = vunpack.c.l.b16 %v1008
    %v2265 = vunpack.c.h.b16 %v1008
    %v2266 = vunpack.c.l.b16 %v1009
    %v2267 = vunpack.c.h.b16 %v1009
    %v2268 = vunpack.c.l.b16 %v1010
    %v2269 = vunpack.c.h.b16 %v1010
    %v2270 = vunpack.c.l.b16 %v1011
    %v2271 = vunpack.c.h.b16 %v1011
    %v2272 = vunpack.c.l.b16 %v1012
    %v2273 = vunpack.c.h.b16 %v1012
    %v2274 = vunpack.c.l.b16 %v1013
    %v2275 = vunpack.c.h.b16 %v1013
    %v2276 = vunpack.c.l.b16 %v1014
    %v2277 = vunpack.c.h.b16 %v1014
    %v2278 = vunpack.c.l.b16 %v1015
    %v2279 = vunpack.c.h.b16 %v1015
    %v2280 = vunpack.c.l.b16 %v1016
    %v2281 = vunpack.c.h.b16 %v1016
    %v2282 = vunpack.c.l.b16 %v1017
    %v2283 = vunpack.c.h.b16 %v1017
    %v2284 = vunpack.c.l.b16 %v1018
    %v2285 = vunpack.c.h.b16 %v1018
    %v2286 = vunpack.c.l.b16 %v1019
    %v2287 = vunpack.c.h.b16 %v1019
    %v2288 = vunpack.c.l.b16 %v1020
    %v2289 = vunpack.c.h.b16 %v1020
    %v2290 = vunpack.c.l.b16 %v1021
    %v2291 = vunpack.c.h.b16 %v1021
    %v2292 = vunpack.c.l.b16 %v1022
    %v2293 = vunpack.c.h.b16 %v1022
    %v2294 = vunpack.c.l.b16 %v1023
    %v2295 = vunpack.c.h.b16 %v1023
    %v2296 = vunpack.c.l.b16 %v1024
    %v2297 = vunpack.c.h.b16 %v1024
    %v2298 = vunpack.c.l.b16 %v1025
    %v2299 = vunpack.c.h.b16 %v1025
    %v2300 = vunpack.c.l.b16 %v1026
    %v2301 = vunpack.c.h.b16 %v1026
    %v2302 = vunpack.c.l.b16 %v1027
    %v2303 = vunpack.c.h.b16 %v1027
    %v2304 = vunpack.c.l.b16 %v1028
    %v2305 = vunpack.c.h.b16 %v1028
    %v2306 = vunpack.c.l.b16 %v1029
    %v2307 = vunpack.c.h.b16 %v1029
    %v2308 = vunpack.c.l.b16 %v1030
    %v2309 = vunpack.c.h.b16 %v1030
    %v2310 = vunpack.c.l.b16 %v1031
    %v2311 = vunpack.c.h.b16 %v1031
    %v2312 = vunpack.c.l.b16 %v1032
    %v2313 = vunpack.c.h.b16 %v1032
    %v2314 = vunpack.c.l.b16 %v1033
    %v2315 = vunpack.c.h.b16 %v1033
    %v2316 = vunpack.c.l.b16 %v1034
    %v2317 = vunpack.c.h.b16 %v1034
    %v2318 = vunpack.c.l.b16 %v1035
    %v2319 = vunpack.c.h.b16 %v1035
    %v2320 = vunpack.c.l.b16 %v1036
    %v2321 = vunpack.c.h.b16 %v1036
    %v2322 = vunpack.c.l.b16 %v1037
    %v2323 = vunpack.c.h.b16 %v1037
    %v2324 = vunpack.c.l.b16 %v1038
    %v2325 = vunpack.c.h.b16 %v1038
    %v2326 = vunpack.c.l.b16 %v1039
    %v2327 = vunpack.c.h.b16 %v1039
    %v2328 = vunpack.c.l.b16 %v1040
    %v2329 = vunpack.c.h.b16 %v1040
    %v2330 = vunpack.c.l.b16 %v1041
    %v2331 = vunpack.c.h.b16 %v1041
    %v2332 = vunpack.c.l.b16 %v1042
    %v2333 = vunpack.c.h.b16 %v1042
    %v2334 = vunpack.c.l.b16 %v1043
    %v2335 = vunpack.c.h.b16 %v1043
    %v2336 = vunpack.c.l.b16 %v1044
    %v2337 = vunpack.c.h.b16 %v1044
    %v2338 = vunpack.c.l.b16 %v1045
    %v2339 = vunpack.c.h.b16 %v1045
    %v2340 = vunpack.c.l.b16 %v1046
    %v2341 = vunpack.c.h.b16 %v1046
    %v2342 = vunpack.c.l.b16 %v1047
    %v2343 = vunpack.c.h.b16 %v1047
    %v2344 = vunpack.c.l.b16 %v1048
    %v2345 = vunpack.c.h.b16 %v1048
    %v2346 = vunpack.c.l.b16 %v1049
    %v2347 = vunpack.c.h.b16 %v1049
    %v2348 = vunpack.c.l.b16 %v1050
    %v2349 = vunpack.c.h.b16 %v1050
    %v2350 = vunpack.c.l.b16 %v1051
    %v2351 = vunpack.c.h.b16 %v1051
    %v2352 = vunpack.c.l.b16 %v1052
    %v2353 = vunpack.c.h.b16 %v1052
    %v2354 = vunpack.c.l.b16 %v1053
    %v2355 = vunpack.c.h.b16 %v1053
    %v2356 = vunpack.c.l.b16 %v1054
    %v2357 = vunpack.c.h.b16 %v1054
    %v2358 = vunpack.c.l.b16 %v1055
    %v2359 = vunpack.c.h.b16 %v1055
    %v2360 = vunpack.c.l.b16 %v1056
    %v2361 = vunpack.c.h.b16 %v1056
    %v2362 = vunpack.c.l.b16 %v1057
    %v2363 = vunpack.c.h.b16 %v1057
    %v2364 = vunpack.c.l.b16 %v1058
    %v2365 = vunpack.c.h.b16 %v1058
    %v2366 = vunpack.c.l.b16 %v1059
    %v2367 = vunpack.c.h.b16 %v1059
    %v2368 = vunpack.c.l.b16 %v1060
    %v2369 = vunpack.c.h.b16 %v1060
    %v2370 = vunpack.c.l.b16 %v1061
    %v2371 = vunpack.c.h.b16 %v1061
    %v2372 = vunpack.c.l.b16 %v1062
    %v2373 = vunpack.c.h.b16 %v1062
    %v2374 = vunpack.c.l.b16 %v1063
    %v2375 = vunpack.c.h.b16 %v1063
    %v2376 = vunpack.c.l.b16 %v1064
    %v2377 = vunpack.c.h.b16 %v1064
    %v2378 = vunpack.c.l.b16 %v1065
    %v2379 = vunpack.c.h.b16 %v1065
    %v2380 = vunpack.c.l.b16 %v1066
    %v2381 = vunpack.c.h.b16 %v1066
    %v2382 = vunpack.c.l.b16 %v1067
    %v2383 = vunpack.c.h.b16 %v1067
    %v2384 = vunpack.c.l.b16 %v1068
    %v2385 = vunpack.c.h.b16 %v1068
    %v2386 = vunpack.c.l.b16 %v1069
    %v2387 = vunpack.c.h.b16 %v1069
    %v2388 = vunpack.c.l.b16 %v1070
    %v2389 = vunpack.c.h.b16 %v1070
    %v2390 = vunpack.c.l.b16 %v1071
    %v2391 = vunpack.c.h.b16 %v1071
    %v2392 = vunpack.c.l.b16 %v1072
    %v2393 = vunpack.c.h.b16 %v1072
    %v2394 = vunpack.c.l.b16 %v1073
    %v2395 = vunpack.c.h.b16 %v1073
    %v2396 = vunpack.c.l.b16 %v1074
    %v2397 = vunpack.c.h.b16 %v1074
    %v2398 = vunpack.c.l.b16 %v1075
    %v2399 = vunpack.c.h.b16 %v1075
    %v2400 = vunpack.c.l.b16 %v1076
    %v2401 = vunpack.c.h.b16 %v1076
    %v2402 = vunpack.c.l.b16 %v1077
    %v2403 = vunpack.c.h.b16 %v1077
    %v2404 = vunpack.c.l.b16 %v1078
    %v2405 = vunpack.c.h.b16 %v1078
    %v2406 = vunpack.c.l.b16 %v1079
    %v2407 = vunpack.c.h.b16 %v1079
    %v2408 = vunpack.c.l.b16 %v1080
    %v2409 = vunpack.c.h.b16 %v1080
    %v2410 = vunpack.c.l.b16 %v1081
    %v2411 = vunpack.c.h.b16 %v1081
    %v2412 = vunpack.c.l.b16 %v1082
    %v2413 = vunpack.c.h.b16 %v1082
    %v2414 = vunpack.c.l.b16 %v1083
    %v2415 = vunpack.c.h.b16 %v1083
    %v2416 = vunpack.c.l.b16 %v1084
    %v2417 = vunpack.c.h.b16 %v1084
    %v2418 = vunpack.c.l.b16 %v1085
    %v2419 = vunpack.c.h.b16 %v1085
    %v2420 = vunpack.c.l.b16 %v1086
    %v2421 = vunpack.c.h.b16 %v1086
    %v2422 = vunpack.c.l.b16 %v1087
    %v2423 = vunpack.c.h.b16 %v1087
    %v2424 = vunpack.c.l.b16 %v1088
    %v2425 = vunpack.c.h.b16 %v1088
    %v2426 = vunpack.c.l.b16 %v1089
    %v2427 = vunpack.c.h.b16 %v1089
    %v2428 = vunpack.c.l.b16 %v1090
    %v2429 = vunpack.c.h.b16 %v1090
    %v2430 = vunpack.c.l.b16 %v1091
    %v2431 = vunpack.c.h.b16 %v1091
    %v2432 = vunpack.c.l.b16 %v1092
    %v2433 = vunpack.c.h.b16 %v1092
    %v2434 = vunpack.c.l.b16 %v1093
    %v2435 = vunpack.c.h.b16 %v1093
    %v2436 = vunpack.c.l.b16 %v1094
    %v2437 = vunpack.c.h.b16 %v1094
    %v2438 = vunpack.c.l.b16 %v1095
    %v2439 = vunpack.c.h.b16 %v1095
    %v2440 = vunpack.c.l.b16 %v1096
    %v2441 = vunpack.c.h.b16 %v1096
    %v2442 = vunpack.c.l.b16 %v1097
    %v2443 = vunpack.c.h.b16 %v1097
    %v2444 = vunpack.c.l.b16 %v1098
    %v2445 = vunpack.c.h.b16 %v1098
    %v2446 = vunpack.c.l.b16 %v1099
    %v2447 = vunpack.c.h.b16 %v1099
    %v2448 = vunpack.c.l.b16 %v1100
    %v2449 = vunpack.c.h.b16 %v1100
    %v2450 = vunpack.c.l.b16 %v1101
    %v2451 = vunpack.c.h.b16 %v1101
    %v2452 = vunpack.c.l.b16 %v1102
    %v2453 = vunpack.c.h.b16 %v1102
    %v2454 = vunpack.c.l.b16 %v1103
    %v2455 = vunpack.c.h.b16 %v1103
    %v2456 = vunpack.c.l.b16 %v1104
    %v2457 = vunpack.c.h.b16 %v1104
    %v2458 = vunpack.c.l.b16 %v1105
    %v2459 = vunpack.c.h.b16 %v1105
    %v2460 = vunpack.c.l.b16 %v1106
    %v2461 = vunpack.c.h.b16 %v1106
    %v2462 = vunpack.c.l.b16 %v1107
    %v2463 = vunpack.c.h.b16 %v1107
    %v2464 = vunpack.c.l.b16 %v1108
    %v2465 = vunpack.c.h.b16 %v1108
    %v2466 = vunpack.c.l.b16 %v1109
    %v2467 = vunpack.c.h.b16 %v1109
    %v2468 = vunpack.c.l.b16 %v1110
    %v2469 = vunpack.c.h.b16 %v1110
    %v2470 = vunpack.c.l.b16 %v1111
    %v2471 = vunpack.c.h.b16 %v1111
    %v2472 = vunpack.c.l.b16 %v1112
    %v2473 = vunpack.c.h.b16 %v1112
    %v2474 = vunpack.c.l.b16 %v1113
    %v2475 = vunpack.c.h.b16 %v1113
    %v2476 = vunpack.c.l.b16 %v1114
    %v2477 = vunpack.c.h.b16 %v1114
    %v2478 = vunpack.c.l.b16 %v1115
    %v2479 = vunpack.c.h.b16 %v1115
    %v2480 = vunpack.c.l.b16 %v1116
    %v2481 = vunpack.c.h.b16 %v1116
    %v2482 = vunpack.c.l.b16 %v1117
    %v2483 = vunpack.c.h.b16 %v1117
    %v2484 = vunpack.c.l.b16 %v1118
    %v2485 = vunpack.c.h.b16 %v1118
    %v2486 = vunpack.c.l.b16 %v1119
    %v2487 = vunpack.c.h.b16 %v1119
    %v2488 = vunpack.c.l.b16 %v1120
    %v2489 = vunpack.c.h.b16 %v1120
    %v2490 = vunpack.c.l.b16 %v1121
    %v2491 = vunpack.c.h.b16 %v1121
    %v2492 = vunpack.c.l.b16 %v1122
    %v2493 = vunpack.c.h.b16 %v1122
    %v2494 = vunpack.c.l.b16 %v1123
    %v2495 = vunpack.c.h.b16 %v1123
    %v2496 = vunpack.c.l.b16 %v1124
    %v2497 = vunpack.c.h.b16 %v1124
    %v2498 = vunpack.c.l.b16 %v1125
    %v2499 = vunpack.c.h.b16 %v1125
    %v2500 = vunpack.c.l.b16 %v1126
    %v2501 = vunpack.c.h.b16 %v1126
    %v2502 = vunpack.c.l.b16 %v1127
    %v2503 = vunpack.c.h.b16 %v1127
    %v2504 = vunpack.c.l.b16 %v1128
    %v2505 = vunpack.c.h.b16 %v1128
    %v2506 = vunpack.c.l.b16 %v1129
    %v2507 = vunpack.c.h.b16 %v1129
    %v2508 = vunpack.c.l.b16 %v1130
    %v2509 = vunpack.c.h.b16 %v1130
    %v2510 = vunpack.c.l.b16 %v1131
    %v2511 = vunpack.c.h.b16 %v1131
    %v2512 = vunpack.c.l.b16 %v1132
    %v2513 = vunpack.c.h.b16 %v1132
    %v2514 = vunpack.c.l.b16 %v1133
    %v2515 = vunpack.c.h.b16 %v1133
    %v2516 = vunpack.c.l.b16 %v1134
    %v2517 = vunpack.c.h.b16 %v1134
    %v2518 = vunpack.c.l.b16 %v1135
    %v2519 = vunpack.c.h.b16 %v1135
    %v2520 = vunpack.c.l.b16 %v1136
    %v2521 = vunpack.c.h.b16 %v1136
    %v2522 = vunpack.c.l.b16 %v1137
    %v2523 = vunpack.c.h.b16 %v1137
    %v2524 = vunpack.c.l.b16 %v1138
    %v2525 = vunpack.c.h.b16 %v1138
    %v2526 = vunpack.c.l.b16 %v1139
    %v2527 = vunpack.c.h.b16 %v1139
    %v2528 = vunpack.c.l.b16 %v1140
    %v2529 = vunpack.c.h.b16 %v1140
    %v2530 = vunpack.c.l.b16 %v1141
    %v2531 = vunpack.c.h.b16 %v1141
    %v2532 = vunpack.c.l.b16 %v1142
    %v2533 = vunpack.c.h.b16 %v1142
    %v2534 = vunpack.c.l.b16 %v1143
    %v2535 = vunpack.c.h.b16 %v1143
    %v2536 = vunpack.c.l.b16 %v1144
    %v2537 = vunpack.c.h.b16 %v1144
    %v2538 = vunpack.c.l.b16 %v1145
    %v2539 = vunpack.c.h.b16 %v1145
    %v2540 = vunpack.c.l.b16 %v1146
    %v2541 = vunpack.c.h.b16 %v1146
    %v2542 = vunpack.c.l.b16 %v1147
    %v2543 = vunpack.c.h.b16 %v1147
    %v2544 = vunpack.c.l.b16 %v1148
    %v2545 = vunpack.c.h.b16 %v1148
    %v2546 = vunpack.c.l.b16 %v1149
    %v2547 = vunpack.c.h.b16 %v1149
    %v2548 = vunpack.c.l.b16 %v1150
    %v2549 = vunpack.c.h.b16 %v1150
    %v2550 = vunpack.c.l.b16 %v1151
    %v2551 = vunpack.c.h.b16 %v1151
    %v2552 = vunpack.c.l.b16 %v1152
    %v2553 = vunpack.c.h.b16 %v1152
    %v2554 = vunpack.c.l.b16 %v1153
    %v2555 = vunpack.c.h.b16 %v1153
    %v2556 = vunpack.c.l.b16 %v1154
    %v2557 = vunpack.c.h.b16 %v1154
    %v2558 = vunpack.c.l.b16 %v1155
    %v2559 = vunpack.c.h.b16 %v1155
    %v2560 = vunpack.c.l.b16 %v1156
    %v2561 = vunpack.c.h.b16 %v1156
    %v2562 = vunpack.c.l.b16 %v1157
    %v2563 = vunpack.c.h.b16 %v1157
    %v2564 = vunpack.c.l.b16 %v1158
    %v2565 = vunpack.c.h.b16 %v1158
    %v2566 = vunpack.c.l.b16 %v1159
    %v2567 = vunpack.c.h.b16 %v1159
    %v2568 = vunpack.c.l.b16 %v1160
    %v2569 = vunpack.c.h.b16 %v1160
    %v2570 = vunpack.c.l.b16 %v1161
    %v2571 = vunpack.c.h.b16 %v1161
    %v2572 = vunpack.c.l.b16 %v1162
    %v2573 = vunpack.c.h.b16 %v1162
    %v2574 = vunpack.c.l.b16 %v1163
    %v2575 = vunpack.c.h.b16 %v1163
    %v2576 = vunpack.c.l.b16 %v1164
    %v2577 = vunpack.c.h.b16 %v1164
    %v2578 = vunpack.c.l.b16 %v1165
    %v2579 = vunpack.c.h.b16 %v1165
    %v2580 = vunpack.c.l.b16 %v1166
    %v2581 = vunpack.c.h.b16 %v1166
    %v2582 = vunpack.c.l.b16 %v1167
    %v2583 = vunpack.c.h.b16 %v1167
    %v2584 = vunpack.c.l.b16 %v1168
    %v2585 = vunpack.c.h.b16 %v1168
    %v2586 = vunpack.c.l.b16 %v1169
    %v2587 = vunpack.c.h.b16 %v1169
    %v2588 = vunpack.c.l.b16 %v1170
    %v2589 = vunpack.c.h.b16 %v1170
    %v2590 = vunpack.c.l.b16 %v1171
    %v2591 = vunpack.c.h.b16 %v1171
    %v2592 = vunpack.c.l.b16 %v1172
    %v2593 = vunpack.c.h.b16 %v1172
    %v2594 = vunpack.c.l.b16 %v1173
    %v2595 = vunpack.c.h.b16 %v1173
    %v2596 = vunpack.c.l.b16 %v1174
    %v2597 = vunpack.c.h.b16 %v1174
    %v2598 = vunpack.c.l.b16 %v1175
    %v2599 = vunpack.c.h.b16 %v1175
    %v2600 = vunpack.c.l.b16 %v1176
    %v2601 = vunpack.c.h.b16 %v1176
    %v2602 = vunpack.c.l.b16 %v1177
    %v2603 = vunpack.c.h.b16 %v1177
    %v2604 = vunpack.c.l.b16 %v1178
    %v2605 = vunpack.c.h.b16 %v1178
    %v2606 = vunpack.c.l.b16 %v1179
    %v2607 = vunpack.c.h.b16 %v1179
    %v2608 = vunpack.c.l.b16 %v1180
    %v2609 = vunpack.c.h.b16 %v1180
    %v2610 = vunpack.c.l.b16 %v1181
    %v2611 = vunpack.c.h.b16 %v1181
    %v2612 = vunpack.c.l.b16 %v1182
    %v2613 = vunpack.c.h.b16 %v1182
    %v2614 = vunpack.c.l.b16 %v1183
    %v2615 = vunpack.c.h.b16 %v1183
    %v2616 = vunpack.c.l.b16 %v1184
    %v2617 = vunpack.c.h.b16 %v1184
    %v2618 = vunpack.c.l.b16 %v1185
    %v2619 = vunpack.c.h.b16 %v1185
    %v2620 = vunpack.c.l.b16 %v1186
    %v2621 = vunpack.c.h.b16 %v1186
    %v2622 = vunpack.c.l.b16 %v1187
    %v2623 = vunpack.c.h.b16 %v1187
    %v2624 = vunpack.c.l.b16 %v1188
    %v2625 = vunpack.c.h.b16 %v1188
    %v2626 = vunpack.c.l.b16 %v1189
    %v2627 = vunpack.c.h.b16 %v1189
    %v2628 = vunpack.c.l.b16 %v1190
    %v2629 = vunpack.c.h.b16 %v1190
    %v2630 = vunpack.c.l.b16 %v1191
    %v2631 = vunpack.c.h.b16 %v1191
    %v2632 = vunpack.c.l.b16 %v1192
    %v2633 = vunpack.c.h.b16 %v1192
    %v2634 = vunpack.c.l.b16 %v1193
    %v2635 = vunpack.c.h.b16 %v1193
    %v2636 = vunpack.c.l.b16 %v1194
    %v2637 = vunpack.c.h.b16 %v1194
    %v2638 = vunpack.c.l.b16 %v1195
    %v2639 = vunpack.c.h.b16 %v1195
    %v2640 = vunpack.c.l.b16 %v1196
    %v2641 = vunpack.c.h.b16 %v1196
    %v2642 = vunpack.c.l.b16 %v1197
    %v2643 = vunpack.c.h.b16 %v1197
    %v2644 = vunpack.c.l.b16 %v1198
    %v2645 = vunpack.c.h.b16 %v1198
    %v2646 = vunpack.c.l.b16 %v1199
    %v2647 = vunpack.c.h.b16 %v1199
    %v2648 = vunpack.c.l.b16 %v1200
    %v2649 = vunpack.c.h.b16 %v1200
    %v2650 = vunpack.c.l.b16 %v1201
    %v2651 = vunpack.c.h.b16 %v1201
    %v2652 = vunpack.c.l.b16 %v1202
    %v2653 = vunpack.c.h.b16 %v1202
    %v2654 = vunpack.c.l.b16 %v1203
    %v2655 = vunpack.c.h.b16 %v1203
    %v2656 = vunpack.c.l.b16 %v1204
    %v2657 = vunpack.c.h.b16 %v1204
    %v2658 = vunpack.c.l.b16 %v1205
    %v2659 = vunpack.c.h.b16 %v1205
    %v2660 = vunpack.c.l.b16 %v1206
    %v2661 = vunpack.c.h.b16 %v1206
    %v2662 = vunpack.c.l.b16 %v1207
    %v2663 = vunpack.c.h.b16 %v1207
    %v2664 = vunpack.c.l.b16 %v1208
    %v2665 = vunpack.c.h.b16 %v1208
    %v2666 = vunpack.c.l.b16 %v1209
    %v2667 = vunpack.c.h.b16 %v1209
    %v2668 = vunpack.c.l.b16 %v1210
    %v2669 = vunpack.c.h.b16 %v1210
    %v2670 = vunpack.c.l.b16 %v1211
    %v2671 = vunpack.c.h.b16 %v1211
    %v2672 = vunpack.c.l.b16 %v1212
    %v2673 = vunpack.c.h.b16 %v1212
    %v2674 = vunpack.c.l.b16 %v1213
    %v2675 = vunpack.c.h.b16 %v1213
    %v2676 = vunpack.c.l.b16 %v1214
    %v2677 = vunpack.c.h.b16 %v1214
    %v2678 = vunpack.c.l.b16 %v1215
    %v2679 = vunpack.c.h.b16 %v1215
    %v2680 = vunpack.c.l.b16 %v1216
    %v2681 = vunpack.c.h.b16 %v1216
    %v2682 = vunpack.c.l.b16 %v1217
    %v2683 = vunpack.c.h.b16 %v1217
    %v2684 = vunpack.c.l.b16 %v1218
    %v2685 = vunpack.c.h.b16 %v1218
    %v2686 = vunpack.c.l.b16 %v1219
    %v2687 = vunpack.c.h.b16 %v1219
    %v2688 = vunpack.c.l.b16 %v1220
    %v2689 = vunpack.c.h.b16 %v1220
    %v2690 = vunpack.c.l.b16 %v1221
    %v2691 = vunpack.c.h.b16 %v1221
    %v2692 = vunpack.c.l.b16 %v1222
    %v2693 = vunpack.c.h.b16 %v1222
    %v2694 = vunpack.c.l.b16 %v1223
    %v2695 = vunpack.c.h.b16 %v1223
    %v2696 = vunpack.c.l.b16 %v1224
    %v2697 = vunpack.c.h.b16 %v1224
    %v2698 = vunpack.c.l.b16 %v1225
    %v2699 = vunpack.c.h.b16 %v1225
    %v2700 = vunpack.c.l.b16 %v1226
    %v2701 = vunpack.c.h.b16 %v1226
    %v2702 = vunpack.c.l.b16 %v1227
    %v2703 = vunpack.c.h.b16 %v1227
    %v2704 = vunpack.c.l.b16 %v1228
    %v2705 = vunpack.c.h.b16 %v1228
    %v2706 = vunpack.c.l.b16 %v1229
    %v2707 = vunpack.c.h.b16 %v1229
    %v2708 = vunpack.c.l.b16 %v1230
    %v2709 = vunpack.c.h.b16 %v1230
    %v2710 = vunpack.c.l.b16 %v1231
    %v2711 = vunpack.c.h.b16 %v1231
    %v2712 = vunpack.c.l.b16 %v1232
    %v2713 = vunpack.c.h.b16 %v1232
    %v2714 = vunpack.c.l.b16 %v1233
    %v2715 = vunpack.c.h.b16 %v1233
    %v2716 = vunpack.c.l.b16 %v1234
    %v2717 = vunpack.c.h.b16 %v1234
    %v2718 = vunpack.c.l.b16 %v1235
    %v2719 = vunpack.c.h.b16 %v1235
    %v2720 = vunpack.c.l.b16 %v1236
    %v2721 = vunpack.c.h.b16 %v1236
    %v2722 = vunpack.c.l.b16 %v1237
    %v2723 = vunpack.c.h.b16 %v1237
    %v2724 = vunpack.c.l.b16 %v1238
    %v2725 = vunpack.c.h.b16 %v1238
    %v2726 = vunpack.c.l.b16 %v1239
    %v2727 = vunpack.c.h.b16 %v1239
    %v2728 = vunpack.c.l.b16 %v1240
    %v2729 = vunpack.c.h.b16 %v1240
    %v2730 = vunpack.c.l.b16 %v1241
    %v2731 = vunpack.c.h.b16 %v1241
    %v2732 = vunpack.c.l.b16 %v1242
    %v2733 = vunpack.c.h.b16 %v1242
    %v2734 = vunpack.c.l.b16 %v1243
    %v2735 = vunpack.c.h.b16 %v1243
    %v2736 = vunpack.c.l.b16 %v1244
    %v2737 = vunpack.c.h.b16 %v1244
    %v2738 = vunpack.c.l.b16 %v1245
    %v2739 = vunpack.c.h.b16 %v1245
    %v2740 = vunpack.c.l.b16 %v1246
    %v2741 = vunpack.c.h.b16 %v1246
    %v2742 = vunpack.c.l.b16 %v1247
    %v2743 = vunpack.c.h.b16 %v1247
    %v2744 = vunpack.c.l.b16 %v1248
    %v2745 = vunpack.c.h.b16 %v1248
    %v2746 = vunpack.c.l.b16 %v1249
    %v2747 = vunpack.c.h.b16 %v1249
    %v2748 = vunpack.c.l.b16 %v1250
    %v2749 = vunpack.c.h.b16 %v1250
    %v2750 = vunpack.c.l.b16 %v1251
    %v2751 = vunpack.c.h.b16 %v1251
    %v2752 = vunpack.c.l.b16 %v1252
    %v2753 = vunpack.c.h.b16 %v1252
    %v2754 = vunpack.c.l.b16 %v1253
    %v2755 = vunpack.c.h.b16 %v1253
    %v2756 = vunpack.c.l.b16 %v1254
    %v2757 = vunpack.c.h.b16 %v1254
    %v2758 = vunpack.c.l.b16 %v1255
    %v2759 = vunpack.c.h.b16 %v1255
    %v2760 = vunpack.c.l.b16 %v1256
    %v2761 = vunpack.c.h.b16 %v1256
    %v2762 = vunpack.c.l.b16 %v1257
    %v2763 = vunpack.c.h.b16 %v1257
    %v2764 = vunpack.c.l.b16 %v1258
    %v2765 = vunpack.c.h.b16 %v1258
    %v2766 = vunpack.c.l.b16 %v1259
    %v2767 = vunpack.c.h.b16 %v1259
    %v2768 = vunpack.c.l.b16 %v1260
    %v2769 = vunpack.c.h.b16 %v1260
    %v2770 = vunpack.c.l.b16 %v1261
    %v2771 = vunpack.c.h.b16 %v1261
    %v2772 = vunpack.c.l.b16 %v1262
    %v2773 = vunpack.c.h.b16 %v1262
    %v2774 = vunpack.c.l.b16 %v1263
    %v2775 = vunpack.c.h.b16 %v1263
    %v2776 = vunpack.c.l.b16 %v1264
    %v2777 = vunpack.c.h.b16 %v1264
    %v2778 = vunpack.c.l.b16 %v1265
    %v2779 = vunpack.c.h.b16 %v1265
    %v2780 = vunpack.c.l.b16 %v1266
    %v2781 = vunpack.c.h.b16 %v1266
    %v2782 = vunpack.c.l.b16 %v1267
    %v2783 = vunpack.c.h.b16 %v1267
    %v2784 = vunpack.c.l.b16 %v1268
    %v2785 = vunpack.c.h.b16 %v1268
    %v2786 = vunpack.c.l.b16 %v1269
    %v2787 = vunpack.c.h.b16 %v1269
    %v2788 = vunpack.c.l.b16 %v1270
    %v2789 = vunpack.c.h.b16 %v1270
    %v2790 = vunpack.c.l.b16 %v1271
    %v2791 = vunpack.c.h.b16 %v1271
    %v2792 = vunpack.c.l.b16 %v1272
    %v2793 = vunpack.c.h.b16 %v1272
    %v2794 = vunpack.c.l.b16 %v1273
    %v2795 = vunpack.c.h.b16 %v1273
    %v2796 = vunpack.c.l.b16 %v1274
    %v2797 = vunpack.c.h.b16 %v1274
    %v2798 = vunpack.c.l.b16 %v1275
    %v2799 = vunpack.c.h.b16 %v1275
    %v2800 = vunpack.c.l.b16 %v1276
    %v2801 = vunpack.c.h.b16 %v1276
    %v2802 = vunpack.c.l.b16 %v1277
    %v2803 = vunpack.c.h.b16 %v1277
    %v2804 = vunpack.c.l.b16 %v1278
    %v2805 = vunpack.c.h.b16 %v1278
    %v2806 = vunpack.c.l.b16 %v1279
    %v2807 = vunpack.c.h.b16 %v1279
    %v2808 = vunpack.c.l.b16 %v1280
    %v2809 = vunpack.c.h.b16 %v1280
    %v2810 = vunpack.c.l.b16 %v1281
    %v2811 = vunpack.c.h.b16 %v1281
    %v2812 = vunpack.c.l.b16 %v1282
    %v2813 = vunpack.c.h.b16 %v1282
    %v2814 = vunpack.c.l.b16 %v1283
    %v2815 = vunpack.c.h.b16 %v1283
    %v2816 = vunpack.c.l.b16 %v1284
    %v2817 = vunpack.c.h.b16 %v1284
    %v2818 = vunpack.c.l.b16 %v1285
    %v2819 = vunpack.c.h.b16 %v1285
    %v2820 = vunpack.c.l.b16 %v1286
    %v2821 = vunpack.c.h.b16 %v1286
    %v2822 = vunpack.c.l.b16 %v1287
    %v2823 = vunpack.c.h.b16 %v1287
    %v2824 = vunpack.c.l.b16 %v1288
    %v2825 = vunpack.c.h.b16 %v1288
    %v2826 = vunpack.c.l.b16 %v1289
    %v2827 = vunpack.c.h.b16 %v1289
    %v2828 = vunpack.c.l.b16 %v1290
    %v2829 = vunpack.c.h.b16 %v1290
    %v2830 = vunpack.c.l.b16 %v1291
    %v2831 = vunpack.c.h.b16 %v1291
    %v2832 = vunpack.c.l.b16 %v1292
    %v2833 = vunpack.c.h.b16 %v1292
    %v2834 = vunpack.c.l.b16 %v1293
    %v2835 = vunpack.c.h.b16 %v1293
    %v2836 = vunpack.c.l.b16 %v1294
    %v2837 = vunpack.c.h.b16 %v1294
    %v2838 = vunpack.c.l.b16 %v1295
    %v2839 = vunpack.c.h.b16 %v1295
    %v2840 = vunpack.c.l.b16 %v1296
    %v2841 = vunpack.c.h.b16 %v1296
    %v2842 = vunpack.c.l.b16 %v1297
    %v2843 = vunpack.c.h.b16 %v1297
    %v2844 = vunpack.c.l.b16 %v1298
    %v2845 = vunpack.c.h.b16 %v1298
    %v2846 = vunpack.c.l.b16 %v1299
    %v2847 = vunpack.c.h.b16 %v1299
    %v2848 = vunpack.c.l.b16 %v1300
    %v2849 = vunpack.c.h.b16 %v1300
    %v2850 = vunpack.c.l.b16 %v1301
    %v2851 = vunpack.c.h.b16 %v1301
    %v2852 = vunpack.c.l.b16 %v1302
    %v2853 = vunpack.c.h.b16 %v1302
    %v2854 = vunpack.c.l.b16 %v1303
    %v2855 = vunpack.c.h.b16 %v1303
    %v2856 = vunpack.c.l.b16 %v1304
    %v2857 = vunpack.c.h.b16 %v1304
    %v2858 = vunpack.c.l.b16 %v1305
    %v2859 = vunpack.c.h.b16 %v1305
    %v2860 = vunpack.c.l.b16 %v1306
    %v2861 = vunpack.c.h.b16 %v1306
    %v2862 = vunpack.c.l.b16 %v1307
    %v2863 = vunpack.c.h.b16 %v1307
    %v2864 = vunpack.c.l.b16 %v1308
    %v2865 = vunpack.c.h.b16 %v1308
    %v2866 = vunpack.c.l.b16 %v1309
    %v2867 = vunpack.c.h.b16 %v1309
    %v2868 = vunpack.c.l.b16 %v1310
    %v2869 = vunpack.c.h.b16 %v1310
    %v2870 = vunpack.c.l.b16 %v1311
    %v2871 = vunpack.c.h.b16 %v1311
    %v2872 = vunpack.c.l.b16 %v1312
    %v2873 = vunpack.c.h.b16 %v1312
    %v2874 = vunpack.c.l.b16 %v1313
    %v2875 = vunpack.c.h.b16 %v1313
    %v2876 = vunpack.c.l.b16 %v1314
    %v2877 = vunpack.c.h.b16 %v1314
    %v2878 = vunpack.c.l.b16 %v1315
    %v2879 = vunpack.c.h.b16 %v1315
    %v2880 = vunpack.c.l.b16 %v1316
    %v2881 = vunpack.c.h.b16 %v1316
    %v2882 = vunpack.c.l.b16 %v1317
    %v2883 = vunpack.c.h.b16 %v1317
    %v2884 = vunpack.c.l.b16 %v1318
    %v2885 = vunpack.c.h.b16 %v1318
    %v2886 = vunpack.c.l.b16 %v1319
    %v2887 = vunpack.c.h.b16 %v1319
    %v2888 = vunpack.c.l.b16 %v1320
    %v2889 = vunpack.c.h.b16 %v1320
    %v2890 = vunpack.c.l.b16 %v1321
    %v2891 = vunpack.c.h.b16 %v1321
    %v2892 = vunpack.c.l.b16 %v1322
    %v2893 = vunpack.c.h.b16 %v1322
    %v2894 = vunpack.c.l.b16 %v1323
    %v2895 = vunpack.c.h.b16 %v1323
    %v2896 = vunpack.c.l.b16 %v1324
    %v2897 = vunpack.c.h.b16 %v1324
    %v2898 = vunpack.c.l.b16 %v1325
    %v2899 = vunpack.c.h.b16 %v1325
    %v2900 = vunpack.c.l.b16 %v1326
    %v2901 = vunpack.c.h.b16 %v1326
    %v2902 = vunpack.c.l.b16 %v1327
    %v2903 = vunpack.c.h.b16 %v1327
    %v2904 = vunpack.c.l.b16 %v1328
    %v2905 = vunpack.c.h.b16 %v1328
    %v2906 = vunpack.c.l.b16 %v1329
    %v2907 = vunpack.c.h.b16 %v1329
    %v2908 = vpack.c.b16 %v1892, %v1884
    %v2909 = vpack.c.b16 %v1893, %v1885
    %v2910 = vpack.c.b16 %v1894, %v1886
    %v2911 = vpack.c.b16 %v1895, %v1887
    %v2912 = vpack.c.b16 %v1896, %v1888
    %v2913 = vpack.c.b16 %v1897, %v1889
    %v2914 = vpack.c.b16 %v1898, %v1890
    %v2915 = vpack.c.b16 %v1899, %v1891
    %v2916 = vpack.c.b16 %v1908, %v1900
    %v2917 = vpack.c.b16 %v1909, %v1901
    %v2918 = vpack.c.b16 %v1910, %v1902
    %v2919 = vpack.c.b16 %v1911, %v1903
    %v2920 = vpack.c.b16 %v1912, %v1904
    %v2921 = vpack.c.b16 %v1913, %v1905
    %v2922 = vpack.c.b16 %v1914, %v1906
    %v2923 = vpack.c.b16 %v1915, %v1907
    %v2924 = vpack.c.b16 %v1924, %v1916
    %v2925 = vpack.c.b16 %v1925, %v1917
    %v2926 = vpack.c.b16 %v1926, %v1918
    %v2927 = vpack.c.b16 %v1927, %v1919
    %v2928 = vpack.c.b16 %v1928, %v1920
    %v2929 = vpack.c.b16 %v1929, %v1921
    %v2930 = vpack.c.b16 %v1930, %v1922
    %v2931 = vpack.c.b16 %v1931, %v1923
    %v2932 = vpack.c.b16 %v1940, %v1932
    %v2933 = vpack.c.b16 %v1941, %v1933
    %v2934 = vpack.c.b16 %v1942, %v1934
    %v2935 = vpack.c.b16 %v1943, %v1935
    %v2936 = vpack.c.b16 %v1944, %v1936
    %v2937 = vpack.c.b16 %v1945, %v1937
    %v2938 = vpack.c.b16 %v1946, %v1938
    %v2939 = vpack.c.b16 %v1947, %v1939
    %v2940 = vpack.c.b16 %v1956, %v1948
    %v2941 = vpack.c.b16 %v1957, %v1949
    %v2942 = vpack.c.b16 %v1958, %v1950
    %v2943 = vpack.c.b16 %v1959, %v1951
    %v2944 = vpack.c.b16 %v1960, %v1952
    %v2945 = vpack.c.b16 %v1961, %v1953
    %v2946 = vpack.c.b16 %v1962, %v1954
    %v2947 = vpack.c.b16 %v1963, %v1955
    %v2948 = vpack.c.b16 %v1972, %v1964
    %v2949 = vpack.c.b16 %v1973, %v1965
    %v2950 = vpack.c.b16 %v1974, %v1966
    %v2951 = vpack.c.b16 %v1975, %v1967
    %v2952 = vpack.c.b16 %v1976, %v1968
    %v2953 = vpack.c.b16 %v1977, %v1969
    %v2954 = vpack.c.b16 %v1978, %v1970
    %v2955 = vpack.c.b16 %v1979, %v1971
    %v2956 = vpack.c.b16 %v1988, %v1980
    %v2957 = vpack.c.b16 %v1989, %v1981
    %v2958 = vpack.c.b16 %v1990, %v1982
    %v2959 = vpack.c.b16 %v1991, %v1983
    %v2960 = vpack.c.b16 %v1992, %v1984
    %v2961 = vpack.c.b16 %v1993, %v1985
    %v2962 = vpack.c.b16 %v1994, %v1986
    %v2963 = vpack.c.b16 %v1995, %v1987
    %v2964 = vpack.c.b16 %v2004, %v1996
    %v2965 = vpack.c.b16 %v2005, %v1997
    %v2966 = vpack.c.b16 %v2006, %v1998
    %v2967 = vpack.c.b16 %v2007, %v1999
    %v2968 = vpack.c.b16 %v2008, %v2000
    %v2969 = vpack.c.b16 %v2009, %v2001
    %v2970 = vpack.c.b16 %v2010, %v2002
    %v2971 = vpack.c.b16 %v2011, %v2003
    %v2972 = vpack.c.b16 %v2020, %v2012
    %v2973 = vpack.c.b16 %v2021, %v2013
    %v2974 = vpack.c.b16 %v2022, %v2014
    %v2975 = vpack.c.b16 %v2023, %v2015
    %v2976 = vpack.c.b16 %v2024, %v2016
    %v2977 = vpack.c.b16 %v2025, %v2017
    %v2978 = vpack.c.b16 %v2026, %v2018
    %v2979 = vpack.c.b16 %v2027, %v2019
    %v2980 = vpack.c.b16 %v2036, %v2028
    %v2981 = vpack.c.b16 %v2037, %v2029
    %v2982 = vpack.c.b16 %v2038, %v2030
    %v2983 = vpack.c.b16 %v2039, %v2031
    %v2984 = vpack.c.b16 %v2040, %v2032
    %v2985 = vpack.c.b16 %v2041, %v2033
    %v2986 = vpack.c.b16 %v2042, %v2034
    %v2987 = vpack.c.b16 %v2043, %v2035
    %v2988 = vpack.c.b16 %v2052, %v2044
    %v2989 = vpack.c.b16 %v2053, %v2045
    %v2990 = vpack.c.b16 %v2054, %v2046
    %v2991 = vpack.c.b16 %v2055, %v2047
    %v2992 = vpack.c.b16 %v2056, %v2048
    %v2993 = vpack.c.b16 %v2057, %v2049
    %v2994 = vpack.c.b16 %v2058, %v2050
    %v2995 = vpack.c.b16 %v2059, %v2051
    %v2996 = vpack.c.b16 %v2068, %v2060
    %v2997 = vpack.c.b16 %v2069, %v2061
    %v2998 = vpack.c.b16 %v2070, %v2062
    %v2999 = vpack.c.b16 %v2071, %v2063
    %v3000 = vpack.c.b16 %v2072, %v2064
    %v3001 = vpack.c.b16 %v2073, %v2065
    %v3002 = vpack.c.b16 %v2074, %v2066
    %v3003 = vpack.c.b16 %v2075, %v2067
    %v3004 = vpack.c.b16 %v2084, %v2076
    %v3005 = vpack.c.b16 %v2085, %v2077
    %v3006 = vpack.c.b16 %v2086, %v2078
    %v3007 = vpack.c.b16 %v2087, %v2079
    %v3008 = vpack.c.b16 %v2088, %v2080
    %v3009 = vpack.c.b16 %v2089, %v2081
    %v3010 = vpack.c.b16 %v2090, %v2082
    %v3011 = vpack.c.b16 %v2091, %v2083
    %v3012 = vpack.c.b16 %v2100, %v2092
    %v3013 = vpack.c.b16 %v2101, %v2093
    %v3014 = vpack.c.b16 %v2102, %v2094
    %v3015 = vpack.c.b16 %v2103, %v2095
    %v3016 = vpack.c.b16 %v2104, %v2096
    %v3017 = vpack.c.b16 %v2105, %v2097
    %v3018 = vpack.c.b16 %v2106, %v2098
    %v3019 = vpack.c.b16 %v2107, %v2099
    %v3020 = vpack.c.b16 %v2116, %v2108
    %v3021 = vpack.c.b16 %v2117, %v2109
    %v3022 = vpack.c.b16 %v2118, %v2110
    %v3023 = vpack.c.b16 %v2119, %v2111
    %v3024 = vpack.c.b16 %v2120, %v2112
    %v3025 = vpack.c.b16 %v2121, %v2113
    %v3026 = vpack.c.b16 %v2122, %v2114
    %v3027 = vpack.c.b16 %v2123, %v2115
    %v3028 = vpack.c.b16 %v2132, %v2124
    %v3029 = vpack.c.b16 %v2133, %v2125
    %v3030 = vpack.c.b16 %v2134, %v2126
    %v3031 = vpack.c.b16 %v2135, %v2127
    %v3032 = vpack.c.b16 %v2136, %v2128
    %v3033 = vpack.c.b16 %v2137, %v2129
    %v3034 = vpack.c.b16 %v2138, %v2130
    %v3035 = vpack.c.b16 %v2139, %v2131
    %v3036 = vpack.c.b16 %v2148, %v2140
    %v3037 = vpack.c.b16 %v2149, %v2141
    %v3038 = vpack.c.b16 %v2150, %v2142
    %v3039 = vpack.c.b16 %v2151, %v2143
    %v3040 = vpack.c.b16 %v2152, %v2144
    %v3041 = vpack.c.b16 %v2153, %v2145
    %v3042 = vpack.c.b16 %v2154, %v2146
    %v3043 = vpack.c.b16 %v2155, %v2147
    %v3044 = vpack.c.b16 %v2164, %v2156
    %v3045 = vpack.c.b16 %v2165, %v2157
    %v3046 = vpack.c.b16 %v2166, %v2158
    %v3047 = vpack.c.b16 %v2167, %v2159
    %v3048 = vpack.c.b16 %v2168, %v2160
    %v3049 = vpack.c.b16 %v2169, %v2161
    %v3050 = vpack.c.b16 %v2170, %v2162
    %v3051 = vpack.c.b16 %v2171, %v2163
    %v3052 = vpack.c.b16 %v2180, %v2172
    %v3053 = vpack.c.b16 %v2181, %v2173
    %v3054 = vpack.c.b16 %v2182, %v2174
    %v3055 = vpack.c.b16 %v2183, %v2175
    %v3056 = vpack.c.b16 %v2184, %v2176
    %v3057 = vpack.c.b16 %v2185, %v2177
    %v3058 = vpack.c.b16 %v2186, %v2178
    %v3059 = vpack.c.b16 %v2187, %v2179
    %v3060 = vpack.c.b16 %v2196, %v2188
    %v3061 = vpack.c.b16 %v2197, %v2189
    %v3062 = vpack.c.b16 %v2198, %v2190
    %v3063 = vpack.c.b16 %v2199, %v2191
    %v3064 = vpack.c.b16 %v2200, %v2192
    %v3065 = vpack.c.b16 %v2201, %v2193
    %v3066 = vpack.c.b16 %v2202, %v2194
    %v3067 = vpack.c.b16 %v2203, %v2195
    %v3068 = vpack.c.b16 %v2212, %v2204
    %v3069 = vpack.c.b16 %v2213, %v2205
    %v3070 = vpack.c.b16 %v2214, %v2206
    %v3071 = vpack.c.b16 %v2215, %v2207
    %v3072 = vpack.c.b16 %v2216, %v2208
    %v3073 = vpack.c.b16 %v2217, %v2209
    %v3074 = vpack.c.b16 %v2218, %v2210
    %v3075 = vpack.c.b16 %v2219, %v2211
    %v3076 = vpack.c.b16 %v2228, %v2220
    %v3077 = vpack.c.b16 %v2229, %v2221
    %v3078 = vpack.c.b16 %v2230, %v2222
    %v3079 = vpack.c.b16 %v2231, %v2223
    %v3080 = vpack.c.b16 %v2232, %v2224
    %v3081 = vpack.c.b16 %v2233, %v2225
    %v3082 = vpack.c.b16 %v2234, %v2226
    %v3083 = vpack.c.b16 %v2235, %v2227
    %v3084 = vpack.c.b16 %v2244, %v2236
    %v3085 = vpack.c.b16 %v2245, %v2237
    %v3086 = vpack.c.b16 %v2246, %v2238
    %v3087 = vpack.c.b16 %v2247, %v2239
    %v3088 = vpack.c.b16 %v2248, %v2240
    %v3089 = vpack.c.b16 %v2249, %v2241
    %v3090 = vpack.c.b16 %v2250, %v2242
    %v3091 = vpack.c.b16 %v2251, %v2243
    %v3092 = vpack.c.b16 %v2260, %v2252
    %v3093 = vpack.c.b16 %v2261, %v2253
    %v3094 = vpack.c.b16 %v2262, %v2254
    %v3095 = vpack.c.b16 %v2263, %v2255
    %v3096 = vpack.c.b16 %v2264, %v2256
    %v3097 = vpack.c.b16 %v2265, %v2257
    %v3098 = vpack.c.b16 %v2266, %v2258
    %v3099 = vpack.c.b16 %v2267, %v2259
    %v3100 = vpack.c.b16 %v2276, %v2268
    %v3101 = vpack.c.b16 %v2277, %v2269
    %v3102 = vpack.c.b16 %v2278, %v2270
    %v3103 = vpack.c.b16 %v2279, %v2271
    %v3104 = vpack.c.b16 %v2280, %v2272
    %v3105 = vpack.c.b16 %v2281, %v2273
    %v3106 = vpack.c.b16 %v2282, %v2274
    %v3107 = vpack.c.b16 %v2283, %v2275
    %v3108 = vpack.c.b16 %v2292, %v2284
    %v3109 = vpack.c.b16 %v2293, %v2285
    %v3110 = vpack.c.b16 %v2294, %v2286
    %v3111 = vpack.c.b16 %v2295, %v2287
    %v3112 = vpack.c.b16 %v2296, %v2288
    %v3113 = vpack.c.b16 %v2297, %v2289
    %v3114 = vpack.c.b16 %v2298, %v2290
    %v3115 = vpack.c.b16 %v2299, %v2291
    %v3116 = vpack.c.b16 %v2308, %v2300
    %v3117 = vpack.c.b16 %v2309, %v2301
    %v3118 = vpack.c.b16 %v2310, %v2302
    %v3119 = vpack.c.b16 %v2311, %v2303
    %v3120 = vpack.c.b16 %v2312, %v2304
    %v3121 = vpack.c.b16 %v2313, %v2305
    %v3122 = vpack.c.b16 %v2314, %v2306
    %v3123 = vpack.c.b16 %v2315, %v2307
    %v3124 = vpack.c.b16 %v2324, %v2316
    %v3125 = vpack.c.b16 %v2325, %v2317
    %v3126 = vpack.c.b16 %v2326, %v2318
    %v3127 = vpack.c.b16 %v2327, %v2319
    %v3128 = vpack.c.b16 %v2328, %v2320
    %v3129 = vpack.c.b16 %v2329, %v2321
    %v3130 = vpack.c.b16 %v2330, %v2322
    %v3131 = vpack.c.b16 %v2331, %v2323
    %v3132 = vpack.c.b16 %v2340, %v2332
    %v3133 = vpack.c.b16 %v2341, %v2333
    %v3134 = vpack.c.b16 %v2342, %v2334
    %v3135 = vpack.c.b16 %v2343, %v2335
    %v3136 = vpack.c.b16 %v2344, %v2336
    %v3137 = vpack.c.b16 %v2345, %v2337
    %v3138 = vpack.c.b16 %v2346, %v2338
    %v3139 = vpack.c.b16 %v2347, %v2339
    %v3140 = vpack.c.b16 %v2356, %v2348
    %v3141 = vpack.c.b16 %v2357, %v2349
    %v3142 = vpack.c.b16 %v2358, %v2350
    %v3143 = vpack.c.b16 %v2359, %v2351
    %v3144 = vpack.c.b16 %v2360, %v2352
    %v3145 = vpack.c.b16 %v2361, %v2353
    %v3146 = vpack.c.b16 %v2362, %v2354
    %v3147 = vpack.c.b16 %v2363, %v2355
    %v3148 = vpack.c.b16 %v2372, %v2364
    %v3149 = vpack.c.b16 %v2373, %v2365
    %v3150 = vpack.c.b16 %v2374, %v2366
    %v3151 = vpack.c.b16 %v2375, %v2367
    %v3152 = vpack.c.b16 %v2376, %v2368
    %v3153 = vpack.c.b16 %v2377, %v2369
    %v3154 = vpack.c.b16 %v2378, %v2370
    %v3155 = vpack.c.b16 %v2379, %v2371
    %v3156 = vpack.c.b16 %v2388, %v2380
    %v3157 = vpack.c.b16 %v2389, %v2381
    %v3158 = vpack.c.b16 %v2390, %v2382
    %v3159 = vpack.c.b16 %v2391, %v2383
    %v3160 = vpack.c.b16 %v2392, %v2384
    %v3161 = vpack.c.b16 %v2393, %v2385
    %v3162 = vpack.c.b16 %v2394, %v2386
    %v3163 = vpack.c.b16 %v2395, %v2387
    %v3164 = vpack.c.b16 %v2404, %v2396
    %v3165 = vpack.c.b16 %v2405, %v2397
    %v3166 = vpack.c.b16 %v2406, %v2398
    %v3167 = vpack.c.b16 %v2407, %v2399
    %v3168 = vpack.c.b16 %v2408, %v2400
    %v3169 = vpack.c.b16 %v2409, %v2401
    %v3170 = vpack.c.b16 %v2410, %v2402
    %v3171 = vpack.c.b16 %v2411, %v2403
    %v3172 = vpack.c.b16 %v2420, %v2412
    %v3173 = vpack.c.b16 %v2421, %v2413
    %v3174 = vpack.c.b16 %v2422, %v2414
    %v3175 = vpack.c.b16 %v2423, %v2415
    %v3176 = vpack.c.b16 %v2424, %v2416
    %v3177 = vpack.c.b16 %v2425, %v2417
    %v3178 = vpack.c.b16 %v2426, %v2418
    %v3179 = vpack.c.b16 %v2427, %v2419
    %v3180 = vpack.c.b16 %v2436, %v2428
    %v3181 = vpack.c.b16 %v2437, %v2429
    %v3182 = vpack.c.b16 %v2438, %v2430
    %v3183 = vpack.c.b16 %v2439, %v2431
    %v3184 = vpack.c.b16 %v2440, %v2432
    %v3185 = vpack.c.b16 %v2441, %v2433
    %v3186 = vpack.c.b16 %v2442, %v2434
    %v3187 = vpack.c.b16 %v2443, %v2435
    %v3188 = vpack.c.b16 %v2452, %v2444
    %v3189 = vpack.c.b16 %v2453, %v2445
    %v3190 = vpack.c.b16 %v2454, %v2446
    %v3191 = vpack.c.b16 %v2455, %v2447
    %v3192 = vpack.c.b16 %v2456, %v2448
    %v3193 = vpack.c.b16 %v2457, %v2449
    %v3194 = vpack.c.b16 %v2458, %v2450
    %v3195 = vpack.c.b16 %v2459, %v2451
    %v3196 = vpack.c.b16 %v2468, %v2460
    %v3197 = vpack.c.b16 %v2469, %v2461
    %v3198 = vpack.c.b16 %v2470, %v2462
    %v3199 = vpack.c.b16 %v2471, %v2463
    %v3200 = vpack.c.b16 %v2472, %v2464
    %v3201 = vpack.c.b16 %v2473, %v2465
    %v3202 = vpack.c.b16 %v2474, %v2466
    %v3203 = vpack.c.b16 %v2475, %v2467
    %v3204 = vpack.c.b16 %v2484, %v2476
    %v3205 = vpack.c.b16 %v2485, %v2477
    %v3206 = vpack.c.b16 %v2486, %v2478
    %v3207 = vpack.c.b16 %v2487, %v2479
    %v3208 = vpack.c.b16 %v2488, %v2480
    %v3209 = vpack.c.b16 %v2489, %v2481
    %v3210 = vpack.c.b16 %v2490, %v2482
    %v3211 = vpack.c.b16 %v2491, %v2483
    %v3212 = vpack.c.b16 %v2500, %v2492
    %v3213 = vpack.c.b16 %v2501, %v2493
    %v3214 = vpack.c.b16 %v2502, %v2494
    %v3215 = vpack.c.b16 %v2503, %v2495
    %v3216 = vpack.c.b16 %v2504, %v2496
    %v3217 = vpack.c.b16 %v2505, %v2497
    %v3218 = vpack.c.b16 %v2506, %v2498
    %v3219 = vpack.c.b16 %v2507, %v2499
    %v3220 = vpack.c.b16 %v2516, %v2508
    %v3221 = vpack.c.b16 %v2517, %v2509
    %v3222 = vpack.c.b16 %v2518, %v2510
    %v3223 = vpack.c.b16 %v2519, %v2511
    %v3224 = vpack.c.b16 %v2520, %v2512
    %v3225 = vpack.c.b16 %v2521, %v2513
    %v3226 = vpack.c.b16 %v2522, %v2514
    %v3227 = vpack.c.b16 %v2523, %v2515
    %v3228 = vpack.c.b16 %v2532, %v2524
    %v3229 = vpack.c.b16 %v2533, %v2525
    %v3230 = vpack.c.b16 %v2534, %v2526
    %v3231 = vpack.c.b16 %v2535, %v2527
    %v3232 = vpack.c.b16 %v2536, %v2528
    %v3233 = vpack.c.b16 %v2537, %v2529
    %v3234 = vpack.c.b16 %v2538, %v2530
    %v3235 = vpack.c.b16 %v2539, %v2531
    %v3236 = vpack.c.b16 %v2548, %v2540
    %v3237 = vpack.c.b16 %v2549, %v2541
    %v3238 = vpack.c.b16 %v2550, %v2542
    %v3239 = vpack.c.b16 %v2551, %v2543
    %v3240 = vpack.c.b16 %v2552, %v2544
    %v3241 = vpack.c.b16 %v2553, %v2545
    %v3242 = vpack.c.b16 %v2554, %v2546
    %v3243 = vpack.c.b16 %v2555, %v2547
    %v3244 = vpack.c.b16 %v2564, %v2556
    %v3245 = vpack.c.b16 %v2565, %v2557
    %v3246 = vpack.c.b16 %v2566, %v2558
    %v3247 = vpack.c.b16 %v2567, %v2559
    %v3248 = vpack.c.b16 %v2568, %v2560
    %v3249 = vpack.c.b16 %v2569, %v2561
    %v3250 = vpack.c.b16 %v2570, %v2562
    %v3251 = vpack.c.b16 %v2571, %v2563
    %v3252 = vpack.c.b16 %v2580, %v2572
    %v3253 = vpack.c.b16 %v2581, %v2573
    %v3254 = vpack.c.b16 %v2582, %v2574
    %v3255 = vpack.c.b16 %v2583, %v2575
    %v3256 = vpack.c.b16 %v2584, %v2576
    %v3257 = vpack.c.b16 %v2585, %v2577
    %v3258 = vpack.c.b16 %v2586, %v2578
    %v3259 = vpack.c.b16 %v2587, %v2579
    %v3260 = vpack.c.b16 %v2596, %v2588
    %v3261 = vpack.c.b16 %v2597, %v2589
    %v3262 = vpack.c.b16 %v2598, %v2590
    %v3263 = vpack.c.b16 %v2599, %v2591
    %v3264 = vpack.c.b16 %v2600, %v2592
    %v3265 = vpack.c.b16 %v2601, %v2593
    %v3266 = vpack.c.b16 %v2602, %v2594
    %v3267 = vpack.c.b16 %v2603, %v2595
    %v3268 = vpack.c.b16 %v2612, %v2604
    %v3269 = vpack.c.b16 %v2613, %v2605
    %v3270 = vpack.c.b16 %v2614, %v2606
    %v3271 = vpack.c.b16 %v2615, %v2607
    %v3272 = vpack.c.b16 %v2616, %v2608
    %v3273 = vpack.c.b16 %v2617, %v2609
    %v3274 = vpack.c.b16 %v2618, %v2610
    %v3275 = vpack.c.b16 %v2619, %v2611
    %v3276 = vpack.c.b16 %v2628, %v2620
    %v3277 = vpack.c.b16 %v2629, %v2621
    %v3278 = vpack.c.b16 %v2630, %v2622
    %v3279 = vpack.c.b16 %v2631, %v2623
    %v3280 = vpack.c.b16 %v2632, %v2624
    %v3281 = vpack.c.b16 %v2633, %v2625
    %v3282 = vpack.c.b16 %v2634, %v2626
    %v3283 = vpack.c.b16 %v2635, %v2627
    %v3284 = vpack.c.b16 %v2644, %v2636
    %v3285 = vpack.c.b16 %v2645, %v2637
    %v3286 = vpack.c.b16 %v2646, %v2638
    %v3287 = vpack.c.b16 %v2647, %v2639
    %v3288 = vpack.c.b16 %v2648, %v2640
    %v3289 = vpack.c.b16 %v2649, %v2641
    %v3290 = vpack.c.b16 %v2650, %v2642
    %v3291 = vpack.c.b16 %v2651, %v2643
    %v3292 = vpack.c.b16 %v2660, %v2652
    %v3293 = vpack.c.b16 %v2661, %v2653
    %v3294 = vpack.c.b16 %v2662, %v2654
    %v3295 = vpack.c.b16 %v2663, %v2655
    %v3296 = vpack.c.b16 %v2664, %v2656
    %v3297 = vpack.c.b16 %v2665, %v2657
    %v3298 = vpack.c.b16 %v2666, %v2658
    %v3299 = vpack.c.b16 %v2667, %v2659
    %v3300 = vpack.c.b16 %v2676, %v2668
    %v3301 = vpack.c.b16 %v2677, %v2669
    %v3302 = vpack.c.b16 %v2678, %v2670
    %v3303 = vpack.c.b16 %v2679, %v2671
    %v3304 = vpack.c.b16 %v2680, %v2672
    %v3305 = vpack.c.b16 %v2681, %v2673
    %v3306 = vpack.c.b16 %v2682, %v2674
    %v3307 = vpack.c.b16 %v2683, %v2675
    %v3308 = vpack.c.b16 %v2692, %v2684
    %v3309 = vpack.c.b16 %v2693, %v2685
    %v3310 = vpack.c.b16 %v2694, %v2686
    %v3311 = vpack.c.b16 %v2695, %v2687
    %v3312 = vpack.c.b16 %v2696, %v2688
    %v3313 = vpack.c.b16 %v2697, %v2689
    %v3314 = vpack.c.b16 %v2698, %v2690
    %v3315 = vpack.c.b16 %v2699, %v2691
    %v3316 = vpack.c.b16 %v2708, %v2700
    %v3317 = vpack.c.b16 %v2709, %v2701
    %v3318 = vpack.c.b16 %v2710, %v2702
    %v3319 = vpack.c.b16 %v2711, %v2703
    %v3320 = vpack.c.b16 %v2712, %v2704
    %v3321 = vpack.c.b16 %v2713, %v2705
    %v3322 = vpack.c.b16 %v2714, %v2706
    %v3323 = vpack.c.b16 %v2715, %v2707
    %v3324 = vpack.c.b16 %v2724, %v2716
    %v3325 = vpack.c.b16 %v2725, %v2717
    %v3326 = vpack.c.b16 %v2726, %v2718
    %v3327 = vpack.c.b16 %v2727, %v2719
    %v3328 = vpack.c.b16 %v2728, %v2720
    %v3329 = vpack.c.b16 %v2729, %v2721
    %v3330 = vpack.c.b16 %v2730, %v2722
    %v3331 = vpack.c.b16 %v2731, %v2723
    %v3332 = vpack.c.b16 %v2740, %v2732
    %v3333 = vpack.c.b16 %v2741, %v2733
    %v3334 = vpack.c.b16 %v2742, %v2734
    %v3335 = vpack.c.b16 %v2743, %v2735
    %v3336 = vpack.c.b16 %v2744, %v2736
    %v3337 = vpack.c.b16 %v2745, %v2737
    %v3338 = vpack.c.b16 %v2746, %v2738
    %v3339 = vpack.c.b16 %v2747, %v2739
    %v3340 = vpack.c.b16 %v2756, %v2748
    %v3341 = vpack.c.b16 %v2757, %v2749
    %v3342 = vpack.c.b16 %v2758, %v2750
    %v3343 = vpack.c.b16 %v2759, %v2751
    %v3344 = vpack.c.b16 %v2760, %v2752
    %v3345 = vpack.c.b16 %v2761, %v2753
    %v3346 = vpack.c.b16 %v2762, %v2754
    %v3347 = vpack.c.b16 %v2763, %v2755
    %v3348 = vpack.c.b16 %v2772, %v2764
    %v3349 = vpack.c.b16 %v2773, %v2765
    %v3350 = vpack.c.b16 %v2774, %v2766
    %v3351 = vpack.c.b16 %v2775, %v2767
    %v3352 = vpack.c.b16 %v2776, %v2768
    %v3353 = vpack.c.b16 %v2777, %v2769
    %v3354 = vpack.c.b16 %v2778, %v2770
    %v3355 = vpack.c.b16 %v2779, %v2771
    %v3356 = vpack.c.b16 %v2788, %v2780
    %v3357 = vpack.c.b16 %v2789, %v2781
    %v3358 = vpack.c.b16 %v2790, %v2782
    %v3359 = vpack.c.b16 %v2791, %v2783
    %v3360 = vpack.c.b16 %v2792, %v2784
    %v3361 = vpack.c.b16 %v2793, %v2785
    %v3362 = vpack.c.b16 %v2794, %v2786
    %v3363 = vpack.c.b16 %v2795, %v2787
    %v3364 = vpack.c.b16 %v2804, %v2796
    %v3365 = vpack.c.b16 %v2805, %v2797
    %v3366 = vpack.c.b16 %v2806, %v2798
    %v3367 = vpack.c.b16 %v2807, %v2799
    %v3368 = vpack.c.b16 %v2808, %v2800
    %v3369 = vpack.c.b16 %v2809, %v2801
    %v3370 = vpack.c.b16 %v2810, %v2802
    %v3371 = vpack.c.b16 %v2811, %v2803
    %v3372 = vpack.c.b16 %v2820, %v2812
    %v3373 = vpack.c.b16 %v2821, %v2813
    %v3374 = vpack.c.b16 %v2822, %v2814
    %v3375 = vpack.c.b16 %v2823, %v2815
    %v3376 = vpack.c.b16 %v2824, %v2816
    %v3377 = vpack.c.b16 %v2825, %v2817
    %v3378 = vpack.c.b16 %v2826, %v2818
    %v3379 = vpack.c.b16 %v2827, %v2819
    %v3380 = vpack.c.b16 %v2836, %v2828
    %v3381 = vpack.c.b16 %v2837, %v2829
    %v3382 = vpack.c.b16 %v2838, %v2830
    %v3383 = vpack.c.b16 %v2839, %v2831
    %v3384 = vpack.c.b16 %v2840, %v2832
    %v3385 = vpack.c.b16 %v2841, %v2833
    %v3386 = vpack.c.b16 %v2842, %v2834
    %v3387 = vpack.c.b16 %v2843, %v2835
    %v3388 = vpack.c.b16 %v2852, %v2844
    %v3389 = vpack.c.b16 %v2853, %v2845
    %v3390 = vpack.c.b16 %v2854, %v2846
    %v3391 = vpack.c.b16 %v2855, %v2847
    %v3392 = vpack.c.b16 %v2856, %v2848
    %v3393 = vpack.c.b16 %v2857, %v2849
    %v3394 = vpack.c.b16 %v2858, %v2850
    %v3395 = vpack.c.b16 %v2859, %v2851
    %v3396 = vpack.c.b16 %v2868, %v2860
    %v3397 = vpack.c.b16 %v2869, %v2861
    %v3398 = vpack.c.b16 %v2870, %v2862
    %v3399 = vpack.c.b16 %v2871, %v2863
    %v3400 = vpack.c.b16 %v2872, %v2864
    %v3401 = vpack.c.b16 %v2873, %v2865
    %v3402 = vpack.c.b16 %v2874, %v2866
    %v3403 = vpack.c.b16 %v2875, %v2867
    %v3404 = vpack.c.b16 %v2884, %v2876
    %v3405 = vpack.c.b16 %v2885, %v2877
    %v3406 = vpack.c.b16 %v2886, %v2878
    %v3407 = vpack.c.b16 %v2887, %v2879
    %v3408 = vpack.c.b16 %v2888, %v2880
    %v3409 = vpack.c.b16 %v2889, %v2881
    %v3410 = vpack.c.b16 %v2890, %v2882
    %v3411 = vpack.c.b16 %v2891, %v2883
    %v3412 = vpack.c.b16 %v2900, %v2892
    %v3413 = vpack.c.b16 %v2901, %v2893
    %v3414 = vpack.c.b16 %v2902, %v2894
    %v3415 = vpack.c.b16 %v2903, %v2895
    %v3416 = vpack.c.b16 %v2904, %v2896
    %v3417 = vpack.c.b16 %v2905, %v2897
    %v3418 = vpack.c.b16 %v2906, %v2898
    %v3419 = vpack.c.b16 %v2907, %v2899
    %3932 = vmatprep.subr.bf16.mxu0 %v2909
    %3933 = vmatpush1.bf16.msra.mxu0 %v2908
    %3934 = vmatprep.subr.bf16.mxu0 %v2917
    %3935 = vmatpush1.bf16.msra.mxu0 %v2916
    %3936 = vmatprep.subr.bf16.mxu0 %v2925
    %3937 = vmatpush1.bf16.msra.mxu0 %v2924
    %3938 = vmatprep.subr.bf16.mxu0 %v2933
    %3939 = vmatpush1.bf16.msra.mxu0 %v2932
    %3940 = vmatprep.subr.bf16.mxu0 %v2941
    %3941 = vmatpush1.bf16.msra.mxu0 %v2940
    %3942 = vmatprep.subr.bf16.mxu0 %v2949
    %3943 = vmatpush1.bf16.msra.mxu0 %v2948
    %3944 = vmatprep.subr.bf16.mxu0 %v2957
    %3945 = vmatpush1.bf16.msra.mxu0 %v2956
    %3946 = vmatprep.subr.bf16.mxu0 %v2965
    %3947 = vmatpush1.bf16.msra.mxu0 %v2964
    %3948 = vmatprep.subr.bf16.mxu0 %v2973
    %3949 = vmatpush1.bf16.msra.mxu0 %v2972
    %3950 = vmatprep.subr.bf16.mxu0 %v2981
    %3951 = vmatpush1.bf16.msra.mxu0 %v2980
    %3952 = vmatprep.subr.bf16.mxu0 %v2989
    %3953 = vmatpush1.bf16.msra.mxu0 %v2988
    %3954 = vmatprep.subr.bf16.mxu0 %v2997
    %3955 = vmatpush1.bf16.msra.mxu0 %v2996
    %3956 = vmatprep.subr.bf16.mxu0 %v3005
    %3957 = vmatpush1.bf16.msra.mxu0 %v3004
    %3958 = vmatprep.subr.bf16.mxu0 %v3013
    %3959 = vmatpush1.bf16.msra.mxu0 %v3012
    %3960 = vmatprep.subr.bf16.mxu0 %v3021
    %3961 = vmatpush1.bf16.msra.mxu0 %v3020
    %3962 = vmatprep.subr.bf16.mxu0 %v3029
    %3963 = vmatpush1.bf16.msra.mxu0 %v3028
    %3964 = vmatprep.mubr.bf16.mxu0 %v811
    %3965 = vmatmul.mubr.bf16.gmra.mrb[0].mxu0 %v810
    %v3966 = vpop.f32.mrb[0].mxu0
    %v3967 = vadd.f32 %v1335, %v3966
    %v3968 = vpop.f32.mrb[0].mxu0
    %v3969 = vadd.f32 %v1339, %v3968
    %v3970 = vpop.f32.mrb[0].mxu0
    %v3971 = vadd.f32 %v1335, %v3970
    %v3972 = vpop.f32.mrb[0].mxu0
    %v3973 = vadd.f32 %v1339, %v3972
    %3974 = vdwg.mxu0
    %3975 = vmatprep.subr.bf16.mxu0 %v3037
    %3976 = vmatpush1.bf16.msra.mxu0 %v3036
    %3977 = vmatprep.subr.bf16.mxu0 %v3045
    %3978 = vmatpush1.bf16.msra.mxu0 %v3044
    %3979 = vmatprep.subr.bf16.mxu0 %v3053
    %3980 = vmatpush1.bf16.msra.mxu0 %v3052
    %3981 = vmatprep.subr.bf16.mxu0 %v3061
    %3982 = vmatpush1.bf16.msra.mxu0 %v3060
    %3983 = vmatprep.subr.bf16.mxu0 %v3069
    %3984 = vmatpush1.bf16.msra.mxu0 %v3068
    %3985 = vmatprep.subr.bf16.mxu0 %v3077
    %3986 = vmatpush1.bf16.msra.mxu0 %v3076
    %3987 = vmatprep.subr.bf16.mxu0 %v3085
    %3988 = vmatpush1.bf16.msra.mxu0 %v3084
    %3989 = vmatprep.subr.bf16.mxu0 %v3093
    %3990 = vmatpush1.bf16.msra.mxu0 %v3092
    %3991 = vmatprep.subr.bf16.mxu0 %v3101
    %3992 = vmatpush1.bf16.msra.mxu0 %v3100
    %3993 = vmatprep.subr.bf16.mxu0 %v3109
    %3994 = vmatpush1.bf16.msra.mxu0 %v3108
    %3995 = vmatprep.subr.bf16.mxu0 %v3117
    %3996 = vmatpush1.bf16.msra.mxu0 %v3116
    %3997 = vmatprep.subr.bf16.mxu0 %v3125
    %3998 = vmatpush1.bf16.msra.mxu0 %v3124
    %3999 = vmatprep.subr.bf16.mxu0 %v3133
    %4000 = vmatpush1.bf16.msra.mxu0 %v3132
    %4001 = vmatprep.subr.bf16.mxu0 %v3141
    %4002 = vmatpush1.bf16.msra.mxu0 %v3140
    %4003 = vmatprep.subr.bf16.mxu0 %v3149
    %4004 = vmatpush1.bf16.msra.mxu0 %v3148
    %4005 = vmatprep.subr.bf16.mxu0 %v3157
    %4006 = vmatpush1.bf16.msra.mxu0 %v3156
    %4007 = vmatprep.mubr.bf16.mxu0 %v813
    %4008 = vmatmul.mubr.bf16.gmra.mrb[0].mxu0 %v812
    %v4009 = vpop.f32.mrb[0].mxu0
    %v4010 = vadd.f32 %v3967, %v4009
    %v4011 = vpop.f32.mrb[0].mxu0
    %v4012 = vadd.f32 %v3969, %v4011
    %v4013 = vpop.f32.mrb[0].mxu0
    %v4014 = vadd.f32 %v3971, %v4013
    %v4015 = vpop.f32.mrb[0].mxu0
    %v4016 = vadd.f32 %v3973, %v4015
    %4017 = vdwg.mxu0
    %4018 = vmatprep.subr.bf16.mxu0 %v3165
    %4019 = vmatpush1.bf16.msra.mxu0 %v3164
    %4020 = vmatprep.subr.bf16.mxu0 %v3173
    %4021 = vmatpush1.bf16.msra.mxu0 %v3172
    %4022 = vmatprep.subr.bf16.mxu0 %v3181
    %4023 = vmatpush1.bf16.msra.mxu0 %v3180
    %4024 = vmatprep.subr.bf16.mxu0 %v3189
    %4025 = vmatpush1.bf16.msra.mxu0 %v3188
    %4026 = vmatprep.subr.bf16.mxu0 %v3197
    %4027 = vmatpush1.bf16.msra.mxu0 %v3196
    %4028 = vmatprep.subr.bf16.mxu0 %v3205
    %4029 = vmatpush1.bf16.msra.mxu0 %v3204
    %4030 = vmatprep.subr.bf16.mxu0 %v3213
    %4031 = vmatpush1.bf16.msra.mxu0 %v3212
    %4032 = vmatprep.subr.bf16.mxu0 %v3221
    %4033 = vmatpush1.bf16.msra.mxu0 %v3220
    %4034 = vmatprep.subr.bf16.mxu0 %v3229
    %4035 = vmatpush1.bf16.msra.mxu0 %v3228
    %4036 = vmatprep.subr.bf16.mxu0 %v3237
    %4037 = vmatpush1.bf16.msra.mxu0 %v3236
    %4038 = vmatprep.subr.bf16.mxu0 %v3245
    %4039 = vmatpush1.bf16.msra.mxu0 %v3244
    %4040 = vmatprep.subr.bf16.mxu0 %v3253
    %4041 = vmatpush1.bf16.msra.mxu0 %v3252
    %4042 = vmatprep.subr.bf16.mxu0 %v3261
    %4043 = vmatpush1.bf16.msra.mxu0 %v3260
    %4044 = vmatprep.subr.bf16.mxu0 %v3269
    %4045 = vmatpush1.bf16.msra.mxu0 %v3268
    %4046 = vmatprep.subr.bf16.mxu0 %v3277
    %4047 = vmatpush1.bf16.msra.mxu0 %v3276
    %4048 = vmatprep.subr.bf16.mxu0 %v3285
    %4049 = vmatpush1.bf16.msra.mxu0 %v3284
    %4050 = vmatprep.mubr.bf16.mxu0 %v815
    %4051 = vmatmul.mubr.bf16.gmra.mrb[0].mxu0 %v814
    %v4052 = vpop.f32.mrb[0].mxu0
    %v4053 = vadd.f32 %v4010, %v4052
    %v4054 = vpop.f32.mrb[0].mxu0
    %v4055 = vadd.f32 %v4012, %v4054
    %v4056 = vpop.f32.mrb[0].mxu0
    %v4057 = vadd.f32 %v4014, %v4056
    %v4058 = vpop.f32.mrb[0].mxu0
    %v4059 = vadd.f32 %v4016, %v4058
    %4060 = vdwg.mxu0
    %4061 = vmatprep.subr.bf16.mxu0 %v3293
    %4062 = vmatpush1.bf16.msra.mxu0 %v3292
    %4063 = vmatprep.subr.bf16.mxu0 %v3301
    %4064 = vmatpush1.bf16.msra.mxu0 %v3300
    %4065 = vmatprep.subr.bf16.mxu0 %v3309
    %4066 = vmatpush1.bf16.msra.mxu0 %v3308
    %4067 = vmatprep.subr.bf16.mxu0 %v3317
    %4068 = vmatpush1.bf16.msra.mxu0 %v3316
    %4069 = vmatprep.subr.bf16.mxu0 %v3325
    %4070 = vmatpush1.bf16.msra.mxu0 %v3324
    %4071 = vmatprep.subr.bf16.mxu0 %v3333
    %4072 = vmatpush1.bf16.msra.mxu0 %v3332
    %4073 = vmatprep.subr.bf16.mxu0 %v3341
    %4074 = vmatpush1.bf16.msra.mxu0 %v3340
    %4075 = vmatprep.subr.bf16.mxu0 %v3349
    %4076 = vmatpush1.bf16.msra.mxu0 %v3348
    %4077 = vmatprep.subr.bf16.mxu0 %v3357
    %4078 = vmatpush1.bf16.msra.mxu0 %v3356
    %4079 = vmatprep.subr.bf16.mxu0 %v3365
    %4080 = vmatpush1.bf16.msra.mxu0 %v3364
    %4081 = vmatprep.subr.bf16.mxu0 %v3373
    %4082 = vmatpush1.bf16.msra.mxu0 %v3372
    %4083 = vmatprep.subr.bf16.mxu0 %v3381
    %4084 = vmatpush1.bf16.msra.mxu0 %v3380
    %4085 = vmatprep.subr.bf16.mxu0 %v3389
    %4086 = vmatpush1.bf16.msra.mxu0 %v3388
    %4087 = vmatprep.subr.bf16.mxu0 %v3397
    %4088 = vmatpush1.bf16.msra.mxu0 %v3396
    %4089 = vmatprep.subr.bf16.mxu0 %v3405
    %4090 = vmatpush1.bf16.msra.mxu0 %v3404
    %4091 = vmatprep.subr.bf16.mxu0 %v3413
    %4092 = vmatpush1.bf16.msra.mxu0 %v3412
    %4093 = vmatprep.mubr.bf16.mxu0 %v817
    %4094 = vmatmul.mubr.bf16.gmra.mrb[0].mxu0 %v816
    %v4095 = vpop.f32.mrb[0].mxu0
    %v4096 = vadd.f32 %v4053, %v4095
    %v4097 = vpop.f32.mrb[0].mxu0
    %v4098 = vadd.f32 %v4055, %v4097
    %v4099 = vpop.f32.mrb[0].mxu0
    %v4100 = vadd.f32 %v4057, %v4099
    %v4101 = vpop.f32.mrb[0].mxu0
    %v4102 = vadd.f32 %v4059, %v4101
    %4103 = vdwg.mxu0
    %4104 = vmatprep.subr.bf16.mxu0 %v2911
    %4105 = vmatpush1.bf16.msra.mxu0 %v2910
    %4106 = vmatprep.subr.bf16.mxu0 %v2919
    %4107 = vmatpush1.bf16.msra.mxu0 %v2918
    %4108 = vmatprep.subr.bf16.mxu0 %v2927
    %4109 = vmatpush1.bf16.msra.mxu0 %v2926
    %4110 = vmatprep.subr.bf16.mxu0 %v2935
    %4111 = vmatpush1.bf16.msra.mxu0 %v2934
    %4112 = vmatprep.subr.bf16.mxu0 %v2943
    %4113 = vmatpush1.bf16.msra.mxu0 %v2942
    %4114 = vmatprep.subr.bf16.mxu0 %v2951
    %4115 = vmatpush1.bf16.msra.mxu0 %v2950
    %4116 = vmatprep.subr.bf16.mxu0 %v2959
    %4117 = vmatpush1.bf16.msra.mxu0 %v2958
    %4118 = vmatprep.subr.bf16.mxu0 %v2967
    %4119 = vmatpush1.bf16.msra.mxu0 %v2966
    %4120 = vmatprep.subr.bf16.mxu0 %v2975
    %4121 = vmatpush1.bf16.msra.mxu0 %v2974
    %4122 = vmatprep.subr.bf16.mxu0 %v2983
    %4123 = vmatpush1.bf16.msra.mxu0 %v2982
    %4124 = vmatprep.subr.bf16.mxu0 %v2991
    %4125 = vmatpush1.bf16.msra.mxu0 %v2990
    %4126 = vmatprep.subr.bf16.mxu0 %v2999
    %4127 = vmatpush1.bf16.msra.mxu0 %v2998
    %4128 = vmatprep.subr.bf16.mxu0 %v3007
    %4129 = vmatpush1.bf16.msra.mxu0 %v3006
    %4130 = vmatprep.subr.bf16.mxu0 %v3015
    %4131 = vmatpush1.bf16.msra.mxu0 %v3014
    %4132 = vmatprep.subr.bf16.mxu0 %v3023
    %4133 = vmatpush1.bf16.msra.mxu0 %v3022
    %4134 = vmatprep.subr.bf16.mxu0 %v3031
    %4135 = vmatpush1.bf16.msra.mxu0 %v3030
    %4136 = vmatprep.mubr.bf16.mxu0 %v811
    %4137 = vmatmul.mubr.bf16.gmra.mrb[0].mxu0 %v810
    %v4138 = vpop.f32.mrb[0].mxu0
    %v4139 = vadd.f32 %v1343, %v4138
    %v4140 = vpop.f32.mrb[0].mxu0
    %v4141 = vadd.f32 %v1347, %v4140
    %v4142 = vpop.f32.mrb[0].mxu0
    %v4143 = vadd.f32 %v1343, %v4142
    %v4144 = vpop.f32.mrb[0].mxu0
    %v4145 = vadd.f32 %v1347, %v4144
    %4146 = vdwg.mxu0
    %4147 = vmatprep.subr.bf16.mxu0 %v3039
    %4148 = vmatpush1.bf16.msra.mxu0 %v3038
    %4149 = vmatprep.subr.bf16.mxu0 %v3047
    %4150 = vmatpush1.bf16.msra.mxu0 %v3046
    %4151 = vmatprep.subr.bf16.mxu0 %v3055
    %4152 = vmatpush1.bf16.msra.mxu0 %v3054
    %4153 = vmatprep.subr.bf16.mxu0 %v3063
    %4154 = vmatpush1.bf16.msra.mxu0 %v3062
    %4155 = vmatprep.subr.bf16.mxu0 %v3071
    %4156 = vmatpush1.bf16.msra.mxu0 %v3070
    %4157 = vmatprep.subr.bf16.mxu0 %v3079
    %4158 = vmatpush1.bf16.msra.mxu0 %v3078
    %4159 = vmatprep.subr.bf16.mxu0 %v3087
    %4160 = vmatpush1.bf16.msra.mxu0 %v3086
    %4161 = vmatprep.subr.bf16.mxu0 %v3095
    %4162 = vmatpush1.bf16.msra.mxu0 %v3094
    %4163 = vmatprep.subr.bf16.mxu0 %v3103
    %4164 = vmatpush1.bf16.msra.mxu0 %v3102
    %4165 = vmatprep.subr.bf16.mxu0 %v3111
    %4166 = vmatpush1.bf16.msra.mxu0 %v3110
    %4167 = vmatprep.subr.bf16.mxu0 %v3119
    %4168 = vmatpush1.bf16.msra.mxu0 %v3118
    %4169 = vmatprep.subr.bf16.mxu0 %v3127
    %4170 = vmatpush1.bf16.msra.mxu0 %v3126
    %4171 = vmatprep.subr.bf16.mxu0 %v3135
    %4172 = vmatpush1.bf16.msra.mxu0 %v3134
    %4173 = vmatprep.subr.bf16.mxu0 %v3143
    %4174 = vmatpush1.bf16.msra.mxu0 %v3142
    %4175 = vmatprep.subr.bf16.mxu0 %v3151
    %4176 = vmatpush1.bf16.msra.mxu0 %v3150
    %4177 = vmatprep.subr.bf16.mxu0 %v3159
    %4178 = vmatpush1.bf16.msra.mxu0 %v3158
    %4179 = vmatprep.mubr.bf16.mxu0 %v813
    %4180 = vmatmul.mubr.bf16.gmra.mrb[0].mxu0 %v812
    %v4181 = vpop.f32.mrb[0].mxu0
    %v4182 = vadd.f32 %v4139, %v4181
    %v4183 = vpop.f32.mrb[0].mxu0
    %v4184 = vadd.f32 %v4141, %v4183
    %v4185 = vpop.f32.mrb[0].mxu0
    %v4186 = vadd.f32 %v4143, %v4185
    %v4187 = vpop.f32.mrb[0].mxu0
    %v4188 = vadd.f32 %v4145, %v4187
    %4189 = vdwg.mxu0
    %4190 = vmatprep.subr.bf16.mxu0 %v3167
    %4191 = vmatpush1.bf16.msra.mxu0 %v3166
    %4192 = vmatprep.subr.bf16.mxu0 %v3175
    %4193 = vmatpush1.bf16.msra.mxu0 %v3174
    %4194 = vmatprep.subr.bf16.mxu0 %v3183
    %4195 = vmatpush1.bf16.msra.mxu0 %v3182
    %4196 = vmatprep.subr.bf16.mxu0 %v3191
    %4197 = vmatpush1.bf16.msra.mxu0 %v3190
    %4198 = vmatprep.subr.bf16.mxu0 %v3199
    %4199 = vmatpush1.bf16.msra.mxu0 %v3198
    %4200 = vmatprep.subr.bf16.mxu0 %v3207
    %4201 = vmatpush1.bf16.msra.mxu0 %v3206
    %4202 = vmatprep.subr.bf16.mxu0 %v3215
    %4203 = vmatpush1.bf16.msra.mxu0 %v3214
    %4204 = vmatprep.subr.bf16.mxu0 %v3223
    %4205 = vmatpush1.bf16.msra.mxu0 %v3222
    %4206 = vmatprep.subr.bf16.mxu0 %v3231
    %4207 = vmatpush1.bf16.msra.mxu0 %v3230
    %4208 = vmatprep.subr.bf16.mxu0 %v3239
    %4209 = vmatpush1.bf16.msra.mxu0 %v3238
    %4210 = vmatprep.subr.bf16.mxu0 %v3247
    %4211 = vmatpush1.bf16.msra.mxu0 %v3246
    %4212 = vmatprep.subr.bf16.mxu0 %v3255
    %4213 = vmatpush1.bf16.msra.mxu0 %v3254
    %4214 = vmatprep.subr.bf16.mxu0 %v3263
    %4215 = vmatpush1.bf16.msra.mxu0 %v3262
    %4216 = vmatprep.subr.bf16.mxu0 %v3271
    %4217 = vmatpush1.bf16.msra.mxu0 %v3270
    %4218 = vmatprep.subr.bf16.mxu0 %v3279
    %4219 = vmatpush1.bf16.msra.mxu0 %v3278
    %4220 = vmatprep.subr.bf16.mxu0 %v3287
    %4221 = vmatpush1.bf16.msra.mxu0 %v3286
    %4222 = vmatprep.mubr.bf16.mxu0 %v815
    %4223 = vmatmul.mubr.bf16.gmra.mrb[0].mxu0 %v814
    %v4224 = vpop.f32.mrb[0].mxu0
    %v4225 = vadd.f32 %v4182, %v4224
    %v4226 = vpop.f32.mrb[0].mxu0
    %v4227 = vadd.f32 %v4184, %v4226
    %v4228 = vpop.f32.mrb[0].mxu0
    %v4229 = vadd.f32 %v4186, %v4228
    %v4230 = vpop.f32.mrb[0].mxu0
    %v4231 = vadd.f32 %v4188, %v4230
    %4232 = vdwg.mxu0
    %4233 = vmatprep.subr.bf16.mxu0 %v3295
    %4234 = vmatpush1.bf16.msra.mxu0 %v3294
    %4235 = vmatprep.subr.bf16.mxu0 %v3303
    %4236 = vmatpush1.bf16.msra.mxu0 %v3302
    %4237 = vmatprep.subr.bf16.mxu0 %v3311
    %4238 = vmatpush1.bf16.msra.mxu0 %v3310
    %4239 = vmatprep.subr.bf16.mxu0 %v3319
    %4240 = vmatpush1.bf16.msra.mxu0 %v3318
    %4241 = vmatprep.subr.bf16.mxu0 %v3327
    %4242 = vmatpush1.bf16.msra.mxu0 %v3326
    %4243 = vmatprep.subr.bf16.mxu0 %v3335
    %4244 = vmatpush1.bf16.msra.mxu0 %v3334
    %4245 = vmatprep.subr.bf16.mxu0 %v3343
    %4246 = vmatpush1.bf16.msra.mxu0 %v3342
    %4247 = vmatprep.subr.bf16.mxu0 %v3351
    %4248 = vmatpush1.bf16.msra.mxu0 %v3350
    %4249 = vmatprep.subr.bf16.mxu0 %v3359
    %4250 = vmatpush1.bf16.msra.mxu0 %v3358
    %4251 = vmatprep.subr.bf16.mxu0 %v3367
    %4252 = vmatpush1.bf16.msra.mxu0 %v3366
    %4253 = vmatprep.subr.bf16.mxu0 %v3375
    %4254 = vmatpush1.bf16.msra.mxu0 %v3374
    %4255 = vmatprep.subr.bf16.mxu0 %v3383
    %4256 = vmatpush1.bf16.msra.mxu0 %v3382
    %4257 = vmatprep.subr.bf16.mxu0 %v3391
    %4258 = vmatpush1.bf16.msra.mxu0 %v3390
    %4259 = vmatprep.subr.bf16.mxu0 %v3399
    %4260 = vmatpush1.bf16.msra.mxu0 %v3398
    %4261 = vmatprep.subr.bf16.mxu0 %v3407
    %4262 = vmatpush1.bf16.msra.mxu0 %v3406
    %4263 = vmatprep.subr.bf16.mxu0 %v3415
    %4264 = vmatpush1.bf16.msra.mxu0 %v3414
    %4265 = vmatprep.mubr.bf16.mxu0 %v817
    %4266 = vmatmul.mubr.bf16.gmra.mrb[0].mxu0 %v816
    %v4267 = vpop.f32.mrb[0].mxu0
    %v4268 = vadd.f32 %v4225, %v4267
    %v4269 = vpop.f32.mrb[0].mxu0
    %v4270 = vadd.f32 %v4227, %v4269
    %v4271 = vpop.f32.mrb[0].mxu0
    %v4272 = vadd.f32 %v4229, %v4271
    %v4273 = vpop.f32.mrb[0].mxu0
    %v4274 = vadd.f32 %v4231, %v4273
    %4275 = vdwg.mxu0
    %4276 = vmatprep.subr.bf16.mxu0 %v2913
    %4277 = vmatpush1.bf16.msra.mxu0 %v2912
    %4278 = vmatprep.subr.bf16.mxu0 %v2921
    %4279 = vmatpush1.bf16.msra.mxu0 %v2920
    %4280 = vmatprep.subr.bf16.mxu0 %v2929
    %4281 = vmatpush1.bf16.msra.mxu0 %v2928
    %4282 = vmatprep.subr.bf16.mxu0 %v2937
    %4283 = vmatpush1.bf16.msra.mxu0 %v2936
    %4284 = vmatprep.subr.bf16.mxu0 %v2945
    %4285 = vmatpush1.bf16.msra.mxu0 %v2944
    %4286 = vmatprep.subr.bf16.mxu0 %v2953
    %4287 = vmatpush1.bf16.msra.mxu0 %v2952
    %4288 = vmatprep.subr.bf16.mxu0 %v2961
    %4289 = vmatpush1.bf16.msra.mxu0 %v2960
    %4290 = vmatprep.subr.bf16.mxu0 %v2969
    %4291 = vmatpush1.bf16.msra.mxu0 %v2968
    %4292 = vmatprep.subr.bf16.mxu0 %v2977
    %4293 = vmatpush1.bf16.msra.mxu0 %v2976
    %4294 = vmatprep.subr.bf16.mxu0 %v2985
    %4295 = vmatpush1.bf16.msra.mxu0 %v2984
    %4296 = vmatprep.subr.bf16.mxu0 %v2993
    %4297 = vmatpush1.bf16.msra.mxu0 %v2992
    %4298 = vmatprep.subr.bf16.mxu0 %v3001
    %4299 = vmatpush1.bf16.msra.mxu0 %v3000
    %4300 = vmatprep.subr.bf16.mxu0 %v3009
    %4301 = vmatpush1.bf16.msra.mxu0 %v3008
    %4302 = vmatprep.subr.bf16.mxu0 %v3017
    %4303 = vmatpush1.bf16.msra.mxu0 %v3016
    %4304 = vmatprep.subr.bf16.mxu0 %v3025
    %4305 = vmatpush1.bf16.msra.mxu0 %v3024
    %4306 = vmatprep.subr.bf16.mxu0 %v3033
    %4307 = vmatpush1.bf16.msra.mxu0 %v3032
    %4308 = vmatprep.mubr.bf16.mxu0 %v811
    %4309 = vmatmul.mubr.bf16.gmra.mrb[0].mxu0 %v810
    %v4310 = vpop.f32.mrb[0].mxu0
    %v4311 = vadd.f32 %v1351, %v4310
    %v4312 = vpop.f32.mrb[0].mxu0
    %v4313 = vadd.f32 %v1355, %v4312
    %v4314 = vpop.f32.mrb[0].mxu0
    %v4315 = vadd.f32 %v1351, %v4314
    %v4316 = vpop.f32.mrb[0].mxu0
    %v4317 = vadd.f32 %v1355, %v4316
    %4318 = vdwg.mxu0
    %4319 = vmatprep.subr.bf16.mxu0 %v3041
    %4320 = vmatpush1.bf16.msra.mxu0 %v3040
    %4321 = vmatprep.subr.bf16.mxu0 %v3049
    %4322 = vmatpush1.bf16.msra.mxu0 %v3048
    %4323 = vmatprep.subr.bf16.mxu0 %v3057
    %4324 = vmatpush1.bf16.msra.mxu0 %v3056
    %4325 = vmatprep.subr.bf16.mxu0 %v3065
    %4326 = vmatpush1.bf16.msra.mxu0 %v3064
    %4327 = vmatprep.subr.bf16.mxu0 %v3073
    %4328 = vmatpush1.bf16.msra.mxu0 %v3072
    %4329 = vmatprep.subr.bf16.mxu0 %v3081
    %4330 = vmatpush1.bf16.msra.mxu0 %v3080
    %4331 = vmatprep.subr.bf16.mxu0 %v3089
    %4332 = vmatpush1.bf16.msra.mxu0 %v3088
    %4333 = vmatprep.subr.bf16.mxu0 %v3097
    %4334 = vmatpush1.bf16.msra.mxu0 %v3096
    %4335 = vmatprep.subr.bf16.mxu0 %v3105
    %4336 = vmatpush1.bf16.msra.mxu0 %v3104
    %4337 = vmatprep.subr.bf16.mxu0 %v3113
    %4338 = vmatpush1.bf16.msra.mxu0 %v3112
    %4339 = vmatprep.subr.bf16.mxu0 %v3121
    %4340 = vmatpush1.bf16.msra.mxu0 %v3120
    %4341 = vmatprep.subr.bf16.mxu0 %v3129
    %4342 = vmatpush1.bf16.msra.mxu0 %v3128
    %4343 = vmatprep.subr.bf16.mxu0 %v3137
    %4344 = vmatpush1.bf16.msra.mxu0 %v3136
    %4345 = vmatprep.subr.bf16.mxu0 %v3145
    %4346 = vmatpush1.bf16.msra.mxu0 %v3144
    %4347 = vmatprep.subr.bf16.mxu0 %v3153
    %4348 = vmatpush1.bf16.msra.mxu0 %v3152
    %4349 = vmatprep.subr.bf16.mxu0 %v3161
    %4350 = vmatpush1.bf16.msra.mxu0 %v3160
    %4351 = vmatprep.mubr.bf16.mxu0 %v813
    %4352 = vmatmul.mubr.bf16.gmra.mrb[0].mxu0 %v812
    %v4353 = vpop.f32.mrb[0].mxu0
    %v4354 = vadd.f32 %v4311, %v4353
    %v4355 = vpop.f32.mrb[0].mxu0
    %v4356 = vadd.f32 %v4313, %v4355
    %v4357 = vpop.f32.mrb[0].mxu0
    %v4358 = vadd.f32 %v4315, %v4357
    %v4359 = vpop.f32.mrb[0].mxu0
    %v4360 = vadd.f32 %v4317, %v4359
    %4361 = vdwg.mxu0
    %4362 = vmatprep.subr.bf16.mxu0 %v3169
    %4363 = vmatpush1.bf16.msra.mxu0 %v3168
    %4364 = vmatprep.subr.bf16.mxu0 %v3177
    %4365 = vmatpush1.bf16.msra.mxu0 %v3176
    %4366 = vmatprep.subr.bf16.mxu0 %v3185
    %4367 = vmatpush1.bf16.msra.mxu0 %v3184
    %4368 = vmatprep.subr.bf16.mxu0 %v3193
    %4369 = vmatpush1.bf16.msra.mxu0 %v3192
    %4370 = vmatprep.subr.bf16.mxu0 %v3201
    %4371 = vmatpush1.bf16.msra.mxu0 %v3200
    %4372 = vmatprep.subr.bf16.mxu0 %v3209
    %4373 = vmatpush1.bf16.msra.mxu0 %v3208
    %4374 = vmatprep.subr.bf16.mxu0 %v3217
    %4375 = vmatpush1.bf16.msra.mxu0 %v3216
    %4376 = vmatprep.subr.bf16.mxu0 %v3225
    %4377 = vmatpush1.bf16.msra.mxu0 %v3224
    %4378 = vmatprep.subr.bf16.mxu0 %v3233
    %4379 = vmatpush1.bf16.msra.mxu0 %v3232
    %4380 = vmatprep.subr.bf16.mxu0 %v3241
    %4381 = vmatpush1.bf16.msra.mxu0 %v3240
    %4382 = vmatprep.subr.bf16.mxu0 %v3249
    %4383 = vmatpush1.bf16.msra.mxu0 %v3248
    %4384 = vmatprep.subr.bf16.mxu0 %v3257
    %4385 = vmatpush1.bf16.msra.mxu0 %v3256
    %4386 = vmatprep.subr.bf16.mxu0 %v3265
    %4387 = vmatpush1.bf16.msra.mxu0 %v3264
    %4388 = vmatprep.subr.bf16.mxu0 %v3273
    %4389 = vmatpush1.bf16.msra.mxu0 %v3272
    %4390 = vmatprep.subr.bf16.mxu0 %v3281
    %4391 = vmatpush1.bf16.msra.mxu0 %v3280
    %4392 = vmatprep.subr.bf16.mxu0 %v3289
    %4393 = vmatpush1.bf16.msra.mxu0 %v3288
    %4394 = vmatprep.mubr.bf16.mxu0 %v815
    %4395 = vmatmul.mubr.bf16.gmra.mrb[0].mxu0 %v814
    %v4396 = vpop.f32.mrb[0].mxu0
    %v4397 = vadd.f32 %v4354, %v4396
    %v4398 = vpop.f32.mrb[0].mxu0
    %v4399 = vadd.f32 %v4356, %v4398
    %v4400 = vpop.f32.mrb[0].mxu0
    %v4401 = vadd.f32 %v4358, %v4400
    %v4402 = vpop.f32.mrb[0].mxu0
    %v4403 = vadd.f32 %v4360, %v4402
    %4404 = vdwg.mxu0
    %4405 = vmatprep.subr.bf16.mxu0 %v3297
    %4406 = vmatpush1.bf16.msra.mxu0 %v3296
    %4407 = vmatprep.subr.bf16.mxu0 %v3305
    %4408 = vmatpush1.bf16.msra.mxu0 %v3304
    %4409 = vmatprep.subr.bf16.mxu0 %v3313
    %4410 = vmatpush1.bf16.msra.mxu0 %v3312
    %4411 = vmatprep.subr.bf16.mxu0 %v3321
    %4412 = vmatpush1.bf16.msra.mxu0 %v3320
    %4413 = vmatprep.subr.bf16.mxu0 %v3329
    %4414 = vmatpush1.bf16.msra.mxu0 %v3328
    %4415 = vmatprep.subr.bf16.mxu0 %v3337
    %4416 = vmatpush1.bf16.msra.mxu0 %v3336
    %4417 = vmatprep.subr.bf16.mxu0 %v3345
    %4418 = vmatpush1.bf16.msra.mxu0 %v3344
    %4419 = vmatprep.subr.bf16.mxu0 %v3353
    %4420 = vmatpush1.bf16.msra.mxu0 %v3352
    %4421 = vmatprep.subr.bf16.mxu0 %v3361
    %4422 = vmatpush1.bf16.msra.mxu0 %v3360
    %4423 = vmatprep.subr.bf16.mxu0 %v3369
    %4424 = vmatpush1.bf16.msra.mxu0 %v3368
    %4425 = vmatprep.subr.bf16.mxu0 %v3377
    %4426 = vmatpush1.bf16.msra.mxu0 %v3376
    %4427 = vmatprep.subr.bf16.mxu0 %v3385
    %4428 = vmatpush1.bf16.msra.mxu0 %v3384
    %4429 = vmatprep.subr.bf16.mxu0 %v3393
    %4430 = vmatpush1.bf16.msra.mxu0 %v3392
    %4431 = vmatprep.subr.bf16.mxu0 %v3401
    %4432 = vmatpush1.bf16.msra.mxu0 %v3400
    %4433 = vmatprep.subr.bf16.mxu0 %v3409
    %4434 = vmatpush1.bf16.msra.mxu0 %v3408
    %4435 = vmatprep.subr.bf16.mxu0 %v3417
    %4436 = vmatpush1.bf16.msra.mxu0 %v3416
    %4437 = vmatprep.mubr.bf16.mxu0 %v817
    %4438 = vmatmul.mubr.bf16.gmra.mrb[0].mxu0 %v816
    %v4439 = vpop.f32.mrb[0].mxu0
    %v4440 = vadd.f32 %v4397, %v4439
    %v4441 = vpop.f32.mrb[0].mxu0
    %v4442 = vadd.f32 %v4399, %v4441
    %v4443 = vpop.f32.mrb[0].mxu0
    %v4444 = vadd.f32 %v4401, %v4443
    %v4445 = vpop.f32.mrb[0].mxu0
    %v4446 = vadd.f32 %v4403, %v4445
    %4447 = vdwg.mxu0
    %4448 = vmatprep.subr.bf16.mxu0 %v2915
    %4449 = vmatpush1.bf16.msra.mxu0 %v2914
    %4450 = vmatprep.subr.bf16.mxu0 %v2923
    %4451 = vmatpush1.bf16.msra.mxu0 %v2922
    %4452 = vmatprep.subr.bf16.mxu0 %v2931
    %4453 = vmatpush1.bf16.msra.mxu0 %v2930
    %4454 = vmatprep.subr.bf16.mxu0 %v2939
    %4455 = vmatpush1.bf16.msra.mxu0 %v2938
    %4456 = vmatprep.subr.bf16.mxu0 %v2947
    %4457 = vmatpush1.bf16.msra.mxu0 %v2946
    %4458 = vmatprep.subr.bf16.mxu0 %v2955
    %4459 = vmatpush1.bf16.msra.mxu0 %v2954
    %4460 = vmatprep.subr.bf16.mxu0 %v2963
    %4461 = vmatpush1.bf16.msra.mxu0 %v2962
    %4462 = vmatprep.subr.bf16.mxu0 %v2971
    %4463 = vmatpush1.bf16.msra.mxu0 %v2970
    %4464 = vmatprep.subr.bf16.mxu0 %v2979
    %4465 = vmatpush1.bf16.msra.mxu0 %v2978
    %4466 = vmatprep.subr.bf16.mxu0 %v2987
    %4467 = vmatpush1.bf16.msra.mxu0 %v2986
    %4468 = vmatprep.subr.bf16.mxu0 %v2995
    %4469 = vmatpush1.bf16.msra.mxu0 %v2994
    %4470 = vmatprep.subr.bf16.mxu0 %v3003
    %4471 = vmatpush1.bf16.msra.mxu0 %v3002
    %4472 = vmatprep.subr.bf16.mxu0 %v3011
    %4473 = vmatpush1.bf16.msra.mxu0 %v3010
    %4474 = vmatprep.subr.bf16.mxu0 %v3019
    %4475 = vmatpush1.bf16.msra.mxu0 %v3018
    %4476 = vmatprep.subr.bf16.mxu0 %v3027
    %4477 = vmatpush1.bf16.msra.mxu0 %v3026
    %4478 = vmatprep.subr.bf16.mxu0 %v3035
    %4479 = vmatpush1.bf16.msra.mxu0 %v3034
    %4480 = vmatprep.mubr.bf16.mxu0 %v811
    %4481 = vmatmul.mubr.bf16.gmra.mrb[0].mxu0 %v810
    %v4482 = vpop.f32.mrb[0].mxu0
    %v4483 = vadd.f32 %v1359, %v4482
    %v4484 = vpop.f32.mrb[0].mxu0
    %v4485 = vadd.f32 %v1363, %v4484
    %v4486 = vpop.f32.mrb[0].mxu0
    %v4487 = vadd.f32 %v1359, %v4486
    %v4488 = vpop.f32.mrb[0].mxu0
    %v4489 = vadd.f32 %v1363, %v4488
    %4490 = vdwg.mxu0
    %4491 = vmatprep.subr.bf16.mxu0 %v3043
    %4492 = vmatpush1.bf16.msra.mxu0 %v3042
    %4493 = vmatprep.subr.bf16.mxu0 %v3051
    %4494 = vmatpush1.bf16.msra.mxu0 %v3050
    %4495 = vmatprep.subr.bf16.mxu0 %v3059
    %4496 = vmatpush1.bf16.msra.mxu0 %v3058
    %4497 = vmatprep.subr.bf16.mxu0 %v3067
    %4498 = vmatpush1.bf16.msra.mxu0 %v3066
    %4499 = vmatprep.subr.bf16.mxu0 %v3075
    %4500 = vmatpush1.bf16.msra.mxu0 %v3074
    %4501 = vmatprep.subr.bf16.mxu0 %v3083
    %4502 = vmatpush1.bf16.msra.mxu0 %v3082
    %4503 = vmatprep.subr.bf16.mxu0 %v3091
    %4504 = vmatpush1.bf16.msra.mxu0 %v3090
    %4505 = vmatprep.subr.bf16.mxu0 %v3099
    %4506 = vmatpush1.bf16.msra.mxu0 %v3098
    %4507 = vmatprep.subr.bf16.mxu0 %v3107
    %4508 = vmatpush1.bf16.msra.mxu0 %v3106
    %4509 = vmatprep.subr.bf16.mxu0 %v3115
    %4510 = vmatpush1.bf16.msra.mxu0 %v3114
    %4511 = vmatprep.subr.bf16.mxu0 %v3123
    %4512 = vmatpush1.bf16.msra.mxu0 %v3122
    %4513 = vmatprep.subr.bf16.mxu0 %v3131
    %4514 = vmatpush1.bf16.msra.mxu0 %v3130
    %4515 = vmatprep.subr.bf16.mxu0 %v3139
    %4516 = vmatpush1.bf16.msra.mxu0 %v3138
    %4517 = vmatprep.subr.bf16.mxu0 %v3147
    %4518 = vmatpush1.bf16.msra.mxu0 %v3146
    %4519 = vmatprep.subr.bf16.mxu0 %v3155
    %4520 = vmatpush1.bf16.msra.mxu0 %v3154
    %4521 = vmatprep.subr.bf16.mxu0 %v3163
    %4522 = vmatpush1.bf16.msra.mxu0 %v3162
    %4523 = vmatprep.mubr.bf16.mxu0 %v813
    %4524 = vmatmul.mubr.bf16.gmra.mrb[0].mxu0 %v812
    %v4525 = vpop.f32.mrb[0].mxu0
    %v4526 = vadd.f32 %v4483, %v4525
    %v4527 = vpop.f32.mrb[0].mxu0
    %v4528 = vadd.f32 %v4485, %v4527
    %v4529 = vpop.f32.mrb[0].mxu0
    %v4530 = vadd.f32 %v4487, %v4529
    %v4531 = vpop.f32.mrb[0].mxu0
    %v4532 = vadd.f32 %v4489, %v4531
    %4533 = vdwg.mxu0
    %4534 = vmatprep.subr.bf16.mxu0 %v3171
    %4535 = vmatpush1.bf16.msra.mxu0 %v3170
    %4536 = vmatprep.subr.bf16.mxu0 %v3179
    %4537 = vmatpush1.bf16.msra.mxu0 %v3178
    %4538 = vmatprep.subr.bf16.mxu0 %v3187
    %4539 = vmatpush1.bf16.msra.mxu0 %v3186
    %4540 = vmatprep.subr.bf16.mxu0 %v3195
    %4541 = vmatpush1.bf16.msra.mxu0 %v3194
    %4542 = vmatprep.subr.bf16.mxu0 %v3203
    %4543 = vmatpush1.bf16.msra.mxu0 %v3202
    %4544 = vmatprep.subr.bf16.mxu0 %v3211
    %4545 = vmatpush1.bf16.msra.mxu0 %v3210
    %4546 = vmatprep.subr.bf16.mxu0 %v3219
    %4547 = vmatpush1.bf16.msra.mxu0 %v3218
    %4548 = vmatprep.subr.bf16.mxu0 %v3227
    %4549 = vmatpush1.bf16.msra.mxu0 %v3226
    %4550 = vmatprep.subr.bf16.mxu0 %v3235
    %4551 = vmatpush1.bf16.msra.mxu0 %v3234
    %4552 = vmatprep.subr.bf16.mxu0 %v3243
    %4553 = vmatpush1.bf16.msra.mxu0 %v3242
    %4554 = vmatprep.subr.bf16.mxu0 %v3251
    %4555 = vmatpush1.bf16.msra.mxu0 %v3250
    %4556 = vmatprep.subr.bf16.mxu0 %v3259
    %4557 = vmatpush1.bf16.msra.mxu0 %v3258
    %4558 = vmatprep.subr.bf16.mxu0 %v3267
    %4559 = vmatpush1.bf16.msra.mxu0 %v3266
    %4560 = vmatprep.subr.bf16.mxu0 %v3275
    %4561 = vmatpush1.bf16.msra.mxu0 %v3274
    %4562 = vmatprep.subr.bf16.mxu0 %v3283
    %4563 = vmatpush1.bf16.msra.mxu0 %v3282
    %4564 = vmatprep.subr.bf16.mxu0 %v3291
    %4565 = vmatpush1.bf16.msra.mxu0 %v3290
    %4566 = vmatprep.mubr.bf16.mxu0 %v815
    %4567 = vmatmul.mubr.bf16.gmra.mrb[0].mxu0 %v814
    %v4568 = vpop.f32.mrb[0].mxu0
    %v4569 = vadd.f32 %v4526, %v4568
    %v4570 = vpop.f32.mrb[0].mxu0
    %v4571 = vadd.f32 %v4528, %v4570
    %v4572 = vpop.f32.mrb[0].mxu0
    %v4573 = vadd.f32 %v4530, %v4572
    %v4574 = vpop.f32.mrb[0].mxu0
    %v4575 = vadd.f32 %v4532, %v4574
    %4576 = vdwg.mxu0
    %4577 = vmatprep.subr.bf16.mxu0 %v3299
    %4578 = vmatpush1.bf16.msra.mxu0 %v3298
    %4579 = vmatprep.subr.bf16.mxu0 %v3307
    %4580 = vmatpush1.bf16.msra.mxu0 %v3306
    %4581 = vmatprep.subr.bf16.mxu0 %v3315
    %4582 = vmatpush1.bf16.msra.mxu0 %v3314
    %4583 = vmatprep.subr.bf16.mxu0 %v3323
    %4584 = vmatpush1.bf16.msra.mxu0 %v3322
    %4585 = vmatprep.subr.bf16.mxu0 %v3331
    %4586 = vmatpush1.bf16.msra.mxu0 %v3330
    %4587 = vmatprep.subr.bf16.mxu0 %v3339
    %4588 = vmatpush1.bf16.msra.mxu0 %v3338
    %4589 = vmatprep.subr.bf16.mxu0 %v3347
    %4590 = vmatpush1.bf16.msra.mxu0 %v3346
    %4591 = vmatprep.subr.bf16.mxu0 %v3355
    %4592 = vmatpush1.bf16.msra.mxu0 %v3354
    %4593 = vmatprep.subr.bf16.mxu0 %v3363
    %4594 = vmatpush1.bf16.msra.mxu0 %v3362
    %4595 = vmatprep.subr.bf16.mxu0 %v3371
    %4596 = vmatpush1.bf16.msra.mxu0 %v3370
    %4597 = vmatprep.subr.bf16.mxu0 %v3379
    %4598 = vmatpush1.bf16.msra.mxu0 %v3378
    %4599 = vmatprep.subr.bf16.mxu0 %v3387
    %4600 = vmatpush1.bf16.msra.mxu0 %v3386
    %4601 = vmatprep.subr.bf16.mxu0 %v3395
    %4602 = vmatpush1.bf16.msra.mxu0 %v3394
    %4603 = vmatprep.subr.bf16.mxu0 %v3403
    %4604 = vmatpush1.bf16.msra.mxu0 %v3402
    %4605 = vmatprep.subr.bf16.mxu0 %v3411
    %4606 = vmatpush1.bf16.msra.mxu0 %v3410
    %4607 = vmatprep.subr.bf16.mxu0 %v3419
    %4608 = vmatpush1.bf16.msra.mxu0 %v3418
    %4609 = vmatprep.mubr.bf16.mxu0 %v817
    %4610 = vmatmul.mubr.bf16.gmra.mrb[0].mxu0 %v816
    %v4611 = vpop.f32.mrb[0].mxu0
    %v4612 = vadd.f32 %v4569, %v4611
    %v4613 = vpop.f32.mrb[0].mxu0
    %v4614 = vadd.f32 %v4571, %v4613
    %v4615 = vpop.f32.mrb[0].mxu0
    %v4616 = vadd.f32 %v4573, %v4615
    %v4617 = vpop.f32.mrb[0].mxu0
    %v4618 = vadd.f32 %v4575, %v4617
    %4619 = vdwg.mxu0
    %v4620 = vmul.f32 %v4096, 0.01
    %v4621 = vmul.f32 %v4098, 0.01
    %v4622 = vmul.f32 %v4268, 0.01
    %v4623 = vmul.f32 %v4270, 0.01
    %v4624 = vmul.f32 %v4440, 0.01
    %v4625 = vmul.f32 %v4442, 0.01
    %v4626 = vmul.f32 %v4612, 0.01
    %v4627 = vmul.f32 %v4614, 0.01
    %v4628 = vmul.f32 %v4100, 0.01
    %v4629 = vmul.f32 %v4102, 0.01
    %v4630 = vmul.f32 %v4272, 0.01
    %v4631 = vmul.f32 %v4274, 0.01
    %v4632 = vmul.f32 %v4444, 0.01
    %v4633 = vmul.f32 %v4446, 0.01
    %v4634 = vmul.f32 %v4616, 0.01
    %v4635 = vmul.f32 %v4618, 0.01
    %v4636 = vmax.f32 %v4096, %v4620
    %v4637 = vmax.f32 %v4098, %v4621
    %v4638 = vmax.f32 %v4268, %v4622
    %v4639 = vmax.f32 %v4270, %v4623
    %v4640 = vmax.f32 %v4440, %v4624
    %v4641 = vmax.f32 %v4442, %v4625
    %v4642 = vmax.f32 %v4612, %v4626
    %v4643 = vmax.f32 %v4614, %v4627
    %v4644 = vmax.f32 %v4100, %v4628
    %v4645 = vmax.f32 %v4102, %v4629
    %v4646 = vmax.f32 %v4272, %v4630
    %v4647 = vmax.f32 %v4274, %v4631
    %v4648 = vmax.f32 %v4444, %v4632
    %v4649 = vmax.f32 %v4446, %v4633
    %v4650 = vmax.f32 %v4616, %v4634
    %v4651 = vmax.f32 %v4618, %v4635
    %v4652 = vpack.c.bf16 %v4644, %v4636
    %v4653 = vpack.c.bf16 %v4645, %v4637
    %v4654 = vpack.c.bf16 %v4646, %v4638
    %v4655 = vpack.c.bf16 %v4647, %v4639
    %v4656 = vpack.c.bf16 %v4648, %v4640
    %v4657 = vpack.c.bf16 %v4649, %v4641
    %v4658 = vpack.c.bf16 %v4650, %v4642
    %v4659 = vpack.c.bf16 %v4651, %v4643
    %v4660 = vld [vmem:[#allocation11] sm:$0xff]
    %v4661 = vld [vmem:[#allocation11 + $0x8] sm:$0xff]
    %v4662 = vld [vmem:[#allocation11 + $0x10] sm:$0xff]
    %v4663 = vld [vmem:[#allocation11 + $0x18] sm:$0xff]
    %v4664 = vld [vmem:[#allocation11 + $0x20] sm:$0xff]
    %v4665 = vld [vmem:[#allocation11 + $0x28] sm:$0xff]
    %v4666 = vld [vmem:[#allocation11 + $0x30] sm:$0xff]
    %v4667 = vld [vmem:[#allocation11 + $0x38] sm:$0xff]
    %v4668 = vld [vmem:[#allocation11 + $0x40] sm:$0xff]
    %v4669 = vld [vmem:[#allocation11 + $0x48] sm:$0xff]
    %v4670 = vld [vmem:[#allocation11 + $0x50] sm:$0xff]
    %v4671 = vld [vmem:[#allocation11 + $0x58] sm:$0xff]
    %v4672 = vld [vmem:[#allocation11 + $0x60] sm:$0xff]
    %v4673 = vld [vmem:[#allocation11 + $0x68] sm:$0xff]
    %v4674 = vld [vmem:[#allocation11 + $0x70] sm:$0xff]
    %v4675 = vld [vmem:[#allocation11 + $0x78] sm:$0xff]
    %v4676 = vld [vmem:[#allocation11 + $0x80] sm:$0xff]
    %v4677 = vld [vmem:[#allocation11 + $0x88] sm:$0xff]
    %v4678 = vld [vmem:[#allocation11 + $0x90] sm:$0xff]
    %v4679 = vld [vmem:[#allocation11 + $0x98] sm:$0xff]
    %v4680 = vld [vmem:[#allocation11 + $0xa0] sm:$0xff]
    %v4681 = vld [vmem:[#allocation11 + $0xa8] sm:$0xff]
    %v4682 = vld [vmem:[#allocation11 + $0xb0] sm:$0xff]
    %v4683 = vld [vmem:[#allocation11 + $0xb8] sm:$0xff]
    %v4684 = vld [vmem:[#allocation11 + $0xc0] sm:$0xff]
    %v4685 = vld [vmem:[#allocation11 + $0xc8] sm:$0xff]
    %v4686 = vld [vmem:[#allocation11 + $0xd0] sm:$0xff]
    %v4687 = vld [vmem:[#allocation11 + $0xd8] sm:$0xff]
    %v4688 = vld [vmem:[#allocation11 + $0xe0] sm:$0xff]
    %v4689 = vld [vmem:[#allocation11 + $0xe8] sm:$0xff]
    %v4690 = vld [vmem:[#allocation11 + $0xf0] sm:$0xff]
    %v4691 = vld [vmem:[#allocation11 + $0xf8] sm:$0xff]
    %v4692 = vld [vmem:[#allocation11 + $0x100] sm:$0xff]
    %v4693 = vld [vmem:[#allocation11 + $0x108] sm:$0xff]
    %v4694 = vld [vmem:[#allocation11 + $0x110] sm:$0xff]
    %v4695 = vld [vmem:[#allocation11 + $0x118] sm:$0xff]
    %v4696 = vld [vmem:[#allocation11 + $0x120] sm:$0xff]
    %v4697 = vld [vmem:[#allocation11 + $0x128] sm:$0xff]
    %v4698 = vld [vmem:[#allocation11 + $0x130] sm:$0xff]
    %v4699 = vld [vmem:[#allocation11 + $0x138] sm:$0xff]
    %v4700 = vld [vmem:[#allocation11 + $0x140] sm:$0xff]
    %v4701 = vld [vmem:[#allocation11 + $0x148] sm:$0xff]
    %v4702 = vld [vmem:[#allocation11 + $0x150] sm:$0xff]
    %v4703 = vld [vmem:[#allocation11 + $0x158] sm:$0xff]
    %v4704 = vld [vmem:[#allocation11 + $0x160] sm:$0xff]
    %v4705 = vld [vmem:[#allocation11 + $0x168] sm:$0xff]
    %v4706 = vld [vmem:[#allocation11 + $0x170] sm:$0xff]
    %v4707 = vld [vmem:[#allocation11 + $0x178] sm:$0xff]
    %v4708 = vld [vmem:[#allocation11 + $0x180] sm:$0xff]
    %v4709 = vld [vmem:[#allocation11 + $0x188] sm:$0xff]
    %v4710 = vld [vmem:[#allocation11 + $0x190] sm:$0xff]
    %v4711 = vld [vmem:[#allocation11 + $0x198] sm:$0xff]
    %v4712 = vld [vmem:[#allocation11 + $0x1a0] sm:$0xff]
    %v4713 = vld [vmem:[#allocation11 + $0x1a8] sm:$0xff]
    %v4714 = vld [vmem:[#allocation11 + $0x1b0] sm:$0xff]
    %v4715 = vld [vmem:[#allocation11 + $0x1b8] sm:$0xff]
    %v4716 = vld [vmem:[#allocation11 + $0x1c0] sm:$0xff]
    %v4717 = vld [vmem:[#allocation11 + $0x1c8] sm:$0xff]
    %v4718 = vld [vmem:[#allocation11 + $0x1d0] sm:$0xff]
    %v4719 = vld [vmem:[#allocation11 + $0x1d8] sm:$0xff]
    %v4720 = vld [vmem:[#allocation11 + $0x1e0] sm:$0xff]
    %v4721 = vld [vmem:[#allocation11 + $0x1e8] sm:$0xff]
    %v4722 = vld [vmem:[#allocation11 + $0x1f0] sm:$0xff]
    %v4723 = vld [vmem:[#allocation11 + $0x1f8] sm:$0xff]
    %v4724 = vld [vmem:[#allocation11 + $0x200] sm:$0xff]
    %v4725 = vld [vmem:[#allocation11 + $0x208] sm:$0xff]
    %v4726 = vld [vmem:[#allocation11 + $0x210] sm:$0xff]
    %v4727 = vld [vmem:[#allocation11 + $0x218] sm:$0xff]
    %v4728 = vld [vmem:[#allocation11 + $0x220] sm:$0xff]
    %v4729 = vld [vmem:[#allocation11 + $0x228] sm:$0xff]
    %v4730 = vld [vmem:[#allocation11 + $0x230] sm:$0xff]
    %v4731 = vld [vmem:[#allocation11 + $0x238] sm:$0xff]
    %v4732 = vld [vmem:[#allocation11 + $0x240] sm:$0xff]
    %v4733 = vld [vmem:[#allocation11 + $0x248] sm:$0xff]
    %v4734 = vld [vmem:[#allocation11 + $0x250] sm:$0xff]
    %v4735 = vld [vmem:[#allocation11 + $0x258] sm:$0xff]
    %v4736 = vld [vmem:[#allocation11 + $0x260] sm:$0xff]
    %v4737 = vld [vmem:[#allocation11 + $0x268] sm:$0xff]
    %v4738 = vld [vmem:[#allocation11 + $0x270] sm:$0xff]
    %v4739 = vld [vmem:[#allocation11 + $0x278] sm:$0xff]
    %v4740 = vld [vmem:[#allocation11 + $0x280] sm:$0xff]
    %v4741 = vld [vmem:[#allocation11 + $0x288] sm:$0xff]
    %v4742 = vld [vmem:[#allocation11 + $0x290] sm:$0xff]
    %v4743 = vld [vmem:[#allocation11 + $0x298] sm:$0xff]
    %v4744 = vld [vmem:[#allocation11 + $0x2a0] sm:$0xff]
    %v4745 = vld [vmem:[#allocation11 + $0x2a8] sm:$0xff]
    %v4746 = vld [vmem:[#allocation11 + $0x2b0] sm:$0xff]
    %v4747 = vld [vmem:[#allocation11 + $0x2b8] sm:$0xff]
    %v4748 = vld [vmem:[#allocation11 + $0x2c0] sm:$0xff]
    %v4749 = vld [vmem:[#allocation11 + $0x2c8] sm:$0xff]
    %v4750 = vld [vmem:[#allocation11 + $0x2d0] sm:$0xff]
    %v4751 = vld [vmem:[#allocation11 + $0x2d8] sm:$0xff]
    %v4752 = vld [vmem:[#allocation11 + $0x2e0] sm:$0xff]
    %v4753 = vld [vmem:[#allocation11 + $0x2e8] sm:$0xff]
    %v4754 = vld [vmem:[#allocation11 + $0x2f0] sm:$0xff]
    %v4755 = vld [vmem:[#allocation11 + $0x2f8] sm:$0xff]
    %v4756 = vld [vmem:[#allocation11 + $0x300] sm:$0xff]
    %v4757 = vld [vmem:[#allocation11 + $0x308] sm:$0xff]
    %v4758 = vld [vmem:[#allocation11 + $0x310] sm:$0xff]
    %v4759 = vld [vmem:[#allocation11 + $0x318] sm:$0xff]
    %v4760 = vld [vmem:[#allocation11 + $0x320] sm:$0xff]
    %v4761 = vld [vmem:[#allocation11 + $0x328] sm:$0xff]
    %v4762 = vld [vmem:[#allocation11 + $0x330] sm:$0xff]
    %v4763 = vld [vmem:[#allocation11 + $0x338] sm:$0xff]
    %v4764 = vld [vmem:[#allocation11 + $0x340] sm:$0xff]
    %v4765 = vld [vmem:[#allocation11 + $0x348] sm:$0xff]
    %v4766 = vld [vmem:[#allocation11 + $0x350] sm:$0xff]
    %v4767 = vld [vmem:[#allocation11 + $0x358] sm:$0xff]
    %v4768 = vld [vmem:[#allocation11 + $0x360] sm:$0xff]
    %v4769 = vld [vmem:[#allocation11 + $0x368] sm:$0xff]
    %v4770 = vld [vmem:[#allocation11 + $0x370] sm:$0xff]
    %v4771 = vld [vmem:[#allocation11 + $0x378] sm:$0xff]
    %v4772 = vld [vmem:[#allocation11 + $0x380] sm:$0xff]
    %v4773 = vld [vmem:[#allocation11 + $0x388] sm:$0xff]
    %v4774 = vld [vmem:[#allocation11 + $0x390] sm:$0xff]
    %v4775 = vld [vmem:[#allocation11 + $0x398] sm:$0xff]
    %v4776 = vld [vmem:[#allocation11 + $0x3a0] sm:$0xff]
    %v4777 = vld [vmem:[#allocation11 + $0x3a8] sm:$0xff]
    %v4778 = vld [vmem:[#allocation11 + $0x3b0] sm:$0xff]
    %v4779 = vld [vmem:[#allocation11 + $0x3b8] sm:$0xff]
    %v4780 = vld [vmem:[#allocation11 + $0x3c0] sm:$0xff]
    %v4781 = vld [vmem:[#allocation11 + $0x3c8] sm:$0xff]
    %v4782 = vld [vmem:[#allocation11 + $0x3d0] sm:$0xff]
    %v4783 = vld [vmem:[#allocation11 + $0x3d8] sm:$0xff]
    %v4784 = vld [vmem:[#allocation11 + $0x3e0] sm:$0xff]
    %v4785 = vld [vmem:[#allocation11 + $0x3e8] sm:$0xff]
    %v4786 = vld [vmem:[#allocation11 + $0x3f0] sm:$0xff]
    %v4787 = vld [vmem:[#allocation11 + $0x3f8] sm:$0xff]
    %v4788 = vld [vmem:[#allocation11 + $0x400] sm:$0xff]
    %v4789 = vld [vmem:[#allocation11 + $0x408] sm:$0xff]
    %v4790 = vld [vmem:[#allocation11 + $0x410] sm:$0xff]
    %v4791 = vld [vmem:[#allocation11 + $0x418] sm:$0xff]
    %v4792 = vld [vmem:[#allocation11 + $0x420] sm:$0xff]
    %v4793 = vld [vmem:[#allocation11 + $0x428] sm:$0xff]
    %v4794 = vld [vmem:[#allocation11 + $0x430] sm:$0xff]
    %v4795 = vld [vmem:[#allocation11 + $0x438] sm:$0xff]
    %v4796 = vld [vmem:[#allocation11 + $0x440] sm:$0xff]
    %v4797 = vld [vmem:[#allocation11 + $0x448] sm:$0xff]
    %v4798 = vld [vmem:[#allocation11 + $0x450] sm:$0xff]
    %v4799 = vld [vmem:[#allocation11 + $0x458] sm:$0xff]
    %v4800 = vld [vmem:[#allocation11 + $0x460] sm:$0xff]
    %v4801 = vld [vmem:[#allocation11 + $0x468] sm:$0xff]
    %v4802 = vld [vmem:[#allocation11 + $0x470] sm:$0xff]
    %v4803 = vld [vmem:[#allocation11 + $0x478] sm:$0xff]
    %v4804 = vld [vmem:[#allocation11 + $0x480] sm:$0xff]
    %v4805 = vld [vmem:[#allocation11 + $0x488] sm:$0xff]
    %v4806 = vld [vmem:[#allocation11 + $0x490] sm:$0xff]
    %v4807 = vld [vmem:[#allocation11 + $0x498] sm:$0xff]
    %v4808 = vld [vmem:[#allocation11 + $0x4a0] sm:$0xff]
    %v4809 = vld [vmem:[#allocation11 + $0x4a8] sm:$0xff]
    %v4810 = vld [vmem:[#allocation11 + $0x4b0] sm:$0xff]
    %v4811 = vld [vmem:[#allocation11 + $0x4b8] sm:$0xff]
    %v4812 = vld [vmem:[#allocation11 + $0x4c0] sm:$0xff]
    %v4813 = vld [vmem:[#allocation11 + $0x4c8] sm:$0xff]
    %v4814 = vld [vmem:[#allocation11 + $0x4d0] sm:$0xff]
    %v4815 = vld [vmem:[#allocation11 + $0x4d8] sm:$0xff]
    %v4816 = vld [vmem:[#allocation11 + $0x4e0] sm:$0xff]
    %v4817 = vld [vmem:[#allocation11 + $0x4e8] sm:$0xff]
    %v4818 = vld [vmem:[#allocation11 + $0x4f0] sm:$0xff]
    %v4819 = vld [vmem:[#allocation11 + $0x4f8] sm:$0xff]
    %v4820 = vld [vmem:[#allocation11 + $0x500] sm:$0xff]
    %v4821 = vld [vmem:[#allocation11 + $0x508] sm:$0xff]
    %v4822 = vld [vmem:[#allocation11 + $0x510] sm:$0xff]
    %v4823 = vld [vmem:[#allocation11 + $0x518] sm:$0xff]
    %v4824 = vld [vmem:[#allocation11 + $0x520] sm:$0xff]
    %v4825 = vld [vmem:[#allocation11 + $0x528] sm:$0xff]
    %v4826 = vld [vmem:[#allocation11 + $0x530] sm:$0xff]
    %v4827 = vld [vmem:[#allocation11 + $0x538] sm:$0xff]
    %v4828 = vld [vmem:[#allocation11 + $0x540] sm:$0xff]
    %v4829 = vld [vmem:[#allocation11 + $0x548] sm:$0xff]
    %v4830 = vld [vmem:[#allocation11 + $0x550] sm:$0xff]
    %v4831 = vld [vmem:[#allocation11 + $0x558] sm:$0xff]
    %v4832 = vld [vmem:[#allocation11 + $0x560] sm:$0xff]
    %v4833 = vld [vmem:[#allocation11 + $0x568] sm:$0xff]
    %v4834 = vld [vmem:[#allocation11 + $0x570] sm:$0xff]
    %v4835 = vld [vmem:[#allocation11 + $0x578] sm:$0xff]
    %v4836 = vld [vmem:[#allocation11 + $0x580] sm:$0xff]
    %v4837 = vld [vmem:[#allocation11 + $0x588] sm:$0xff]
    %v4838 = vld [vmem:[#allocation11 + $0x590] sm:$0xff]
    %v4839 = vld [vmem:[#allocation11 + $0x598] sm:$0xff]
    %v4840 = vld [vmem:[#allocation11 + $0x5a0] sm:$0xff]
    %v4841 = vld [vmem:[#allocation11 + $0x5a8] sm:$0xff]
    %v4842 = vld [vmem:[#allocation11 + $0x5b0] sm:$0xff]
    %v4843 = vld [vmem:[#allocation11 + $0x5b8] sm:$0xff]
    %v4844 = vld [vmem:[#allocation11 + $0x5c0] sm:$0xff]
    %v4845 = vld [vmem:[#allocation11 + $0x5c8] sm:$0xff]
    %v4846 = vld [vmem:[#allocation11 + $0x5d0] sm:$0xff]
    %v4847 = vld [vmem:[#allocation11 + $0x5d8] sm:$0xff]
    %v4848 = vld [vmem:[#allocation11 + $0x5e0] sm:$0xff]
    %v4849 = vld [vmem:[#allocation11 + $0x5e8] sm:$0xff]
    %v4850 = vld [vmem:[#allocation11 + $0x5f0] sm:$0xff]
    %v4851 = vld [vmem:[#allocation11 + $0x5f8] sm:$0xff]
    %v4852 = vld [vmem:[#allocation11 + $0x600] sm:$0xff]
    %v4853 = vld [vmem:[#allocation11 + $0x608] sm:$0xff]
    %v4854 = vld [vmem:[#allocation11 + $0x610] sm:$0xff]
    %v4855 = vld [vmem:[#allocation11 + $0x618] sm:$0xff]
    %v4856 = vld [vmem:[#allocation11 + $0x620] sm:$0xff]
    %v4857 = vld [vmem:[#allocation11 + $0x628] sm:$0xff]
    %v4858 = vld [vmem:[#allocation11 + $0x630] sm:$0xff]
    %v4859 = vld [vmem:[#allocation11 + $0x638] sm:$0xff]
    %v4860 = vld [vmem:[#allocation11 + $0x640] sm:$0xff]
    %v4861 = vld [vmem:[#allocation11 + $0x648] sm:$0xff]
    %v4862 = vld [vmem:[#allocation11 + $0x650] sm:$0xff]
    %v4863 = vld [vmem:[#allocation11 + $0x658] sm:$0xff]
    %v4864 = vld [vmem:[#allocation11 + $0x660] sm:$0xff]
    %v4865 = vld [vmem:[#allocation11 + $0x668] sm:$0xff]
    %v4866 = vld [vmem:[#allocation11 + $0x670] sm:$0xff]
    %v4867 = vld [vmem:[#allocation11 + $0x678] sm:$0xff]
    %v4868 = vld [vmem:[#allocation11 + $0x680] sm:$0xff]
    %v4869 = vld [vmem:[#allocation11 + $0x688] sm:$0xff]
    %v4870 = vld [vmem:[#allocation11 + $0x690] sm:$0xff]
    %v4871 = vld [vmem:[#allocation11 + $0x698] sm:$0xff]
    %v4872 = vld [vmem:[#allocation11 + $0x6a0] sm:$0xff]
    %v4873 = vld [vmem:[#allocation11 + $0x6a8] sm:$0xff]
    %v4874 = vld [vmem:[#allocation11 + $0x6b0] sm:$0xff]
    %v4875 = vld [vmem:[#allocation11 + $0x6b8] sm:$0xff]
    %v4876 = vld [vmem:[#allocation11 + $0x6c0] sm:$0xff]
    %v4877 = vld [vmem:[#allocation11 + $0x6c8] sm:$0xff]
    %v4878 = vld [vmem:[#allocation11 + $0x6d0] sm:$0xff]
    %v4879 = vld [vmem:[#allocation11 + $0x6d8] sm:$0xff]
    %v4880 = vld [vmem:[#allocation11 + $0x6e0] sm:$0xff]
    %v4881 = vld [vmem:[#allocation11 + $0x6e8] sm:$0xff]
    %v4882 = vld [vmem:[#allocation11 + $0x6f0] sm:$0xff]
    %v4883 = vld [vmem:[#allocation11 + $0x6f8] sm:$0xff]
    %v4884 = vld [vmem:[#allocation11 + $0x700] sm:$0xff]
    %v4885 = vld [vmem:[#allocation11 + $0x708] sm:$0xff]
    %v4886 = vld [vmem:[#allocation11 + $0x710] sm:$0xff]
    %v4887 = vld [vmem:[#allocation11 + $0x718] sm:$0xff]
    %v4888 = vld [vmem:[#allocation11 + $0x720] sm:$0xff]
    %v4889 = vld [vmem:[#allocation11 + $0x728] sm:$0xff]
    %v4890 = vld [vmem:[#allocation11 + $0x730] sm:$0xff]
    %v4891 = vld [vmem:[#allocation11 + $0x738] sm:$0xff]
    %v4892 = vld [vmem:[#allocation11 + $0x740] sm:$0xff]
    %v4893 = vld [vmem:[#allocation11 + $0x748] sm:$0xff]
    %v4894 = vld [vmem:[#allocation11 + $0x750] sm:$0xff]
    %v4895 = vld [vmem:[#allocation11 + $0x758] sm:$0xff]
    %v4896 = vld [vmem:[#allocation11 + $0x760] sm:$0xff]
    %v4897 = vld [vmem:[#allocation11 + $0x768] sm:$0xff]
    %v4898 = vld [vmem:[#allocation11 + $0x770] sm:$0xff]
    %v4899 = vld [vmem:[#allocation11 + $0x778] sm:$0xff]
    %v4900 = vld [vmem:[#allocation11 + $0x780] sm:$0xff]
    %v4901 = vld [vmem:[#allocation11 + $0x788] sm:$0xff]
    %v4902 = vld [vmem:[#allocation11 + $0x790] sm:$0xff]
    %v4903 = vld [vmem:[#allocation11 + $0x798] sm:$0xff]
    %v4904 = vld [vmem:[#allocation11 + $0x7a0] sm:$0xff]
    %v4905 = vld [vmem:[#allocation11 + $0x7a8] sm:$0xff]
    %v4906 = vld [vmem:[#allocation11 + $0x7b0] sm:$0xff]
    %v4907 = vld [vmem:[#allocation11 + $0x7b8] sm:$0xff]
    %v4908 = vld [vmem:[#allocation11 + $0x7c0] sm:$0xff]
    %v4909 = vld [vmem:[#allocation11 + $0x7c8] sm:$0xff]
    %v4910 = vld [vmem:[#allocation11 + $0x7d0] sm:$0xff]
    %v4911 = vld [vmem:[#allocation11 + $0x7d8] sm:$0xff]
    %v4912 = vld [vmem:[#allocation11 + $0x7e0] sm:$0xff]
    %v4913 = vld [vmem:[#allocation11 + $0x7e8] sm:$0xff]
    %v4914 = vld [vmem:[#allocation11 + $0x7f0] sm:$0xff]
    %v4915 = vld [vmem:[#allocation11 + $0x7f8] sm:$0xff]
    %v4916 = vld [vmem:[#allocation13] sm:$0xf]
    %v4918 = vlaneseq
    %v4919 = vshrl.u32 %v4918, 7
    %v4920 = vsub.s32 0, %v4919
    %v4921 = vrot.slane %v4916, %v4920
    %v4922 = vlaneseq
    %v4923 = vshrl.u32 %v4922, 7
    %v4924 = vsub.s32 1, %v4923
    %v4925 = vrot.slane %v4916, %v4924
    %v4926 = vlaneseq
    %v4927 = vshrl.u32 %v4926, 7
    %v4928 = vsub.s32 2, %v4927
    %v4929 = vrot.slane %v4916, %v4928
    %v4930 = vlaneseq
    %v4931 = vshrl.u32 %v4930, 7
    %v4932 = vsub.s32 3, %v4931
    %v4933 = vrot.slane %v4916, %v4932
    %v5194 = vunpack.c.l.b16 %v4660
    %v5195 = vunpack.c.h.b16 %v4660
    %v5196 = vunpack.c.l.b16 %v4661
    %v5197 = vunpack.c.h.b16 %v4661
    %v5198 = vunpack.c.l.b16 %v4662
    %v5199 = vunpack.c.h.b16 %v4662
    %v5200 = vunpack.c.l.b16 %v4663
    %v5201 = vunpack.c.h.b16 %v4663
    %v5202 = vunpack.c.l.b16 %v4664
    %v5203 = vunpack.c.h.b16 %v4664
    %v5204 = vunpack.c.l.b16 %v4665
    %v5205 = vunpack.c.h.b16 %v4665
    %v5206 = vunpack.c.l.b16 %v4666
    %v5207 = vunpack.c.h.b16 %v4666
    %v5208 = vunpack.c.l.b16 %v4667
    %v5209 = vunpack.c.h.b16 %v4667
    %v5210 = vunpack.c.l.b16 %v4668
    %v5211 = vunpack.c.h.b16 %v4668
    %v5212 = vunpack.c.l.b16 %v4669
    %v5213 = vunpack.c.h.b16 %v4669
    %v5214 = vunpack.c.l.b16 %v4670
    %v5215 = vunpack.c.h.b16 %v4670
    %v5216 = vunpack.c.l.b16 %v4671
    %v5217 = vunpack.c.h.b16 %v4671
    %v5218 = vunpack.c.l.b16 %v4672
    %v5219 = vunpack.c.h.b16 %v4672
    %v5220 = vunpack.c.l.b16 %v4673
    %v5221 = vunpack.c.h.b16 %v4673
    %v5222 = vunpack.c.l.b16 %v4674
    %v5223 = vunpack.c.h.b16 %v4674
    %v5224 = vunpack.c.l.b16 %v4675
    %v5225 = vunpack.c.h.b16 %v4675
    %v5226 = vunpack.c.l.b16 %v4676
    %v5227 = vunpack.c.h.b16 %v4676
    %v5228 = vunpack.c.l.b16 %v4677
    %v5229 = vunpack.c.h.b16 %v4677
    %v5230 = vunpack.c.l.b16 %v4678
    %v5231 = vunpack.c.h.b16 %v4678
    %v5232 = vunpack.c.l.b16 %v4679
    %v5233 = vunpack.c.h.b16 %v4679
    %v5234 = vunpack.c.l.b16 %v4680
    %v5235 = vunpack.c.h.b16 %v4680
    %v5236 = vunpack.c.l.b16 %v4681
    %v5237 = vunpack.c.h.b16 %v4681
    %v5238 = vunpack.c.l.b16 %v4682
    %v5239 = vunpack.c.h.b16 %v4682
    %v5240 = vunpack.c.l.b16 %v4683
    %v5241 = vunpack.c.h.b16 %v4683
    %v5242 = vunpack.c.l.b16 %v4684
    %v5243 = vunpack.c.h.b16 %v4684
    %v5244 = vunpack.c.l.b16 %v4685
    %v5245 = vunpack.c.h.b16 %v4685
    %v5246 = vunpack.c.l.b16 %v4686
    %v5247 = vunpack.c.h.b16 %v4686
    %v5248 = vunpack.c.l.b16 %v4687
    %v5249 = vunpack.c.h.b16 %v4687
    %v5250 = vunpack.c.l.b16 %v4688
    %v5251 = vunpack.c.h.b16 %v4688
    %v5252 = vunpack.c.l.b16 %v4689
    %v5253 = vunpack.c.h.b16 %v4689
    %v5254 = vunpack.c.l.b16 %v4690
    %v5255 = vunpack.c.h.b16 %v4690
    %v5256 = vunpack.c.l.b16 %v4691
    %v5257 = vunpack.c.h.b16 %v4691
    %v5258 = vunpack.c.l.b16 %v4692
    %v5259 = vunpack.c.h.b16 %v4692
    %v5260 = vunpack.c.l.b16 %v4693
    %v5261 = vunpack.c.h.b16 %v4693
    %v5262 = vunpack.c.l.b16 %v4694
    %v5263 = vunpack.c.h.b16 %v4694
    %v5264 = vunpack.c.l.b16 %v4695
    %v5265 = vunpack.c.h.b16 %v4695
    %v5266 = vunpack.c.l.b16 %v4696
    %v5267 = vunpack.c.h.b16 %v4696
    %v5268 = vunpack.c.l.b16 %v4697
    %v5269 = vunpack.c.h.b16 %v4697
    %v5270 = vunpack.c.l.b16 %v4698
    %v5271 = vunpack.c.h.b16 %v4698
    %v5272 = vunpack.c.l.b16 %v4699
    %v5273 = vunpack.c.h.b16 %v4699
    %v5274 = vunpack.c.l.b16 %v4700
    %v5275 = vunpack.c.h.b16 %v4700
    %v5276 = vunpack.c.l.b16 %v4701
    %v5277 = vunpack.c.h.b16 %v4701
    %v5278 = vunpack.c.l.b16 %v4702
    %v5279 = vunpack.c.h.b16 %v4702
    %v5280 = vunpack.c.l.b16 %v4703
    %v5281 = vunpack.c.h.b16 %v4703
    %v5282 = vunpack.c.l.b16 %v4704
    %v5283 = vunpack.c.h.b16 %v4704
    %v5284 = vunpack.c.l.b16 %v4705
    %v5285 = vunpack.c.h.b16 %v4705
    %v5286 = vunpack.c.l.b16 %v4706
    %v5287 = vunpack.c.h.b16 %v4706
    %v5288 = vunpack.c.l.b16 %v4707
    %v5289 = vunpack.c.h.b16 %v4707
    %v5290 = vunpack.c.l.b16 %v4708
    %v5291 = vunpack.c.h.b16 %v4708
    %v5292 = vunpack.c.l.b16 %v4709
    %v5293 = vunpack.c.h.b16 %v4709
    %v5294 = vunpack.c.l.b16 %v4710
    %v5295 = vunpack.c.h.b16 %v4710
    %v5296 = vunpack.c.l.b16 %v4711
    %v5297 = vunpack.c.h.b16 %v4711
    %v5298 = vunpack.c.l.b16 %v4712
    %v5299 = vunpack.c.h.b16 %v4712
    %v5300 = vunpack.c.l.b16 %v4713
    %v5301 = vunpack.c.h.b16 %v4713
    %v5302 = vunpack.c.l.b16 %v4714
    %v5303 = vunpack.c.h.b16 %v4714
    %v5304 = vunpack.c.l.b16 %v4715
    %v5305 = vunpack.c.h.b16 %v4715
    %v5306 = vunpack.c.l.b16 %v4716
    %v5307 = vunpack.c.h.b16 %v4716
    %v5308 = vunpack.c.l.b16 %v4717
    %v5309 = vunpack.c.h.b16 %v4717
    %v5310 = vunpack.c.l.b16 %v4718
    %v5311 = vunpack.c.h.b16 %v4718
    %v5312 = vunpack.c.l.b16 %v4719
    %v5313 = vunpack.c.h.b16 %v4719
    %v5314 = vunpack.c.l.b16 %v4720
    %v5315 = vunpack.c.h.b16 %v4720
    %v5316 = vunpack.c.l.b16 %v4721
    %v5317 = vunpack.c.h.b16 %v4721
    %v5318 = vunpack.c.l.b16 %v4722
    %v5319 = vunpack.c.h.b16 %v4722
    %v5320 = vunpack.c.l.b16 %v4723
    %v5321 = vunpack.c.h.b16 %v4723
    %v5322 = vunpack.c.l.b16 %v4724
    %v5323 = vunpack.c.h.b16 %v4724
    %v5324 = vunpack.c.l.b16 %v4725
    %v5325 = vunpack.c.h.b16 %v4725
    %v5326 = vunpack.c.l.b16 %v4726
    %v5327 = vunpack.c.h.b16 %v4726
    %v5328 = vunpack.c.l.b16 %v4727
    %v5329 = vunpack.c.h.b16 %v4727
    %v5330 = vunpack.c.l.b16 %v4728
    %v5331 = vunpack.c.h.b16 %v4728
    %v5332 = vunpack.c.l.b16 %v4729
    %v5333 = vunpack.c.h.b16 %v4729
    %v5334 = vunpack.c.l.b16 %v4730
    %v5335 = vunpack.c.h.b16 %v4730
    %v5336 = vunpack.c.l.b16 %v4731
    %v5337 = vunpack.c.h.b16 %v4731
    %v5338 = vunpack.c.l.b16 %v4732
    %v5339 = vunpack.c.h.b16 %v4732
    %v5340 = vunpack.c.l.b16 %v4733
    %v5341 = vunpack.c.h.b16 %v4733
    %v5342 = vunpack.c.l.b16 %v4734
    %v5343 = vunpack.c.h.b16 %v4734
    %v5344 = vunpack.c.l.b16 %v4735
    %v5345 = vunpack.c.h.b16 %v4735
    %v5346 = vunpack.c.l.b16 %v4736
    %v5347 = vunpack.c.h.b16 %v4736
    %v5348 = vunpack.c.l.b16 %v4737
    %v5349 = vunpack.c.h.b16 %v4737
    %v5350 = vunpack.c.l.b16 %v4738
    %v5351 = vunpack.c.h.b16 %v4738
    %v5352 = vunpack.c.l.b16 %v4739
    %v5353 = vunpack.c.h.b16 %v4739
    %v5354 = vunpack.c.l.b16 %v4740
    %v5355 = vunpack.c.h.b16 %v4740
    %v5356 = vunpack.c.l.b16 %v4741
    %v5357 = vunpack.c.h.b16 %v4741
    %v5358 = vunpack.c.l.b16 %v4742
    %v5359 = vunpack.c.h.b16 %v4742
    %v5360 = vunpack.c.l.b16 %v4743
    %v5361 = vunpack.c.h.b16 %v4743
    %v5362 = vunpack.c.l.b16 %v4744
    %v5363 = vunpack.c.h.b16 %v4744
    %v5364 = vunpack.c.l.b16 %v4745
    %v5365 = vunpack.c.h.b16 %v4745
    %v5366 = vunpack.c.l.b16 %v4746
    %v5367 = vunpack.c.h.b16 %v4746
    %v5368 = vunpack.c.l.b16 %v4747
    %v5369 = vunpack.c.h.b16 %v4747
    %v5370 = vunpack.c.l.b16 %v4748
    %v5371 = vunpack.c.h.b16 %v4748
    %v5372 = vunpack.c.l.b16 %v4749
    %v5373 = vunpack.c.h.b16 %v4749
    %v5374 = vunpack.c.l.b16 %v4750
    %v5375 = vunpack.c.h.b16 %v4750
    %v5376 = vunpack.c.l.b16 %v4751
    %v5377 = vunpack.c.h.b16 %v4751
    %v5378 = vunpack.c.l.b16 %v4752
    %v5379 = vunpack.c.h.b16 %v4752
    %v5380 = vunpack.c.l.b16 %v4753
    %v5381 = vunpack.c.h.b16 %v4753
    %v5382 = vunpack.c.l.b16 %v4754
    %v5383 = vunpack.c.h.b16 %v4754
    %v5384 = vunpack.c.l.b16 %v4755
    %v5385 = vunpack.c.h.b16 %v4755
    %v5386 = vunpack.c.l.b16 %v4756
    %v5387 = vunpack.c.h.b16 %v4756
    %v5388 = vunpack.c.l.b16 %v4757
    %v5389 = vunpack.c.h.b16 %v4757
    %v5390 = vunpack.c.l.b16 %v4758
    %v5391 = vunpack.c.h.b16 %v4758
    %v5392 = vunpack.c.l.b16 %v4759
    %v5393 = vunpack.c.h.b16 %v4759
    %v5394 = vunpack.c.l.b16 %v4760
    %v5395 = vunpack.c.h.b16 %v4760
    %v5396 = vunpack.c.l.b16 %v4761
    %v5397 = vunpack.c.h.b16 %v4761
    %v5398 = vunpack.c.l.b16 %v4762
    %v5399 = vunpack.c.h.b16 %v4762
    %v5400 = vunpack.c.l.b16 %v4763
    %v5401 = vunpack.c.h.b16 %v4763
    %v5402 = vunpack.c.l.b16 %v4764
    %v5403 = vunpack.c.h.b16 %v4764
    %v5404 = vunpack.c.l.b16 %v4765
    %v5405 = vunpack.c.h.b16 %v4765
    %v5406 = vunpack.c.l.b16 %v4766
    %v5407 = vunpack.c.h.b16 %v4766
    %v5408 = vunpack.c.l.b16 %v4767
    %v5409 = vunpack.c.h.b16 %v4767
    %v5410 = vunpack.c.l.b16 %v4768
    %v5411 = vunpack.c.h.b16 %v4768
    %v5412 = vunpack.c.l.b16 %v4769
    %v5413 = vunpack.c.h.b16 %v4769
    %v5414 = vunpack.c.l.b16 %v4770
    %v5415 = vunpack.c.h.b16 %v4770
    %v5416 = vunpack.c.l.b16 %v4771
    %v5417 = vunpack.c.h.b16 %v4771
    %v5418 = vunpack.c.l.b16 %v4772
    %v5419 = vunpack.c.h.b16 %v4772
    %v5420 = vunpack.c.l.b16 %v4773
    %v5421 = vunpack.c.h.b16 %v4773
    %v5422 = vunpack.c.l.b16 %v4774
    %v5423 = vunpack.c.h.b16 %v4774
    %v5424 = vunpack.c.l.b16 %v4775
    %v5425 = vunpack.c.h.b16 %v4775
    %v5426 = vunpack.c.l.b16 %v4776
    %v5427 = vunpack.c.h.b16 %v4776
    %v5428 = vunpack.c.l.b16 %v4777
    %v5429 = vunpack.c.h.b16 %v4777
    %v5430 = vunpack.c.l.b16 %v4778
    %v5431 = vunpack.c.h.b16 %v4778
    %v5432 = vunpack.c.l.b16 %v4779
    %v5433 = vunpack.c.h.b16 %v4779
    %v5434 = vunpack.c.l.b16 %v4780
    %v5435 = vunpack.c.h.b16 %v4780
    %v5436 = vunpack.c.l.b16 %v4781
    %v5437 = vunpack.c.h.b16 %v4781
    %v5438 = vunpack.c.l.b16 %v4782
    %v5439 = vunpack.c.h.b16 %v4782
    %v5440 = vunpack.c.l.b16 %v4783
    %v5441 = vunpack.c.h.b16 %v4783
    %v5442 = vunpack.c.l.b16 %v4784
    %v5443 = vunpack.c.h.b16 %v4784
    %v5444 = vunpack.c.l.b16 %v4785
    %v5445 = vunpack.c.h.b16 %v4785
    %v5446 = vunpack.c.l.b16 %v4786
    %v5447 = vunpack.c.h.b16 %v4786
    %v5448 = vunpack.c.l.b16 %v4787
    %v5449 = vunpack.c.h.b16 %v4787
    %v5450 = vunpack.c.l.b16 %v4788
    %v5451 = vunpack.c.h.b16 %v4788
    %v5452 = vunpack.c.l.b16 %v4789
    %v5453 = vunpack.c.h.b16 %v4789
    %v5454 = vunpack.c.l.b16 %v4790
    %v5455 = vunpack.c.h.b16 %v4790
    %v5456 = vunpack.c.l.b16 %v4791
    %v5457 = vunpack.c.h.b16 %v4791
    %v5458 = vunpack.c.l.b16 %v4792
    %v5459 = vunpack.c.h.b16 %v4792
    %v5460 = vunpack.c.l.b16 %v4793
    %v5461 = vunpack.c.h.b16 %v4793
    %v5462 = vunpack.c.l.b16 %v4794
    %v5463 = vunpack.c.h.b16 %v4794
    %v5464 = vunpack.c.l.b16 %v4795
    %v5465 = vunpack.c.h.b16 %v4795
    %v5466 = vunpack.c.l.b16 %v4796
    %v5467 = vunpack.c.h.b16 %v4796
    %v5468 = vunpack.c.l.b16 %v4797
    %v5469 = vunpack.c.h.b16 %v4797
    %v5470 = vunpack.c.l.b16 %v4798
    %v5471 = vunpack.c.h.b16 %v4798
    %v5472 = vunpack.c.l.b16 %v4799
    %v5473 = vunpack.c.h.b16 %v4799
    %v5474 = vunpack.c.l.b16 %v4800
    %v5475 = vunpack.c.h.b16 %v4800
    %v5476 = vunpack.c.l.b16 %v4801
    %v5477 = vunpack.c.h.b16 %v4801
    %v5478 = vunpack.c.l.b16 %v4802
    %v5479 = vunpack.c.h.b16 %v4802
    %v5480 = vunpack.c.l.b16 %v4803
    %v5481 = vunpack.c.h.b16 %v4803
    %v5482 = vunpack.c.l.b16 %v4804
    %v5483 = vunpack.c.h.b16 %v4804
    %v5484 = vunpack.c.l.b16 %v4805
    %v5485 = vunpack.c.h.b16 %v4805
    %v5486 = vunpack.c.l.b16 %v4806
    %v5487 = vunpack.c.h.b16 %v4806
    %v5488 = vunpack.c.l.b16 %v4807
    %v5489 = vunpack.c.h.b16 %v4807
    %v5490 = vunpack.c.l.b16 %v4808
    %v5491 = vunpack.c.h.b16 %v4808
    %v5492 = vunpack.c.l.b16 %v4809
    %v5493 = vunpack.c.h.b16 %v4809
    %v5494 = vunpack.c.l.b16 %v4810
    %v5495 = vunpack.c.h.b16 %v4810
    %v5496 = vunpack.c.l.b16 %v4811
    %v5497 = vunpack.c.h.b16 %v4811
    %v5498 = vunpack.c.l.b16 %v4812
    %v5499 = vunpack.c.h.b16 %v4812
    %v5500 = vunpack.c.l.b16 %v4813
    %v5501 = vunpack.c.h.b16 %v4813
    %v5502 = vunpack.c.l.b16 %v4814
    %v5503 = vunpack.c.h.b16 %v4814
    %v5504 = vunpack.c.l.b16 %v4815
    %v5505 = vunpack.c.h.b16 %v4815
    %v5506 = vunpack.c.l.b16 %v4816
    %v5507 = vunpack.c.h.b16 %v4816
    %v5508 = vunpack.c.l.b16 %v4817
    %v5509 = vunpack.c.h.b16 %v4817
    %v5510 = vunpack.c.l.b16 %v4818
    %v5511 = vunpack.c.h.b16 %v4818
    %v5512 = vunpack.c.l.b16 %v4819
    %v5513 = vunpack.c.h.b16 %v4819
    %v5514 = vunpack.c.l.b16 %v4820
    %v5515 = vunpack.c.h.b16 %v4820
    %v5516 = vunpack.c.l.b16 %v4821
    %v5517 = vunpack.c.h.b16 %v4821
    %v5518 = vunpack.c.l.b16 %v4822
    %v5519 = vunpack.c.h.b16 %v4822
    %v5520 = vunpack.c.l.b16 %v4823
    %v5521 = vunpack.c.h.b16 %v4823
    %v5522 = vunpack.c.l.b16 %v4824
    %v5523 = vunpack.c.h.b16 %v4824
    %v5524 = vunpack.c.l.b16 %v4825
    %v5525 = vunpack.c.h.b16 %v4825
    %v5526 = vunpack.c.l.b16 %v4826
    %v5527 = vunpack.c.h.b16 %v4826
    %v5528 = vunpack.c.l.b16 %v4827
    %v5529 = vunpack.c.h.b16 %v4827
    %v5530 = vunpack.c.l.b16 %v4828
    %v5531 = vunpack.c.h.b16 %v4828
    %v5532 = vunpack.c.l.b16 %v4829
    %v5533 = vunpack.c.h.b16 %v4829
    %v5534 = vunpack.c.l.b16 %v4830
    %v5535 = vunpack.c.h.b16 %v4830
    %v5536 = vunpack.c.l.b16 %v4831
    %v5537 = vunpack.c.h.b16 %v4831
    %v5538 = vunpack.c.l.b16 %v4832
    %v5539 = vunpack.c.h.b16 %v4832
    %v5540 = vunpack.c.l.b16 %v4833
    %v5541 = vunpack.c.h.b16 %v4833
    %v5542 = vunpack.c.l.b16 %v4834
    %v5543 = vunpack.c.h.b16 %v4834
    %v5544 = vunpack.c.l.b16 %v4835
    %v5545 = vunpack.c.h.b16 %v4835
    %v5546 = vunpack.c.l.b16 %v4836
    %v5547 = vunpack.c.h.b16 %v4836
    %v5548 = vunpack.c.l.b16 %v4837
    %v5549 = vunpack.c.h.b16 %v4837
    %v5550 = vunpack.c.l.b16 %v4838
    %v5551 = vunpack.c.h.b16 %v4838
    %v5552 = vunpack.c.l.b16 %v4839
    %v5553 = vunpack.c.h.b16 %v4839
    %v5554 = vunpack.c.l.b16 %v4840
    %v5555 = vunpack.c.h.b16 %v4840
    %v5556 = vunpack.c.l.b16 %v4841
    %v5557 = vunpack.c.h.b16 %v4841
    %v5558 = vunpack.c.l.b16 %v4842
    %v5559 = vunpack.c.h.b16 %v4842
    %v5560 = vunpack.c.l.b16 %v4843
    %v5561 = vunpack.c.h.b16 %v4843
    %v5562 = vunpack.c.l.b16 %v4844
    %v5563 = vunpack.c.h.b16 %v4844
    %v5564 = vunpack.c.l.b16 %v4845
    %v5565 = vunpack.c.h.b16 %v4845
    %v5566 = vunpack.c.l.b16 %v4846
    %v5567 = vunpack.c.h.b16 %v4846
    %v5568 = vunpack.c.l.b16 %v4847
    %v5569 = vunpack.c.h.b16 %v4847
    %v5570 = vunpack.c.l.b16 %v4848
    %v5571 = vunpack.c.h.b16 %v4848
    %v5572 = vunpack.c.l.b16 %v4849
    %v5573 = vunpack.c.h.b16 %v4849
    %v5574 = vunpack.c.l.b16 %v4850
    %v5575 = vunpack.c.h.b16 %v4850
    %v5576 = vunpack.c.l.b16 %v4851
    %v5577 = vunpack.c.h.b16 %v4851
    %v5578 = vunpack.c.l.b16 %v4852
    %v5579 = vunpack.c.h.b16 %v4852
    %v5580 = vunpack.c.l.b16 %v4853
    %v5581 = vunpack.c.h.b16 %v4853
    %v5582 = vunpack.c.l.b16 %v4854
    %v5583 = vunpack.c.h.b16 %v4854
    %v5584 = vunpack.c.l.b16 %v4855
    %v5585 = vunpack.c.h.b16 %v4855
    %v5586 = vunpack.c.l.b16 %v4856
    %v5587 = vunpack.c.h.b16 %v4856
    %v5588 = vunpack.c.l.b16 %v4857
    %v5589 = vunpack.c.h.b16 %v4857
    %v5590 = vunpack.c.l.b16 %v4858
    %v5591 = vunpack.c.h.b16 %v4858
    %v5592 = vunpack.c.l.b16 %v4859
    %v5593 = vunpack.c.h.b16 %v4859
    %v5594 = vunpack.c.l.b16 %v4860
    %v5595 = vunpack.c.h.b16 %v4860
    %v5596 = vunpack.c.l.b16 %v4861
    %v5597 = vunpack.c.h.b16 %v4861
    %v5598 = vunpack.c.l.b16 %v4862
    %v5599 = vunpack.c.h.b16 %v4862
    %v5600 = vunpack.c.l.b16 %v4863
    %v5601 = vunpack.c.h.b16 %v4863
    %v5602 = vunpack.c.l.b16 %v4864
    %v5603 = vunpack.c.h.b16 %v4864
    %v5604 = vunpack.c.l.b16 %v4865
    %v5605 = vunpack.c.h.b16 %v4865
    %v5606 = vunpack.c.l.b16 %v4866
    %v5607 = vunpack.c.h.b16 %v4866
    %v5608 = vunpack.c.l.b16 %v4867
    %v5609 = vunpack.c.h.b16 %v4867
    %v5610 = vunpack.c.l.b16 %v4868
    %v5611 = vunpack.c.h.b16 %v4868
    %v5612 = vunpack.c.l.b16 %v4869
    %v5613 = vunpack.c.h.b16 %v4869
    %v5614 = vunpack.c.l.b16 %v4870
    %v5615 = vunpack.c.h.b16 %v4870
    %v5616 = vunpack.c.l.b16 %v4871
    %v5617 = vunpack.c.h.b16 %v4871
    %v5618 = vunpack.c.l.b16 %v4872
    %v5619 = vunpack.c.h.b16 %v4872
    %v5620 = vunpack.c.l.b16 %v4873
    %v5621 = vunpack.c.h.b16 %v4873
    %v5622 = vunpack.c.l.b16 %v4874
    %v5623 = vunpack.c.h.b16 %v4874
    %v5624 = vunpack.c.l.b16 %v4875
    %v5625 = vunpack.c.h.b16 %v4875
    %v5626 = vunpack.c.l.b16 %v4876
    %v5627 = vunpack.c.h.b16 %v4876
    %v5628 = vunpack.c.l.b16 %v4877
    %v5629 = vunpack.c.h.b16 %v4877
    %v5630 = vunpack.c.l.b16 %v4878
    %v5631 = vunpack.c.h.b16 %v4878
    %v5632 = vunpack.c.l.b16 %v4879
    %v5633 = vunpack.c.h.b16 %v4879
    %v5634 = vunpack.c.l.b16 %v4880
    %v5635 = vunpack.c.h.b16 %v4880
    %v5636 = vunpack.c.l.b16 %v4881
    %v5637 = vunpack.c.h.b16 %v4881
    %v5638 = vunpack.c.l.b16 %v4882
    %v5639 = vunpack.c.h.b16 %v4882
    %v5640 = vunpack.c.l.b16 %v4883
    %v5641 = vunpack.c.h.b16 %v4883
    %v5642 = vunpack.c.l.b16 %v4884
    %v5643 = vunpack.c.h.b16 %v4884
    %v5644 = vunpack.c.l.b16 %v4885
    %v5645 = vunpack.c.h.b16 %v4885
    %v5646 = vunpack.c.l.b16 %v4886
    %v5647 = vunpack.c.h.b16 %v4886
    %v5648 = vunpack.c.l.b16 %v4887
    %v5649 = vunpack.c.h.b16 %v4887
    %v5650 = vunpack.c.l.b16 %v4888
    %v5651 = vunpack.c.h.b16 %v4888
    %v5652 = vunpack.c.l.b16 %v4889
    %v5653 = vunpack.c.h.b16 %v4889
    %v5654 = vunpack.c.l.b16 %v4890
    %v5655 = vunpack.c.h.b16 %v4890
    %v5656 = vunpack.c.l.b16 %v4891
    %v5657 = vunpack.c.h.b16 %v4891
    %v5658 = vunpack.c.l.b16 %v4892
    %v5659 = vunpack.c.h.b16 %v4892
    %v5660 = vunpack.c.l.b16 %v4893
    %v5661 = vunpack.c.h.b16 %v4893
    %v5662 = vunpack.c.l.b16 %v4894
    %v5663 = vunpack.c.h.b16 %v4894
    %v5664 = vunpack.c.l.b16 %v4895
    %v5665 = vunpack.c.h.b16 %v4895
    %v5666 = vunpack.c.l.b16 %v4896
    %v5667 = vunpack.c.h.b16 %v4896
    %v5668 = vunpack.c.l.b16 %v4897
    %v5669 = vunpack.c.h.b16 %v4897
    %v5670 = vunpack.c.l.b16 %v4898
    %v5671 = vunpack.c.h.b16 %v4898
    %v5672 = vunpack.c.l.b16 %v4899
    %v5673 = vunpack.c.h.b16 %v4899
    %v5674 = vunpack.c.l.b16 %v4900
    %v5675 = vunpack.c.h.b16 %v4900
    %v5676 = vunpack.c.l.b16 %v4901
    %v5677 = vunpack.c.h.b16 %v4901
    %v5678 = vunpack.c.l.b16 %v4902
    %v5679 = vunpack.c.h.b16 %v4902
    %v5680 = vunpack.c.l.b16 %v4903
    %v5681 = vunpack.c.h.b16 %v4903
    %v5682 = vunpack.c.l.b16 %v4904
    %v5683 = vunpack.c.h.b16 %v4904
    %v5684 = vunpack.c.l.b16 %v4905
    %v5685 = vunpack.c.h.b16 %v4905
    %v5686 = vunpack.c.l.b16 %v4906
    %v5687 = vunpack.c.h.b16 %v4906
    %v5688 = vunpack.c.l.b16 %v4907
    %v5689 = vunpack.c.h.b16 %v4907
    %v5690 = vunpack.c.l.b16 %v4908
    %v5691 = vunpack.c.h.b16 %v4908
    %v5692 = vunpack.c.l.b16 %v4909
    %v5693 = vunpack.c.h.b16 %v4909
    %v5694 = vunpack.c.l.b16 %v4910
    %v5695 = vunpack.c.h.b16 %v4910
    %v5696 = vunpack.c.l.b16 %v4911
    %v5697 = vunpack.c.h.b16 %v4911
    %v5698 = vunpack.c.l.b16 %v4912
    %v5699 = vunpack.c.h.b16 %v4912
    %v5700 = vunpack.c.l.b16 %v4913
    %v5701 = vunpack.c.h.b16 %v4913
    %v5702 = vunpack.c.l.b16 %v4914
    %v5703 = vunpack.c.h.b16 %v4914
    %v5704 = vunpack.c.l.b16 %v4915
    %v5705 = vunpack.c.h.b16 %v4915
    %v5706 = vpack.c.b16 %v5198, %v5194
    %v5707 = vpack.c.b16 %v5199, %v5195
    %v5708 = vpack.c.b16 %v5200, %v5196
    %v5709 = vpack.c.b16 %v5201, %v5197
    %v5710 = vpack.c.b16 %v5206, %v5202
    %v5711 = vpack.c.b16 %v5207, %v5203
    %v5712 = vpack.c.b16 %v5208, %v5204
    %v5713 = vpack.c.b16 %v5209, %v5205
    %v5714 = vpack.c.b16 %v5214, %v5210
    %v5715 = vpack.c.b16 %v5215, %v5211
    %v5716 = vpack.c.b16 %v5216, %v5212
    %v5717 = vpack.c.b16 %v5217, %v5213
    %v5718 = vpack.c.b16 %v5222, %v5218
    %v5719 = vpack.c.b16 %v5223, %v5219
    %v5720 = vpack.c.b16 %v5224, %v5220
    %v5721 = vpack.c.b16 %v5225, %v5221
    %v5722 = vpack.c.b16 %v5230, %v5226
    %v5723 = vpack.c.b16 %v5231, %v5227
    %v5724 = vpack.c.b16 %v5232, %v5228
    %v5725 = vpack.c.b16 %v5233, %v5229
    %v5726 = vpack.c.b16 %v5238, %v5234
    %v5727 = vpack.c.b16 %v5239, %v5235
    %v5728 = vpack.c.b16 %v5240, %v5236
    %v5729 = vpack.c.b16 %v5241, %v5237
    %v5730 = vpack.c.b16 %v5246, %v5242
    %v5731 = vpack.c.b16 %v5247, %v5243
    %v5732 = vpack.c.b16 %v5248, %v5244
    %v5733 = vpack.c.b16 %v5249, %v5245
    %v5734 = vpack.c.b16 %v5254, %v5250
    %v5735 = vpack.c.b16 %v5255, %v5251
    %v5736 = vpack.c.b16 %v5256, %v5252
    %v5737 = vpack.c.b16 %v5257, %v5253
    %v5738 = vpack.c.b16 %v5262, %v5258
    %v5739 = vpack.c.b16 %v5263, %v5259
    %v5740 = vpack.c.b16 %v5264, %v5260
    %v5741 = vpack.c.b16 %v5265, %v5261
    %v5742 = vpack.c.b16 %v5270, %v5266
    %v5743 = vpack.c.b16 %v5271, %v5267
    %v5744 = vpack.c.b16 %v5272, %v5268
    %v5745 = vpack.c.b16 %v5273, %v5269
    %v5746 = vpack.c.b16 %v5278, %v5274
    %v5747 = vpack.c.b16 %v5279, %v5275
    %v5748 = vpack.c.b16 %v5280, %v5276
    %v5749 = vpack.c.b16 %v5281, %v5277
    %v5750 = vpack.c.b16 %v5286, %v5282
    %v5751 = vpack.c.b16 %v5287, %v5283
    %v5752 = vpack.c.b16 %v5288, %v5284
    %v5753 = vpack.c.b16 %v5289, %v5285
    %v5754 = vpack.c.b16 %v5294, %v5290
    %v5755 = vpack.c.b16 %v5295, %v5291
    %v5756 = vpack.c.b16 %v5296, %v5292
    %v5757 = vpack.c.b16 %v5297, %v5293
    %v5758 = vpack.c.b16 %v5302, %v5298
    %v5759 = vpack.c.b16 %v5303, %v5299
    %v5760 = vpack.c.b16 %v5304, %v5300
    %v5761 = vpack.c.b16 %v5305, %v5301
    %v5762 = vpack.c.b16 %v5310, %v5306
    %v5763 = vpack.c.b16 %v5311, %v5307
    %v5764 = vpack.c.b16 %v5312, %v5308
    %v5765 = vpack.c.b16 %v5313, %v5309
    %v5766 = vpack.c.b16 %v5318, %v5314
    %v5767 = vpack.c.b16 %v5319, %v5315
    %v5768 = vpack.c.b16 %v5320, %v5316
    %v5769 = vpack.c.b16 %v5321, %v5317
    %v5770 = vpack.c.b16 %v5326, %v5322
    %v5771 = vpack.c.b16 %v5327, %v5323
    %v5772 = vpack.c.b16 %v5328, %v5324
    %v5773 = vpack.c.b16 %v5329, %v5325
    %v5774 = vpack.c.b16 %v5334, %v5330
    %v5775 = vpack.c.b16 %v5335, %v5331
    %v5776 = vpack.c.b16 %v5336, %v5332
    %v5777 = vpack.c.b16 %v5337, %v5333
    %v5778 = vpack.c.b16 %v5342, %v5338
    %v5779 = vpack.c.b16 %v5343, %v5339
    %v5780 = vpack.c.b16 %v5344, %v5340
    %v5781 = vpack.c.b16 %v5345, %v5341
    %v5782 = vpack.c.b16 %v5350, %v5346
    %v5783 = vpack.c.b16 %v5351, %v5347
    %v5784 = vpack.c.b16 %v5352, %v5348
    %v5785 = vpack.c.b16 %v5353, %v5349
    %v5786 = vpack.c.b16 %v5358, %v5354
    %v5787 = vpack.c.b16 %v5359, %v5355
    %v5788 = vpack.c.b16 %v5360, %v5356
    %v5789 = vpack.c.b16 %v5361, %v5357
    %v5790 = vpack.c.b16 %v5366, %v5362
    %v5791 = vpack.c.b16 %v5367, %v5363
    %v5792 = vpack.c.b16 %v5368, %v5364
    %v5793 = vpack.c.b16 %v5369, %v5365
    %v5794 = vpack.c.b16 %v5374, %v5370
    %v5795 = vpack.c.b16 %v5375, %v5371
    %v5796 = vpack.c.b16 %v5376, %v5372
    %v5797 = vpack.c.b16 %v5377, %v5373
    %v5798 = vpack.c.b16 %v5382, %v5378
    %v5799 = vpack.c.b16 %v5383, %v5379
    %v5800 = vpack.c.b16 %v5384, %v5380
    %v5801 = vpack.c.b16 %v5385, %v5381
    %v5802 = vpack.c.b16 %v5390, %v5386
    %v5803 = vpack.c.b16 %v5391, %v5387
    %v5804 = vpack.c.b16 %v5392, %v5388
    %v5805 = vpack.c.b16 %v5393, %v5389
    %v5806 = vpack.c.b16 %v5398, %v5394
    %v5807 = vpack.c.b16 %v5399, %v5395
    %v5808 = vpack.c.b16 %v5400, %v5396
    %v5809 = vpack.c.b16 %v5401, %v5397
    %v5810 = vpack.c.b16 %v5406, %v5402
    %v5811 = vpack.c.b16 %v5407, %v5403
    %v5812 = vpack.c.b16 %v5408, %v5404
    %v5813 = vpack.c.b16 %v5409, %v5405
    %v5814 = vpack.c.b16 %v5414, %v5410
    %v5815 = vpack.c.b16 %v5415, %v5411
    %v5816 = vpack.c.b16 %v5416, %v5412
    %v5817 = vpack.c.b16 %v5417, %v5413
    %v5818 = vpack.c.b16 %v5422, %v5418
    %v5819 = vpack.c.b16 %v5423, %v5419
    %v5820 = vpack.c.b16 %v5424, %v5420
    %v5821 = vpack.c.b16 %v5425, %v5421
    %v5822 = vpack.c.b16 %v5430, %v5426
    %v5823 = vpack.c.b16 %v5431, %v5427
    %v5824 = vpack.c.b16 %v5432, %v5428
    %v5825 = vpack.c.b16 %v5433, %v5429
    %v5826 = vpack.c.b16 %v5438, %v5434
    %v5827 = vpack.c.b16 %v5439, %v5435
    %v5828 = vpack.c.b16 %v5440, %v5436
    %v5829 = vpack.c.b16 %v5441, %v5437
    %v5830 = vpack.c.b16 %v5446, %v5442
    %v5831 = vpack.c.b16 %v5447, %v5443
    %v5832 = vpack.c.b16 %v5448, %v5444
    %v5833 = vpack.c.b16 %v5449, %v5445
    %v5834 = vpack.c.b16 %v5454, %v5450
    %v5835 = vpack.c.b16 %v5455, %v5451
    %v5836 = vpack.c.b16 %v5456, %v5452
    %v5837 = vpack.c.b16 %v5457, %v5453
    %v5838 = vpack.c.b16 %v5462, %v5458
    %v5839 = vpack.c.b16 %v5463, %v5459
    %v5840 = vpack.c.b16 %v5464, %v5460
    %v5841 = vpack.c.b16 %v5465, %v5461
    %v5842 = vpack.c.b16 %v5470, %v5466
    %v5843 = vpack.c.b16 %v5471, %v5467
    %v5844 = vpack.c.b16 %v5472, %v5468
    %v5845 = vpack.c.b16 %v5473, %v5469
    %v5846 = vpack.c.b16 %v5478, %v5474
    %v5847 = vpack.c.b16 %v5479, %v5475
    %v5848 = vpack.c.b16 %v5480, %v5476
    %v5849 = vpack.c.b16 %v5481, %v5477
    %v5850 = vpack.c.b16 %v5486, %v5482
    %v5851 = vpack.c.b16 %v5487, %v5483
    %v5852 = vpack.c.b16 %v5488, %v5484
    %v5853 = vpack.c.b16 %v5489, %v5485
    %v5854 = vpack.c.b16 %v5494, %v5490
    %v5855 = vpack.c.b16 %v5495, %v5491
    %v5856 = vpack.c.b16 %v5496, %v5492
    %v5857 = vpack.c.b16 %v5497, %v5493
    %v5858 = vpack.c.b16 %v5502, %v5498
    %v5859 = vpack.c.b16 %v5503, %v5499
    %v5860 = vpack.c.b16 %v5504, %v5500
    %v5861 = vpack.c.b16 %v5505, %v5501
    %v5862 = vpack.c.b16 %v5510, %v5506
    %v5863 = vpack.c.b16 %v5511, %v5507
    %v5864 = vpack.c.b16 %v5512, %v5508
    %v5865 = vpack.c.b16 %v5513, %v5509
    %v5866 = vpack.c.b16 %v5518, %v5514
    %v5867 = vpack.c.b16 %v5519, %v5515
    %v5868 = vpack.c.b16 %v5520, %v5516
    %v5869 = vpack.c.b16 %v5521, %v5517
    %v5870 = vpack.c.b16 %v5526, %v5522
    %v5871 = vpack.c.b16 %v5527, %v5523
    %v5872 = vpack.c.b16 %v5528, %v5524
    %v5873 = vpack.c.b16 %v5529, %v5525
    %v5874 = vpack.c.b16 %v5534, %v5530
    %v5875 = vpack.c.b16 %v5535, %v5531
    %v5876 = vpack.c.b16 %v5536, %v5532
    %v5877 = vpack.c.b16 %v5537, %v5533
    %v5878 = vpack.c.b16 %v5542, %v5538
    %v5879 = vpack.c.b16 %v5543, %v5539
    %v5880 = vpack.c.b16 %v5544, %v5540
    %v5881 = vpack.c.b16 %v5545, %v5541
    %v5882 = vpack.c.b16 %v5550, %v5546
    %v5883 = vpack.c.b16 %v5551, %v5547
    %v5884 = vpack.c.b16 %v5552, %v5548
    %v5885 = vpack.c.b16 %v5553, %v5549
    %v5886 = vpack.c.b16 %v5558, %v5554
    %v5887 = vpack.c.b16 %v5559, %v5555
    %v5888 = vpack.c.b16 %v5560, %v5556
    %v5889 = vpack.c.b16 %v5561, %v5557
    %v5890 = vpack.c.b16 %v5566, %v5562
    %v5891 = vpack.c.b16 %v5567, %v5563
    %v5892 = vpack.c.b16 %v5568, %v5564
    %v5893 = vpack.c.b16 %v5569, %v5565
    %v5894 = vpack.c.b16 %v5574, %v5570
    %v5895 = vpack.c.b16 %v5575, %v5571
    %v5896 = vpack.c.b16 %v5576, %v5572
    %v5897 = vpack.c.b16 %v5577, %v5573
    %v5898 = vpack.c.b16 %v5582, %v5578
    %v5899 = vpack.c.b16 %v5583, %v5579
    %v5900 = vpack.c.b16 %v5584, %v5580
    %v5901 = vpack.c.b16 %v5585, %v5581
    %v5902 = vpack.c.b16 %v5590, %v5586
    %v5903 = vpack.c.b16 %v5591, %v5587
    %v5904 = vpack.c.b16 %v5592, %v5588
    %v5905 = vpack.c.b16 %v5593, %v5589
    %v5906 = vpack.c.b16 %v5598, %v5594
    %v5907 = vpack.c.b16 %v5599, %v5595
    %v5908 = vpack.c.b16 %v5600, %v5596
    %v5909 = vpack.c.b16 %v5601, %v5597
    %v5910 = vpack.c.b16 %v5606, %v5602
    %v5911 = vpack.c.b16 %v5607, %v5603
    %v5912 = vpack.c.b16 %v5608, %v5604
    %v5913 = vpack.c.b16 %v5609, %v5605
    %v5914 = vpack.c.b16 %v5614, %v5610
    %v5915 = vpack.c.b16 %v5615, %v5611
    %v5916 = vpack.c.b16 %v5616, %v5612
    %v5917 = vpack.c.b16 %v5617, %v5613
    %v5918 = vpack.c.b16 %v5622, %v5618
    %v5919 = vpack.c.b16 %v5623, %v5619
    %v5920 = vpack.c.b16 %v5624, %v5620
    %v5921 = vpack.c.b16 %v5625, %v5621
    %v5922 = vpack.c.b16 %v5630, %v5626
    %v5923 = vpack.c.b16 %v5631, %v5627
    %v5924 = vpack.c.b16 %v5632, %v5628
    %v5925 = vpack.c.b16 %v5633, %v5629
    %v5926 = vpack.c.b16 %v5638, %v5634
    %v5927 = vpack.c.b16 %v5639, %v5635
    %v5928 = vpack.c.b16 %v5640, %v5636
    %v5929 = vpack.c.b16 %v5641, %v5637
    %v5930 = vpack.c.b16 %v5646, %v5642
    %v5931 = vpack.c.b16 %v5647, %v5643
    %v5932 = vpack.c.b16 %v5648, %v5644
    %v5933 = vpack.c.b16 %v5649, %v5645
    %v5934 = vpack.c.b16 %v5654, %v5650
    %v5935 = vpack.c.b16 %v5655, %v5651
    %v5936 = vpack.c.b16 %v5656, %v5652
    %v5937 = vpack.c.b16 %v5657, %v5653
    %v5938 = vpack.c.b16 %v5662, %v5658
    %v5939 = vpack.c.b16 %v5663, %v5659
    %v5940 = vpack.c.b16 %v5664, %v5660
    %v5941 = vpack.c.b16 %v5665, %v5661
    %v5942 = vpack.c.b16 %v5670, %v5666
    %v5943 = vpack.c.b16 %v5671, %v5667
    %v5944 = vpack.c.b16 %v5672, %v5668
    %v5945 = vpack.c.b16 %v5673, %v5669
    %v5946 = vpack.c.b16 %v5678, %v5674
    %v5947 = vpack.c.b16 %v5679, %v5675
    %v5948 = vpack.c.b16 %v5680, %v5676
    %v5949 = vpack.c.b16 %v5681, %v5677
    %v5950 = vpack.c.b16 %v5686, %v5682
    %v5951 = vpack.c.b16 %v5687, %v5683
    %v5952 = vpack.c.b16 %v5688, %v5684
    %v5953 = vpack.c.b16 %v5689, %v5685
    %v5954 = vpack.c.b16 %v5694, %v5690
    %v5955 = vpack.c.b16 %v5695, %v5691
    %v5956 = vpack.c.b16 %v5696, %v5692
    %v5957 = vpack.c.b16 %v5697, %v5693
    %v5958 = vpack.c.b16 %v5702, %v5698
    %v5959 = vpack.c.b16 %v5703, %v5699
    %v5960 = vpack.c.b16 %v5704, %v5700
    %v5961 = vpack.c.b16 %v5705, %v5701
    %6218 = vmatprep.subr.bf16.mxu0 %v5707
    %6219 = vmatpush1.bf16.msra.mxu0 %v5706
    %6220 = vmatprep.subr.bf16.mxu0 %v5711
    %6221 = vmatpush1.bf16.msra.mxu0 %v5710
    %6222 = vmatprep.subr.bf16.mxu0 %v5715
    %6223 = vmatpush1.bf16.msra.mxu0 %v5714
    %6224 = vmatprep.subr.bf16.mxu0 %v5719
    %6225 = vmatpush1.bf16.msra.mxu0 %v5718
    %6226 = vmatprep.subr.bf16.mxu0 %v5723
    %6227 = vmatpush1.bf16.msra.mxu0 %v5722
    %6228 = vmatprep.subr.bf16.mxu0 %v5727
    %6229 = vmatpush1.bf16.msra.mxu0 %v5726
    %6230 = vmatprep.subr.bf16.mxu0 %v5731
    %6231 = vmatpush1.bf16.msra.mxu0 %v5730
    %6232 = vmatprep.subr.bf16.mxu0 %v5735
    %6233 = vmatpush1.bf16.msra.mxu0 %v5734
    %6234 = vmatprep.subr.bf16.mxu0 %v5739
    %6235 = vmatpush1.bf16.msra.mxu0 %v5738
    %6236 = vmatprep.subr.bf16.mxu0 %v5743
    %6237 = vmatpush1.bf16.msra.mxu0 %v5742
    %6238 = vmatprep.subr.bf16.mxu0 %v5747
    %6239 = vmatpush1.bf16.msra.mxu0 %v5746
    %6240 = vmatprep.subr.bf16.mxu0 %v5751
    %6241 = vmatpush1.bf16.msra.mxu0 %v5750
    %6242 = vmatprep.subr.bf16.mxu0 %v5755
    %6243 = vmatpush1.bf16.msra.mxu0 %v5754
    %6244 = vmatprep.subr.bf16.mxu0 %v5759
    %6245 = vmatpush1.bf16.msra.mxu0 %v5758
    %6246 = vmatprep.subr.bf16.mxu0 %v5763
    %6247 = vmatpush1.bf16.msra.mxu0 %v5762
    %6248 = vmatprep.subr.bf16.mxu0 %v5767
    %6249 = vmatpush1.bf16.msra.mxu0 %v5766
    %6250 = vmatprep.mubr.bf16.mxu0 %v4653
    %6251 = vmatmul.mubr.bf16.gmra.mrb[0].mxu0 %v4652
    %v6252 = vpop.f32.mrb[0].mxu0
    %v6253 = vadd.f32 %v4921, %v6252
    %v6254 = vpop.f32.mrb[0].mxu0
    %v6255 = vadd.f32 %v4925, %v6254
    %v6256 = vpop.f32.mrb[0].mxu0
    %v6257 = vadd.f32 %v4921, %v6256
    %v6258 = vpop.f32.mrb[0].mxu0
    %v6259 = vadd.f32 %v4925, %v6258
    %6260 = vdwg.mxu0
    %6261 = vmatprep.subr.bf16.mxu0 %v5771
    %6262 = vmatpush1.bf16.msra.mxu0 %v5770
    %6263 = vmatprep.subr.bf16.mxu0 %v5775
    %6264 = vmatpush1.bf16.msra.mxu0 %v5774
    %6265 = vmatprep.subr.bf16.mxu0 %v5779
    %6266 = vmatpush1.bf16.msra.mxu0 %v5778
    %6267 = vmatprep.subr.bf16.mxu0 %v5783
    %6268 = vmatpush1.bf16.msra.mxu0 %v5782
    %6269 = vmatprep.subr.bf16.mxu0 %v5787
    %6270 = vmatpush1.bf16.msra.mxu0 %v5786
    %6271 = vmatprep.subr.bf16.mxu0 %v5791
    %6272 = vmatpush1.bf16.msra.mxu0 %v5790
    %6273 = vmatprep.subr.bf16.mxu0 %v5795
    %6274 = vmatpush1.bf16.msra.mxu0 %v5794
    %6275 = vmatprep.subr.bf16.mxu0 %v5799
    %6276 = vmatpush1.bf16.msra.mxu0 %v5798
    %6277 = vmatprep.subr.bf16.mxu0 %v5803
    %6278 = vmatpush1.bf16.msra.mxu0 %v5802
    %6279 = vmatprep.subr.bf16.mxu0 %v5807
    %6280 = vmatpush1.bf16.msra.mxu0 %v5806
    %6281 = vmatprep.subr.bf16.mxu0 %v5811
    %6282 = vmatpush1.bf16.msra.mxu0 %v5810
    %6283 = vmatprep.subr.bf16.mxu0 %v5815
    %6284 = vmatpush1.bf16.msra.mxu0 %v5814
    %6285 = vmatprep.subr.bf16.mxu0 %v5819
    %6286 = vmatpush1.bf16.msra.mxu0 %v5818
    %6287 = vmatprep.subr.bf16.mxu0 %v5823
    %6288 = vmatpush1.bf16.msra.mxu0 %v5822
    %6289 = vmatprep.subr.bf16.mxu0 %v5827
    %6290 = vmatpush1.bf16.msra.mxu0 %v5826
    %6291 = vmatprep.subr.bf16.mxu0 %v5831
    %6292 = vmatpush1.bf16.msra.mxu0 %v5830
    %6293 = vmatprep.mubr.bf16.mxu0 %v4655
    %6294 = vmatmul.mubr.bf16.gmra.mrb[0].mxu0 %v4654
    %v6295 = vpop.f32.mrb[0].mxu0
    %v6296 = vadd.f32 %v6253, %v6295
    %v6297 = vpop.f32.mrb[0].mxu0
    %v6298 = vadd.f32 %v6255, %v6297
    %v6299 = vpop.f32.mrb[0].mxu0
    %v6300 = vadd.f32 %v6257, %v6299
    %v6301 = vpop.f32.mrb[0].mxu0
    %v6302 = vadd.f32 %v6259, %v6301
    %6303 = vdwg.mxu0
    %6304 = vmatprep.subr.bf16.mxu0 %v5835
    %6305 = vmatpush1.bf16.msra.mxu0 %v5834
    %6306 = vmatprep.subr.bf16.mxu0 %v5839
    %6307 = vmatpush1.bf16.msra.mxu0 %v5838
    %6308 = vmatprep.subr.bf16.mxu0 %v5843
    %6309 = vmatpush1.bf16.msra.mxu0 %v5842
    %6310 = vmatprep.subr.bf16.mxu0 %v5847
    %6311 = vmatpush1.bf16.msra.mxu0 %v5846
    %6312 = vmatprep.subr.bf16.mxu0 %v5851
    %6313 = vmatpush1.bf16.msra.mxu0 %v5850
    %6314 = vmatprep.subr.bf16.mxu0 %v5855
    %6315 = vmatpush1.bf16.msra.mxu0 %v5854
    %6316 = vmatprep.subr.bf16.mxu0 %v5859
    %6317 = vmatpush1.bf16.msra.mxu0 %v5858
    %6318 = vmatprep.subr.bf16.mxu0 %v5863
    %6319 = vmatpush1.bf16.msra.mxu0 %v5862
    %6320 = vmatprep.subr.bf16.mxu0 %v5867
    %6321 = vmatpush1.bf16.msra.mxu0 %v5866
    %6322 = vmatprep.subr.bf16.mxu0 %v5871
    %6323 = vmatpush1.bf16.msra.mxu0 %v5870
    %6324 = vmatprep.subr.bf16.mxu0 %v5875
    %6325 = vmatpush1.bf16.msra.mxu0 %v5874
    %6326 = vmatprep.subr.bf16.mxu0 %v5879
    %6327 = vmatpush1.bf16.msra.mxu0 %v5878
    %6328 = vmatprep.subr.bf16.mxu0 %v5883
    %6329 = vmatpush1.bf16.msra.mxu0 %v5882
    %6330 = vmatprep.subr.bf16.mxu0 %v5887
    %6331 = vmatpush1.bf16.msra.mxu0 %v5886
    %6332 = vmatprep.subr.bf16.mxu0 %v5891
    %6333 = vmatpush1.bf16.msra.mxu0 %v5890
    %6334 = vmatprep.subr.bf16.mxu0 %v5895
    %6335 = vmatpush1.bf16.msra.mxu0 %v5894
    %6336 = vmatprep.mubr.bf16.mxu0 %v4657
    %6337 = vmatmul.mubr.bf16.gmra.mrb[0].mxu0 %v4656
    %v6338 = vpop.f32.mrb[0].mxu0
    %v6339 = vadd.f32 %v6296, %v6338
    %v6340 = vpop.f32.mrb[0].mxu0
    %v6341 = vadd.f32 %v6298, %v6340
    %v6342 = vpop.f32.mrb[0].mxu0
    %v6343 = vadd.f32 %v6300, %v6342
    %v6344 = vpop.f32.mrb[0].mxu0
    %v6345 = vadd.f32 %v6302, %v6344
    %6346 = vdwg.mxu0
    %6347 = vmatprep.subr.bf16.mxu0 %v5899
    %6348 = vmatpush1.bf16.msra.mxu0 %v5898
    %6349 = vmatprep.subr.bf16.mxu0 %v5903
    %6350 = vmatpush1.bf16.msra.mxu0 %v5902
    %6351 = vmatprep.subr.bf16.mxu0 %v5907
    %6352 = vmatpush1.bf16.msra.mxu0 %v5906
    %6353 = vmatprep.subr.bf16.mxu0 %v5911
    %6354 = vmatpush1.bf16.msra.mxu0 %v5910
    %6355 = vmatprep.subr.bf16.mxu0 %v5915
    %6356 = vmatpush1.bf16.msra.mxu0 %v5914
    %6357 = vmatprep.subr.bf16.mxu0 %v5919
    %6358 = vmatpush1.bf16.msra.mxu0 %v5918
    %6359 = vmatprep.subr.bf16.mxu0 %v5923
    %6360 = vmatpush1.bf16.msra.mxu0 %v5922
    %6361 = vmatprep.subr.bf16.mxu0 %v5927
    %6362 = vmatpush1.bf16.msra.mxu0 %v5926
    %6363 = vmatprep.subr.bf16.mxu0 %v5931
    %6364 = vmatpush1.bf16.msra.mxu0 %v5930
    %6365 = vmatprep.subr.bf16.mxu0 %v5935
    %6366 = vmatpush1.bf16.msra.mxu0 %v5934
    %6367 = vmatprep.subr.bf16.mxu0 %v5939
    %6368 = vmatpush1.bf16.msra.mxu0 %v5938
    %6369 = vmatprep.subr.bf16.mxu0 %v5943
    %6370 = vmatpush1.bf16.msra.mxu0 %v5942
    %6371 = vmatprep.subr.bf16.mxu0 %v5947
    %6372 = vmatpush1.bf16.msra.mxu0 %v5946
    %6373 = vmatprep.subr.bf16.mxu0 %v5951
    %6374 = vmatpush1.bf16.msra.mxu0 %v5950
    %6375 = vmatprep.subr.bf16.mxu0 %v5955
    %6376 = vmatpush1.bf16.msra.mxu0 %v5954
    %6377 = vmatprep.subr.bf16.mxu0 %v5959
    %6378 = vmatpush1.bf16.msra.mxu0 %v5958
    %6379 = vmatprep.mubr.bf16.mxu0 %v4659
    %6380 = vmatmul.mubr.bf16.gmra.mrb[0].mxu0 %v4658
    %v6381 = vpop.f32.mrb[0].mxu0
    %v6382 = vadd.f32 %v6339, %v6381
    %v6383 = vpop.f32.mrb[0].mxu0
    %v6384 = vadd.f32 %v6341, %v6383
    %v6385 = vpop.f32.mrb[0].mxu0
    %v6386 = vadd.f32 %v6343, %v6385
    %v6387 = vpop.f32.mrb[0].mxu0
    %v6388 = vadd.f32 %v6345, %v6387
    %6389 = vdwg.mxu0
    %6390 = vmatprep.subr.bf16.mxu0 %v5709
    %6391 = vmatpush1.bf16.msra.mxu0 %v5708
    %6392 = vmatprep.subr.bf16.mxu0 %v5713
    %6393 = vmatpush1.bf16.msra.mxu0 %v5712
    %6394 = vmatprep.subr.bf16.mxu0 %v5717
    %6395 = vmatpush1.bf16.msra.mxu0 %v5716
    %6396 = vmatprep.subr.bf16.mxu0 %v5721
    %6397 = vmatpush1.bf16.msra.mxu0 %v5720
    %6398 = vmatprep.subr.bf16.mxu0 %v5725
    %6399 = vmatpush1.bf16.msra.mxu0 %v5724
    %6400 = vmatprep.subr.bf16.mxu0 %v5729
    %6401 = vmatpush1.bf16.msra.mxu0 %v5728
    %6402 = vmatprep.subr.bf16.mxu0 %v5733
    %6403 = vmatpush1.bf16.msra.mxu0 %v5732
    %6404 = vmatprep.subr.bf16.mxu0 %v5737
    %6405 = vmatpush1.bf16.msra.mxu0 %v5736
    %6406 = vmatprep.subr.bf16.mxu0 %v5741
    %6407 = vmatpush1.bf16.msra.mxu0 %v5740
    %6408 = vmatprep.subr.bf16.mxu0 %v5745
    %6409 = vmatpush1.bf16.msra.mxu0 %v5744
    %6410 = vmatprep.subr.bf16.mxu0 %v5749
    %6411 = vmatpush1.bf16.msra.mxu0 %v5748
    %6412 = vmatprep.subr.bf16.mxu0 %v5753
    %6413 = vmatpush1.bf16.msra.mxu0 %v5752
    %6414 = vmatprep.subr.bf16.mxu0 %v5757
    %6415 = vmatpush1.bf16.msra.mxu0 %v5756
    %6416 = vmatprep.subr.bf16.mxu0 %v5761
    %6417 = vmatpush1.bf16.msra.mxu0 %v5760
    %6418 = vmatprep.subr.bf16.mxu0 %v5765
    %6419 = vmatpush1.bf16.msra.mxu0 %v5764
    %6420 = vmatprep.subr.bf16.mxu0 %v5769
    %6421 = vmatpush1.bf16.msra.mxu0 %v5768
    %6422 = vmatprep.mubr.bf16.mxu0 %v4653
    %6423 = vmatmul.mubr.bf16.gmra.mrb[0].mxu0 %v4652
    %v6424 = vpop.f32.mrb[0].mxu0
    %v6425 = vadd.f32 %v4929, %v6424
    %v6426 = vpop.f32.mrb[0].mxu0
    %v6427 = vadd.f32 %v4933, %v6426
    %v6428 = vpop.f32.mrb[0].mxu0
    %v6429 = vadd.f32 %v4929, %v6428
    %v6430 = vpop.f32.mrb[0].mxu0
    %v6431 = vadd.f32 %v4933, %v6430
    %6432 = vdwg.mxu0
    %6433 = vmatprep.subr.bf16.mxu0 %v5773
    %6434 = vmatpush1.bf16.msra.mxu0 %v5772
    %6435 = vmatprep.subr.bf16.mxu0 %v5777
    %6436 = vmatpush1.bf16.msra.mxu0 %v5776
    %6437 = vmatprep.subr.bf16.mxu0 %v5781
    %6438 = vmatpush1.bf16.msra.mxu0 %v5780
    %6439 = vmatprep.subr.bf16.mxu0 %v5785
    %6440 = vmatpush1.bf16.msra.mxu0 %v5784
    %6441 = vmatprep.subr.bf16.mxu0 %v5789
    %6442 = vmatpush1.bf16.msra.mxu0 %v5788
    %6443 = vmatprep.subr.bf16.mxu0 %v5793
    %6444 = vmatpush1.bf16.msra.mxu0 %v5792
    %6445 = vmatprep.subr.bf16.mxu0 %v5797
    %6446 = vmatpush1.bf16.msra.mxu0 %v5796
    %6447 = vmatprep.subr.bf16.mxu0 %v5801
    %6448 = vmatpush1.bf16.msra.mxu0 %v5800
    %6449 = vmatprep.subr.bf16.mxu0 %v5805
    %6450 = vmatpush1.bf16.msra.mxu0 %v5804
    %6451 = vmatprep.subr.bf16.mxu0 %v5809
    %6452 = vmatpush1.bf16.msra.mxu0 %v5808
    %6453 = vmatprep.subr.bf16.mxu0 %v5813
    %6454 = vmatpush1.bf16.msra.mxu0 %v5812
    %6455 = vmatprep.subr.bf16.mxu0 %v5817
    %6456 = vmatpush1.bf16.msra.mxu0 %v5816
    %6457 = vmatprep.subr.bf16.mxu0 %v5821
    %6458 = vmatpush1.bf16.msra.mxu0 %v5820
    %6459 = vmatprep.subr.bf16.mxu0 %v5825
    %6460 = vmatpush1.bf16.msra.mxu0 %v5824
    %6461 = vmatprep.subr.bf16.mxu0 %v5829
    %6462 = vmatpush1.bf16.msra.mxu0 %v5828
    %6463 = vmatprep.subr.bf16.mxu0 %v5833
    %6464 = vmatpush1.bf16.msra.mxu0 %v5832
    %6465 = vmatprep.mubr.bf16.mxu0 %v4655
    %6466 = vmatmul.mubr.bf16.gmra.mrb[0].mxu0 %v4654
    %v6467 = vpop.f32.mrb[0].mxu0
    %v6468 = vadd.f32 %v6425, %v6467
    %v6469 = vpop.f32.mrb[0].mxu0
    %v6470 = vadd.f32 %v6427, %v6469
    %v6471 = vpop.f32.mrb[0].mxu0
    %v6472 = vadd.f32 %v6429, %v6471
    %v6473 = vpop.f32.mrb[0].mxu0
    %v6474 = vadd.f32 %v6431, %v6473
    %6475 = vdwg.mxu0
    %6476 = vmatprep.subr.bf16.mxu0 %v5837
    %6477 = vmatpush1.bf16.msra.mxu0 %v5836
    %6478 = vmatprep.subr.bf16.mxu0 %v5841
    %6479 = vmatpush1.bf16.msra.mxu0 %v5840
    %6480 = vmatprep.subr.bf16.mxu0 %v5845
    %6481 = vmatpush1.bf16.msra.mxu0 %v5844
    %6482 = vmatprep.subr.bf16.mxu0 %v5849
    %6483 = vmatpush1.bf16.msra.mxu0 %v5848
    %6484 = vmatprep.subr.bf16.mxu0 %v5853
    %6485 = vmatpush1.bf16.msra.mxu0 %v5852
    %6486 = vmatprep.subr.bf16.mxu0 %v5857
    %6487 = vmatpush1.bf16.msra.mxu0 %v5856
    %6488 = vmatprep.subr.bf16.mxu0 %v5861
    %6489 = vmatpush1.bf16.msra.mxu0 %v5860
    %6490 = vmatprep.subr.bf16.mxu0 %v5865
    %6491 = vmatpush1.bf16.msra.mxu0 %v5864
    %6492 = vmatprep.subr.bf16.mxu0 %v5869
    %6493 = vmatpush1.bf16.msra.mxu0 %v5868
    %6494 = vmatprep.subr.bf16.mxu0 %v5873
    %6495 = vmatpush1.bf16.msra.mxu0 %v5872
    %6496 = vmatprep.subr.bf16.mxu0 %v5877
    %6497 = vmatpush1.bf16.msra.mxu0 %v5876
    %6498 = vmatprep.subr.bf16.mxu0 %v5881
    %6499 = vmatpush1.bf16.msra.mxu0 %v5880
    %6500 = vmatprep.subr.bf16.mxu0 %v5885
    %6501 = vmatpush1.bf16.msra.mxu0 %v5884
    %6502 = vmatprep.subr.bf16.mxu0 %v5889
    %6503 = vmatpush1.bf16.msra.mxu0 %v5888
    %6504 = vmatprep.subr.bf16.mxu0 %v5893
    %6505 = vmatpush1.bf16.msra.mxu0 %v5892
    %6506 = vmatprep.subr.bf16.mxu0 %v5897
    %6507 = vmatpush1.bf16.msra.mxu0 %v5896
    %6508 = vmatprep.mubr.bf16.mxu0 %v4657
    %6509 = vmatmul.mubr.bf16.gmra.mrb[0].mxu0 %v4656
    %v6510 = vpop.f32.mrb[0].mxu0
    %v6511 = vadd.f32 %v6468, %v6510
    %v6512 = vpop.f32.mrb[0].mxu0
    %v6513 = vadd.f32 %v6470, %v6512
    %v6514 = vpop.f32.mrb[0].mxu0
    %v6515 = vadd.f32 %v6472, %v6514
    %v6516 = vpop.f32.mrb[0].mxu0
    %v6517 = vadd.f32 %v6474, %v6516
    %6518 = vdwg.mxu0
    %6519 = vmatprep.subr.bf16.mxu0 %v5901
    %6520 = vmatpush1.bf16.msra.mxu0 %v5900
    %6521 = vmatprep.subr.bf16.mxu0 %v5905
    %6522 = vmatpush1.bf16.msra.mxu0 %v5904
    %6523 = vmatprep.subr.bf16.mxu0 %v5909
    %6524 = vmatpush1.bf16.msra.mxu0 %v5908
    %6525 = vmatprep.subr.bf16.mxu0 %v5913
    %6526 = vmatpush1.bf16.msra.mxu0 %v5912
    %6527 = vmatprep.subr.bf16.mxu0 %v5917
    %6528 = vmatpush1.bf16.msra.mxu0 %v5916
    %6529 = vmatprep.subr.bf16.mxu0 %v5921
    %6530 = vmatpush1.bf16.msra.mxu0 %v5920
    %6531 = vmatprep.subr.bf16.mxu0 %v5925
    %6532 = vmatpush1.bf16.msra.mxu0 %v5924
    %6533 = vmatprep.subr.bf16.mxu0 %v5929
    %6534 = vmatpush1.bf16.msra.mxu0 %v5928
    %6535 = vmatprep.subr.bf16.mxu0 %v5933
    %6536 = vmatpush1.bf16.msra.mxu0 %v5932
    %6537 = vmatprep.subr.bf16.mxu0 %v5937
    %6538 = vmatpush1.bf16.msra.mxu0 %v5936
    %6539 = vmatprep.subr.bf16.mxu0 %v5941
    %6540 = vmatpush1.bf16.msra.mxu0 %v5940
    %6541 = vmatprep.subr.bf16.mxu0 %v5945
    %6542 = vmatpush1.bf16.msra.mxu0 %v5944
    %6543 = vmatprep.subr.bf16.mxu0 %v5949
    %6544 = vmatpush1.bf16.msra.mxu0 %v5948
    %6545 = vmatprep.subr.bf16.mxu0 %v5953
    %6546 = vmatpush1.bf16.msra.mxu0 %v5952
    %6547 = vmatprep.subr.bf16.mxu0 %v5957
    %6548 = vmatpush1.bf16.msra.mxu0 %v5956
    %6549 = vmatprep.subr.bf16.mxu0 %v5961
    %6550 = vmatpush1.bf16.msra.mxu0 %v5960
    %6551 = vmatprep.mubr.bf16.mxu0 %v4659
    %6552 = vmatmul.mubr.bf16.gmra.mrb[0].mxu0 %v4658
    %v6553 = vpop.f32.mrb[0].mxu0
    %v6554 = vadd.f32 %v6511, %v6553
    %v6555 = vpop.f32.mrb[0].mxu0
    %v6556 = vadd.f32 %v6513, %v6555
    %v6557 = vpop.f32.mrb[0].mxu0
    %v6558 = vadd.f32 %v6515, %v6557
    %v6559 = vpop.f32.mrb[0].mxu0
    %v6560 = vadd.f32 %v6517, %v6559
    %6561 = vdwg.mxu0
    %v6562 = vtanh.pop %v6382
    %v6563 = vtanh.pop %v6384
    %v6564 = vtanh.pop %v6554
    %v6565 = vtanh.pop %v6556
    %v6566 = vtanh.pop %v6386
    %v6567 = vtanh.pop %v6388
    %v6568 = vtanh.pop %v6558
    %v6569 = vtanh.pop %v6560
    %6570 = vst [vmem:[#allocation14] sm:$0xff] %v6562
    %6571 = vst [vmem:[#allocation14 + $0x8] sm:$0xff] %v6563
    %6572 = vst [vmem:[#allocation14 + $0x10] sm:$0xff] %v6564
    %6573 = vst [vmem:[#allocation14 + $0x18] sm:$0xff] %v6565
    %6574 = vst [vmem:[#allocation14 + $0x20] sm:$0xff] %v6566
    %6575 = vst [vmem:[#allocation14 + $0x28] sm:$0xff] %v6567
    %6576 = vst [vmem:[#allocation14 + $0x30] sm:$0xff] %v6568
    %6577 = vst [vmem:[#allocation14 + $0x38] sm:$0xff] %v6569
    // Predicated region
    $region58: #{tpu_custom_call.1} parent=1 // pred_check
      _
    $region59: #{tpu_custom_call.1} parent=1 // pred_check_branch
      %6579 = sbr.rel (0) target = $region61
    $region60: #{tpu_custom_call.1} parent=1 // pred_region
      %s6581 = ssub.s32 1024, 1024
      %6582 = vsyncadd [#allocation4], %s6581
      %s6583 = sshll.u32 [#allocation14], 4
      %s6584 = int_to_ptr.vmem [resolvable:$true] %s6583
      %6589 = dma.vmem_to_hbm [thread:$0]  %s6584, 1024, %s7, [#allocation4], 512, 512, 32
    $region61: #{tpu_custom_call.1} parent=1 // pred_fallthru
      _
    // Predicated region
    $region62: #{tpu_custom_call.1} parent=1 // pred_check
      _
    $region63: #{tpu_custom_call.1} parent=1 // pred_check_branch
      %6591 = sbr.rel (0) target = $region65
    $region64: #{tpu_custom_call.1} parent=1 // pred_region
      %6592 = dma.done [#allocation4], 1024
    $region65: #{tpu_custom_call.1} parent=1 // pred_fallthru
      _
    %6593 = vsyncpa [#allocation3], 1
    %6594 = vsyncpa [#allocation6], 1
    %6595 = vsyncpa [#allocation9], 1
    %6596 = vsyncpa [#allocation12], 1
    %6597 = vsyncpa [#allocation4], 1

// kernel: tpu_custom_call.1
$region0: #{tpu_custom_call.1}
  #allocation0 [shape = 'u32[]', space=smem, size = 0x4, offset = 0x4, fixed_abs, tag = 'smem constant byte address 0x4 - core index']
  #allocation1 [shape = 'u32[144,128]{1,0:T(1,128)}', space=vmem, size = 0x12000, scoped, tag = 'internal scratch']
  %s0 = inlined_call_operand.hbm [shape: bf16[16,144], index: 0, kind: input, shape index: {}]
  %s1 = inlined_call_operand.hbm [shape: bf16[144,1024], index: 1, kind: input, shape index: {}]
  %s2 = inlined_call_operand.hbm [shape: f32[1,1024], index: 2, kind: input, shape index: {}]
  %s3 = inlined_call_operand.hbm [shape: bf16[1024,1024], index: 3, kind: input, shape index: {}]
  %s4 = inlined_call_operand.hbm [shape: f32[1,1024], index: 4, kind: input, shape index: {}]
  %s5 = inlined_call_operand.hbm [shape: bf16[1024,512], index: 5, kind: input, shape index: {}]
  %s6 = inlined_call_operand.hbm [shape: f32[1,512], index: 6, kind: input, shape index: {}]
  %s7 = inlined_call_operand.hbm [shape: f32[16,512], index: 7, kind: output, shape index: {}]
  %s8 = sld [smem:[#allocation0]]
  $region66: #{tpu_custom_call.1} parent=0
    _
  %s10 = ssub.s32 1, %s8
  %s11 = scalar_select 0, %s10, %s8
  $region1: #{tpu_custom_call.1} parent=0
    #allocation2 [shape = 'u8[8192]{0}', space=vmem, size = 0x2000, scoped, tag = 'input window, operand 0, single buffered']
    #allocation3 [shape = 's32[1]{0}', space=sflag, size = 0x4, scoped, tag = 'scoped memory for tpu_custom_call.1']
    #allocation4 [shape = 's32[1]{0}', space=sflag, size = 0x4, scoped, tag = 'scoped memory for tpu_custom_call.1']
    #allocation5 [shape = 'u8[294912]{0}', space=vmem, size = 0x48000, scoped, tag = 'input window, operand 1, single buffered']
    #allocation6 [shape = 's32[1]{0}', space=sflag, size = 0x4, scoped, tag = 'scoped memory for tpu_custom_call.1']
    #allocation7 [shape = 'u8[4096]{0}', space=vmem, size = 0x1000, scoped, tag = 'input window, operand 2, single buffered']
    #allocation8 [shape = 'u8[2097152]{0}', space=vmem, size = 0x200000, scoped, tag = 'input window, operand 3, single buffered']
    #allocation9 [shape = 's32[1]{0}', space=sflag, size = 0x4, scoped, tag = 'scoped memory for tpu_custom_call.1']
    #allocation10 [shape = 'u8[4096]{0}', space=vmem, size = 0x1000, scoped, tag = 'input window, operand 4, single buffered']
    #allocation11 [shape = 'u8[1048576]{0}', space=vmem, size = 0x100000, scoped, tag = 'input window, operand 5, single buffered']
    #allocation12 [shape = 's32[1]{0}', space=sflag, size = 0x4, scoped, tag = 'scoped memory for tpu_custom_call.1']
    #allocation13 [shape = 'u8[2048]{0}', space=vmem, size = 0x800, scoped, tag = 'input window, operand 6, single buffered']
    #allocation14 [shape = 'u8[32768]{0}', space=vmem, size = 0x8000, scoped, tag = 'output window, operand 0, single buffered']
    %12 = vsyncpa [#allocation3], 0
    %13 = vsyncpa [#allocation6], 0
    %14 = vsyncpa [#allocation9], 0
    %15 = vsyncpa [#allocation12], 0
    %16 = vsyncpa [#allocation4], 0
    // Predicated region
    $region2: #{tpu_custom_call.1} parent=1 // pred_check
      _
    $region3: #{tpu_custom_call.1} parent=1 // pred_check_branch
      %18 = sbr.rel (0) target = $region5
    $region4: #{tpu_custom_call.1} parent=1 // pred_region
      %s20 = ssub.s32 256, 256
      %21 = vsyncadd [#allocation3], %s20
      %s22 = sshll.u32 [#allocation2], 4
      %s23 = int_to_ptr.vmem [resolvable:$true] %s22
      %28 = dma.hbm_to_vmem [thread:$0]  %s0, 256, %s23, [#allocation3], 128, 128, 8
    $region5: #{tpu_custom_call.1} parent=1 // pred_fallthru
      _
    // Predicated region
    $region6: #{tpu_custom_call.1} parent=1 // pred_check
      _
    $region7: #{tpu_custom_call.1} parent=1 // pred_check_branch
      %30 = sbr.rel (0) target = $region9
    $region8: #{tpu_custom_call.1} parent=1 // pred_region
      %s32 = ssub.s32 9216, 9216
      %33 = vsyncadd [#allocation6], %s32
      %s34 = sshll.u32 [#allocation5], 4
      %s35 = int_to_ptr.vmem [resolvable:$true] %s34
      %40 = dma.hbm_to_vmem [thread:$0]  %s1, 9216, %s35, [#allocation6], 512, 512, 32
    $region9: #{tpu_custom_call.1} parent=1 // pred_fallthru
      _
    // Predicated region
    $region10: #{tpu_custom_call.1} parent=1 // pred_check
      _
    $region11: #{tpu_custom_call.1} parent=1 // pred_check_branch
      %42 = sbr.rel (0) target = $region13
    $region12: #{tpu_custom_call.1} parent=1 // pred_region
      %s44 = ssub.s32 128, 128
      %45 = vsyncadd [#allocation6], %s44
      %s47 = sshll.u32 [#allocation7], 4
      %s48 = int_to_ptr.vmem [resolvable:$true] %s47
      %50 = dma.hbm_to_vmem [thread:$0]  %s2, 128, %s48, [#allocation6]
    $region13: #{tpu_custom_call.1} parent=1 // pred_fallthru
      _
    // Predicated region
    $region14: #{tpu_custom_call.1} parent=1 // pred_check
      _
    $region15: #{tpu_custom_call.1} parent=1 // pred_check_branch
      %52 = sbr.rel (0) target = $region17
    $region16: #{tpu_custom_call.1} parent=1 // pred_region
      %s54 = ssub.s32 65536, 65536
      %55 = vsyncadd [#allocation9], %s54
      %s56 = sshll.u32 [#allocation8], 4
      %s57 = int_to_ptr.vmem [resolvable:$true] %s56
      %62 = dma.hbm_to_vmem [thread:$0]  %s3, 65536, %s57, [#allocation9], 512, 512, 32
    $region17: #{tpu_custom_call.1} parent=1 // pred_fallthru
      _
    // Predicated region
    $region18: #{tpu_custom_call.1} parent=1 // pred_check
      _
    $region19: #{tpu_custom_call.1} parent=1 // pred_check_branch
      %64 = sbr.rel (0) target = $region21
    $region20: #{tpu_custom_call.1} parent=1 // pred_region
      %s66 = ssub.s32 128, 128
      %67 = vsyncadd [#allocation9], %s66
      %s69 = sshll.u32 [#allocation10], 4
      %s70 = int_to_ptr.vmem [resolvable:$true] %s69
      %72 = dma.hbm_to_vmem [thread:$0]  %s4, 128, %s70, [#allocation9]
    $region21: #{tpu_custom_call.1} parent=1 // pred_fallthru
      _
    // Predicated region
    $region22: #{tpu_custom_call.1} parent=1 // pred_check
      _
    $region23: #{tpu_custom_call.1} parent=1 // pred_check_branch
      %74 = sbr.rel (0) target = $region25
    $region24: #{tpu_custom_call.1} parent=1 // pred_region
      %s76 = ssub.s32 32768, 32768
      %77 = vsyncadd [#allocation12], %s76
      %s78 = sshll.u32 [#allocation11], 4
      %s79 = int_to_ptr.vmem [resolvable:$true] %s78
      %84 = dma.hbm_to_vmem [thread:$0]  %s5, 32768, %s79, [#allocation12], 256, 256, 16
    $region25: #{tpu_custom_call.1} parent=1 // pred_fallthru
      _
    // Predicated region
    $region26: #{tpu_custom_call.1} parent=1 // pred_check
      _
    $region27: #{tpu_custom_call.1} parent=1 // pred_check_branch
      %86 = sbr.rel (0) target = $region29
    $region28: #{tpu_custom_call.1} parent=1 // pred_region
      %s88 = ssub.s32 64, 64
      %89 = vsyncadd [#allocation12], %s88
      %s91 = sshll.u32 [#allocation13], 4
      %s92 = int_to_ptr.vmem [resolvable:$true] %s91
      %94 = dma.hbm_to_vmem [thread:$0]  %s6, 64, %s92, [#allocation12]
    $region29: #{tpu_custom_call.1} parent=1 // pred_fallthru
      _
    // Predicated region
    $region30: #{tpu_custom_call.1} parent=1 // pred_check
      _
    $region31: #{tpu_custom_call.1} parent=1 // pred_check_branch
      %96 = sbr.rel (0) target = $region33
    $region32: #{tpu_custom_call.1} parent=1 // pred_region
      %97 = dma.done [#allocation3], 256
    $region33: #{tpu_custom_call.1} parent=1 // pred_fallthru
      _
    // Predicated region
    $region34: #{tpu_custom_call.1} parent=1 // pred_check
      _
    $region35: #{tpu_custom_call.1} parent=1 // pred_check_branch
      %99 = sbr.rel (0) target = $region37
    $region36: #{tpu_custom_call.1} parent=1 // pred_region
      %100 = dma.done [#allocation6], 9216
    $region37: #{tpu_custom_call.1} parent=1 // pred_fallthru
      _
    // Predicated region
    $region38: #{tpu_custom_call.1} parent=1 // pred_check
      _
    $region39: #{tpu_custom_call.1} parent=1 // pred_check_branch
      %102 = sbr.rel (0) target = $region41
    $region40: #{tpu_custom_call.1} parent=1 // pred_region
      %103 = dma.done [#allocation6], 128
    $region41: #{tpu_custom_call.1} parent=1 // pred_fallthru
      _
    // Predicated region
    $region42: #{tpu_custom_call.1} parent=1 // pred_check
      _
    $region43: #{tpu_custom_call.1} parent=1 // pred_check_branch
      %105 = sbr.rel (0) target = $region45
    $region44: #{tpu_custom_call.1} parent=1 // pred_region
      %106 = dma.done [#allocation9], 65536
    $region45: #{tpu_custom_call.1} parent=1 // pred_fallthru
      _
    // Predicated region
    $region46: #{tpu_custom_call.1} parent=1 // pred_check
      _
    $region47: #{tpu_custom_call.1} parent=1 // pred_check_branch
      %108 = sbr.rel (0) target = $region49
    $region48: #{tpu_custom_call.1} parent=1 // pred_region
      %109 = dma.done [#allocation9], 128
    $region49: #{tpu_custom_call.1} parent=1 // pred_fallthru
      _
    // Predicated region
    $region50: #{tpu_custom_call.1} parent=1 // pred_check
      _
    $region51: #{tpu_custom_call.1} parent=1 // pred_check_branch
      %111 = sbr.rel (0) target = $region53
    $region52: #{tpu_custom_call.1} parent=1 // pred_region
      %112 = dma.done [#allocation12], 32768
    $region53: #{tpu_custom_call.1} parent=1 // pred_fallthru
      _
    // Predicated region
    $region54: #{tpu_custom_call.1} parent=1 // pred_check
      _
    $region55: #{tpu_custom_call.1} parent=1 // pred_check_branch
      %114 = sbr.rel (0) target = $region57
    $region56: #{tpu_custom_call.1} parent=1 // pred_region
      %115 = dma.done [#allocation12], 64
    $region57: #{tpu_custom_call.1} parent=1 // pred_fallthru
      _
    %v117 = vld [vmem:[#allocation2] sm:$0xff]
    %v118 = vld [vmem:[#allocation2 + $0x8] sm:$0xff]
    %v119 = vld [vmem:[#allocation5] sm:$0xff]
    %v120 = vld [vmem:[#allocation5 + $0x8] sm:$0xff]
    %v121 = vld [vmem:[#allocation5 + $0x10] sm:$0xff]
    %v122 = vld [vmem:[#allocation5 + $0x18] sm:$0xff]
    %v123 = vld [vmem:[#allocation5 + $0x20] sm:$0xff]
    %v124 = vld [vmem:[#allocation5 + $0x28] sm:$0xff]
    %v125 = vld [vmem:[#allocation5 + $0x30] sm:$0xff]
    %v126 = vld [vmem:[#allocation5 + $0x38] sm:$0xff]
    %v127 = vld [vmem:[#allocation5 + $0x40] sm:$0xff]
    %v128 = vld [vmem:[#allocation5 + $0x48] sm:$0xff]
    %v129 = vld [vmem:[#allocation5 + $0x50] sm:$0xff]
    %v130 = vld [vmem:[#allocation5 + $0x58] sm:$0xff]
    %v131 = vld [vmem:[#allocation5 + $0x60] sm:$0xff]
    %v132 = vld [vmem:[#allocation5 + $0x68] sm:$0xff]
    %v133 = vld [vmem:[#allocation5 + $0x70] sm:$0xff]
    %v134 = vld [vmem:[#allocation5 + $0x78] sm:$0xff]
    %v135 = vld [vmem:[#allocation5 + $0x80] sm:$0xff]
    %v136 = vld [vmem:[#allocation5 + $0x88] sm:$0xff]
    %v137 = vld [vmem:[#allocation5 + $0x90] sm:$0xff]
    %v138 = vld [vmem:[#allocation5 + $0x98] sm:$0xff]
    %v139 = vld [vmem:[#allocation5 + $0xa0] sm:$0xff]
    %v140 = vld [vmem:[#allocation5 + $0xa8] sm:$0xff]
    %v141 = vld [vmem:[#allocation5 + $0xb0] sm:$0xff]
    %v142 = vld [vmem:[#allocation5 + $0xb8] sm:$0xff]
    %v143 = vld [vmem:[#allocation5 + $0xc0] sm:$0xff]
    %v144 = vld [vmem:[#allocation5 + $0xc8] sm:$0xff]
    %v145 = vld [vmem:[#allocation5 + $0xd0] sm:$0xff]
    %v146 = vld [vmem:[#allocation5 + $0xd8] sm:$0xff]
    %v147 = vld [vmem:[#allocation5 + $0xe0] sm:$0xff]
    %v148 = vld [vmem:[#allocation5 + $0xe8] sm:$0xff]
    %v149 = vld [vmem:[#allocation5 + $0xf0] sm:$0xff]
    %v150 = vld [vmem:[#allocation5 + $0xf8] sm:$0xff]
    %v151 = vld [vmem:[#allocation5 + $0x100] sm:$0xff]
    %v152 = vld [vmem:[#allocation5 + $0x108] sm:$0xff]
    %v153 = vld [vmem:[#allocation5 + $0x110] sm:$0xff]
    %v154 = vld [vmem:[#allocation5 + $0x118] sm:$0xff]
    %v155 = vld [vmem:[#allocation5 + $0x120] sm:$0xff]
    %v156 = vld [vmem:[#allocation5 + $0x128] sm:$0xff]
    %v157 = vld [vmem:[#allocation5 + $0x130] sm:$0xff]
    %v158 = vld [vmem:[#allocation5 + $0x138] sm:$0xff]
    %v159 = vld [vmem:[#allocation5 + $0x140] sm:$0xff]
    %v160 = vld [vmem:[#allocation5 + $0x148] sm:$0xff]
    %v161 = vld [vmem:[#allocation5 + $0x150] sm:$0xff]
    %v162 = vld [vmem:[#allocation5 + $0x158] sm:$0xff]
    %v163 = vld [vmem:[#allocation5 + $0x160] sm:$0xff]
    %v164 = vld [vmem:[#allocation5 + $0x168] sm:$0xff]
    %v165 = vld [vmem:[#allocation5 + $0x170] sm:$0xff]
    %v166 = vld [vmem:[#allocation5 + $0x178] sm:$0xff]
    %v167 = vld [vmem:[#allocation5 + $0x180] sm:$0xff]
    %v168 = vld [vmem:[#allocation5 + $0x188] sm:$0xff]
    %v169 = vld [vmem:[#allocation5 + $0x190] sm:$0xff]
    %v170 = vld [vmem:[#allocation5 + $0x198] sm:$0xff]
    %v171 = vld [vmem:[#allocation5 + $0x1a0] sm:$0xff]
    %v172 = vld [vmem:[#allocation5 + $0x1a8] sm:$0xff]
    %v173 = vld [vmem:[#allocation5 + $0x1b0] sm:$0xff]
    %v174 = vld [vmem:[#allocation5 + $0x1b8] sm:$0xff]
    %v175 = vld [vmem:[#allocation5 + $0x1c0] sm:$0xff]
    %v176 = vld [vmem:[#allocation5 + $0x1c8] sm:$0xff]
    %v177 = vld [vmem:[#allocation5 + $0x1d0] sm:$0xff]
    %v178 = vld [vmem:[#allocation5 + $0x1d8] sm:$0xff]
    %v179 = vld [vmem:[#allocation5 + $0x1e0] sm:$0xff]
    %v180 = vld [vmem:[#allocation5 + $0x1e8] sm:$0xff]
    %v181 = vld [vmem:[#allocation5 + $0x1f0] sm:$0xff]
    %v182 = vld [vmem:[#allocation5 + $0x1f8] sm:$0xff]
    %v183 = vld [vmem:[#allocation5 + $0x200] sm:$0xff]
    %v184 = vld [vmem:[#allocation5 + $0x208] sm:$0xff]
    %v185 = vld [vmem:[#allocation5 + $0x210] sm:$0xff]
    %v186 = vld [vmem:[#allocation5 + $0x218] sm:$0xff]
    %v187 = vld [vmem:[#allocation5 + $0x220] sm:$0xff]
    %v188 = vld [vmem:[#allocation5 + $0x228] sm:$0xff]
    %v189 = vld [vmem:[#allocation5 + $0x230] sm:$0xff]
    %v190 = vld [vmem:[#allocation5 + $0x238] sm:$0xff]
    %v191 = vld [vmem:[#allocation7] sm:$0xff]
    %v193 = vlaneseq
    %v194 = vshrl.u32 %v193, 7
    %v195 = vsub.s32 0, %v194
    %v196 = vrot.slane %v191, %v195
    %v197 = vlaneseq
    %v198 = vshrl.u32 %v197, 7
    %v199 = vsub.s32 1, %v198
    %v200 = vrot.slane %v191, %v199
    %v201 = vlaneseq
    %v202 = vshrl.u32 %v201, 7
    %v203 = vsub.s32 2, %v202
    %v204 = vrot.slane %v191, %v203
    %v205 = vlaneseq
    %v206 = vshrl.u32 %v205, 7
    %v207 = vsub.s32 3, %v206
    %v208 = vrot.slane %v191, %v207
    %v209 = vlaneseq
    %v210 = vshrl.u32 %v209, 7
    %v211 = vsub.s32 4, %v210
    %v212 = vrot.slane %v191, %v211
    %v213 = vlaneseq
    %v214 = vshrl.u32 %v213, 7
    %v215 = vsub.s32 5, %v214
    %v216 = vrot.slane %v191, %v215
    %v217 = vlaneseq
    %v218 = vshrl.u32 %v217, 7
    %v219 = vsub.s32 6, %v218
    %v220 = vrot.slane %v191, %v219
    %v221 = vlaneseq
    %v222 = vshrl.u32 %v221, 7
    %v223 = vsub.s32 7, %v222
    %v224 = vrot.slane %v191, %v223
    %v235 = vunpack.c.l.b16 %v117
    %v236 = vunpack.c.h.b16 %v117
    %v237 = vunpack.c.l.b16 %v118
    %v238 = vunpack.c.h.b16 %v118
    %v239 = vpack.c.b16 %v237, %v235
    %v240 = vpack.c.b16 %v238, %v236
    %v314 = vunpack.c.l.b16 %v119
    %v315 = vunpack.c.h.b16 %v119
    %v316 = vunpack.c.l.b16 %v120
    %v317 = vunpack.c.h.b16 %v120
    %v318 = vunpack.c.l.b16 %v121
    %v319 = vunpack.c.h.b16 %v121
    %v320 = vunpack.c.l.b16 %v122
    %v321 = vunpack.c.h.b16 %v122
    %v322 = vunpack.c.l.b16 %v123
    %v323 = vunpack.c.h.b16 %v123
    %v324 = vunpack.c.l.b16 %v124
    %v325 = vunpack.c.h.b16 %v124
    %v326 = vunpack.c.l.b16 %v125
    %v327 = vunpack.c.h.b16 %v125
    %v328 = vunpack.c.l.b16 %v126
    %v329 = vunpack.c.h.b16 %v126
    %v330 = vunpack.c.l.b16 %v127
    %v331 = vunpack.c.h.b16 %v127
    %v332 = vunpack.c.l.b16 %v128
    %v333 = vunpack.c.h.b16 %v128
    %v334 = vunpack.c.l.b16 %v129
    %v335 = vunpack.c.h.b16 %v129
    %v336 = vunpack.c.l.b16 %v130
    %v337 = vunpack.c.h.b16 %v130
    %v338 = vunpack.c.l.b16 %v131
    %v339 = vunpack.c.h.b16 %v131
    %v340 = vunpack.c.l.b16 %v132
    %v341 = vunpack.c.h.b16 %v132
    %v342 = vunpack.c.l.b16 %v133
    %v343 = vunpack.c.h.b16 %v133
    %v344 = vunpack.c.l.b16 %v134
    %v345 = vunpack.c.h.b16 %v134
    %v346 = vunpack.c.l.b16 %v135
    %v347 = vunpack.c.h.b16 %v135
    %v348 = vunpack.c.l.b16 %v136
    %v349 = vunpack.c.h.b16 %v136
    %v350 = vunpack.c.l.b16 %v137
    %v351 = vunpack.c.h.b16 %v137
    %v352 = vunpack.c.l.b16 %v138
    %v353 = vunpack.c.h.b16 %v138
    %v354 = vunpack.c.l.b16 %v139
    %v355 = vunpack.c.h.b16 %v139
    %v356 = vunpack.c.l.b16 %v140
    %v357 = vunpack.c.h.b16 %v140
    %v358 = vunpack.c.l.b16 %v141
    %v359 = vunpack.c.h.b16 %v141
    %v360 = vunpack.c.l.b16 %v142
    %v361 = vunpack.c.h.b16 %v142
    %v362 = vunpack.c.l.b16 %v143
    %v363 = vunpack.c.h.b16 %v143
    %v364 = vunpack.c.l.b16 %v144
    %v365 = vunpack.c.h.b16 %v144
    %v366 = vunpack.c.l.b16 %v145
    %v367 = vunpack.c.h.b16 %v145
    %v368 = vunpack.c.l.b16 %v146
    %v369 = vunpack.c.h.b16 %v146
    %v370 = vunpack.c.l.b16 %v147
    %v371 = vunpack.c.h.b16 %v147
    %v372 = vunpack.c.l.b16 %v148
    %v373 = vunpack.c.h.b16 %v148
    %v374 = vunpack.c.l.b16 %v149
    %v375 = vunpack.c.h.b16 %v149
    %v376 = vunpack.c.l.b16 %v150
    %v377 = vunpack.c.h.b16 %v150
    %v378 = vunpack.c.l.b16 %v151
    %v379 = vunpack.c.h.b16 %v151
    %v380 = vunpack.c.l.b16 %v152
    %v381 = vunpack.c.h.b16 %v152
    %v382 = vunpack.c.l.b16 %v153
    %v383 = vunpack.c.h.b16 %v153
    %v384 = vunpack.c.l.b16 %v154
    %v385 = vunpack.c.h.b16 %v154
    %v386 = vunpack.c.l.b16 %v155
    %v387 = vunpack.c.h.b16 %v155
    %v388 = vunpack.c.l.b16 %v156
    %v389 = vunpack.c.h.b16 %v156
    %v390 = vunpack.c.l.b16 %v157
    %v391 = vunpack.c.h.b16 %v157
    %v392 = vunpack.c.l.b16 %v158
    %v393 = vunpack.c.h.b16 %v158
    %v394 = vunpack.c.l.b16 %v159
    %v395 = vunpack.c.h.b16 %v159
    %v396 = vunpack.c.l.b16 %v160
    %v397 = vunpack.c.h.b16 %v160
    %v398 = vunpack.c.l.b16 %v161
    %v399 = vunpack.c.h.b16 %v161
    %v400 = vunpack.c.l.b16 %v162
    %v401 = vunpack.c.h.b16 %v162
    %v402 = vunpack.c.l.b16 %v163
    %v403 = vunpack.c.h.b16 %v163
    %v404 = vunpack.c.l.b16 %v164
    %v405 = vunpack.c.h.b16 %v164
    %v406 = vunpack.c.l.b16 %v165
    %v407 = vunpack.c.h.b16 %v165
    %v408 = vunpack.c.l.b16 %v166
    %v409 = vunpack.c.h.b16 %v166
    %v410 = vunpack.c.l.b16 %v167
    %v411 = vunpack.c.h.b16 %v167
    %v412 = vunpack.c.l.b16 %v168
    %v413 = vunpack.c.h.b16 %v168
    %v414 = vunpack.c.l.b16 %v169
    %v415 = vunpack.c.h.b16 %v169
    %v416 = vunpack.c.l.b16 %v170
    %v417 = vunpack.c.h.b16 %v170
    %v418 = vunpack.c.l.b16 %v171
    %v419 = vunpack.c.h.b16 %v171
    %v420 = vunpack.c.l.b16 %v172
    %v421 = vunpack.c.h.b16 %v172
    %v422 = vunpack.c.l.b16 %v173
    %v423 = vunpack.c.h.b16 %v173
    %v424 = vunpack.c.l.b16 %v174
    %v425 = vunpack.c.h.b16 %v174
    %v426 = vunpack.c.l.b16 %v175
    %v427 = vunpack.c.h.b16 %v175
    %v428 = vunpack.c.l.b16 %v176
    %v429 = vunpack.c.h.b16 %v176
    %v430 = vunpack.c.l.b16 %v177
    %v431 = vunpack.c.h.b16 %v177
    %v432 = vunpack.c.l.b16 %v178
    %v433 = vunpack.c.h.b16 %v178
    %v434 = vunpack.c.l.b16 %v179
    %v435 = vunpack.c.h.b16 %v179
    %v436 = vunpack.c.l.b16 %v180
    %v437 = vunpack.c.h.b16 %v180
    %v438 = vunpack.c.l.b16 %v181
    %v439 = vunpack.c.h.b16 %v181
    %v440 = vunpack.c.l.b16 %v182
    %v441 = vunpack.c.h.b16 %v182
    %v442 = vunpack.c.l.b16 %v183
    %v443 = vunpack.c.h.b16 %v183
    %v444 = vunpack.c.l.b16 %v184
    %v445 = vunpack.c.h.b16 %v184
    %v446 = vunpack.c.l.b16 %v185
    %v447 = vunpack.c.h.b16 %v185
    %v448 = vunpack.c.l.b16 %v186
    %v449 = vunpack.c.h.b16 %v186
    %v450 = vunpack.c.l.b16 %v187
    %v451 = vunpack.c.h.b16 %v187
    %v452 = vunpack.c.l.b16 %v188
    %v453 = vunpack.c.h.b16 %v188
    %v454 = vunpack.c.l.b16 %v189
    %v455 = vunpack.c.h.b16 %v189
    %v456 = vunpack.c.l.b16 %v190
    %v457 = vunpack.c.h.b16 %v190
    %v458 = vpack.c.b16 %v322, %v314
    %v459 = vpack.c.b16 %v323, %v315
    %v460 = vpack.c.b16 %v324, %v316
    %v461 = vpack.c.b16 %v325, %v317
    %v462 = vpack.c.b16 %v326, %v318
    %v463 = vpack.c.b16 %v327, %v319
    %v464 = vpack.c.b16 %v328, %v320
    %v465 = vpack.c.b16 %v329, %v321
    %v466 = vpack.c.b16 %v338, %v330
    %v467 = vpack.c.b16 %v339, %v331
    %v468 = vpack.c.b16 %v340, %v332
    %v469 = vpack.c.b16 %v341, %v333
    %v470 = vpack.c.b16 %v342, %v334
    %v471 = vpack.c.b16 %v343, %v335
    %v472 = vpack.c.b16 %v344, %v336
    %v473 = vpack.c.b16 %v345, %v337
    %v474 = vpack.c.b16 %v354, %v346
    %v475 = vpack.c.b16 %v355, %v347
    %v476 = vpack.c.b16 %v356, %v348
    %v477 = vpack.c.b16 %v357, %v349
    %v478 = vpack.c.b16 %v358, %v350
    %v479 = vpack.c.b16 %v359, %v351
    %v480 = vpack.c.b16 %v360, %v352
    %v481 = vpack.c.b16 %v361, %v353
    %v482 = vpack.c.b16 %v370, %v362
    %v483 = vpack.c.b16 %v371, %v363
    %v484 = vpack.c.b16 %v372, %v364
    %v485 = vpack.c.b16 %v373, %v365
    %v486 = vpack.c.b16 %v374, %v366
    %v487 = vpack.c.b16 %v375, %v367
    %v488 = vpack.c.b16 %v376, %v368
    %v489 = vpack.c.b16 %v377, %v369
    %v490 = vpack.c.b16 %v386, %v378
    %v491 = vpack.c.b16 %v387, %v379
    %v492 = vpack.c.b16 %v388, %v380
    %v493 = vpack.c.b16 %v389, %v381
    %v494 = vpack.c.b16 %v390, %v382
    %v495 = vpack.c.b16 %v391, %v383
    %v496 = vpack.c.b16 %v392, %v384
    %v497 = vpack.c.b16 %v393, %v385
    %v498 = vpack.c.b16 %v402, %v394
    %v499 = vpack.c.b16 %v403, %v395
    %v500 = vpack.c.b16 %v404, %v396
    %v501 = vpack.c.b16 %v405, %v397
    %v502 = vpack.c.b16 %v406, %v398
    %v503 = vpack.c.b16 %v407, %v399
    %v504 = vpack.c.b16 %v408, %v400
    %v505 = vpack.c.b16 %v409, %v401
    %v506 = vpack.c.b16 %v418, %v410
    %v507 = vpack.c.b16 %v419, %v411
    %v508 = vpack.c.b16 %v420, %v412
    %v509 = vpack.c.b16 %v421, %v413
    %v510 = vpack.c.b16 %v422, %v414
    %v511 = vpack.c.b16 %v423, %v415
    %v512 = vpack.c.b16 %v424, %v416
    %v513 = vpack.c.b16 %v425, %v417
    %v514 = vpack.c.b16 %v434, %v426
    %v515 = vpack.c.b16 %v435, %v427
    %v516 = vpack.c.b16 %v436, %v428
    %v517 = vpack.c.b16 %v437, %v429
    %v518 = vpack.c.b16 %v438, %v430
    %v519 = vpack.c.b16 %v439, %v431
    %v520 = vpack.c.b16 %v440, %v432
    %v521 = vpack.c.b16 %v441, %v433
    %v522 = vpack.c.b16 %v450, %v442
    %v523 = vpack.c.b16 %v451, %v443
    %v524 = vpack.c.b16 %v452, %v444
    %v525 = vpack.c.b16 %v453, %v445
    %v526 = vpack.c.b16 %v454, %v446
    %v527 = vpack.c.b16 %v455, %v447
    %v528 = vpack.c.b16 %v456, %v448
    %v529 = vpack.c.b16 %v457, %v449
    %vm602 = vcmask 130048
    %v604 = vsel %vm602, %v240, 0
    %606 = vmatprep.subr.bf16.mxu0 %v459
    %607 = vmatpush1.bf16.msra.mxu0 %v458
    %608 = vmatprep.subr.bf16.mxu0 %v467
    %609 = vmatpush1.bf16.msra.mxu0 %v466
    %610 = vmatprep.subr.bf16.mxu0 %v475
    %611 = vmatpush1.bf16.msra.mxu0 %v474
    %612 = vmatprep.subr.bf16.mxu0 %v483
    %613 = vmatpush1.bf16.msra.mxu0 %v482
    %614 = vmatprep.subr.bf16.mxu0 %v491
    %615 = vmatpush1.bf16.msra.mxu0 %v490
    %616 = vmatprep.subr.bf16.mxu0 %v499
    %617 = vmatpush1.bf16.msra.mxu0 %v498
    %618 = vmatprep.subr.bf16.mxu0 %v507
    %619 = vmatpush1.bf16.msra.mxu0 %v506
    %620 = vmatprep.subr.bf16.mxu0 %v515
    %621 = vmatpush1.bf16.msra.mxu0 %v514
    %622 = vmatprep.subr.bf16.mxu0 %v523
    %623 = vmatpush1.bf16.msra.mxu0 %v522
    %624 = vmatprep.subr.bf16.mxu0 0
    %625 = vmatpush1.bf16.msra.mxu0 0
    %626 = vmatprep.subr.bf16.mxu0 0
    %627 = vmatpush1.bf16.msra.mxu0 0
    %628 = vmatprep.subr.bf16.mxu0 0
    %629 = vmatpush1.bf16.msra.mxu0 0
    %630 = vmatprep.subr.bf16.mxu0 0
    %631 = vmatpush1.bf16.msra.mxu0 0
    %632 = vmatprep.subr.bf16.mxu0 0
    %633 = vmatpush1.bf16.msra.mxu0 0
    %634 = vmatprep.subr.bf16.mxu0 0
    %635 = vmatpush1.bf16.msra.mxu0 0
    %636 = vmatprep.subr.bf16.mxu0 0
    %637 = vmatpush1.bf16.msra.mxu0 0
    %638 = vmatprep.mubr.bf16.mxu0 %v604
    %639 = vmatmul.mubr.bf16.gmra.mrb[0].mxu0 %v239
    %v640 = vpop.f32.mrb[0].mxu0
    %v641 = vadd.f32 %v196, %v640
    %v642 = vpop.f32.mrb[0].mxu0
    %v643 = vadd.f32 %v200, %v642
    %v644 = vpop.f32.mrb[0].mxu0
    %v645 = vadd.f32 %v196, %v644
    %v646 = vpop.f32.mrb[0].mxu0
    %v647 = vadd.f32 %v200, %v646
    %648 = vdwg.mxu0
    %649 = vmatprep.subr.bf16.mxu0 %v461
    %650 = vmatpush1.bf16.msra.mxu0 %v460
    %651 = vmatprep.subr.bf16.mxu0 %v469
    %652 = vmatpush1.bf16.msra.mxu0 %v468
    %653 = vmatprep.subr.bf16.mxu0 %v477
    %654 = vmatpush1.bf16.msra.mxu0 %v476
    %655 = vmatprep.subr.bf16.mxu0 %v485
    %656 = vmatpush1.bf16.msra.mxu0 %v484
    %657 = vmatprep.subr.bf16.mxu0 %v493
    %658 = vmatpush1.bf16.msra.mxu0 %v492
    %659 = vmatprep.subr.bf16.mxu0 %v501
    %660 = vmatpush1.bf16.msra.mxu0 %v500
    %661 = vmatprep.subr.bf16.mxu0 %v509
    %662 = vmatpush1.bf16.msra.mxu0 %v508
    %663 = vmatprep.subr.bf16.mxu0 %v517
    %664 = vmatpush1.bf16.msra.mxu0 %v516
    %665 = vmatprep.subr.bf16.mxu0 %v525
    %666 = vmatpush1.bf16.msra.mxu0 %v524
    %667 = vmatprep.subr.bf16.mxu0 0
    %668 = vmatpush1.bf16.msra.mxu0 0
    %669 = vmatprep.subr.bf16.mxu0 0
    %670 = vmatpush1.bf16.msra.mxu0 0
    %671 = vmatprep.subr.bf16.mxu0 0
    %672 = vmatpush1.bf16.msra.mxu0 0
    %673 = vmatprep.subr.bf16.mxu0 0
    %674 = vmatpush1.bf16.msra.mxu0 0
    %675 = vmatprep.subr.bf16.mxu0 0
    %676 = vmatpush1.bf16.msra.mxu0 0
    %677 = vmatprep.subr.bf16.mxu0 0
    %678 = vmatpush1.bf16.msra.mxu0 0
    %679 = vmatprep.subr.bf16.mxu0 0
    %680 = vmatpush1.bf16.msra.mxu0 0
    %681 = vmatprep.mubr.bf16.mxu0 %v604
    %682 = vmatmul.mubr.bf16.gmra.mrb[0].mxu0 %v239
    %v683 = vpop.f32.mrb[0].mxu0
    %v684 = vadd.f32 %v204, %v683
    %v685 = vpop.f32.mrb[0].mxu0
    %v686 = vadd.f32 %v208, %v685
    %v687 = vpop.f32.mrb[0].mxu0
    %v688 = vadd.f32 %v204, %v687
    %v689 = vpop.f32.mrb[0].mxu0
    %v690 = vadd.f32 %v208, %v689
    %691 = vdwg.mxu0
    %692 = vmatprep.subr.bf16.mxu0 %v463
    %693 = vmatpush1.bf16.msra.mxu0 %v462
    %694 = vmatprep.subr.bf16.mxu0 %v471
    %695 = vmatpush1.bf16.msra.mxu0 %v470
    %696 = vmatprep.subr.bf16.mxu0 %v479
    %697 = vmatpush1.bf16.msra.mxu0 %v478
    %698 = vmatprep.subr.bf16.mxu0 %v487
    %699 = vmatpush1.bf16.msra.mxu0 %v486
    %700 = vmatprep.subr.bf16.mxu0 %v495
    %701 = vmatpush1.bf16.msra.mxu0 %v494
    %702 = vmatprep.subr.bf16.mxu0 %v503
    %703 = vmatpush1.bf16.msra.mxu0 %v502
    %704 = vmatprep.subr.bf16.mxu0 %v511
    %705 = vmatpush1.bf16.msra.mxu0 %v510
    %706 = vmatprep.subr.bf16.mxu0 %v519
    %707 = vmatpush1.bf16.msra.mxu0 %v518
    %708 = vmatprep.subr.bf16.mxu0 %v527
    %709 = vmatpush1.bf16.msra.mxu0 %v526
    %710 = vmatprep.subr.bf16.mxu0 0
    %711 = vmatpush1.bf16.msra.mxu0 0
    %712 = vmatprep.subr.bf16.mxu0 0
    %713 = vmatpush1.bf16.msra.mxu0 0
    %714 = vmatprep.subr.bf16.mxu0 0
    %715 = vmatpush1.bf16.msra.mxu0 0
    %716 = vmatprep.subr.bf16.mxu0 0
    %717 = vmatpush1.bf16.msra.mxu0 0
    %718 = vmatprep.subr.bf16.mxu0 0
    %719 = vmatpush1.bf16.msra.mxu0 0
    %720 = vmatprep.subr.bf16.mxu0 0
    %721 = vmatpush1.bf16.msra.mxu0 0
    %722 = vmatprep.subr.bf16.mxu0 0
    %723 = vmatpush1.bf16.msra.mxu0 0
    %724 = vmatprep.mubr.bf16.mxu0 %v604
    %725 = vmatmul.mubr.bf16.gmra.mrb[0].mxu0 %v239
    %v726 = vpop.f32.mrb[0].mxu0
    %v727 = vadd.f32 %v212, %v726
    %v728 = vpop.f32.mrb[0].mxu0
    %v729 = vadd.f32 %v216, %v728
    %v730 = vpop.f32.mrb[0].mxu0
    %v731 = vadd.f32 %v212, %v730
    %v732 = vpop.f32.mrb[0].mxu0
    %v733 = vadd.f32 %v216, %v732
    %734 = vdwg.mxu0
    %735 = vmatprep.subr.bf16.mxu0 %v465
    %736 = vmatpush1.bf16.msra.mxu0 %v464
    %737 = vmatprep.subr.bf16.mxu0 %v473
    %738 = vmatpush1.bf16.msra.mxu0 %v472
    %739 = vmatprep.subr.bf16.mxu0 %v481
    %740 = vmatpush1.bf16.msra.mxu0 %v480
    %741 = vmatprep.subr.bf16.mxu0 %v489
    %742 = vmatpush1.bf16.msra.mxu0 %v488
    %743 = vmatprep.subr.bf16.mxu0 %v497
    %744 = vmatpush1.bf16.msra.mxu0 %v496
    %745 = vmatprep.subr.bf16.mxu0 %v505
    %746 = vmatpush1.bf16.msra.mxu0 %v504
    %747 = vmatprep.subr.bf16.mxu0 %v513
    %748 = vmatpush1.bf16.msra.mxu0 %v512
    %749 = vmatprep.subr.bf16.mxu0 %v521
    %750 = vmatpush1.bf16.msra.mxu0 %v520
    %751 = vmatprep.subr.bf16.mxu0 %v529
    %752 = vmatpush1.bf16.msra.mxu0 %v528
    %753 = vmatprep.subr.bf16.mxu0 0
    %754 = vmatpush1.bf16.msra.mxu0 0
    %755 = vmatprep.subr.bf16.mxu0 0
    %756 = vmatpush1.bf16.msra.mxu0 0
    %757 = vmatprep.subr.bf16.mxu0 0
    %758 = vmatpush1.bf16.msra.mxu0 0
    %759 = vmatprep.subr.bf16.mxu0 0
    %760 = vmatpush1.bf16.msra.mxu0 0
    %761 = vmatprep.subr.bf16.mxu0 0
    %762 = vmatpush1.bf16.msra.mxu0 0
    %763 = vmatprep.subr.bf16.mxu0 0
    %764 = vmatpush1.bf16.msra.mxu0 0
    %765 = vmatprep.subr.bf16.mxu0 0
    %766 = vmatpush1.bf16.msra.mxu0 0
    %767 = vmatprep.mubr.bf16.mxu0 %v604
    %768 = vmatmul.mubr.bf16.gmra.mrb[0].mxu0 %v239
    %v769 = vpop.f32.mrb[0].mxu0
    %v770 = vadd.f32 %v220, %v769
    %v771 = vpop.f32.mrb[0].mxu0
    %v772 = vadd.f32 %v224, %v771
    %v773 = vpop.f32.mrb[0].mxu0
    %v774 = vadd.f32 %v220, %v773
    %v775 = vpop.f32.mrb[0].mxu0
    %v776 = vadd.f32 %v224, %v775
    %777 = vdwg.mxu0
    %v778 = vmul.f32 %v641, 0.01
    %v779 = vmul.f32 %v643, 0.01
    %v780 = vmul.f32 %v684, 0.01
    %v781 = vmul.f32 %v686, 0.01
    %v782 = vmul.f32 %v727, 0.01
    %v783 = vmul.f32 %v729, 0.01
    %v784 = vmul.f32 %v770, 0.01
    %v785 = vmul.f32 %v772, 0.01
    %v786 = vmul.f32 %v645, 0.01
    %v787 = vmul.f32 %v647, 0.01
    %v788 = vmul.f32 %v688, 0.01
    %v789 = vmul.f32 %v690, 0.01
    %v790 = vmul.f32 %v731, 0.01
    %v791 = vmul.f32 %v733, 0.01
    %v792 = vmul.f32 %v774, 0.01
    %v793 = vmul.f32 %v776, 0.01
    %v794 = vmax.f32 %v641, %v778
    %v795 = vmax.f32 %v643, %v779
    %v796 = vmax.f32 %v684, %v780
    %v797 = vmax.f32 %v686, %v781
    %v798 = vmax.f32 %v727, %v782
    %v799 = vmax.f32 %v729, %v783
    %v800 = vmax.f32 %v770, %v784
    %v801 = vmax.f32 %v772, %v785
    %v802 = vmax.f32 %v645, %v786
    %v803 = vmax.f32 %v647, %v787
    %v804 = vmax.f32 %v688, %v788
    %v805 = vmax.f32 %v690, %v789
    %v806 = vmax.f32 %v731, %v790
    %v807 = vmax.f32 %v733, %v791
    %v808 = vmax.f32 %v774, %v792
    %v809 = vmax.f32 %v776, %v793
    %v810 = vpack.c.bf16 %v802, %v794
    %v811 = vpack.c.bf16 %v803, %v795
    %v812 = vpack.c.bf16 %v804, %v796
    %v813 = vpack.c.bf16 %v805, %v797
    %v814 = vpack.c.bf16 %v806, %v798
    %v815 = vpack.c.bf16 %v807, %v799
    %v816 = vpack.c.bf16 %v808, %v800
    %v817 = vpack.c.bf16 %v809, %v801
    %v818 = vld [vmem:[#allocation8] sm:$0xff]
    %v819 = vld [vmem:[#allocation8 + $0x8] sm:$0xff]
    %v820 = vld [vmem:[#allocation8 + $0x10] sm:$0xff]
    %v821 = vld [vmem:[#allocation8 + $0x18] sm:$0xff]
    %v822 = vld [vmem:[#allocation8 + $0x20] sm:$0xff]
    %v823 = vld [vmem:[#allocation8 + $0x28] sm:$0xff]
    %v824 = vld [vmem:[#allocation8 + $0x30] sm:$0xff]
    %v825 = vld [vmem:[#allocation8 + $0x38] sm:$0xff]
    %v826 = vld [vmem:[#allocation8 + $0x40] sm:$0xff]
    %v827 = vld [vmem:[#allocation8 + $0x48] sm:$0xff]
    %v828 = vld [vmem:[#allocation8 + $0x50] sm:$0xff]
    %v829 = vld [vmem:[#allocation8 + $0x58] sm:$0xff]
    %v830 = vld [vmem:[#allocation8 + $0x60] sm:$0xff]
    %v831 = vld [vmem:[#allocation8 + $0x68] sm:$0xff]
    %v832 = vld [vmem:[#allocation8 + $0x70] sm:$0xff]
    %v833 = vld [vmem:[#allocation8 + $0x78] sm:$0xff]
    %v834 = vld [vmem:[#allocation8 + $0x80] sm:$0xff]
    %v835 = vld [vmem:[#allocation8 + $0x88] sm:$0xff]
    %v836 = vld [vmem:[#allocation8 + $0x90] sm:$0xff]
    %v837 = vld [vmem:[#allocation8 + $0x98] sm:$0xff]
    %v838 = vld [vmem:[#allocation8 + $0xa0] sm:$0xff]
    %v839 = vld [vmem:[#allocation8 + $0xa8] sm:$0xff]
    %v840 = vld [vmem:[#allocation8 + $0xb0] sm:$0xff]
    %v841 = vld [vmem:[#allocation8 + $0xb8] sm:$0xff]
    %v842 = vld [vmem:[#allocation8 + $0xc0] sm:$0xff]
    %v843 = vld [vmem:[#allocation8 + $0xc8] sm:$0xff]
    %v844 = vld [vmem:[#allocation8 + $0xd0] sm:$0xff]
    %v845 = vld [vmem:[#allocation8 + $0xd8] sm:$0xff]
    %v846 = vld [vmem:[#allocation8 + $0xe0] sm:$0xff]
    %v847 = vld [vmem:[#allocation8 + $0xe8] sm:$0xff]
    %v848 = vld [vmem:[#allocation8 + $0xf0] sm:$0xff]
    %v849 = vld [vmem:[#allocation8 + $0xf8] sm:$0xff]
    %v850 = vld [vmem:[#allocation8 + $0x100] sm:$0xff]
    %v851 = vld [vmem:[#allocation8 + $0x108] sm:$0xff]
    %v852 = vld [vmem:[#allocation8 + $0x110] sm:$0xff]
    %v853 = vld [vmem:[#allocation8 + $0x118] sm:$0xff]
    %v854 = vld [vmem:[#allocation8 + $0x120] sm:$0xff]
    %v855 = vld [vmem:[#allocation8 + $0x128] sm:$0xff]
    %v856 = vld [vmem:[#allocation8 + $0x130] sm:$0xff]
    %v857 = vld [vmem:[#allocation8 + $0x138] sm:$0xff]
    %v858 = vld [vmem:[#allocation8 + $0x140] sm:$0xff]
    %v859 = vld [vmem:[#allocation8 + $0x148] sm:$0xff]
    %v860 = vld [vmem:[#allocation8 + $0x150] sm:$0xff]
    %v861 = vld [vmem:[#allocation8 + $0x158] sm:$0xff]
    %v862 = vld [vmem:[#allocation8 + $0x160] sm:$0xff]
    %v863 = vld [vmem:[#allocation8 + $0x168] sm:$0xff]
    %v864 = vld [vmem:[#allocation8 + $0x170] sm:$0xff]
    %v865 = vld [vmem:[#allocation8 + $0x178] sm:$0xff]
    %v866 = vld [vmem:[#allocation8 + $0x180] sm:$0xff]
    %v867 = vld [vmem:[#allocation8 + $0x188] sm:$0xff]
    %v868 = vld [vmem:[#allocation8 + $0x190] sm:$0xff]
    %v869 = vld [vmem:[#allocation8 + $0x198] sm:$0xff]
    %v870 = vld [vmem:[#allocation8 + $0x1a0] sm:$0xff]
    %v871 = vld [vmem:[#allocation8 + $0x1a8] sm:$0xff]
    %v872 = vld [vmem:[#allocation8 + $0x1b0] sm:$0xff]
    %v873 = vld [vmem:[#allocation8 + $0x1b8] sm:$0xff]
    %v874 = vld [vmem:[#allocation8 + $0x1c0] sm:$0xff]
    %v875 = vld [vmem:[#allocation8 + $0x1c8] sm:$0xff]
    %v876 = vld [vmem:[#allocation8 + $0x1d0] sm:$0xff]
    %v877 = vld [vmem:[#allocation8 + $0x1d8] sm:$0xff]
    %v878 = vld [vmem:[#allocation8 + $0x1e0] sm:$0xff]
    %v879 = vld [vmem:[#allocation8 + $0x1e8] sm:$0xff]
    %v880 = vld [vmem:[#allocation8 + $0x1f0] sm:$0xff]
    %v881 = vld [vmem:[#allocation8 + $0x1f8] sm:$0xff]
    %v882 = vld [vmem:[#allocation8 + $0x200] sm:$0xff]
    %v883 = vld [vmem:[#allocation8 + $0x208] sm:$0xff]
    %v884 = vld [vmem:[#allocation8 + $0x210] sm:$0xff]
    %v885 = vld [vmem:[#allocation8 + $0x218] sm:$0xff]
    %v886 = vld [vmem:[#allocation8 + $0x220] sm:$0xff]
    %v887 = vld [vmem:[#allocation8 + $0x228] sm:$0xff]
    %v888 = vld [vmem:[#allocation8 + $0x230] sm:$0xff]
    %v889 = vld [vmem:[#allocation8 + $0x238] sm:$0xff]
    %v890 = vld [vmem:[#allocation8 + $0x240] sm:$0xff]
    %v891 = vld [vmem:[#allocation8 + $0x248] sm:$0xff]
    %v892 = vld [vmem:[#allocation8 + $0x250] sm:$0xff]
    %v893 = vld [vmem:[#allocation8 + $0x258] sm:$0xff]
    %v894 = vld [vmem:[#allocation8 + $0x260] sm:$0xff]
    %v895 = vld [vmem:[#allocation8 + $0x268] sm:$0xff]
    %v896 = vld [vmem:[#allocation8 + $0x270] sm:$0xff]
    %v897 = vld [vmem:[#allocation8 + $0x278] sm:$0xff]
    %v898 = vld [vmem:[#allocation8 + $0x280] sm:$0xff]
    %v899 = vld [vmem:[#allocation8 + $0x288] sm:$0xff]
    %v900 = vld [vmem:[#allocation8 + $0x290] sm:$0xff]
    %v901 = vld [vmem:[#allocation8 + $0x298] sm:$0xff]
    %v902 = vld [vmem:[#allocation8 + $0x2a0] sm:$0xff]
    %v903 = vld [vmem:[#allocation8 + $0x2a8] sm:$0xff]
    %v904 = vld [vmem:[#allocation8 + $0x2b0] sm:$0xff]
    %v905 = vld [vmem:[#allocation8 + $0x2b8] sm:$0xff]
    %v906 = vld [vmem:[#allocation8 + $0x2c0] sm:$0xff]
    %v907 = vld [vmem:[#allocation8 + $0x2c8] sm:$0xff]
    %v908 = vld [vmem:[#allocation8 + $0x2d0] sm:$0xff]
    %v909 = vld [vmem:[#allocation8 + $0x2d8] sm:$0xff]
    %v910 = vld [vmem:[#allocation8 + $0x2e0] sm:$0xff]
    %v911 = vld [vmem:[#allocation8 + $0x2e8] sm:$0xff]
    %v912 = vld [vmem:[#allocation8 + $0x2f0] sm:$0xff]
    %v913 = vld [vmem:[#allocation8 + $0x2f8] sm:$0xff]
    %v914 = vld [vmem:[#allocation8 + $0x300] sm:$0xff]
    %v915 = vld [vmem:[#allocation8 + $0x308] sm:$0xff]
    %v916 = vld [vmem:[#allocation8 + $0x310] sm:$0xff]
    %v917 = vld [vmem:[#allocation8 + $0x318] sm:$0xff]
    %v918 = vld [vmem:[#allocation8 + $0x320] sm:$0xff]
    %v919 = vld [vmem:[#allocation8 + $0x328] sm:$0xff]
    %v920 = vld [vmem:[#allocation8 + $0x330] sm:$0xff]
    %v921 = vld [vmem:[#allocation8 + $0x338] sm:$0xff]
    %v922 = vld [vmem:[#allocation8 + $0x340] sm:$0xff]
    %v923 = vld [vmem:[#allocation8 + $0x348] sm:$0xff]
    %v924 = vld [vmem:[#allocation8 + $0x350] sm:$0xff]
    %v925 = vld [vmem:[#allocation8 + $0x358] sm:$0xff]
    %v926 = vld [vmem:[#allocation8 + $0x360] sm:$0xff]
    %v927 = vld [vmem:[#allocation8 + $0x368] sm:$0xff]
    %v928 = vld [vmem:[#allocation8 + $0x370] sm:$0xff]
    %v929 = vld [vmem:[#allocation8 + $0x378] sm:$0xff]
    %v930 = vld [vmem:[#allocation8 + $0x380] sm:$0xff]
    %v931 = vld [vmem:[#allocation8 + $0x388] sm:$0xff]
    %v932 = vld [vmem:[#allocation8 + $0x390] sm:$0xff]
    %v933 = vld [vmem:[#allocation8 + $0x398] sm:$0xff]
    %v934 = vld [vmem:[#allocation8 + $0x3a0] sm:$0xff]
    %v935 = vld [vmem:[#allocation8 + $0x3a8] sm:$0xff]
    %v936 = vld [vmem:[#allocation8 + $0x3b0] sm:$0xff]
    %v937 = vld [vmem:[#allocation8 + $0x3b8] sm:$0xff]
    %v938 = vld [vmem:[#allocation8 + $0x3c0] sm:$0xff]
    %v939 = vld [vmem:[#allocation8 + $0x3c8] sm:$0xff]
    %v940 = vld [vmem:[#allocation8 + $0x3d0] sm:$0xff]
    %v941 = vld [vmem:[#allocation8 + $0x3d8] sm:$0xff]
    %v942 = vld [vmem:[#allocation8 + $0x3e0] sm:$0xff]
    %v943 = vld [vmem:[#allocation8 + $0x3e8] sm:$0xff]
    %v944 = vld [vmem:[#allocation8 + $0x3f0] sm:$0xff]
    %v945 = vld [vmem:[#allocation8 + $0x3f8] sm:$0xff]
    %v946 = vld [vmem:[#allocation8 + $0x400] sm:$0xff]
    %v947 = vld [vmem:[#allocation8 + $0x408] sm:$0xff]
    %v948 = vld [vmem:[#allocation8 + $0x410] sm:$0xff]
    %v949 = vld [vmem:[#allocation8 + $0x418] sm:$0xff]
    %v950 = vld [vmem:[#allocation8 + $0x420] sm:$0xff]
    %v951 = vld [vmem:[#allocation8 + $0x428] sm:$0xff]
    %v952 = vld [vmem:[#allocation8 + $0x430] sm:$0xff]
    %v953 = vld [vmem:[#allocation8 + $0x438] sm:$0xff]
    %v954 = vld [vmem:[#allocation8 + $0x440] sm:$0xff]
    %v955 = vld [vmem:[#allocation8 + $0x448] sm:$0xff]
    %v956 = vld [vmem:[#allocation8 + $0x450] sm:$0xff]
    %v957 = vld [vmem:[#allocation8 + $0x458] sm:$0xff]
    %v958 = vld [vmem:[#allocation8 + $0x460] sm:$0xff]
    %v959 = vld [vmem:[#allocation8 + $0x468] sm:$0xff]
    %v960 = vld [vmem:[#allocation8 + $0x470] sm:$0xff]
    %v961 = vld [vmem:[#allocation8 + $0x478] sm:$0xff]
    %v962 = vld [vmem:[#allocation8 + $0x480] sm:$0xff]
    %v963 = vld [vmem:[#allocation8 + $0x488] sm:$0xff]
    %v964 = vld [vmem:[#allocation8 + $0x490] sm:$0xff]
    %v965 = vld [vmem:[#allocation8 + $0x498] sm:$0xff]
    %v966 = vld [vmem:[#allocation8 + $0x4a0] sm:$0xff]
    %v967 = vld [vmem:[#allocation8 + $0x4a8] sm:$0xff]
    %v968 = vld [vmem:[#allocation8 + $0x4b0] sm:$0xff]
    %v969 = vld [vmem:[#allocation8 + $0x4b8] sm:$0xff]
    %v970 = vld [vmem:[#allocation8 + $0x4c0] sm:$0xff]
    %v971 = vld [vmem:[#allocation8 + $0x4c8] sm:$0xff]
    %v972 = vld [vmem:[#allocation8 + $0x4d0] sm:$0xff]
    %v973 = vld [vmem:[#allocation8 + $0x4d8] sm:$0xff]
    %v974 = vld [vmem:[#allocation8 + $0x4e0] sm:$0xff]
    %v975 = vld [vmem:[#allocation8 + $0x4e8] sm:$0xff]
    %v976 = vld [vmem:[#allocation8 + $0x4f0] sm:$0xff]
    %v977 = vld [vmem:[#allocation8 + $0x4f8] sm:$0xff]
    %v978 = vld [vmem:[#allocation8 + $0x500] sm:$0xff]
    %v979 = vld [vmem:[#allocation8 + $0x508] sm:$0xff]
    %v980 = vld [vmem:[#allocation8 + $0x510] sm:$0xff]
    %v981 = vld [vmem:[#allocation8 + $0x518] sm:$0xff]
    %v982 = vld [vmem:[#allocation8 + $0x520] sm:$0xff]
    %v983 = vld [vmem:[#allocation8 + $0x528] sm:$0xff]
    %v984 = vld [vmem:[#allocation8 + $0x530] sm:$0xff]
    %v985 = vld [vmem:[#allocation8 + $0x538] sm:$0xff]
    %v986 = vld [vmem:[#allocation8 + $0x540] sm:$0xff]
    %v987 = vld [vmem:[#allocation8 + $0x548] sm:$0xff]
    %v988 = vld [vmem:[#allocation8 + $0x550] sm:$0xff]
    %v989 = vld [vmem:[#allocation8 + $0x558] sm:$0xff]
    %v990 = vld [vmem:[#allocation8 + $0x560] sm:$0xff]
    %v991 = vld [vmem:[#allocation8 + $0x568] sm:$0xff]
    %v992 = vld [vmem:[#allocation8 + $0x570] sm:$0xff]
    %v993 = vld [vmem:[#allocation8 + $0x578] sm:$0xff]
    %v994 = vld [vmem:[#allocation8 + $0x580] sm:$0xff]
    %v995 = vld [vmem:[#allocation8 + $0x588] sm:$0xff]
    %v996 = vld [vmem:[#allocation8 + $0x590] sm:$0xff]
    %v997 = vld [vmem:[#allocation8 + $0x598] sm:$0xff]
    %v998 = vld [vmem:[#allocation8 + $0x5a0] sm:$0xff]
    %v999 = vld [vmem:[#allocation8 + $0x5a8] sm:$0xff]
    %v1000 = vld [vmem:[#allocation8 + $0x5b0] sm:$0xff]
    %v1001 = vld [vmem:[#allocation8 + $0x5b8] sm:$0xff]
    %v1002 = vld [vmem:[#allocation8 + $0x5c0] sm:$0xff]
    %v1003 = vld [vmem:[#allocation8 + $0x5c8] sm:$0xff]
    %v1004 = vld [vmem:[#allocation8 + $0x5d0] sm:$0xff]
    %v1005 = vld [vmem:[#allocation8 + $0x5d8] sm:$0xff]
    %v1006 = vld [vmem:[#allocation8 + $0x5e0] sm:$0xff]
    %v1007 = vld [vmem:[#allocation8 + $0x5e8] sm:$0xff]
    %v1008 = vld [vmem:[#allocation8 + $0x5f0] sm:$0xff]
    %v1009 = vld [vmem:[#allocation8 + $0x5f8] sm:$0xff]
    %v1010 = vld [vmem:[#allocation8 + $0x600] sm:$0xff]
    %v1011 = vld [vmem:[#allocation8 + $0x608] sm:$0xff]
    %v1012 = vld [vmem:[#allocation8 + $0x610] sm:$0xff]
    %v1013 = vld [vmem:[#allocation8 + $0x618] sm:$0xff]
    %v1014 = vld [vmem:[#allocation8 + $0x620] sm:$0xff]
    %v1015 = vld [vmem:[#allocation8 + $0x628] sm:$0xff]
    %v1016 = vld [vmem:[#allocation8 + $0x630] sm:$0xff]
    %v1017 = vld [vmem:[#allocation8 + $0x638] sm:$0xff]
    %v1018 = vld [vmem:[#allocation8 + $0x640] sm:$0xff]
    %v1019 = vld [vmem:[#allocation8 + $0x648] sm:$0xff]
    %v1020 = vld [vmem:[#allocation8 + $0x650] sm:$0xff]
    %v1021 = vld [vmem:[#allocation8 + $0x658] sm:$0xff]
    %v1022 = vld [vmem:[#allocation8 + $0x660] sm:$0xff]
    %v1023 = vld [vmem:[#allocation8 + $0x668] sm:$0xff]
    %v1024 = vld [vmem:[#allocation8 + $0x670] sm:$0xff]
    %v1025 = vld [vmem:[#allocation8 + $0x678] sm:$0xff]
    %v1026 = vld [vmem:[#allocation8 + $0x680] sm:$0xff]
    %v1027 = vld [vmem:[#allocation8 + $0x688] sm:$0xff]
    %v1028 = vld [vmem:[#allocation8 + $0x690] sm:$0xff]
    %v1029 = vld [vmem:[#allocation8 + $0x698] sm:$0xff]
    %v1030 = vld [vmem:[#allocation8 + $0x6a0] sm:$0xff]
    %v1031 = vld [vmem:[#allocation8 + $0x6a8] sm:$0xff]
    %v1032 = vld [vmem:[#allocation8 + $0x6b0] sm:$0xff]
    %v1033 = vld [vmem:[#allocation8 + $0x6b8] sm:$0xff]
    %v1034 = vld [vmem:[#allocation8 + $0x6c0] sm:$0xff]
    %v1035 = vld [vmem:[#allocation8 + $0x6c8] sm:$0xff]
    %v1036 = vld [vmem:[#allocation8 + $0x6d0] sm:$0xff]
    %v1037 = vld [vmem:[#allocation8 + $0x6d8] sm:$0xff]
    %v1038 = vld [vmem:[#allocation8 + $0x6e0] sm:$0xff]
    %v1039 = vld [vmem:[#allocation8 + $0x6e8] sm:$0xff]
    %v1040 = vld [vmem:[#allocation8 + $0x6f0] sm:$0xff]
    %v1041 = vld [vmem:[#allocation8 + $0x6f8] sm:$0xff]
    %v1042 = vld [vmem:[#allocation8 + $0x700] sm:$0xff]
    %v1043 = vld [vmem:[#allocation8 + $0x708] sm:$0xff]
    %v1044 = vld [vmem:[#allocation8 + $0x710] sm:$0xff]
    %v1045 = vld [vmem:[#allocation8 + $0x718] sm:$0xff]
    %v1046 = vld [vmem:[#allocation8 + $0x720] sm:$0xff]
    %v1047 = vld [vmem:[#allocation8 + $0x728] sm:$0xff]
    %v1048 = vld [vmem:[#allocation8 + $0x730] sm:$0xff]
    %v1049 = vld [vmem:[#allocation8 + $0x738] sm:$0xff]
    %v1050 = vld [vmem:[#allocation8 + $0x740] sm:$0xff]
    %v1051 = vld [vmem:[#allocation8 + $0x748] sm:$0xff]
    %v1052 = vld [vmem:[#allocation8 + $0x750] sm:$0xff]
    %v1053 = vld [vmem:[#allocation8 + $0x758] sm:$0xff]
    %v1054 = vld [vmem:[#allocation8 + $0x760] sm:$0xff]
    %v1055 = vld [vmem:[#allocation8 + $0x768] sm:$0xff]
    %v1056 = vld [vmem:[#allocation8 + $0x770] sm:$0xff]
    %v1057 = vld [vmem:[#allocation8 + $0x778] sm:$0xff]
    %v1058 = vld [vmem:[#allocation8 + $0x780] sm:$0xff]
    %v1059 = vld [vmem:[#allocation8 + $0x788] sm:$0xff]
    %v1060 = vld [vmem:[#allocation8 + $0x790] sm:$0xff]
    %v1061 = vld [vmem:[#allocation8 + $0x798] sm:$0xff]
    %v1062 = vld [vmem:[#allocation8 + $0x7a0] sm:$0xff]
    %v1063 = vld [vmem:[#allocation8 + $0x7a8] sm:$0xff]
    %v1064 = vld [vmem:[#allocation8 + $0x7b0] sm:$0xff]
    %v1065 = vld [vmem:[#allocation8 + $0x7b8] sm:$0xff]
    %v1066 = vld [vmem:[#allocation8 + $0x7c0] sm:$0xff]
    %v1067 = vld [vmem:[#allocation8 + $0x7c8] sm:$0xff]
    %v1068 = vld [vmem:[#allocation8 + $0x7d0] sm:$0xff]
    %v1069 = vld [vmem:[#allocation8 + $0x7d8] sm:$0xff]
    %v1070 = vld [vmem:[#allocation8 + $0x7e0] sm:$0xff]
    %v1071 = vld [vmem:[#allocation8 + $0x7e8] sm:$0xff]
    %v1072 = vld [vmem:[#allocation8 + $0x7f0] sm:$0xff]
    %v1073 = vld [vmem:[#allocation8 + $0x7f8] sm:$0xff]
    %v1074 = vld [vmem:[#allocation8 + $0x800] sm:$0xff]
    %v1075 = vld [vmem:[#allocation8 + $0x808] sm:$0xff]
    %v1076 = vld [vmem:[#allocation8 + $0x810] sm:$0xff]
    %v1077 = vld [vmem:[#allocation8 + $0x818] sm:$0xff]
    %v1078 = vld [vmem:[#allocation8 + $0x820] sm:$0xff]
    %v1079 = vld [vmem:[#allocation8 + $0x828] sm:$0xff]
    %v1080 = vld [vmem:[#allocation8 + $0x830] sm:$0xff]
    %v1081 = vld [vmem:[#allocation8 + $0x838] sm:$0xff]
    %v1082 = vld [vmem:[#allocation8 + $0x840] sm:$0xff]
    %v1083 = vld [vmem:[#allocation8 + $0x848] sm:$0xff]
    %v1084 = vld [vmem:[#allocation8 + $0x850] sm:$0xff]
    %v1085 = vld [vmem:[#allocation8 + $0x858] sm:$0xff]
    %v1086 = vld [vmem:[#allocation8 + $0x860] sm:$0xff]
    %v1087 = vld [vmem:[#allocation8 + $0x868] sm:$0xff]
    %v1088 = vld [vmem:[#allocation8 + $0x870] sm:$0xff]
    %v1089 = vld [vmem:[#allocation8 + $0x878] sm:$0xff]
    %v1090 = vld [vmem:[#allocation8 + $0x880] sm:$0xff]
    %v1091 = vld [vmem:[#allocation8 + $0x888] sm:$0xff]
    %v1092 = vld [vmem:[#allocation8 + $0x890] sm:$0xff]
    %v1093 = vld [vmem:[#allocation8 + $0x898] sm:$0xff]
    %v1094 = vld [vmem:[#allocation8 + $0x8a0] sm:$0xff]
    %v1095 = vld [vmem:[#allocation8 + $0x8a8] sm:$0xff]
    %v1096 = vld [vmem:[#allocation8 + $0x8b0] sm:$0xff]
    %v1097 = vld [vmem:[#allocation8 + $0x8b8] sm:$0xff]
    %v1098 = vld [vmem:[#allocation8 + $0x8c0] sm:$0xff]
    %v1099 = vld [vmem:[#allocation8 + $0x8c8] sm:$0xff]
    %v1100 = vld [vmem:[#allocation8 + $0x8d0] sm:$0xff]
    %v1101 = vld [vmem:[#allocation8 + $0x8d8] sm:$0xff]
    %v1102 = vld [vmem:[#allocation8 + $0x8e0] sm:$0xff]
    %v1103 = vld [vmem:[#allocation8 + $0x8e8] sm:$0xff]
    %v1104 = vld [vmem:[#allocation8 + $0x8f0] sm:$0xff]
    %v1105 = vld [vmem:[#allocation8 + $0x8f8] sm:$0xff]
    %v1106 = vld [vmem:[#allocation8 + $0x900] sm:$0xff]
    %v1107 = vld [vmem:[#allocation8 + $0x908] sm:$0xff]
    %v1108 = vld [vmem:[#allocation8 + $0x910] sm:$0xff]
    %v1109 = vld [vmem:[#allocation8 + $0x918] sm:$0xff]
    %v1110 = vld [vmem:[#allocation8 + $0x920] sm:$0xff]
    %v1111 = vld [vmem:[#allocation8 + $0x928] sm:$0xff]
    %v1112 = vld [vmem:[#allocation8 + $0x930] sm:$0xff]
    %v1113 = vld [vmem:[#allocation8 + $0x938] sm:$0xff]
    %v1114 = vld [vmem:[#allocation8 + $0x940] sm:$0xff]
    %v1115 = vld [vmem:[#allocation8 + $0x948] sm:$0xff]
    %v1116 = vld [vmem:[#allocation8 + $0x950] sm:$0xff]
    %v1117 = vld [vmem:[#allocation8 + $0x958] sm:$0xff]
    %v1118 = vld [vmem:[#allocation8 + $0x960] sm:$0xff]
    %v1119 = vld [vmem:[#allocation8 + $0x968] sm:$0xff]
    %v1120 = vld [vmem:[#allocation8 + $0x970] sm:$0xff]
    %v1121 = vld [vmem:[#allocation8 + $0x978] sm:$0xff]
    %v1122 = vld [vmem:[#allocation8 + $0x980] sm:$0xff]
    %v1123 = vld [vmem:[#allocation8 + $0x988] sm:$0xff]
    %v1124 = vld [vmem:[#allocation8 + $0x990] sm:$0xff]
    %v1125 = vld [vmem:[#allocation8 + $0x998] sm:$0xff]
    %v1126 = vld [vmem:[#allocation8 + $0x9a0] sm:$0xff]
    %v1127 = vld [vmem:[#allocation8 + $0x9a8] sm:$0xff]
    %v1128 = vld [vmem:[#allocation8 + $0x9b0] sm:$0xff]
    %v1129 = vld [vmem:[#allocation8 + $0x9b8] sm:$0xff]
    %v1130 = vld [vmem:[#allocation8 + $0x9c0] sm:$0xff]
    %v1131 = vld [vmem:[#allocation8 + $0x9c8] sm:$0xff]
    %v1132 = vld [vmem:[#allocation8 + $0x9d0] sm:$0xff]
    %v1133 = vld [vmem:[#allocation8 + $0x9d8] sm:$0xff]
    %v1134 = vld [vmem:[#allocation8 + $0x9e0] sm:$0xff]
    %v1135 = vld [vmem:[#allocation8 + $0x9e8] sm:$0xff]
    %v1136 = vld [vmem:[#allocation8 + $0x9f0] sm:$0xff]
    %v1137 = vld [vmem:[#allocation8 + $0x9f8] sm:$0xff]
    %v1138 = vld [vmem:[#allocation8 + $0xa00] sm:$0xff]
    %v1139 = vld [vmem:[#allocation8 + $0xa08] sm:$0xff]
    %v1140 = vld [vmem:[#allocation8 + $0xa10] sm:$0xff]
    %v1141 = vld [vmem:[#allocation8 + $0xa18] sm:$0xff]
    %v1142 = vld [vmem:[#allocation8 + $0xa20] sm:$0xff]
    %v1143 = vld [vmem:[#allocation8 + $0xa28] sm:$0xff]
    %v1144 = vld [vmem:[#allocation8 + $0xa30] sm:$0xff]
    %v1145 = vld [vmem:[#allocation8 + $0xa38] sm:$0xff]
    %v1146 = vld [vmem:[#allocation8 + $0xa40] sm:$0xff]
    %v1147 = vld [vmem:[#allocation8 + $0xa48] sm:$0xff]
    %v1148 = vld [vmem:[#allocation8 + $0xa50] sm:$0xff]
    %v1149 = vld [vmem:[#allocation8 + $0xa58] sm:$0xff]
    %v1150 = vld [vmem:[#allocation8 + $0xa60] sm:$0xff]
    %v1151 = vld [vmem:[#allocation8 + $0xa68] sm:$0xff]
    %v1152 = vld [vmem:[#allocation8 + $0xa70] sm:$0xff]
    %v1153 = vld [vmem:[#allocation8 + $0xa78] sm:$0xff]
    %v1154 = vld [vmem:[#allocation8 + $0xa80] sm:$0xff]
    %v1155 = vld [vmem:[#allocation8 + $0xa88] sm:$0xff]
    %v1156 = vld [vmem:[#allocation8 + $0xa90] sm:$0xff]
    %v1157 = vld [vmem:[#allocation8 + $0xa98] sm:$0xff]
    %v1158 = vld [vmem:[#allocation8 + $0xaa0] sm:$0xff]
    %v1159 = vld [vmem:[#allocation8 + $0xaa8] sm:$0xff]
    %v1160 = vld [vmem:[#allocation8 + $0xab0] sm:$0xff]
    %v1161 = vld [vmem:[#allocation8 + $0xab8] sm:$0xff]
    %v1162 = vld [vmem:[#allocation8 + $0xac0] sm:$0xff]
    %v1163 = vld [vmem:[#allocation8 + $0xac8] sm:$0xff]
    %v1164 = vld [vmem:[#allocation8 + $0xad0] sm:$0xff]
    %v1165 = vld [vmem:[#allocation8 + $0xad8] sm:$0xff]
    %v1166 = vld [vmem:[#allocation8 + $0xae0] sm:$0xff]
    %v1167 = vld [vmem:[#allocation8 + $0xae8] sm:$0xff]
    %v1168 = vld [vmem:[#allocation8 + $0xaf0] sm:$0xff]
    %v1169 = vld [vmem:[#allocation8 + $0xaf8] sm:$0xff]
    %v1170 = vld [vmem:[#allocation8 + $0xb00] sm:$0xff]
    %v1171 = vld [vmem:[#allocation8 + $0xb08] sm:$0xff]
    %v1172 = vld [vmem:[#allocation8 + $0xb10] sm:$0xff]
    %v1173 = vld [vmem:[#allocation8 + $0xb18] sm:$0xff]
    %v1174 = vld [vmem:[#allocation8 + $0xb20] sm:$0xff]
    %v1175 = vld [vmem:[#allocation8 + $0xb28] sm:$0xff]
    %v1176 = vld [vmem:[#allocation8 + $0xb30] sm:$0xff]
    %v1177 = vld [vmem:[#allocation8 + $0xb38] sm:$0xff]
    %v1178 = vld [vmem:[#allocation8 + $0xb40] sm:$0xff]
    %v1179 = vld [vmem:[#allocation8 + $0xb48] sm:$0xff]
    %v1180 = vld [vmem:[#allocation8 + $0xb50] sm:$0xff]
    %v1181 = vld [vmem:[#allocation8 + $0xb58] sm:$0xff]
    %v1182 = vld [vmem:[#allocation8 + $0xb60] sm:$0xff]
    %v1183 = vld [vmem:[#allocation8 + $0xb68] sm:$0xff]
    %v1184 = vld [vmem:[#allocation8 + $0xb70] sm:$0xff]
    %v1185 = vld [vmem:[#allocation8 + $0xb78] sm:$0xff]
    %v1186 = vld [vmem:[#allocation8 + $0xb80] sm:$0xff]
    %v1187 = vld [vmem:[#allocation8 + $0xb88] sm:$0xff]
    %v1188 = vld [vmem:[#allocation8 + $0xb90] sm:$0xff]
    %v1189 = vld [vmem:[#allocation8 + $0xb98] sm:$0xff]
    %v1190 = vld [vmem:[#allocation8 + $0xba0] sm:$0xff]
    %v1191 = vld [vmem:[#allocation8 + $0xba8] sm:$0xff]
    %v1192 = vld [vmem:[#allocation8 + $0xbb0] sm:$0xff]
    %v1193 = vld [vmem:[#allocation8 + $0xbb8] sm:$0xff]
    %v1194 = vld [vmem:[#allocation8 + $0xbc0] sm:$0xff]
    %v1195 = vld [vmem:[#allocation8 + $0xbc8] sm:$0xff]
    %v1196 = vld [vmem:[#allocation8 + $0xbd0] sm:$0xff]
    %v1197 = vld [vmem:[#allocation8 + $0xbd8] sm:$0xff]
    %v1198 = vld [vmem:[#allocation8 + $0xbe0] sm:$0xff]
    %v1199 = vld [vmem:[#allocation8 + $0xbe8] sm:$0xff]
    %v1200 = vld [vmem:[#allocation8 + $0xbf0] sm:$0xff]
    %v1201 = vld [vmem:[#allocation8 + $0xbf8] sm:$0xff]
    %v1202 = vld [vmem:[#allocation8 + $0xc00] sm:$0xff]
    %v1203 = vld [vmem:[#allocation8 + $0xc08] sm:$0xff]
    %v1204 = vld [vmem:[#allocation8 + $0xc10] sm:$0xff]
    %v1205 = vld [vmem:[#allocation8 + $0xc18] sm:$0xff]
    %v1206 = vld [vmem:[#allocation8 + $0xc20] sm:$0xff]
    %v1207 = vld [vmem:[#allocation8 + $0xc28] sm:$0xff]
    %v1208 = vld [vmem:[#allocation8 + $0xc30] sm:$0xff]
    %v1209 = vld [vmem:[#allocation8 + $0xc38] sm:$0xff]
    %v1210 = vld [vmem:[#allocation8 + $0xc40] sm:$0xff]
    %v1211 = vld [vmem:[#allocation8 + $0xc48] sm:$0xff]
    %v1212 = vld [vmem:[#allocation8 + $0xc50] sm:$0xff]
    %v1213 = vld [vmem:[#allocation8 + $0xc58] sm:$0xff]
    %v1214 = vld [vmem:[#allocation8 + $0xc60] sm:$0xff]
    %v1215 = vld [vmem:[#allocation8 + $0xc68] sm:$0xff]
    %v1216 = vld [vmem:[#allocation8 + $0xc70] sm:$0xff]
    %v1217 = vld [vmem:[#allocation8 + $0xc78] sm:$0xff]
    %v1218 = vld [vmem:[#allocation8 + $0xc80] sm:$0xff]
    %v1219 = vld [vmem:[#allocation8 + $0xc88] sm:$0xff]
    %v1220 = vld [vmem:[#allocation8 + $0xc90] sm:$0xff]
    %v1221 = vld [vmem:[#allocation8 + $0xc98] sm:$0xff]
    %v1222 = vld [vmem:[#allocation8 + $0xca0] sm:$0xff]
    %v1223 = vld [vmem:[#allocation8 + $0xca8] sm:$0xff]
    %v1224 = vld [vmem:[#allocation8 + $0xcb0] sm:$0xff]
    %v1225 = vld [vmem:[#allocation8 + $0xcb8] sm:$0xff]
    %v1226 = vld [vmem:[#allocation8 + $0xcc0] sm:$0xff]
    %v1227 = vld [vmem:[#allocation8 + $0xcc8] sm:$0xff]
    %v1228 = vld [vmem:[#allocation8 + $0xcd0] sm:$0xff]
    %v1229 = vld [vmem:[#allocation8 + $0xcd8] sm:$0xff]
    %v1230 = vld [vmem:[#allocation8 + $0xce0] sm:$0xff]
    %v1231 = vld [vmem:[#allocation8 + $0xce8] sm:$0xff]
    %v1232 = vld [vmem:[#allocation8 + $0xcf0] sm:$0xff]
    %v1233 = vld [vmem:[#allocation8 + $0xcf8] sm:$0xff]
    %v1234 = vld [vmem:[#allocation8 + $0xd00] sm:$0xff]
    %v1235 = vld [vmem:[#allocation8 + $0xd08] sm:$0xff]
    %v1236 = vld [vmem:[#allocation8 + $0xd10] sm:$0xff]
    %v1237 = vld [vmem:[#allocation8 + $0xd18] sm:$0xff]
    %v1238 = vld [vmem:[#allocation8 + $0xd20] sm:$0xff]
    %v1239 = vld [vmem:[#allocation8 + $0xd28] sm:$0xff]
    %v1240 = vld [vmem:[#allocation8 + $0xd30] sm:$0xff]
    %v1241 = vld [vmem:[#allocation8 + $0xd38] sm:$0xff]
    %v1242 = vld [vmem:[#allocation8 + $0xd40] sm:$0xff]
    %v1243 = vld [vmem:[#allocation8 + $0xd48] sm:$0xff]
    %v1244 = vld [vmem:[#allocation8 + $0xd50] sm:$0xff]
    %v1245 = vld [vmem:[#allocation8 + $0xd58] sm:$0xff]
    %v1246 = vld [vmem:[#allocation8 + $0xd60] sm:$0xff]
    %v1247 = vld [vmem:[#allocation8 + $0xd68] sm:$0xff]
    %v1248 = vld [vmem:[#allocation8 + $0xd70] sm:$0xff]
    %v1249 = vld [vmem:[#allocation8 + $0xd78] sm:$0xff]
    %v1250 = vld [vmem:[#allocation8 + $0xd80] sm:$0xff]
    %v1251 = vld [vmem:[#allocation8 + $0xd88] sm:$0xff]
    %v1252 = vld [vmem:[#allocation8 + $0xd90] sm:$0xff]
    %v1253 = vld [vmem:[#allocation8 + $0xd98] sm:$0xff]
    %v1254 = vld [vmem:[#allocation8 + $0xda0] sm:$0xff]
    %v1255 = vld [vmem:[#allocation8 + $0xda8] sm:$0xff]
    %v1256 = vld [vmem:[#allocation8 + $0xdb0] sm:$0xff]
    %v1257 = vld [vmem:[#allocation8 + $0xdb8] sm:$0xff]
    %v1258 = vld [vmem:[#allocation8 + $0xdc0] sm:$0xff]
    %v1259 = vld [vmem:[#allocation8 + $0xdc8] sm:$0xff]
    %v1260 = vld [vmem:[#allocation8 + $0xdd0] sm:$0xff]
    %v1261 = vld [vmem:[#allocation8 + $0xdd8] sm:$0xff]
    %v1262 = vld [vmem:[#allocation8 + $0xde0] sm:$0xff]
    %v1263 = vld [vmem:[#allocation8 + $0xde8] sm:$0xff]
    %v1264 = vld [vmem:[#allocation8 + $0xdf0] sm:$0xff]
    %v1265 = vld [vmem:[#allocation8 + $0xdf8] sm:$0xff]
    %v1266 = vld [vmem:[#allocation8 + $0xe00] sm:$0xff]
    %v1267 = vld [vmem:[#allocation8 + $0xe08] sm:$0xff]
    %v1268 = vld [vmem:[#allocation8 + $0xe10] sm:$0xff]
    %v1269 = vld [vmem:[#allocation8 + $0xe18] sm:$0xff]
    %v1270 = vld [vmem:[#allocation8 + $0xe20] sm:$0xff]
    %v1271 = vld [vmem:[#allocation8 + $0xe28] sm:$0xff]
    %v1272 = vld [vmem:[#allocation8 + $0xe30] sm:$0xff]
    %v1273 = vld [vmem:[#allocation8 + $0xe38] sm:$0xff]
    %v1274 = vld [vmem:[#allocation8 + $0xe40] sm:$0xff]
    %v1275 = vld [vmem:[#allocation8 + $0xe48] sm:$0xff]
    %v1276 = vld [vmem:[#allocation8 + $0xe50] sm:$0xff]
    %v1277 = vld [vmem:[#allocation8 + $0xe58] sm:$0xff]
    %v1278 = vld [vmem:[#allocation8 + $0xe60] sm:$0xff]
    %v1279 = vld [vmem:[#allocation8 + $0xe68] sm:$0xff]
    %v1280 = vld [vmem:[#allocation8 + $0xe70] sm:$0xff]
    %v1281 = vld [vmem:[#allocation8 + $0xe78] sm:$0xff]
    %v1282 = vld [vmem:[#allocation8 + $0xe80] sm:$0xff]
    %v1283 = vld [vmem:[#allocation8 + $0xe88] sm:$0xff]
    %v1284 = vld [vmem:[#allocation8 + $0xe90] sm:$0xff]
    %v1285 = vld [vmem:[#allocation8 + $0xe98] sm:$0xff]
    %v1286 = vld [vmem:[#allocation8 + $0xea0] sm:$0xff]
    %v1287 = vld [vmem:[#allocation8 + $0xea8] sm:$0xff]
    %v1288 = vld [vmem:[#allocation8 + $0xeb0] sm:$0xff]
    %v1289 = vld [vmem:[#allocation8 + $0xeb8] sm:$0xff]
    %v1290 = vld [vmem:[#allocation8 + $0xec0] sm:$0xff]
    %v1291 = vld [vmem:[#allocation8 + $0xec8] sm:$0xff]
    %v1292 = vld [vmem:[#allocation8 + $0xed0] sm:$0xff]
    %v1293 = vld [vmem:[#allocation8 + $0xed8] sm:$0xff]
    %v1294 = vld [vmem:[#allocation8 + $0xee0] sm:$0xff]
    %v1295 = vld [vmem:[#allocation8 + $0xee8] sm:$0xff]
    %v1296 = vld [vmem:[#allocation8 + $0xef0] sm:$0xff]
    %v1297 = vld [vmem:[#allocation8 + $0xef8] sm:$0xff]
    %v1298 = vld [vmem:[#allocation8 + $0xf00] sm:$0xff]
    %v1299 = vld [vmem:[#allocation8 + $0xf08] sm:$0xff]
    %v1300 = vld [vmem:[#allocation8 + $0xf10] sm:$0xff]
    %v1301 = vld [vmem:[#allocation8 + $0xf18] sm:$0xff]
    %v1302 = vld [vmem:[#allocation8 + $0xf20] sm:$0xff]
    %v1303 = vld [vmem:[#allocation8 + $0xf28] sm:$0xff]
    %v1304 = vld [vmem:[#allocation8 + $0xf30] sm:$0xff]
    %v1305 = vld [vmem:[#allocation8 + $0xf38] sm:$0xff]
    %v1306 = vld [vmem:[#allocation8 + $0xf40] sm:$0xff]
    %v1307 = vld [vmem:[#allocation8 + $0xf48] sm:$0xff]
    %v1308 = vld [vmem:[#allocation8 + $0xf50] sm:$0xff]
    %v1309 = vld [vmem:[#allocation8 + $0xf58] sm:$0xff]
    %v1310 = vld [vmem:[#allocation8 + $0xf60] sm:$0xff]
    %v1311 = vld [vmem:[#allocation8 + $0xf68] sm:$0xff]
    %v1312 = vld [vmem:[#allocation8 + $0xf70] sm:$0xff]
    %v1313 = vld [vmem:[#allocation8 + $0xf78] sm:$0xff]
    %v1314 = vld [vmem:[#allocation8 + $0xf80] sm:$0xff]
    %v1315 = vld [vmem:[#allocation8 + $0xf88] sm:$0xff]
    %v1316 = vld [vmem:[#allocation8 + $0xf90] sm:$0xff]
    %v1317 = vld [vmem:[#allocation8 + $0xf98] sm:$0xff]
    %v1318 = vld [vmem:[#allocation8 + $0xfa0] sm:$0xff]
    %v1319 = vld [vmem:[#allocation8 + $0xfa8] sm:$0xff]
    %v1320 = vld [vmem:[#allocation8 + $0xfb0] sm:$0xff]
    %v1321 = vld [vmem:[#allocation8 + $0xfb8] sm:$0xff]
    %v1322 = vld [vmem:[#allocation8 + $0xfc0] sm:$0xff]
    %v1323 = vld [vmem:[#allocation8 + $0xfc8] sm:$0xff]
    %v1324 = vld [vmem:[#allocation8 + $0xfd0] sm:$0xff]
    %v1325 = vld [vmem:[#allocation8 + $0xfd8] sm:$0xff]
    %v1326 = vld [vmem:[#allocation8 + $0xfe0] sm:$0xff]
    %v1327 = vld [vmem:[#allocation8 + $0xfe8] sm:$0xff]
    %v1328 = vld [vmem:[#allocation8 + $0xff0] sm:$0xff]
    %v1329 = vld [vmem:[#allocation8 + $0xff8] sm:$0xff]
    %v1330 = vld [vmem:[#allocation10] sm:$0xff]
    %v1332 = vlaneseq
    %v1333 = vshrl.u32 %v1332, 7
    %v1334 = vsub.s32 0, %v1333
    %v1335 = vrot.slane %v1330, %v1334
    %v1336 = vlaneseq
    %v1337 = vshrl.u32 %v1336, 7
    %v1338 = vsub.s32 1, %v1337
    %v1339 = vrot.slane %v1330, %v1338
    %v1340 = vlaneseq
    %v1341 = vshrl.u32 %v1340, 7
    %v1342 = vsub.s32 2, %v1341
    %v1343 = vrot.slane %v1330, %v1342
    %v1344 = vlaneseq
    %v1345 = vshrl.u32 %v1344, 7
    %v1346 = vsub.s32 3, %v1345
    %v1347 = vrot.slane %v1330, %v1346
    %v1348 = vlaneseq
    %v1349 = vshrl.u32 %v1348, 7
    %v1350 = vsub.s32 4, %v1349
    %v1351 = vrot.slane %v1330, %v1350
    %v1352 = vlaneseq
    %v1353 = vshrl.u32 %v1352, 7
    %v1354 = vsub.s32 5, %v1353
    %v1355 = vrot.slane %v1330, %v1354
    %v1356 = vlaneseq
    %v1357 = vshrl.u32 %v1356, 7
    %v1358 = vsub.s32 6, %v1357
    %v1359 = vrot.slane %v1330, %v1358
    %v1360 = vlaneseq
    %v1361 = vshrl.u32 %v1360, 7
    %v1362 = vsub.s32 7, %v1361
    %v1363 = vrot.slane %v1330, %v1362
    %v1884 = vunpack.c.l.b16 %v818
    %v1885 = vunpack.c.h.b16 %v818
    %v1886 = vunpack.c.l.b16 %v819
    %v1887 = vunpack.c.h.b16 %v819
    %v1888 = vunpack.c.l.b16 %v820
    %v1889 = vunpack.c.h.b16 %v820
    %v1890 = vunpack.c.l.b16 %v821
    %v1891 = vunpack.c.h.b16 %v821
    %v1892 = vunpack.c.l.b16 %v822
    %v1893 = vunpack.c.h.b16 %v822
    %v1894 = vunpack.c.l.b16 %v823
    %v1895 = vunpack.c.h.b16 %v823
    %v1896 = vunpack.c.l.b16 %v824
    %v1897 = vunpack.c.h.b16 %v824
    %v1898 = vunpack.c.l.b16 %v825
    %v1899 = vunpack.c.h.b16 %v825
    %v1900 = vunpack.c.l.b16 %v826
    %v1901 = vunpack.c.h.b16 %v826
    %v1902 = vunpack.c.l.b16 %v827
    %v1903 = vunpack.c.h.b16 %v827
    %v1904 = vunpack.c.l.b16 %v828
    %v1905 = vunpack.c.h.b16 %v828
    %v1906 = vunpack.c.l.b16 %v829
    %v1907 = vunpack.c.h.b16 %v829
    %v1908 = vunpack.c.l.b16 %v830
    %v1909 = vunpack.c.h.b16 %v830
    %v1910 = vunpack.c.l.b16 %v831
    %v1911 = vunpack.c.h.b16 %v831
    %v1912 = vunpack.c.l.b16 %v832
    %v1913 = vunpack.c.h.b16 %v832
    %v1914 = vunpack.c.l.b16 %v833
    %v1915 = vunpack.c.h.b16 %v833
    %v1916 = vunpack.c.l.b16 %v834
    %v1917 = vunpack.c.h.b16 %v834
    %v1918 = vunpack.c.l.b16 %v835
    %v1919 = vunpack.c.h.b16 %v835
    %v1920 = vunpack.c.l.b16 %v836
    %v1921 = vunpack.c.h.b16 %v836
    %v1922 = vunpack.c.l.b16 %v837
    %v1923 = vunpack.c.h.b16 %v837
    %v1924 = vunpack.c.l.b16 %v838
    %v1925 = vunpack.c.h.b16 %v838
    %v1926 = vunpack.c.l.b16 %v839
    %v1927 = vunpack.c.h.b16 %v839
    %v1928 = vunpack.c.l.b16 %v840
    %v1929 = vunpack.c.h.b16 %v840
    %v1930 = vunpack.c.l.b16 %v841
    %v1931 = vunpack.c.h.b16 %v841
    %v1932 = vunpack.c.l.b16 %v842
    %v1933 = vunpack.c.h.b16 %v842
    %v1934 = vunpack.c.l.b16 %v843
    %v1935 = vunpack.c.h.b16 %v843
    %v1936 = vunpack.c.l.b16 %v844
    %v1937 = vunpack.c.h.b16 %v844
    %v1938 = vunpack.c.l.b16 %v845
    %v1939 = vunpack.c.h.b16 %v845
    %v1940 = vunpack.c.l.b16 %v846
    %v1941 = vunpack.c.h.b16 %v846
    %v1942 = vunpack.c.l.b16 %v847
    %v1943 = vunpack.c.h.b16 %v847
    %v1944 = vunpack.c.l.b16 %v848
    %v1945 = vunpack.c.h.b16 %v848
    %v1946 = vunpack.c.l.b16 %v849
    %v1947 = vunpack.c.h.b16 %v849
    %v1948 = vunpack.c.l.b16 %v850
    %v1949 = vunpack.c.h.b16 %v850
    %v1950 = vunpack.c.l.b16 %v851
    %v1951 = vunpack.c.h.b16 %v851
    %v1952 = vunpack.c.l.b16 %v852
    %v1953 = vunpack.c.h.b16 %v852
    %v1954 = vunpack.c.l.b16 %v853
    %v1955 = vunpack.c.h.b16 %v853
    %v1956 = vunpack.c.l.b16 %v854
    %v1957 = vunpack.c.h.b16 %v854
    %v1958 = vunpack.c.l.b16 %v855
    %v1959 = vunpack.c.h.b16 %v855
    %v1960 = vunpack.c.l.b16 %v856
    %v1961 = vunpack.c.h.b16 %v856
    %v1962 = vunpack.c.l.b16 %v857
    %v1963 = vunpack.c.h.b16 %v857
    %v1964 = vunpack.c.l.b16 %v858
    %v1965 = vunpack.c.h.b16 %v858
    %v1966 = vunpack.c.l.b16 %v859
    %v1967 = vunpack.c.h.b16 %v859
    %v1968 = vunpack.c.l.b16 %v860
    %v1969 = vunpack.c.h.b16 %v860
    %v1970 = vunpack.c.l.b16 %v861
    %v1971 = vunpack.c.h.b16 %v861
    %v1972 = vunpack.c.l.b16 %v862
    %v1973 = vunpack.c.h.b16 %v862
    %v1974 = vunpack.c.l.b16 %v863
    %v1975 = vunpack.c.h.b16 %v863
    %v1976 = vunpack.c.l.b16 %v864
    %v1977 = vunpack.c.h.b16 %v864
    %v1978 = vunpack.c.l.b16 %v865
    %v1979 = vunpack.c.h.b16 %v865
    %v1980 = vunpack.c.l.b16 %v866
    %v1981 = vunpack.c.h.b16 %v866
    %v1982 = vunpack.c.l.b16 %v867
    %v1983 = vunpack.c.h.b16 %v867
    %v1984 = vunpack.c.l.b16 %v868
    %v1985 = vunpack.c.h.b16 %v868
    %v1986 = vunpack.c.l.b16 %v869
    %v1987 = vunpack.c.h.b16 %v869
    %v1988 = vunpack.c.l.b16 %v870
    %v1989 = vunpack.c.h.b16 %v870
    %v1990 = vunpack.c.l.b16 %v871
    %v1991 = vunpack.c.h.b16 %v871
    %v1992 = vunpack.c.l.b16 %v872
    %v1993 = vunpack.c.h.b16 %v872
    %v1994 = vunpack.c.l.b16 %v873
    %v1995 = vunpack.c.h.b16 %v873
    %v1996 = vunpack.c.l.b16 %v874
    %v1997 = vunpack.c.h.b16 %v874
    %v1998 = vunpack.c.l.b16 %v875
    %v1999 = vunpack.c.h.b16 %v875
    %v2000 = vunpack.c.l.b16 %v876
    %v2001 = vunpack.c.h.b16 %v876
    %v2002 = vunpack.c.l.b16 %v877
    %v2003 = vunpack.c.h.b16 %v877
    %v2004 = vunpack.c.l.b16 %v878
    %v2005 = vunpack.c.h.b16 %v878
    %v2006 = vunpack.c.l.b16 %v879
    %v2007 = vunpack.c.h.b16 %v879
    %v2008 = vunpack.c.l.b16 %v880
    %v2009 = vunpack.c.h.b16 %v880
    %v2010 = vunpack.c.l.b16 %v881
    %v2011 = vunpack.c.h.b16 %v881
    %v2012 = vunpack.c.l.b16 %v882
    %v2013 = vunpack.c.h.b16 %v882
    %v2014 = vunpack.c.l.b16 %v883
    %v2015 = vunpack.c.h.b16 %v883
    %v2016 = vunpack.c.l.b16 %v884
    %v2017 = vunpack.c.h.b16 %v884
    %v2018 = vunpack.c.l.b16 %v885
    %v2019 = vunpack.c.h.b16 %v885
    %v2020 = vunpack.c.l.b16 %v886
    %v2021 = vunpack.c.h.b16 %v886
    %v2022 = vunpack.c.l.b16 %v887
    %v2023 = vunpack.c.h.b16 %v887
    %v2024 = vunpack.c.l.b16 %v888
    %v2025 = vunpack.c.h.b16 %v888
    %v2026 = vunpack.c.l.b16 %v889
    %v2027 = vunpack.c.h.b16 %v889
    %v2028 = vunpack.c.l.b16 %v890
    %v2029 = vunpack.c.h.b16 %v890
    %v2030 = vunpack.c.l.b16 %v891
    %v2031 = vunpack.c.h.b16 %v891
    %v2032 = vunpack.c.l.b16 %v892
    %v2033 = vunpack.c.h.b16 %v892
    %v2034 = vunpack.c.l.b16 %v893
    %v2035 = vunpack.c.h.b16 %v893
    %v2036 = vunpack.c.l.b16 %v894
    %v2037 = vunpack.c.h.b16 %v894
    %v2038 = vunpack.c.l.b16 %v895
    %v2039 = vunpack.c.h.b16 %v895
    %v2040 = vunpack.c.l.b16 %v896
    %v2041 = vunpack.c.h.b16 %v896
    %v2042 = vunpack.c.l.b16 %v897
    %v2043 = vunpack.c.h.b16 %v897
    %v2044 = vunpack.c.l.b16 %v898
    %v2045 = vunpack.c.h.b16 %v898
    %v2046 = vunpack.c.l.b16 %v899
    %v2047 = vunpack.c.h.b16 %v899
    %v2048 = vunpack.c.l.b16 %v900
    %v2049 = vunpack.c.h.b16 %v900
    %v2050 = vunpack.c.l.b16 %v901
    %v2051 = vunpack.c.h.b16 %v901
    %v2052 = vunpack.c.l.b16 %v902
    %v2053 = vunpack.c.h.b16 %v902
    %v2054 = vunpack.c.l.b16 %v903
    %v2055 = vunpack.c.h.b16 %v903
    %v2056 = vunpack.c.l.b16 %v904
    %v2057 = vunpack.c.h.b16 %v904
    %v2058 = vunpack.c.l.b16 %v905
    %v2059 = vunpack.c.h.b16 %v905
    %v2060 = vunpack.c.l.b16 %v906
    %v2061 = vunpack.c.h.b16 %v906
    %v2062 = vunpack.c.l.b16 %v907
    %v2063 = vunpack.c.h.b16 %v907
    %v2064 = vunpack.c.l.b16 %v908
    %v2065 = vunpack.c.h.b16 %v908
    %v2066 = vunpack.c.l.b16 %v909
    %v2067 = vunpack.c.h.b16 %v909
    %v2068 = vunpack.c.l.b16 %v910
    %v2069 = vunpack.c.h.b16 %v910
    %v2070 = vunpack.c.l.b16 %v911
    %v2071 = vunpack.c.h.b16 %v911
    %v2072 = vunpack.c.l.b16 %v912
    %v2073 = vunpack.c.h.b16 %v912
    %v2074 = vunpack.c.l.b16 %v913
    %v2075 = vunpack.c.h.b16 %v913
    %v2076 = vunpack.c.l.b16 %v914
    %v2077 = vunpack.c.h.b16 %v914
    %v2078 = vunpack.c.l.b16 %v915
    %v2079 = vunpack.c.h.b16 %v915
    %v2080 = vunpack.c.l.b16 %v916
    %v2081 = vunpack.c.h.b16 %v916
    %v2082 = vunpack.c.l.b16 %v917
    %v2083 = vunpack.c.h.b16 %v917
    %v2084 = vunpack.c.l.b16 %v918
    %v2085 = vunpack.c.h.b16 %v918
    %v2086 = vunpack.c.l.b16 %v919
    %v2087 = vunpack.c.h.b16 %v919
    %v2088 = vunpack.c.l.b16 %v920
    %v2089 = vunpack.c.h.b16 %v920
    %v2090 = vunpack.c.l.b16 %v921
    %v2091 = vunpack.c.h.b16 %v921
    %v2092 = vunpack.c.l.b16 %v922
    %v2093 = vunpack.c.h.b16 %v922
    %v2094 = vunpack.c.l.b16 %v923
    %v2095 = vunpack.c.h.b16 %v923
    %v2096 = vunpack.c.l.b16 %v924
    %v2097 = vunpack.c.h.b16 %v924
    %v2098 = vunpack.c.l.b16 %v925
    %v2099 = vunpack.c.h.b16 %v925
    %v2100 = vunpack.c.l.b16 %v926
    %v2101 = vunpack.c.h.b16 %v926
    %v2102 = vunpack.c.l.b16 %v927
    %v2103 = vunpack.c.h.b16 %v927
    %v2104 = vunpack.c.l.b16 %v928
    %v2105 = vunpack.c.h.b16 %v928
    %v2106 = vunpack.c.l.b16 %v929
    %v2107 = vunpack.c.h.b16 %v929
    %v2108 = vunpack.c.l.b16 %v930
    %v2109 = vunpack.c.h.b16 %v930
    %v2110 = vunpack.c.l.b16 %v931
    %v2111 = vunpack.c.h.b16 %v931
    %v2112 = vunpack.c.l.b16 %v932
    %v2113 = vunpack.c.h.b16 %v932
    %v2114 = vunpack.c.l.b16 %v933
    %v2115 = vunpack.c.h.b16 %v933
    %v2116 = vunpack.c.l.b16 %v934
    %v2117 = vunpack.c.h.b16 %v934
    %v2118 = vunpack.c.l.b16 %v935
    %v2119 = vunpack.c.h.b16 %v935
    %v2120 = vunpack.c.l.b16 %v936
    %v2121 = vunpack.c.h.b16 %v936
    %v2122 = vunpack.c.l.b16 %v937
    %v2123 = vunpack.c.h.b16 %v937
    %v2124 = vunpack.c.l.b16 %v938
    %v2125 = vunpack.c.h.b16 %v938
    %v2126 = vunpack.c.l.b16 %v939
    %v2127 = vunpack.c.h.b16 %v939
    %v2128 = vunpack.c.l.b16 %v940
    %v2129 = vunpack.c.h.b16 %v940
    %v2130 = vunpack.c.l.b16 %v941
    %v2131 = vunpack.c.h.b16 %v941
    %v2132 = vunpack.c.l.b16 %v942
    %v2133 = vunpack.c.h.b16 %v942
    %v2134 = vunpack.c.l.b16 %v943
    %v2135 = vunpack.c.h.b16 %v943
    %v2136 = vunpack.c.l.b16 %v944
    %v2137 = vunpack.c.h.b16 %v944
    %v2138 = vunpack.c.l.b16 %v945
    %v2139 = vunpack.c.h.b16 %v945
    %v2140 = vunpack.c.l.b16 %v946
    %v2141 = vunpack.c.h.b16 %v946
    %v2142 = vunpack.c.l.b16 %v947
    %v2143 = vunpack.c.h.b16 %v947
    %v2144 = vunpack.c.l.b16 %v948
    %v2145 = vunpack.c.h.b16 %v948
    %v2146 = vunpack.c.l.b16 %v949
    %v2147 = vunpack.c.h.b16 %v949
    %v2148 = vunpack.c.l.b16 %v950
    %v2149 = vunpack.c.h.b16 %v950
    %v2150 = vunpack.c.l.b16 %v951
    %v2151 = vunpack.c.h.b16 %v951
    %v2152 = vunpack.c.l.b16 %v952
    %v2153 = vunpack.c.h.b16 %v952
    %v2154 = vunpack.c.l.b16 %v953
    %v2155 = vunpack.c.h.b16 %v953
    %v2156 = vunpack.c.l.b16 %v954
    %v2157 = vunpack.c.h.b16 %v954
    %v2158 = vunpack.c.l.b16 %v955
    %v2159 = vunpack.c.h.b16 %v955
    %v2160 = vunpack.c.l.b16 %v956
    %v2161 = vunpack.c.h.b16 %v956
    %v2162 = vunpack.c.l.b16 %v957
    %v2163 = vunpack.c.h.b16 %v957
    %v2164 = vunpack.c.l.b16 %v958
    %v2165 = vunpack.c.h.b16 %v958
    %v2166 = vunpack.c.l.b16 %v959
    %v2167 = vunpack.c.h.b16 %v959
    %v2168 = vunpack.c.l.b16 %v960
    %v2169 = vunpack.c.h.b16 %v960
    %v2170 = vunpack.c.l.b16 %v961
    %v2171 = vunpack.c.h.b16 %v961
    %v2172 = vunpack.c.l.b16 %v962
    %v2173 = vunpack.c.h.b16 %v962
    %v2174 = vunpack.c.l.b16 %v963
    %v2175 = vunpack.c.h.b16 %v963
    %v2176 = vunpack.c.l.b16 %v964
    %v2177 = vunpack.c.h.b16 %v964
    %v2178 = vunpack.c.l.b16 %v965
    %v2179 = vunpack.c.h.b16 %v965
    %v2180 = vunpack.c.l.b16 %v966
    %v2181 = vunpack.c.h.b16 %v966
    %v2182 = vunpack.c.l.b16 %v967
    %v2183 = vunpack.c.h.b16 %v967
    %v2184 = vunpack.c.l.b16 %v968
    %v2185 = vunpack.c.h.b16 %v968
    %v2186 = vunpack.c.l.b16 %v969
    %v2187 = vunpack.c.h.b16 %v969
    %v2188 = vunpack.c.l.b16 %v970
    %v2189 = vunpack.c.h.b16 %v970
    %v2190 = vunpack.c.l.b16 %v971
    %v2191 = vunpack.c.h.b16 %v971
    %v2192 = vunpack.c.l.b16 %v972
    %v2193 = vunpack.c.h.b16 %v972
    %v2194 = vunpack.c.l.b16 %v973
    %v2195 = vunpack.c.h.b16 %v973
    %v2196 = vunpack.c.l.b16 %v974
    %v2197 = vunpack.c.h.b16 %v974
    %v2198 = vunpack.c.l.b16 %v975
    %v2199 = vunpack.c.h.b16 %v975
    %v2200 = vunpack.c.l.b16 %v976
    %v2201 = vunpack.c.h.b16 %v976
    %v2202 = vunpack.c.l.b16 %v977
    %v2203 = vunpack.c.h.b16 %v977
    %v2204 = vunpack.c.l.b16 %v978
    %v2205 = vunpack.c.h.b16 %v978
    %v2206 = vunpack.c.l.b16 %v979
    %v2207 = vunpack.c.h.b16 %v979
    %v2208 = vunpack.c.l.b16 %v980
    %v2209 = vunpack.c.h.b16 %v980
    %v2210 = vunpack.c.l.b16 %v981
    %v2211 = vunpack.c.h.b16 %v981
    %v2212 = vunpack.c.l.b16 %v982
    %v2213 = vunpack.c.h.b16 %v982
    %v2214 = vunpack.c.l.b16 %v983
    %v2215 = vunpack.c.h.b16 %v983
    %v2216 = vunpack.c.l.b16 %v984
    %v2217 = vunpack.c.h.b16 %v984
    %v2218 = vunpack.c.l.b16 %v985
    %v2219 = vunpack.c.h.b16 %v985
    %v2220 = vunpack.c.l.b16 %v986
    %v2221 = vunpack.c.h.b16 %v986
    %v2222 = vunpack.c.l.b16 %v987
    %v2223 = vunpack.c.h.b16 %v987
    %v2224 = vunpack.c.l.b16 %v988
    %v2225 = vunpack.c.h.b16 %v988
    %v2226 = vunpack.c.l.b16 %v989
    %v2227 = vunpack.c.h.b16 %v989
    %v2228 = vunpack.c.l.b16 %v990
    %v2229 = vunpack.c.h.b16 %v990
    %v2230 = vunpack.c.l.b16 %v991
    %v2231 = vunpack.c.h.b16 %v991
    %v2232 = vunpack.c.l.b16 %v992
    %v2233 = vunpack.c.h.b16 %v992
    %v2234 = vunpack.c.l.b16 %v993
    %v2235 = vunpack.c.h.b16 %v993
    %v2236 = vunpack.c.l.b16 %v994
    %v2237 = vunpack.c.h.b16 %v994
    %v2238 = vunpack.c.l.b16 %v995
    %v2239 = vunpack.c.h.b16 %v995
    %v2240 = vunpack.c.l.b16 %v996
    %v2241 = vunpack.c.h.b16 %v996
    %v2242 = vunpack.c.l.b16 %v997
    %v2243 = vunpack.c.h.b16 %v997
    %v2244 = vunpack.c.l.b16 %v998
    %v2245 = vunpack.c.h.b16 %v998
    %v2246 = vunpack.c.l.b16 %v999
    %v2247 = vunpack.c.h.b16 %v999
    %v2248 = vunpack.c.l.b16 %v1000
    %v2249 = vunpack.c.h.b16 %v1000
    %v2250 = vunpack.c.l.b16 %v1001
    %v2251 = vunpack.c.h.b16 %v1001
    %v2252 = vunpack.c.l.b16 %v1002
    %v2253 = vunpack.c.h.b16 %v1002
    %v2254 = vunpack.c.l.b16 %v1003
    %v2255 = vunpack.c.h.b16 %v1003
    %v2256 = vunpack.c.l.b16 %v1004
    %v2257 = vunpack.c.h.b16 %v1004
    %v2258 = vunpack.c.l.b16 %v1005
    %v2259 = vunpack.c.h.b16 %v1005
    %v2260 = vunpack.c.l.b16 %v1006
    %v2261 = vunpack.c.h.b16 %v1006
    %v2262 = vunpack.c.l.b16 %v1007
    %v2263 = vunpack.c.h.b16 %v1007
    %v2264 = vunpack.c.l.b16 %v1008
    %v2265 = vunpack.c.h.b16 %v1008
    %v2266 = vunpack.c.l.b16 %v1009
    %v2267 = vunpack.c.h.b16 %v1009
    %v2268 = vunpack.c.l.b16 %v1010
    %v2269 = vunpack.c.h.b16 %v1010
    %v2270 = vunpack.c.l.b16 %v1011
    %v2271 = vunpack.c.h.b16 %v1011
    %v2272 = vunpack.c.l.b16 %v1012
    %v2273 = vunpack.c.h.b16 %v1012
    %v2274 = vunpack.c.l.b16 %v1013
    %v2275 = vunpack.c.h.b16 %v1013
    %v2276 = vunpack.c.l.b16 %v1014
    %v2277 = vunpack.c.h.b16 %v1014
    %v2278 = vunpack.c.l.b16 %v1015
    %v2279 = vunpack.c.h.b16 %v1015
    %v2280 = vunpack.c.l.b16 %v1016
    %v2281 = vunpack.c.h.b16 %v1016
    %v2282 = vunpack.c.l.b16 %v1017
    %v2283 = vunpack.c.h.b16 %v1017
    %v2284 = vunpack.c.l.b16 %v1018
    %v2285 = vunpack.c.h.b16 %v1018
    %v2286 = vunpack.c.l.b16 %v1019
    %v2287 = vunpack.c.h.b16 %v1019
    %v2288 = vunpack.c.l.b16 %v1020
    %v2289 = vunpack.c.h.b16 %v1020
    %v2290 = vunpack.c.l.b16 %v1021
    %v2291 = vunpack.c.h.b16 %v1021
    %v2292 = vunpack.c.l.b16 %v1022
    %v2293 = vunpack.c.h.b16 %v1022
    %v2294 = vunpack.c.l.b16 %v1023
    %v2295 = vunpack.c.h.b16 %v1023
    %v2296 = vunpack.c.l.b16 %v1024
    %v2297 = vunpack.c.h.b16 %v1024
    %v2298 = vunpack.c.l.b16 %v1025
    %v2299 = vunpack.c.h.b16 %v1025
    %v2300 = vunpack.c.l.b16 %v1026
    %v2301 = vunpack.c.h.b16 %v1026
    %v2302 = vunpack.c.l.b16 %v1027
    %v2303 = vunpack.c.h.b16 %v1027
    %v2304 = vunpack.c.l.b16 %v1028
    %v2305 = vunpack.c.h.b16 %v1028
    %v2306 = vunpack.c.l.b16 %v1029
    %v2307 = vunpack.c.h.b16 %v1029
    %v2308 = vunpack.c.l.b16 %v1030
    %v2309 = vunpack.c.h.b16 %v1030
    %v2310 = vunpack.c.l.b16 %v1031
    %v2311 = vunpack.c.h.b16 %v1031
    %v2312 = vunpack.c.l.b16 %v1032
    %v2313 = vunpack.c.h.b16 %v1032
    %v2314 = vunpack.c.l.b16 %v1033
    %v2315 = vunpack.c.h.b16 %v1033
    %v2316 = vunpack.c.l.b16 %v1034
    %v2317 = vunpack.c.h.b16 %v1034
    %v2318 = vunpack.c.l.b16 %v1035
    %v2319 = vunpack.c.h.b16 %v1035
    %v2320 = vunpack.c.l.b16 %v1036
    %v2321 = vunpack.c.h.b16 %v1036
    %v2322 = vunpack.c.l.b16 %v1037
    %v2323 = vunpack.c.h.b16 %v1037
    %v2324 = vunpack.c.l.b16 %v1038
    %v2325 = vunpack.c.h.b16 %v1038
    %v2326 = vunpack.c.l.b16 %v1039
    %v2327 = vunpack.c.h.b16 %v1039
    %v2328 = vunpack.c.l.b16 %v1040
    %v2329 = vunpack.c.h.b16 %v1040
    %v2330 = vunpack.c.l.b16 %v1041
    %v2331 = vunpack.c.h.b16 %v1041
    %v2332 = vunpack.c.l.b16 %v1042
    %v2333 = vunpack.c.h.b16 %v1042
    %v2334 = vunpack.c.l.b16 %v1043
    %v2335 = vunpack.c.h.b16 %v1043
    %v2336 = vunpack.c.l.b16 %v1044
    %v2337 = vunpack.c.h.b16 %v1044
    %v2338 = vunpack.c.l.b16 %v1045
    %v2339 = vunpack.c.h.b16 %v1045
    %v2340 = vunpack.c.l.b16 %v1046
    %v2341 = vunpack.c.h.b16 %v1046
    %v2342 = vunpack.c.l.b16 %v1047
    %v2343 = vunpack.c.h.b16 %v1047
    %v2344 = vunpack.c.l.b16 %v1048
    %v2345 = vunpack.c.h.b16 %v1048
    %v2346 = vunpack.c.l.b16 %v1049
    %v2347 = vunpack.c.h.b16 %v1049
    %v2348 = vunpack.c.l.b16 %v1050
    %v2349 = vunpack.c.h.b16 %v1050
    %v2350 = vunpack.c.l.b16 %v1051
    %v2351 = vunpack.c.h.b16 %v1051
    %v2352 = vunpack.c.l.b16 %v1052
    %v2353 = vunpack.c.h.b16 %v1052
    %v2354 = vunpack.c.l.b16 %v1053
    %v2355 = vunpack.c.h.b16 %v1053
    %v2356 = vunpack.c.l.b16 %v1054
    %v2357 = vunpack.c.h.b16 %v1054
    %v2358 = vunpack.c.l.b16 %v1055
    %v2359 = vunpack.c.h.b16 %v1055
    %v2360 = vunpack.c.l.b16 %v1056
    %v2361 = vunpack.c.h.b16 %v1056
    %v2362 = vunpack.c.l.b16 %v1057
    %v2363 = vunpack.c.h.b16 %v1057
    %v2364 = vunpack.c.l.b16 %v1058
    %v2365 = vunpack.c.h.b16 %v1058
    %v2366 = vunpack.c.l.b16 %v1059
    %v2367 = vunpack.c.h.b16 %v1059
    %v2368 = vunpack.c.l.b16 %v1060
    %v2369 = vunpack.c.h.b16 %v1060
    %v2370 = vunpack.c.l.b16 %v1061
    %v2371 = vunpack.c.h.b16 %v1061
    %v2372 = vunpack.c.l.b16 %v1062
    %v2373 = vunpack.c.h.b16 %v1062
    %v2374 = vunpack.c.l.b16 %v1063
    %v2375 = vunpack.c.h.b16 %v1063
    %v2376 = vunpack.c.l.b16 %v1064
    %v2377 = vunpack.c.h.b16 %v1064
    %v2378 = vunpack.c.l.b16 %v1065
    %v2379 = vunpack.c.h.b16 %v1065
    %v2380 = vunpack.c.l.b16 %v1066
    %v2381 = vunpack.c.h.b16 %v1066
    %v2382 = vunpack.c.l.b16 %v1067
    %v2383 = vunpack.c.h.b16 %v1067
    %v2384 = vunpack.c.l.b16 %v1068
    %v2385 = vunpack.c.h.b16 %v1068
    %v2386 = vunpack.c.l.b16 %v1069
    %v2387 = vunpack.c.h.b16 %v1069
    %v2388 = vunpack.c.l.b16 %v1070
    %v2389 = vunpack.c.h.b16 %v1070
    %v2390 = vunpack.c.l.b16 %v1071
    %v2391 = vunpack.c.h.b16 %v1071
    %v2392 = vunpack.c.l.b16 %v1072
    %v2393 = vunpack.c.h.b16 %v1072
    %v2394 = vunpack.c.l.b16 %v1073
    %v2395 = vunpack.c.h.b16 %v1073
    %v2396 = vunpack.c.l.b16 %v1074
    %v2397 = vunpack.c.h.b16 %v1074
    %v2398 = vunpack.c.l.b16 %v1075
    %v2399 = vunpack.c.h.b16 %v1075
    %v2400 = vunpack.c.l.b16 %v1076
    %v2401 = vunpack.c.h.b16 %v1076
    %v2402 = vunpack.c.l.b16 %v1077
    %v2403 = vunpack.c.h.b16 %v1077
    %v2404 = vunpack.c.l.b16 %v1078
    %v2405 = vunpack.c.h.b16 %v1078
    %v2406 = vunpack.c.l.b16 %v1079
    %v2407 = vunpack.c.h.b16 %v1079
    %v2408 = vunpack.c.l.b16 %v1080
    %v2409 = vunpack.c.h.b16 %v1080
    %v2410 = vunpack.c.l.b16 %v1081
    %v2411 = vunpack.c.h.b16 %v1081
    %v2412 = vunpack.c.l.b16 %v1082
    %v2413 = vunpack.c.h.b16 %v1082
    %v2414 = vunpack.c.l.b16 %v1083
    %v2415 = vunpack.c.h.b16 %v1083
    %v2416 = vunpack.c.l.b16 %v1084
    %v2417 = vunpack.c.h.b16 %v1084
    %v2418 = vunpack.c.l.b16 %v1085
    %v2419 = vunpack.c.h.b16 %v1085
    %v2420 = vunpack.c.l.b16 %v1086
    %v2421 = vunpack.c.h.b16 %v1086
    %v2422 = vunpack.c.l.b16 %v1087
    %v2423 = vunpack.c.h.b16 %v1087
    %v2424 = vunpack.c.l.b16 %v1088
    %v2425 = vunpack.c.h.b16 %v1088
    %v2426 = vunpack.c.l.b16 %v1089
    %v2427 = vunpack.c.h.b16 %v1089
    %v2428 = vunpack.c.l.b16 %v1090
    %v2429 = vunpack.c.h.b16 %v1090
    %v2430 = vunpack.c.l.b16 %v1091
    %v2431 = vunpack.c.h.b16 %v1091
    %v2432 = vunpack.c.l.b16 %v1092
    %v2433 = vunpack.c.h.b16 %v1092
    %v2434 = vunpack.c.l.b16 %v1093
    %v2435 = vunpack.c.h.b16 %v1093
    %v2436 = vunpack.c.l.b16 %v1094
    %v2437 = vunpack.c.h.b16 %v1094
    %v2438 = vunpack.c.l.b16 %v1095
    %v2439 = vunpack.c.h.b16 %v1095
    %v2440 = vunpack.c.l.b16 %v1096
    %v2441 = vunpack.c.h.b16 %v1096
    %v2442 = vunpack.c.l.b16 %v1097
    %v2443 = vunpack.c.h.b16 %v1097
    %v2444 = vunpack.c.l.b16 %v1098
    %v2445 = vunpack.c.h.b16 %v1098
    %v2446 = vunpack.c.l.b16 %v1099
    %v2447 = vunpack.c.h.b16 %v1099
    %v2448 = vunpack.c.l.b16 %v1100
    %v2449 = vunpack.c.h.b16 %v1100
    %v2450 = vunpack.c.l.b16 %v1101
    %v2451 = vunpack.c.h.b16 %v1101
    %v2452 = vunpack.c.l.b16 %v1102
    %v2453 = vunpack.c.h.b16 %v1102
    %v2454 = vunpack.c.l.b16 %v1103
    %v2455 = vunpack.c.h.b16 %v1103
    %v2456 = vunpack.c.l.b16 %v1104
    %v2457 = vunpack.c.h.b16 %v1104
    %v2458 = vunpack.c.l.b16 %v1105
    %v2459 = vunpack.c.h.b16 %v1105
    %v2460 = vunpack.c.l.b16 %v1106
    %v2461 = vunpack.c.h.b16 %v1106
    %v2462 = vunpack.c.l.b16 %v1107
    %v2463 = vunpack.c.h.b16 %v1107
    %v2464 = vunpack.c.l.b16 %v1108
    %v2465 = vunpack.c.h.b16 %v1108
    %v2466 = vunpack.c.l.b16 %v1109
    %v2467 = vunpack.c.h.b16 %v1109
    %v2468 = vunpack.c.l.b16 %v1110
    %v2469 = vunpack.c.h.b16 %v1110
    %v2470 = vunpack.c.l.b16 %v1111
    %v2471 = vunpack.c.h.b16 %v1111
    %v2472 = vunpack.c.l.b16 %v1112
    %v2473 = vunpack.c.h.b16 %v1112
    %v2474 = vunpack.c.l.b16 %v1113
    %v2475 = vunpack.c.h.b16 %v1113
    %v2476 = vunpack.c.l.b16 %v1114
    %v2477 = vunpack.c.h.b16 %v1114
    %v2478 = vunpack.c.l.b16 %v1115
    %v2479 = vunpack.c.h.b16 %v1115
    %v2480 = vunpack.c.l.b16 %v1116
    %v2481 = vunpack.c.h.b16 %v1116
    %v2482 = vunpack.c.l.b16 %v1117
    %v2483 = vunpack.c.h.b16 %v1117
    %v2484 = vunpack.c.l.b16 %v1118
    %v2485 = vunpack.c.h.b16 %v1118
    %v2486 = vunpack.c.l.b16 %v1119
    %v2487 = vunpack.c.h.b16 %v1119
    %v2488 = vunpack.c.l.b16 %v1120
    %v2489 = vunpack.c.h.b16 %v1120
    %v2490 = vunpack.c.l.b16 %v1121
    %v2491 = vunpack.c.h.b16 %v1121
    %v2492 = vunpack.c.l.b16 %v1122
    %v2493 = vunpack.c.h.b16 %v1122
    %v2494 = vunpack.c.l.b16 %v1123
    %v2495 = vunpack.c.h.b16 %v1123
    %v2496 = vunpack.c.l.b16 %v1124
    %v2497 = vunpack.c.h.b16 %v1124
    %v2498 = vunpack.c.l.b16 %v1125
    %v2499 = vunpack.c.h.b16 %v1125
    %v2500 = vunpack.c.l.b16 %v1126
    %v2501 = vunpack.c.h.b16 %v1126
    %v2502 = vunpack.c.l.b16 %v1127
    %v2503 = vunpack.c.h.b16 %v1127
    %v2504 = vunpack.c.l.b16 %v1128
    %v2505 = vunpack.c.h.b16 %v1128
    %v2506 = vunpack.c.l.b16 %v1129
    %v2507 = vunpack.c.h.b16 %v1129
    %v2508 = vunpack.c.l.b16 %v1130
    %v2509 = vunpack.c.h.b16 %v1130
    %v2510 = vunpack.c.l.b16 %v1131
    %v2511 = vunpack.c.h.b16 %v1131
    %v2512 = vunpack.c.l.b16 %v1132
    %v2513 = vunpack.c.h.b16 %v1132
    %v2514 = vunpack.c.l.b16 %v1133
    %v2515 = vunpack.c.h.b16 %v1133
    %v2516 = vunpack.c.l.b16 %v1134
    %v2517 = vunpack.c.h.b16 %v1134
    %v2518 = vunpack.c.l.b16 %v1135
    %v2519 = vunpack.c.h.b16 %v1135
    %v2520 = vunpack.c.l.b16 %v1136
    %v2521 = vunpack.c.h.b16 %v1136
    %v2522 = vunpack.c.l.b16 %v1137
    %v2523 = vunpack.c.h.b16 %v1137
    %v2524 = vunpack.c.l.b16 %v1138
    %v2525 = vunpack.c.h.b16 %v1138
    %v2526 = vunpack.c.l.b16 %v1139
    %v2527 = vunpack.c.h.b16 %v1139
    %v2528 = vunpack.c.l.b16 %v1140
    %v2529 = vunpack.c.h.b16 %v1140
    %v2530 = vunpack.c.l.b16 %v1141
    %v2531 = vunpack.c.h.b16 %v1141
    %v2532 = vunpack.c.l.b16 %v1142
    %v2533 = vunpack.c.h.b16 %v1142
    %v2534 = vunpack.c.l.b16 %v1143
    %v2535 = vunpack.c.h.b16 %v1143
    %v2536 = vunpack.c.l.b16 %v1144
    %v2537 = vunpack.c.h.b16 %v1144
    %v2538 = vunpack.c.l.b16 %v1145
    %v2539 = vunpack.c.h.b16 %v1145
    %v2540 = vunpack.c.l.b16 %v1146
    %v2541 = vunpack.c.h.b16 %v1146
    %v2542 = vunpack.c.l.b16 %v1147
    %v2543 = vunpack.c.h.b16 %v1147
    %v2544 = vunpack.c.l.b16 %v1148
    %v2545 = vunpack.c.h.b16 %v1148
    %v2546 = vunpack.c.l.b16 %v1149
    %v2547 = vunpack.c.h.b16 %v1149
    %v2548 = vunpack.c.l.b16 %v1150
    %v2549 = vunpack.c.h.b16 %v1150
    %v2550 = vunpack.c.l.b16 %v1151
    %v2551 = vunpack.c.h.b16 %v1151
    %v2552 = vunpack.c.l.b16 %v1152
    %v2553 = vunpack.c.h.b16 %v1152
    %v2554 = vunpack.c.l.b16 %v1153
    %v2555 = vunpack.c.h.b16 %v1153
    %v2556 = vunpack.c.l.b16 %v1154
    %v2557 = vunpack.c.h.b16 %v1154
    %v2558 = vunpack.c.l.b16 %v1155
    %v2559 = vunpack.c.h.b16 %v1155
    %v2560 = vunpack.c.l.b16 %v1156
    %v2561 = vunpack.c.h.b16 %v1156
    %v2562 = vunpack.c.l.b16 %v1157
    %v2563 = vunpack.c.h.b16 %v1157
    %v2564 = vunpack.c.l.b16 %v1158
    %v2565 = vunpack.c.h.b16 %v1158
    %v2566 = vunpack.c.l.b16 %v1159
    %v2567 = vunpack.c.h.b16 %v1159
    %v2568 = vunpack.c.l.b16 %v1160
    %v2569 = vunpack.c.h.b16 %v1160
    %v2570 = vunpack.c.l.b16 %v1161
    %v2571 = vunpack.c.h.b16 %v1161
    %v2572 = vunpack.c.l.b16 %v1162
    %v2573 = vunpack.c.h.b16 %v1162
    %v2574 = vunpack.c.l.b16 %v1163
    %v2575 = vunpack.c.h.b16 %v1163
    %v2576 = vunpack.c.l.b16 %v1164
    %v2577 = vunpack.c.h.b16 %v1164
    %v2578 = vunpack.c.l.b16 %v1165
    %v2579 = vunpack.c.h.b16 %v1165
    %v2580 = vunpack.c.l.b16 %v1166
    %v2581 = vunpack.c.h.b16 %v1166
    %v2582 = vunpack.c.l.b16 %v1167
    %v2583 = vunpack.c.h.b16 %v1167
    %v2584 = vunpack.c.l.b16 %v1168
    %v2585 = vunpack.c.h.b16 %v1168
    %v2586 = vunpack.c.l.b16 %v1169
    %v2587 = vunpack.c.h.b16 %v1169
    %v2588 = vunpack.c.l.b16 %v1170
    %v2589 = vunpack.c.h.b16 %v1170
    %v2590 = vunpack.c.l.b16 %v1171
    %v2591 = vunpack.c.h.b16 %v1171
    %v2592 = vunpack.c.l.b16 %v1172
    %v2593 = vunpack.c.h.b16 %v1172
    %v2594 = vunpack.c.l.b16 %v1173
    %v2595 = vunpack.c.h.b16 %v1173
    %v2596 = vunpack.c.l.b16 %v1174
    %v2597 = vunpack.c.h.b16 %v1174
    %v2598 = vunpack.c.l.b16 %v1175
    %v2599 = vunpack.c.h.b16 %v1175
    %v2600 = vunpack.c.l.b16 %v1176
    %v2601 = vunpack.c.h.b16 %v1176
    %v2602 = vunpack.c.l.b16 %v1177
    %v2603 = vunpack.c.h.b16 %v1177
    %v2604 = vunpack.c.l.b16 %v1178
    %v2605 = vunpack.c.h.b16 %v1178
    %v2606 = vunpack.c.l.b16 %v1179
    %v2607 = vunpack.c.h.b16 %v1179
    %v2608 = vunpack.c.l.b16 %v1180
    %v2609 = vunpack.c.h.b16 %v1180
    %v2610 = vunpack.c.l.b16 %v1181
    %v2611 = vunpack.c.h.b16 %v1181
    %v2612 = vunpack.c.l.b16 %v1182
    %v2613 = vunpack.c.h.b16 %v1182
    %v2614 = vunpack.c.l.b16 %v1183
    %v2615 = vunpack.c.h.b16 %v1183
    %v2616 = vunpack.c.l.b16 %v1184
    %v2617 = vunpack.c.h.b16 %v1184
    %v2618 = vunpack.c.l.b16 %v1185
    %v2619 = vunpack.c.h.b16 %v1185
    %v2620 = vunpack.c.l.b16 %v1186
    %v2621 = vunpack.c.h.b16 %v1186
    %v2622 = vunpack.c.l.b16 %v1187
    %v2623 = vunpack.c.h.b16 %v1187
    %v2624 = vunpack.c.l.b16 %v1188
    %v2625 = vunpack.c.h.b16 %v1188
    %v2626 = vunpack.c.l.b16 %v1189
    %v2627 = vunpack.c.h.b16 %v1189
    %v2628 = vunpack.c.l.b16 %v1190
    %v2629 = vunpack.c.h.b16 %v1190
    %v2630 = vunpack.c.l.b16 %v1191
    %v2631 = vunpack.c.h.b16 %v1191
    %v2632 = vunpack.c.l.b16 %v1192
    %v2633 = vunpack.c.h.b16 %v1192
    %v2634 = vunpack.c.l.b16 %v1193
    %v2635 = vunpack.c.h.b16 %v1193
    %v2636 = vunpack.c.l.b16 %v1194
    %v2637 = vunpack.c.h.b16 %v1194
    %v2638 = vunpack.c.l.b16 %v1195
    %v2639 = vunpack.c.h.b16 %v1195
    %v2640 = vunpack.c.l.b16 %v1196
    %v2641 = vunpack.c.h.b16 %v1196
    %v2642 = vunpack.c.l.b16 %v1197
    %v2643 = vunpack.c.h.b16 %v1197
    %v2644 = vunpack.c.l.b16 %v1198
    %v2645 = vunpack.c.h.b16 %v1198
    %v2646 = vunpack.c.l.b16 %v1199
    %v2647 = vunpack.c.h.b16 %v1199
    %v2648 = vunpack.c.l.b16 %v1200
    %v2649 = vunpack.c.h.b16 %v1200
    %v2650 = vunpack.c.l.b16 %v1201
    %v2651 = vunpack.c.h.b16 %v1201
    %v2652 = vunpack.c.l.b16 %v1202
    %v2653 = vunpack.c.h.b16 %v1202
    %v2654 = vunpack.c.l.b16 %v1203
    %v2655 = vunpack.c.h.b16 %v1203
    %v2656 = vunpack.c.l.b16 %v1204
    %v2657 = vunpack.c.h.b16 %v1204
    %v2658 = vunpack.c.l.b16 %v1205
    %v2659 = vunpack.c.h.b16 %v1205
    %v2660 = vunpack.c.l.b16 %v1206
    %v2661 = vunpack.c.h.b16 %v1206
    %v2662 = vunpack.c.l.b16 %v1207
    %v2663 = vunpack.c.h.b16 %v1207
    %v2664 = vunpack.c.l.b16 %v1208
    %v2665 = vunpack.c.h.b16 %v1208
    %v2666 = vunpack.c.l.b16 %v1209
    %v2667 = vunpack.c.h.b16 %v1209
    %v2668 = vunpack.c.l.b16 %v1210
    %v2669 = vunpack.c.h.b16 %v1210
    %v2670 = vunpack.c.l.b16 %v1211
    %v2671 = vunpack.c.h.b16 %v1211
    %v2672 = vunpack.c.l.b16 %v1212
    %v2673 = vunpack.c.h.b16 %v1212
    %v2674 = vunpack.c.l.b16 %v1213
    %v2675 = vunpack.c.h.b16 %v1213
    %v2676 = vunpack.c.l.b16 %v1214
    %v2677 = vunpack.c.h.b16 %v1214
    %v2678 = vunpack.c.l.b16 %v1215
    %v2679 = vunpack.c.h.b16 %v1215
    %v2680 = vunpack.c.l.b16 %v1216
    %v2681 = vunpack.c.h.b16 %v1216
    %v2682 = vunpack.c.l.b16 %v1217
    %v2683 = vunpack.c.h.b16 %v1217
    %v2684 = vunpack.c.l.b16 %v1218
    %v2685 = vunpack.c.h.b16 %v1218
    %v2686 = vunpack.c.l.b16 %v1219
    %v2687 = vunpack.c.h.b16 %v1219
    %v2688 = vunpack.c.l.b16 %v1220
    %v2689 = vunpack.c.h.b16 %v1220
    %v2690 = vunpack.c.l.b16 %v1221
    %v2691 = vunpack.c.h.b16 %v1221
    %v2692 = vunpack.c.l.b16 %v1222
    %v2693 = vunpack.c.h.b16 %v1222
    %v2694 = vunpack.c.l.b16 %v1223
    %v2695 = vunpack.c.h.b16 %v1223
    %v2696 = vunpack.c.l.b16 %v1224
    %v2697 = vunpack.c.h.b16 %v1224
    %v2698 = vunpack.c.l.b16 %v1225
    %v2699 = vunpack.c.h.b16 %v1225
    %v2700 = vunpack.c.l.b16 %v1226
    %v2701 = vunpack.c.h.b16 %v1226
    %v2702 = vunpack.c.l.b16 %v1227
    %v2703 = vunpack.c.h.b16 %v1227
    %v2704 = vunpack.c.l.b16 %v1228
    %v2705 = vunpack.c.h.b16 %v1228
    %v2706 = vunpack.c.l.b16 %v1229
    %v2707 = vunpack.c.h.b16 %v1229
    %v2708 = vunpack.c.l.b16 %v1230
    %v2709 = vunpack.c.h.b16 %v1230
    %v2710 = vunpack.c.l.b16 %v1231
    %v2711 = vunpack.c.h.b16 %v1231
    %v2712 = vunpack.c.l.b16 %v1232
    %v2713 = vunpack.c.h.b16 %v1232
    %v2714 = vunpack.c.l.b16 %v1233
    %v2715 = vunpack.c.h.b16 %v1233
    %v2716 = vunpack.c.l.b16 %v1234
    %v2717 = vunpack.c.h.b16 %v1234
    %v2718 = vunpack.c.l.b16 %v1235
    %v2719 = vunpack.c.h.b16 %v1235
    %v2720 = vunpack.c.l.b16 %v1236
    %v2721 = vunpack.c.h.b16 %v1236
    %v2722 = vunpack.c.l.b16 %v1237
    %v2723 = vunpack.c.h.b16 %v1237
    %v2724 = vunpack.c.l.b16 %v1238
    %v2725 = vunpack.c.h.b16 %v1238
    %v2726 = vunpack.c.l.b16 %v1239
    %v2727 = vunpack.c.h.b16 %v1239
    %v2728 = vunpack.c.l.b16 %v1240
    %v2729 = vunpack.c.h.b16 %v1240
    %v2730 = vunpack.c.l.b16 %v1241
    %v2731 = vunpack.c.h.b16 %v1241
    %v2732 = vunpack.c.l.b16 %v1242
    %v2733 = vunpack.c.h.b16 %v1242
    %v2734 = vunpack.c.l.b16 %v1243
    %v2735 = vunpack.c.h.b16 %v1243
    %v2736 = vunpack.c.l.b16 %v1244
    %v2737 = vunpack.c.h.b16 %v1244
    %v2738 = vunpack.c.l.b16 %v1245
    %v2739 = vunpack.c.h.b16 %v1245
    %v2740 = vunpack.c.l.b16 %v1246
    %v2741 = vunpack.c.h.b16 %v1246
    %v2742 = vunpack.c.l.b16 %v1247
    %v2743 = vunpack.c.h.b16 %v1247
    %v2744 = vunpack.c.l.b16 %v1248
    %v2745 = vunpack.c.h.b16 %v1248
    %v2746 = vunpack.c.l.b16 %v1249
    %v2747 = vunpack.c.h.b16 %v1249
    %v2748 = vunpack.c.l.b16 %v1250
    %v2749 = vunpack.c.h.b16 %v1250
    %v2750 = vunpack.c.l.b16 %v1251
    %v2751 = vunpack.c.h.b16 %v1251
    %v2752 = vunpack.c.l.b16 %v1252
    %v2753 = vunpack.c.h.b16 %v1252
    %v2754 = vunpack.c.l.b16 %v1253
    %v2755 = vunpack.c.h.b16 %v1253
    %v2756 = vunpack.c.l.b16 %v1254
    %v2757 = vunpack.c.h.b16 %v1254
    %v2758 = vunpack.c.l.b16 %v1255
    %v2759 = vunpack.c.h.b16 %v1255
    %v2760 = vunpack.c.l.b16 %v1256
    %v2761 = vunpack.c.h.b16 %v1256
    %v2762 = vunpack.c.l.b16 %v1257
    %v2763 = vunpack.c.h.b16 %v1257
    %v2764 = vunpack.c.l.b16 %v1258
    %v2765 = vunpack.c.h.b16 %v1258
    %v2766 = vunpack.c.l.b16 %v1259
    %v2767 = vunpack.c.h.b16 %v1259
    %v2768 = vunpack.c.l.b16 %v1260
    %v2769 = vunpack.c.h.b16 %v1260
    %v2770 = vunpack.c.l.b16 %v1261
    %v2771 = vunpack.c.h.b16 %v1261
    %v2772 = vunpack.c.l.b16 %v1262
    %v2773 = vunpack.c.h.b16 %v1262
    %v2774 = vunpack.c.l.b16 %v1263
    %v2775 = vunpack.c.h.b16 %v1263
    %v2776 = vunpack.c.l.b16 %v1264
    %v2777 = vunpack.c.h.b16 %v1264
    %v2778 = vunpack.c.l.b16 %v1265
    %v2779 = vunpack.c.h.b16 %v1265
    %v2780 = vunpack.c.l.b16 %v1266
    %v2781 = vunpack.c.h.b16 %v1266
    %v2782 = vunpack.c.l.b16 %v1267
    %v2783 = vunpack.c.h.b16 %v1267
    %v2784 = vunpack.c.l.b16 %v1268
    %v2785 = vunpack.c.h.b16 %v1268
    %v2786 = vunpack.c.l.b16 %v1269
    %v2787 = vunpack.c.h.b16 %v1269
    %v2788 = vunpack.c.l.b16 %v1270
    %v2789 = vunpack.c.h.b16 %v1270
    %v2790 = vunpack.c.l.b16 %v1271
    %v2791 = vunpack.c.h.b16 %v1271
    %v2792 = vunpack.c.l.b16 %v1272
    %v2793 = vunpack.c.h.b16 %v1272
    %v2794 = vunpack.c.l.b16 %v1273
    %v2795 = vunpack.c.h.b16 %v1273
    %v2796 = vunpack.c.l.b16 %v1274
    %v2797 = vunpack.c.h.b16 %v1274
    %v2798 = vunpack.c.l.b16 %v1275
    %v2799 = vunpack.c.h.b16 %v1275
    %v2800 = vunpack.c.l.b16 %v1276
    %v2801 = vunpack.c.h.b16 %v1276
    %v2802 = vunpack.c.l.b16 %v1277
    %v2803 = vunpack.c.h.b16 %v1277
    %v2804 = vunpack.c.l.b16 %v1278
    %v2805 = vunpack.c.h.b16 %v1278
    %v2806 = vunpack.c.l.b16 %v1279
    %v2807 = vunpack.c.h.b16 %v1279
    %v2808 = vunpack.c.l.b16 %v1280
    %v2809 = vunpack.c.h.b16 %v1280
    %v2810 = vunpack.c.l.b16 %v1281
    %v2811 = vunpack.c.h.b16 %v1281
    %v2812 = vunpack.c.l.b16 %v1282
    %v2813 = vunpack.c.h.b16 %v1282
    %v2814 = vunpack.c.l.b16 %v1283
    %v2815 = vunpack.c.h.b16 %v1283
    %v2816 = vunpack.c.l.b16 %v1284
    %v2817 = vunpack.c.h.b16 %v1284
    %v2818 = vunpack.c.l.b16 %v1285
    %v2819 = vunpack.c.h.b16 %v1285
    %v2820 = vunpack.c.l.b16 %v1286
    %v2821 = vunpack.c.h.b16 %v1286
    %v2822 = vunpack.c.l.b16 %v1287
    %v2823 = vunpack.c.h.b16 %v1287
    %v2824 = vunpack.c.l.b16 %v1288
    %v2825 = vunpack.c.h.b16 %v1288
    %v2826 = vunpack.c.l.b16 %v1289
    %v2827 = vunpack.c.h.b16 %v1289
    %v2828 = vunpack.c.l.b16 %v1290
    %v2829 = vunpack.c.h.b16 %v1290
    %v2830 = vunpack.c.l.b16 %v1291
    %v2831 = vunpack.c.h.b16 %v1291
    %v2832 = vunpack.c.l.b16 %v1292
    %v2833 = vunpack.c.h.b16 %v1292
    %v2834 = vunpack.c.l.b16 %v1293
    %v2835 = vunpack.c.h.b16 %v1293
    %v2836 = vunpack.c.l.b16 %v1294
    %v2837 = vunpack.c.h.b16 %v1294
    %v2838 = vunpack.c.l.b16 %v1295
    %v2839 = vunpack.c.h.b16 %v1295
    %v2840 = vunpack.c.l.b16 %v1296
    %v2841 = vunpack.c.h.b16 %v1296
    %v2842 = vunpack.c.l.b16 %v1297
    %v2843 = vunpack.c.h.b16 %v1297
    %v2844 = vunpack.c.l.b16 %v1298
    %v2845 = vunpack.c.h.b16 %v1298
    %v2846 = vunpack.c.l.b16 %v1299
    %v2847 = vunpack.c.h.b16 %v1299
    %v2848 = vunpack.c.l.b16 %v1300
    %v2849 = vunpack.c.h.b16 %v1300
    %v2850 = vunpack.c.l.b16 %v1301
    %v2851 = vunpack.c.h.b16 %v1301
    %v2852 = vunpack.c.l.b16 %v1302
    %v2853 = vunpack.c.h.b16 %v1302
    %v2854 = vunpack.c.l.b16 %v1303
    %v2855 = vunpack.c.h.b16 %v1303
    %v2856 = vunpack.c.l.b16 %v1304
    %v2857 = vunpack.c.h.b16 %v1304
    %v2858 = vunpack.c.l.b16 %v1305
    %v2859 = vunpack.c.h.b16 %v1305
    %v2860 = vunpack.c.l.b16 %v1306
    %v2861 = vunpack.c.h.b16 %v1306
    %v2862 = vunpack.c.l.b16 %v1307
    %v2863 = vunpack.c.h.b16 %v1307
    %v2864 = vunpack.c.l.b16 %v1308
    %v2865 = vunpack.c.h.b16 %v1308
    %v2866 = vunpack.c.l.b16 %v1309
    %v2867 = vunpack.c.h.b16 %v1309
    %v2868 = vunpack.c.l.b16 %v1310
    %v2869 = vunpack.c.h.b16 %v1310
    %v2870 = vunpack.c.l.b16 %v1311
    %v2871 = vunpack.c.h.b16 %v1311
    %v2872 = vunpack.c.l.b16 %v1312
    %v2873 = vunpack.c.h.b16 %v1312
    %v2874 = vunpack.c.l.b16 %v1313
    %v2875 = vunpack.c.h.b16 %v1313
    %v2876 = vunpack.c.l.b16 %v1314
    %v2877 = vunpack.c.h.b16 %v1314
    %v2878 = vunpack.c.l.b16 %v1315
    %v2879 = vunpack.c.h.b16 %v1315
    %v2880 = vunpack.c.l.b16 %v1316
    %v2881 = vunpack.c.h.b16 %v1316
    %v2882 = vunpack.c.l.b16 %v1317
    %v2883 = vunpack.c.h.b16 %v1317
    %v2884 = vunpack.c.l.b16 %v1318
    %v2885 = vunpack.c.h.b16 %v1318
    %v2886 = vunpack.c.l.b16 %v1319
    %v2887 = vunpack.c.h.b16 %v1319
    %v2888 = vunpack.c.l.b16 %v1320
    %v2889 = vunpack.c.h.b16 %v1320
    %v2890 = vunpack.c.l.b16 %v1321
    %v2891 = vunpack.c.h.b16 %v1321
    %v2892 = vunpack.c.l.b16 %v1322
    %v2893 = vunpack.c.h.b16 %v1322
    %v2894 = vunpack.c.l.b16 %v1323
    %v2895 = vunpack.c.h.b16 %v1323
    %v2896 = vunpack.c.l.b16 %v1324
    %v2897 = vunpack.c.h.b16 %v1324
    %v2898 = vunpack.c.l.b16 %v1325
    %v2899 = vunpack.c.h.b16 %v1325
    %v2900 = vunpack.c.l.b16 %v1326
    %v2901 = vunpack.c.h.b16 %v1326
    %v2902 = vunpack.c.l.b16 %v1327
    %v2903 = vunpack.c.h.b16 %v1327
    %v2904 = vunpack.c.l.b16 %v1328
    %v2905 = vunpack.c.h.b16 %v1328
    %v2906 = vunpack.c.l.b16 %v1329
    %v2907 = vunpack.c.h.b16 %v1329
    %v2908 = vpack.c.b16 %v1892, %v1884
    %v2909 = vpack.c.b16 %v1893, %v1885
    %v2910 = vpack.c.b16 %v1894, %v1886
    %v2911 = vpack.c.b16 %v1895, %v1887
    %v2912 = vpack.c.b16 %v1896, %v1888
    %v2913 = vpack.c.b16 %v1897, %v1889
    %v2914 = vpack.c.b16 %v1898, %v1890
    %v2915 = vpack.c.b16 %v1899, %v1891
    %v2916 = vpack.c.b16 %v1908, %v1900
    %v2917 = vpack.c.b16 %v1909, %v1901
    %v2918 = vpack.c.b16 %v1910, %v1902
    %v2919 = vpack.c.b16 %v1911, %v1903
    %v2920 = vpack.c.b16 %v1912, %v1904
    %v2921 = vpack.c.b16 %v1913, %v1905
    %v2922 = vpack.c.b16 %v1914, %v1906
    %v2923 = vpack.c.b16 %v1915, %v1907
    %v2924 = vpack.c.b16 %v1924, %v1916
    %v2925 = vpack.c.b16 %v1925, %v1917
    %v2926 = vpack.c.b16 %v1926, %v1918
    %v2927 = vpack.c.b16 %v1927, %v1919
    %v2928 = vpack.c.b16 %v1928, %v1920
    %v2929 = vpack.c.b16 %v1929, %v1921
    %v2930 = vpack.c.b16 %v1930, %v1922
    %v2931 = vpack.c.b16 %v1931, %v1923
    %v2932 = vpack.c.b16 %v1940, %v1932
    %v2933 = vpack.c.b16 %v1941, %v1933
    %v2934 = vpack.c.b16 %v1942, %v1934
    %v2935 = vpack.c.b16 %v1943, %v1935
    %v2936 = vpack.c.b16 %v1944, %v1936
    %v2937 = vpack.c.b16 %v1945, %v1937
    %v2938 = vpack.c.b16 %v1946, %v1938
    %v2939 = vpack.c.b16 %v1947, %v1939
    %v2940 = vpack.c.b16 %v1956, %v1948
    %v2941 = vpack.c.b16 %v1957, %v1949
    %v2942 = vpack.c.b16 %v1958, %v1950
    %v2943 = vpack.c.b16 %v1959, %v1951
    %v2944 = vpack.c.b16 %v1960, %v1952
    %v2945 = vpack.c.b16 %v1961, %v1953
    %v2946 = vpack.c.b16 %v1962, %v1954
    %v2947 = vpack.c.b16 %v1963, %v1955
    %v2948 = vpack.c.b16 %v1972, %v1964
    %v2949 = vpack.c.b16 %v1973, %v1965
    %v2950 = vpack.c.b16 %v1974, %v1966
    %v2951 = vpack.c.b16 %v1975, %v1967
    %v2952 = vpack.c.b16 %v1976, %v1968
    %v2953 = vpack.c.b16 %v1977, %v1969
    %v2954 = vpack.c.b16 %v1978, %v1970
    %v2955 = vpack.c.b16 %v1979, %v1971
    %v2956 = vpack.c.b16 %v1988, %v1980
    %v2957 = vpack.c.b16 %v1989, %v1981
    %v2958 = vpack.c.b16 %v1990, %v1982
    %v2959 = vpack.c.b16 %v1991, %v1983
    %v2960 = vpack.c.b16 %v1992, %v1984
    %v2961 = vpack.c.b16 %v1993, %v1985
    %v2962 = vpack.c.b16 %v1994, %v1986
    %v2963 = vpack.c.b16 %v1995, %v1987
    %v2964 = vpack.c.b16 %v2004, %v1996
    %v2965 = vpack.c.b16 %v2005, %v1997
    %v2966 = vpack.c.b16 %v2006, %v1998
    %v2967 = vpack.c.b16 %v2007, %v1999
    %v2968 = vpack.c.b16 %v2008, %v2000
    %v2969 = vpack.c.b16 %v2009, %v2001
    %v2970 = vpack.c.b16 %v2010, %v2002
    %v2971 = vpack.c.b16 %v2011, %v2003
    %v2972 = vpack.c.b16 %v2020, %v2012
    %v2973 = vpack.c.b16 %v2021, %v2013
    %v2974 = vpack.c.b16 %v2022, %v2014
    %v2975 = vpack.c.b16 %v2023, %v2015
    %v2976 = vpack.c.b16 %v2024, %v2016
    %v2977 = vpack.c.b16 %v2025, %v2017
    %v2978 = vpack.c.b16 %v2026, %v2018
    %v2979 = vpack.c.b16 %v2027, %v2019
    %v2980 = vpack.c.b16 %v2036, %v2028
    %v2981 = vpack.c.b16 %v2037, %v2029
    %v2982 = vpack.c.b16 %v2038, %v2030
    %v2983 = vpack.c.b16 %v2039, %v2031
    %v2984 = vpack.c.b16 %v2040, %v2032
    %v2985 = vpack.c.b16 %v2041, %v2033
    %v2986 = vpack.c.b16 %v2042, %v2034
    %v2987 = vpack.c.b16 %v2043, %v2035
    %v2988 = vpack.c.b16 %v2052, %v2044
    %v2989 = vpack.c.b16 %v2053, %v2045
    %v2990 = vpack.c.b16 %v2054, %v2046
    %v2991 = vpack.c.b16 %v2055, %v2047
    %v2992 = vpack.c.b16 %v2056, %v2048
    %v2993 = vpack.c.b16 %v2057, %v2049
    %v2994 = vpack.c.b16 %v2058, %v2050
    %v2995 = vpack.c.b16 %v2059, %v2051
    %v2996 = vpack.c.b16 %v2068, %v2060
    %v2997 = vpack.c.b16 %v2069, %v2061
    %v2998 = vpack.c.b16 %v2070, %v2062
    %v2999 = vpack.c.b16 %v2071, %v2063
    %v3000 = vpack.c.b16 %v2072, %v2064
    %v3001 = vpack.c.b16 %v2073, %v2065
    %v3002 = vpack.c.b16 %v2074, %v2066
    %v3003 = vpack.c.b16 %v2075, %v2067
    %v3004 = vpack.c.b16 %v2084, %v2076
    %v3005 = vpack.c.b16 %v2085, %v2077
    %v3006 = vpack.c.b16 %v2086, %v2078
    %v3007 = vpack.c.b16 %v2087, %v2079
    %v3008 = vpack.c.b16 %v2088, %v2080
    %v3009 = vpack.c.b16 %v2089, %v2081
    %v3010 = vpack.c.b16 %v2090, %v2082
    %v3011 = vpack.c.b16 %v2091, %v2083
    %v3012 = vpack.c.b16 %v2100, %v2092
    %v3013 = vpack.c.b16 %v2101, %v2093
    %v3014 = vpack.c.b16 %v2102, %v2094
    %v3015 = vpack.c.b16 %v2103, %v2095
    %v3016 = vpack.c.b16 %v2104, %v2096
    %v3017 = vpack.c.b16 %v2105, %v2097
    %v3018 = vpack.c.b16 %v2106, %v2098
    %v3019 = vpack.c.b16 %v2107, %v2099
    %v3020 = vpack.c.b16 %v2116, %v2108
    %v3021 = vpack.c.b16 %v2117, %v2109
    %v3022 = vpack.c.b16 %v2118, %v2110
    %v3023 = vpack.c.b16 %v2119, %v2111
    %v3024 = vpack.c.b16 %v2120, %v2112
    %v3025 = vpack.c.b16 %v2121, %v2113
    %v3026 = vpack.c.b16 %v2122, %v2114
    %v3027 = vpack.c.b16 %v2123, %v2115
    %v3028 = vpack.c.b16 %v2132, %v2124
    %v3029 = vpack.c.b16 %v2133, %v2125
    %v3030 = vpack.c.b16 %v2134, %v2126
    %v3031 = vpack.c.b16 %v2135, %v2127
    %v3032 = vpack.c.b16 %v2136, %v2128
    %v3033 = vpack.c.b16 %v2137, %v2129
    %v3034 = vpack.c.b16 %v2138, %v2130
    %v3035 = vpack.c.b16 %v2139, %v2131
    %v3036 = vpack.c.b16 %v2148, %v2140
    %v3037 = vpack.c.b16 %v2149, %v2141
    %v3038 = vpack.c.b16 %v2150, %v2142
    %v3039 = vpack.c.b16 %v2151, %v2143
    %v3040 = vpack.c.b16 %v2152, %v2144
    %v3041 = vpack.c.b16 %v2153, %v2145
    %v3042 = vpack.c.b16 %v2154, %v2146
    %v3043 = vpack.c.b16 %v2155, %v2147
    %v3044 = vpack.c.b16 %v2164, %v2156
    %v3045 = vpack.c.b16 %v2165, %v2157
    %v3046 = vpack.c.b16 %v2166, %v2158
    %v3047 = vpack.c.b16 %v2167, %v2159
    %v3048 = vpack.c.b16 %v2168, %v2160
    %v3049 = vpack.c.b16 %v2169, %v2161
    %v3050 = vpack.c.b16 %v2170, %v2162
    %v3051 = vpack.c.b16 %v2171, %v2163
    %v3052 = vpack.c.b16 %v2180, %v2172
    %v3053 = vpack.c.b16 %v2181, %v2173
    %v3054 = vpack.c.b16 %v2182, %v2174
    %v3055 = vpack.c.b16 %v2183, %v2175
    %v3056 = vpack.c.b16 %v2184, %v2176
    %v3057 = vpack.c.b16 %v2185, %v2177
    %v3058 = vpack.c.b16 %v2186, %v2178
    %v3059 = vpack.c.b16 %v2187, %v2179
    %v3060 = vpack.c.b16 %v2196, %v2188
    %v3061 = vpack.c.b16 %v2197, %v2189
    %v3062 = vpack.c.b16 %v2198, %v2190
    %v3063 = vpack.c.b16 %v2199, %v2191
    %v3064 = vpack.c.b16 %v2200, %v2192
    %v3065 = vpack.c.b16 %v2201, %v2193
    %v3066 = vpack.c.b16 %v2202, %v2194
    %v3067 = vpack.c.b16 %v2203, %v2195
    %v3068 = vpack.c.b16 %v2212, %v2204
    %v3069 = vpack.c.b16 %v2213, %v2205
    %v3070 = vpack.c.b16 %v2214, %v2206
    %v3071 = vpack.c.b16 %v2215, %v2207
    %v3072 = vpack.c.b16 %v2216, %v2208
    %v3073 = vpack.c.b16 %v2217, %v2209
    %v3074 = vpack.c.b16 %v2218, %v2210
    %v3075 = vpack.c.b16 %v2219, %v2211
    %v3076 = vpack.c.b16 %v2228, %v2220
    %v3077 = vpack.c.b16 %v2229, %v2221
    %v3078 = vpack.c.b16 %v2230, %v2222
    %v3079 = vpack.c.b16 %v2231, %v2223
    %v3080 = vpack.c.b16 %v2232, %v2224
    %v3081 = vpack.c.b16 %v2233, %v2225
    %v3082 = vpack.c.b16 %v2234, %v2226
    %v3083 = vpack.c.b16 %v2235, %v2227
    %v3084 = vpack.c.b16 %v2244, %v2236
    %v3085 = vpack.c.b16 %v2245, %v2237
    %v3086 = vpack.c.b16 %v2246, %v2238
    %v3087 = vpack.c.b16 %v2247, %v2239
    %v3088 = vpack.c.b16 %v2248, %v2240
    %v3089 = vpack.c.b16 %v2249, %v2241
    %v3090 = vpack.c.b16 %v2250, %v2242
    %v3091 = vpack.c.b16 %v2251, %v2243
    %v3092 = vpack.c.b16 %v2260, %v2252
    %v3093 = vpack.c.b16 %v2261, %v2253
    %v3094 = vpack.c.b16 %v2262, %v2254
    %v3095 = vpack.c.b16 %v2263, %v2255
    %v3096 = vpack.c.b16 %v2264, %v2256
    %v3097 = vpack.c.b16 %v2265, %v2257
    %v3098 = vpack.c.b16 %v2266, %v2258
    %v3099 = vpack.c.b16 %v2267, %v2259
    %v3100 = vpack.c.b16 %v2276, %v2268
    %v3101 = vpack.c.b16 %v2277, %v2269
    %v3102 = vpack.c.b16 %v2278, %v2270
    %v3103 = vpack.c.b16 %v2279, %v2271
    %v3104 = vpack.c.b16 %v2280, %v2272
    %v3105 = vpack.c.b16 %v2281, %v2273
    %v3106 = vpack.c.b16 %v2282, %v2274
    %v3107 = vpack.c.b16 %v2283, %v2275
    %v3108 = vpack.c.b16 %v2292, %v2284
    %v3109 = vpack.c.b16 %v2293, %v2285
    %v3110 = vpack.c.b16 %v2294, %v2286
    %v3111 = vpack.c.b16 %v2295, %v2287
    %v3112 = vpack.c.b16 %v2296, %v2288
    %v3113 = vpack.c.b16 %v2297, %v2289
    %v3114 = vpack.c.b16 %v2298, %v2290
    %v3115 = vpack.c.b16 %v2299, %v2291
    %v3116 = vpack.c.b16 %v2308, %v2300
    %v3117 = vpack.c.b16 %v2309, %v2301
    %v3118 = vpack.c.b16 %v2310, %v2302
    %v3119 = vpack.c.b16 %v2311, %v2303
    %v3120 = vpack.c.b16 %v2312, %v2304
    %v3121 = vpack.c.b16 %v2313, %v2305
    %v3122 = vpack.c.b16 %v2314, %v2306
    %v3123 = vpack.c.b16 %v2315, %v2307
    %v3124 = vpack.c.b16 %v2324, %v2316
    %v3125 = vpack.c.b16 %v2325, %v2317
    %v3126 = vpack.c.b16 %v2326, %v2318
    %v3127 = vpack.c.b16 %v2327, %v2319
    %v3128 = vpack.c.b16 %v2328, %v2320
    %v3129 = vpack.c.b16 %v2329, %v2321
    %v3130 = vpack.c.b16 %v2330, %v2322
    %v3131 = vpack.c.b16 %v2331, %v2323
    %v3132 = vpack.c.b16 %v2340, %v2332
    %v3133 = vpack.c.b16 %v2341, %v2333
    %v3134 = vpack.c.b16 %v2342, %v2334
    %v3135 = vpack.c.b16 %v2343, %v2335
    %v3136 = vpack.c.b16 %v2344, %v2336
    %v3137 = vpack.c.b16 %v2345, %v2337
    %v3138 = vpack.c.b16 %v2346, %v2338
    %v3139 = vpack.c.b16 %v2347, %v2339
    %v3140 = vpack.c.b16 %v2356, %v2348
    %v3141 = vpack.c.b16 %v2357, %v2349
    %v3142 = vpack.c.b16 %v2358, %v2350
    %v3143 = vpack.c.b16 %v2359, %v2351
    %v3144 = vpack.c.b16 %v2360, %v2352
    %v3145 = vpack.c.b16 %v2361, %v2353
    %v3146 = vpack.c.b16 %v2362, %v2354
    %v3147 = vpack.c.b16 %v2363, %v2355
    %v3148 = vpack.c.b16 %v2372, %v2364
    %v3149 = vpack.c.b16 %v2373, %v2365
    %v3150 = vpack.c.b16 %v2374, %v2366
    %v3151 = vpack.c.b16 %v2375, %v2367
    %v3152 = vpack.c.b16 %v2376, %v2368
    %v3153 = vpack.c.b16 %v2377, %v2369
    %v3154 = vpack.c.b16 %v2378, %v2370
    %v3155 = vpack.c.b16 %v2379, %v2371
    %v3156 = vpack.c.b16 %v2388, %v2380
    %v3157 = vpack.c.b16 %v2389, %v2381
    %v3158 = vpack.c.b16 %v2390, %v2382
    %v3159 = vpack.c.b16 %v2391, %v2383
    %v3160 = vpack.c.b16 %v2392, %v2384
    %v3161 = vpack.c.b16 %v2393, %v2385
    %v3162 = vpack.c.b16 %v2394, %v2386
    %v3163 = vpack.c.b16 %v2395, %v2387
    %v3164 = vpack.c.b16 %v2404, %v2396
    %v3165 = vpack.c.b16 %v2405, %v2397
    %v3166 = vpack.c.b16 %v2406, %v2398
    %v3167 = vpack.c.b16 %v2407, %v2399
    %v3168 = vpack.c.b16 %v2408, %v2400
    %v3169 = vpack.c.b16 %v2409, %v2401
    %v3170 = vpack.c.b16 %v2410, %v2402
    %v3171 = vpack.c.b16 %v2411, %v2403
    %v3172 = vpack.c.b16 %v2420, %v2412
    %v3173 = vpack.c.b16 %v2421, %v2413
    %v3174 = vpack.c.b16 %v2422, %v2414
    %v3175 = vpack.c.b16 %v2423, %v2415
    %v3176 = vpack.c.b16 %v2424, %v2416
    %v3177 = vpack.c.b16 %v2425, %v2417
    %v3178 = vpack.c.b16 %v2426, %v2418
    %v3179 = vpack.c.b16 %v2427, %v2419
    %v3180 = vpack.c.b16 %v2436, %v2428
    %v3181 = vpack.c.b16 %v2437, %v2429
    %v3182 = vpack.c.b16 %v2438, %v2430
    %v3183 = vpack.c.b16 %v2439, %v2431
    %v3184 = vpack.c.b16 %v2440, %v2432
    %v3185 = vpack.c.b16 %v2441, %v2433
    %v3186 = vpack.c.b16 %v2442, %v2434
    %v3187 = vpack.c.b16 %v2443, %v2435
    %v3188 = vpack.c.b16 %v2452, %v2444
    %v3189 = vpack.c.b16 %v2453, %v2445
    %v3190 = vpack.c.b16 %v2454, %v2446
    %v3191 = vpack.c.b16 %v2455, %v2447
    %v3192 = vpack.c.b16 %v2456, %v2448
    %v3193 = vpack.c.b16 %v2457, %v2449
    %v3194 = vpack.c.b16 %v2458, %v2450
    %v3195 = vpack.c.b16 %v2459, %v2451
    %v3196 = vpack.c.b16 %v2468, %v2460
    %v3197 = vpack.c.b16 %v2469, %v2461
    %v3198 = vpack.c.b16 %v2470, %v2462
    %v3199 = vpack.c.b16 %v2471, %v2463
    %v3200 = vpack.c.b16 %v2472, %v2464
    %v3201 = vpack.c.b16 %v2473, %v2465
    %v3202 = vpack.c.b16 %v2474, %v2466
    %v3203 = vpack.c.b16 %v2475, %v2467
    %v3204 = vpack.c.b16 %v2484, %v2476
    %v3205 = vpack.c.b16 %v2485, %v2477
    %v3206 = vpack.c.b16 %v2486, %v2478
    %v3207 = vpack.c.b16 %v2487, %v2479
    %v3208 = vpack.c.b16 %v2488, %v2480
    %v3209 = vpack.c.b16 %v2489, %v2481
    %v3210 = vpack.c.b16 %v2490, %v2482
    %v3211 = vpack.c.b16 %v2491, %v2483
    %v3212 = vpack.c.b16 %v2500, %v2492
    %v3213 = vpack.c.b16 %v2501, %v2493
    %v3214 = vpack.c.b16 %v2502, %v2494
    %v3215 = vpack.c.b16 %v2503, %v2495
    %v3216 = vpack.c.b16 %v2504, %v2496
    %v3217 = vpack.c.b16 %v2505, %v2497
    %v3218 = vpack.c.b16 %v2506, %v2498
    %v3219 = vpack.c.b16 %v2507, %v2499
    %v3220 = vpack.c.b16 %v2516, %v2508
    %v3221 = vpack.c.b16 %v2517, %v2509
    %v3222 = vpack.c.b16 %v2518, %v2510
    %v3223 = vpack.c.b16 %v2519, %v2511
    %v3224 = vpack.c.b16 %v2520, %v2512
    %v3225 = vpack.c.b16 %v2521, %v2513
    %v3226 = vpack.c.b16 %v2522, %v2514
    %v3227 = vpack.c.b16 %v2523, %v2515
    %v3228 = vpack.c.b16 %v2532, %v2524
    %v3229 = vpack.c.b16 %v2533, %v2525
    %v3230 = vpack.c.b16 %v2534, %v2526
    %v3231 = vpack.c.b16 %v2535, %v2527
    %v3232 = vpack.c.b16 %v2536, %v2528
    %v3233 = vpack.c.b16 %v2537, %v2529
    %v3234 = vpack.c.b16 %v2538, %v2530
    %v3235 = vpack.c.b16 %v2539, %v2531
    %v3236 = vpack.c.b16 %v2548, %v2540
    %v3237 = vpack.c.b16 %v2549, %v2541
    %v3238 = vpack.c.b16 %v2550, %v2542
    %v3239 = vpack.c.b16 %v2551, %v2543
    %v3240 = vpack.c.b16 %v2552, %v2544
    %v3241 = vpack.c.b16 %v2553, %v2545
    %v3242 = vpack.c.b16 %v2554, %v2546
    %v3243 = vpack.c.b16 %v2555, %v2547
    %v3244 = vpack.c.b16 %v2564, %v2556
    %v3245 = vpack.c.b16 %v2565, %v2557
    %v3246 = vpack.c.b16 %v2566, %v2558
    %v3247 = vpack.c.b16 %v2567, %v2559
    %v3248 = vpack.c.b16 %v2568, %v2560
    %v3249 = vpack.c.b16 %v2569, %v2561
    %v3250 = vpack.c.b16 %v2570, %v2562
    %v3251 = vpack.c.b16 %v2571, %v2563
    %v3252 = vpack.c.b16 %v2580, %v2572
    %v3253 = vpack.c.b16 %v2581, %v2573
    %v3254 = vpack.c.b16 %v2582, %v2574
    %v3255 = vpack.c.b16 %v2583, %v2575
    %v3256 = vpack.c.b16 %v2584, %v2576
    %v3257 = vpack.c.b16 %v2585, %v2577
    %v3258 = vpack.c.b16 %v2586, %v2578
    %v3259 = vpack.c.b16 %v2587, %v2579
    %v3260 = vpack.c.b16 %v2596, %v2588
    %v3261 = vpack.c.b16 %v2597, %v2589
    %v3262 = vpack.c.b16 %v2598, %v2590
    %v3263 = vpack.c.b16 %v2599, %v2591
    %v3264 = vpack.c.b16 %v2600, %v2592
    %v3265 = vpack.c.b16 %v2601, %v2593
    %v3266 = vpack.c.b16 %v2602, %v2594
    %v3267 = vpack.c.b16 %v2603, %v2595
    %v3268 = vpack.c.b16 %v2612, %v2604
    %v3269 = vpack.c.b16 %v2613, %v2605
    %v3270 = vpack.c.b16 %v2614, %v2606
    %v3271 = vpack.c.b16 %v2615, %v2607
    %v3272 = vpack.c.b16 %v2616, %v2608
    %v3273 = vpack.c.b16 %v2617, %v2609
    %v3274 = vpack.c.b16 %v2618, %v2610
    %v3275 = vpack.c.b16 %v2619, %v2611
    %v3276 = vpack.c.b16 %v2628, %v2620
    %v3277 = vpack.c.b16 %v2629, %v2621
    %v3278 = vpack.c.b16 %v2630, %v2622
    %v3279 = vpack.c.b16 %v2631, %v2623
    %v3280 = vpack.c.b16 %v2632, %v2624
    %v3281 = vpack.c.b16 %v2633, %v2625
    %v3282 = vpack.c.b16 %v2634, %v2626
    %v3283 = vpack.c.b16 %v2635, %v2627
    %v3284 = vpack.c.b16 %v2644, %v2636
    %v3285 = vpack.c.b16 %v2645, %v2637
    %v3286 = vpack.c.b16 %v2646, %v2638
    %v3287 = vpack.c.b16 %v2647, %v2639
    %v3288 = vpack.c.b16 %v2648, %v2640
    %v3289 = vpack.c.b16 %v2649, %v2641
    %v3290 = vpack.c.b16 %v2650, %v2642
    %v3291 = vpack.c.b16 %v2651, %v2643
    %v3292 = vpack.c.b16 %v2660, %v2652
    %v3293 = vpack.c.b16 %v2661, %v2653
    %v3294 = vpack.c.b16 %v2662, %v2654
    %v3295 = vpack.c.b16 %v2663, %v2655
    %v3296 = vpack.c.b16 %v2664, %v2656
    %v3297 = vpack.c.b16 %v2665, %v2657
    %v3298 = vpack.c.b16 %v2666, %v2658
    %v3299 = vpack.c.b16 %v2667, %v2659
    %v3300 = vpack.c.b16 %v2676, %v2668
    %v3301 = vpack.c.b16 %v2677, %v2669
    %v3302 = vpack.c.b16 %v2678, %v2670
    %v3303 = vpack.c.b16 %v2679, %v2671
    %v3304 = vpack.c.b16 %v2680, %v2672
    %v3305 = vpack.c.b16 %v2681, %v2673
    %v3306 = vpack.c.b16 %v2682, %v2674
    %v3307 = vpack.c.b16 %v2683, %v2675
    %v3308 = vpack.c.b16 %v2692, %v2684
    %v3309 = vpack.c.b16 %v2693, %v2685
    %v3310 = vpack.c.b16 %v2694, %v2686
    %v3311 = vpack.c.b16 %v2695, %v2687
    %v3312 = vpack.c.b16 %v2696, %v2688
    %v3313 = vpack.c.b16 %v2697, %v2689
    %v3314 = vpack.c.b16 %v2698, %v2690
    %v3315 = vpack.c.b16 %v2699, %v2691
    %v3316 = vpack.c.b16 %v2708, %v2700
    %v3317 = vpack.c.b16 %v2709, %v2701
    %v3318 = vpack.c.b16 %v2710, %v2702
    %v3319 = vpack.c.b16 %v2711, %v2703
    %v3320 = vpack.c.b16 %v2712, %v2704
    %v3321 = vpack.c.b16 %v2713, %v2705
    %v3322 = vpack.c.b16 %v2714, %v2706
    %v3323 = vpack.c.b16 %v2715, %v2707
    %v3324 = vpack.c.b16 %v2724, %v2716
    %v3325 = vpack.c.b16 %v2725, %v2717
    %v3326 = vpack.c.b16 %v2726, %v2718
    %v3327 = vpack.c.b16 %v2727, %v2719
    %v3328 = vpack.c.b16 %v2728, %v2720
    %v3329 = vpack.c.b16 %v2729, %v2721
    %v3330 = vpack.c.b16 %v2730, %v2722
    %v3331 = vpack.c.b16 %v2731, %v2723
    %v3332 = vpack.c.b16 %v2740, %v2732
    %v3333 = vpack.c.b16 %v2741, %v2733
    %v3334 = vpack.c.b16 %v2742, %v2734
    %v3335 = vpack.c.b16 %v2743, %v2735
    %v3336 = vpack.c.b16 %v2744, %v2736
    %v3337 = vpack.c.b16 %v2745, %v2737
    %v3338 = vpack.c.b16 %v2746, %v2738
    %v3339 = vpack.c.b16 %v2747, %v2739
    %v3340 = vpack.c.b16 %v2756, %v2748
    %v3341 = vpack.c.b16 %v2757, %v2749
    %v3342 = vpack.c.b16 %v2758, %v2750
    %v3343 = vpack.c.b16 %v2759, %v2751
    %v3344 = vpack.c.b16 %v2760, %v2752
    %v3345 = vpack.c.b16 %v2761, %v2753
    %v3346 = vpack.c.b16 %v2762, %v2754
    %v3347 = vpack.c.b16 %v2763, %v2755
    %v3348 = vpack.c.b16 %v2772, %v2764
    %v3349 = vpack.c.b16 %v2773, %v2765
    %v3350 = vpack.c.b16 %v2774, %v2766
    %v3351 = vpack.c.b16 %v2775, %v2767
    %v3352 = vpack.c.b16 %v2776, %v2768
    %v3353 = vpack.c.b16 %v2777, %v2769
    %v3354 = vpack.c.b16 %v2778, %v2770
    %v3355 = vpack.c.b16 %v2779, %v2771
    %v3356 = vpack.c.b16 %v2788, %v2780
    %v3357 = vpack.c.b16 %v2789, %v2781
    %v3358 = vpack.c.b16 %v2790, %v2782
    %v3359 = vpack.c.b16 %v2791, %v2783
    %v3360 = vpack.c.b16 %v2792, %v2784
    %v3361 = vpack.c.b16 %v2793, %v2785
    %v3362 = vpack.c.b16 %v2794, %v2786
    %v3363 = vpack.c.b16 %v2795, %v2787
    %v3364 = vpack.c.b16 %v2804, %v2796
    %v3365 = vpack.c.b16 %v2805, %v2797
    %v3366 = vpack.c.b16 %v2806, %v2798
    %v3367 = vpack.c.b16 %v2807, %v2799
    %v3368 = vpack.c.b16 %v2808, %v2800
    %v3369 = vpack.c.b16 %v2809, %v2801
    %v3370 = vpack.c.b16 %v2810, %v2802
    %v3371 = vpack.c.b16 %v2811, %v2803
    %v3372 = vpack.c.b16 %v2820, %v2812
    %v3373 = vpack.c.b16 %v2821, %v2813
    %v3374 = vpack.c.b16 %v2822, %v2814
    %v3375 = vpack.c.b16 %v2823, %v2815
    %v3376 = vpack.c.b16 %v2824, %v2816
    %v3377 = vpack.c.b16 %v2825, %v2817
    %v3378 = vpack.c.b16 %v2826, %v2818
    %v3379 = vpack.c.b16 %v2827, %v2819
    %v3380 = vpack.c.b16 %v2836, %v2828
    %v3381 = vpack.c.b16 %v2837, %v2829
    %v3382 = vpack.c.b16 %v2838, %v2830
    %v3383 = vpack.c.b16 %v2839, %v2831
    %v3384 = vpack.c.b16 %v2840, %v2832
    %v3385 = vpack.c.b16 %v2841, %v2833
    %v3386 = vpack.c.b16 %v2842, %v2834
    %v3387 = vpack.c.b16 %v2843, %v2835
    %v3388 = vpack.c.b16 %v2852, %v2844
    %v3389 = vpack.c.b16 %v2853, %v2845
    %v3390 = vpack.c.b16 %v2854, %v2846
    %v3391 = vpack.c.b16 %v2855, %v2847
    %v3392 = vpack.c.b16 %v2856, %v2848
    %v3393 = vpack.c.b16 %v2857, %v2849
    %v3394 = vpack.c.b16 %v2858, %v2850
    %v3395 = vpack.c.b16 %v2859, %v2851
    %v3396 = vpack.c.b16 %v2868, %v2860
    %v3397 = vpack.c.b16 %v2869, %v2861
    %v3398 = vpack.c.b16 %v2870, %v2862
    %v3399 = vpack.c.b16 %v2871, %v2863
    %v3400 = vpack.c.b16 %v2872, %v2864
    %v3401 = vpack.c.b16 %v2873, %v2865
    %v3402 = vpack.c.b16 %v2874, %v2866
    %v3403 = vpack.c.b16 %v2875, %v2867
    %v3404 = vpack.c.b16 %v2884, %v2876
    %v3405 = vpack.c.b16 %v2885, %v2877
    %v3406 = vpack.c.b16 %v2886, %v2878
    %v3407 = vpack.c.b16 %v2887, %v2879
    %v3408 = vpack.c.b16 %v2888, %v2880
    %v3409 = vpack.c.b16 %v2889, %v2881
    %v3410 = vpack.c.b16 %v2890, %v2882
    %v3411 = vpack.c.b16 %v2891, %v2883
    %v3412 = vpack.c.b16 %v2900, %v2892
    %v3413 = vpack.c.b16 %v2901, %v2893
    %v3414 = vpack.c.b16 %v2902, %v2894
    %v3415 = vpack.c.b16 %v2903, %v2895
    %v3416 = vpack.c.b16 %v2904, %v2896
    %v3417 = vpack.c.b16 %v2905, %v2897
    %v3418 = vpack.c.b16 %v2906, %v2898
    %v3419 = vpack.c.b16 %v2907, %v2899
    %3932 = vmatprep.subr.bf16.mxu0 %v2909
    %3933 = vmatpush1.bf16.msra.mxu0 %v2908
    %3934 = vmatprep.subr.bf16.mxu0 %v2917
    %3935 = vmatpush1.bf16.msra.mxu0 %v2916
    %3936 = vmatprep.subr.bf16.mxu0 %v2925
    %3937 = vmatpush1.bf16.msra.mxu0 %v2924
    %3938 = vmatprep.subr.bf16.mxu0 %v2933
    %3939 = vmatpush1.bf16.msra.mxu0 %v2932
    %3940 = vmatprep.subr.bf16.mxu0 %v2941
    %3941 = vmatpush1.bf16.msra.mxu0 %v2940
    %3942 = vmatprep.subr.bf16.mxu0 %v2949
    %3943 = vmatpush1.bf16.msra.mxu0 %v2948
    %3944 = vmatprep.subr.bf16.mxu0 %v2957
    %3945 = vmatpush1.bf16.msra.mxu0 %v2956
    %3946 = vmatprep.subr.bf16.mxu0 %v2965
    %3947 = vmatpush1.bf16.msra.mxu0 %v2964
    %3948 = vmatprep.subr.bf16.mxu0 %v2973
    %3949 = vmatpush1.bf16.msra.mxu0 %v2972
    %3950 = vmatprep.subr.bf16.mxu0 %v2981
    %3951 = vmatpush1.bf16.msra.mxu0 %v2980
    %3952 = vmatprep.subr.bf16.mxu0 %v2989
    %3953 = vmatpush1.bf16.msra.mxu0 %v2988
    %3954 = vmatprep.subr.bf16.mxu0 %v2997
    %3955 = vmatpush1.bf16.msra.mxu0 %v2996
    %3956 = vmatprep.subr.bf16.mxu0 %v3005
    %3957 = vmatpush1.bf16.msra.mxu0 %v3004
    %3958 = vmatprep.subr.bf16.mxu0 %v3013
    %3959 = vmatpush1.bf16.msra.mxu0 %v3012
    %3960 = vmatprep.subr.bf16.mxu0 %v3021
    %3961 = vmatpush1.bf16.msra.mxu0 %v3020
    %3962 = vmatprep.subr.bf16.mxu0 %v3029
    %3963 = vmatpush1.bf16.msra.mxu0 %v3028
    %3964 = vmatprep.mubr.bf16.mxu0 %v811
    %3965 = vmatmul.mubr.bf16.gmra.mrb[0].mxu0 %v810
    %v3966 = vpop.f32.mrb[0].mxu0
    %v3967 = vadd.f32 %v1335, %v3966
    %v3968 = vpop.f32.mrb[0].mxu0
    %v3969 = vadd.f32 %v1339, %v3968
    %v3970 = vpop.f32.mrb[0].mxu0
    %v3971 = vadd.f32 %v1335, %v3970
    %v3972 = vpop.f32.mrb[0].mxu0
    %v3973 = vadd.f32 %v1339, %v3972
    %3974 = vdwg.mxu0
    %3975 = vmatprep.subr.bf16.mxu0 %v3037
    %3976 = vmatpush1.bf16.msra.mxu0 %v3036
    %3977 = vmatprep.subr.bf16.mxu0 %v3045
    %3978 = vmatpush1.bf16.msra.mxu0 %v3044
    %3979 = vmatprep.subr.bf16.mxu0 %v3053
    %3980 = vmatpush1.bf16.msra.mxu0 %v3052
    %3981 = vmatprep.subr.bf16.mxu0 %v3061
    %3982 = vmatpush1.bf16.msra.mxu0 %v3060
    %3983 = vmatprep.subr.bf16.mxu0 %v3069
    %3984 = vmatpush1.bf16.msra.mxu0 %v3068
    %3985 = vmatprep.subr.bf16.mxu0 %v3077
    %3986 = vmatpush1.bf16.msra.mxu0 %v3076
    %3987 = vmatprep.subr.bf16.mxu0 %v3085
    %3988 = vmatpush1.bf16.msra.mxu0 %v3084
    %3989 = vmatprep.subr.bf16.mxu0 %v3093
    %3990 = vmatpush1.bf16.msra.mxu0 %v3092
    %3991 = vmatprep.subr.bf16.mxu0 %v3101
    %3992 = vmatpush1.bf16.msra.mxu0 %v3100
    %3993 = vmatprep.subr.bf16.mxu0 %v3109
    %3994 = vmatpush1.bf16.msra.mxu0 %v3108
    %3995 = vmatprep.subr.bf16.mxu0 %v3117
    %3996 = vmatpush1.bf16.msra.mxu0 %v3116
    %3997 = vmatprep.subr.bf16.mxu0 %v3125
    %3998 = vmatpush1.bf16.msra.mxu0 %v3124
    %3999 = vmatprep.subr.bf16.mxu0 %v3133
    %4000 = vmatpush1.bf16.msra.mxu0 %v3132
    %4001 = vmatprep.subr.bf16.mxu0 %v3141
    %4002 = vmatpush1.bf16.msra.mxu0 %v3140
    %4003 = vmatprep.subr.bf16.mxu0 %v3149
    %4004 = vmatpush1.bf16.msra.mxu0 %v3148
    %4005 = vmatprep.subr.bf16.mxu0 %v3157
    %4006 = vmatpush1.bf16.msra.mxu0 %v3156
    %4007 = vmatprep.mubr.bf16.mxu0 %v813
    %4008 = vmatmul.mubr.bf16.gmra.mrb[0].mxu0 %v812
    %v4009 = vpop.f32.mrb[0].mxu0
    %v4010 = vadd.f32 %v3967, %v4009
    %v4011 = vpop.f32.mrb[0].mxu0
    %v4012 = vadd.f32 %v3969, %v4011
    %v4013 = vpop.f32.mrb[0].mxu0
    %v4014 = vadd.f32 %v3971, %v4013
    %v4015 = vpop.f32.mrb[0].mxu0
    %v4016 = vadd.f32 %v3973, %v4015
    %4017 = vdwg.mxu0
    %4018 = vmatprep.subr.bf16.mxu0 %v3165
    %4019 = vmatpush1.bf16.msra.mxu0 %v3164
    %4020 = vmatprep.subr.bf16.mxu0 %v3173
    %4021 = vmatpush1.bf16.msra.mxu0 %v3172
    %4022 = vmatprep.subr.bf16.mxu0 %v3181
    %4023 = vmatpush1.bf16.msra.mxu0 %v3180
    %4024 = vmatprep.subr.bf16.mxu0 %v3189
    %4025 = vmatpush1.bf16.msra.mxu0 %v3188
    %4026 = vmatprep.subr.bf16.mxu0 %v3197
    %4027 = vmatpush1.bf16.msra.mxu0 %v3196
    %4028 = vmatprep.subr.bf16.mxu0 %v3205
    %4029 = vmatpush1.bf16.msra.mxu0 %v3204
    %4030 = vmatprep.subr.bf16.mxu0 %v3213
    %4031 = vmatpush1.bf16.msra.mxu0 %v3212
    %4032 = vmatprep.subr.bf16.mxu0 %v3221
    %4033 = vmatpush1.bf16.msra.mxu0 %v3220
    %4034 = vmatprep.subr.bf16.mxu0 %v3229
    %4035 = vmatpush1.bf16.msra.mxu0 %v3228
    %4036 = vmatprep.subr.bf16.mxu0 %v3237
    %4037 = vmatpush1.bf16.msra.mxu0 %v3236
    %4038 = vmatprep.subr.bf16.mxu0 %v3245
    %4039 = vmatpush1.bf16.msra.mxu0 %v3244
    %4040 = vmatprep.subr.bf16.mxu0 %v3253
    %4041 = vmatpush1.bf16.msra.mxu0 %v3252
    %4042 = vmatprep.subr.bf16.mxu0 %v3261
    %4043 = vmatpush1.bf16.msra.mxu0 %v3260
    %4044 = vmatprep.subr.bf16.mxu0 %v3269
    %4045 = vmatpush1.bf16.msra.mxu0 %v3268
    %4046 = vmatprep.subr.bf16.mxu0 %v3277
    %4047 = vmatpush1.bf16.msra.mxu0 %v3276
    %4048 = vmatprep.subr.bf16.mxu0 %v3285
    %4049 = vmatpush1.bf16.msra.mxu0 %v3284
    %4050 = vmatprep.mubr.bf16.mxu0 %v815
    %4051 = vmatmul.mubr.bf16.gmra.mrb[0].mxu0 %v814
    %v4052 = vpop.f32.mrb[0].mxu0
    %v4053 = vadd.f32 %v4010, %v4052
    %v4054 = vpop.f32.mrb[0].mxu0
    %v4055 = vadd.f32 %v4012, %v4054
    %v4056 = vpop.f32.mrb[0].mxu0
    %v4057 = vadd.f32 %v4014, %v4056
    %v4058 = vpop.f32.mrb[0].mxu0
    %v4059 = vadd.f32 %v4016, %v4058
    %4060 = vdwg.mxu0
    %4061 = vmatprep.subr.bf16.mxu0 %v3293
    %4062 = vmatpush1.bf16.msra.mxu0 %v3292
    %4063 = vmatprep.subr.bf16.mxu0 %v3301
    %4064 = vmatpush1.bf16.msra.mxu0 %v3300
    %4065 = vmatprep.subr.bf16.mxu0 %v3309
    %4066 = vmatpush1.bf16.msra.mxu0 %v3308
    %4067 = vmatprep.subr.bf16.mxu0 %v3317
    %4068 = vmatpush1.bf16.msra.mxu0 %v3316
    %4069 = vmatprep.subr.bf16.mxu0 %v3325
    %4070 = vmatpush1.bf16.msra.mxu0 %v3324
    %4071 = vmatprep.subr.bf16.mxu0 %v3333
    %4072 = vmatpush1.bf16.msra.mxu0 %v3332
    %4073 = vmatprep.subr.bf16.mxu0 %v3341
    %4074 = vmatpush1.bf16.msra.mxu0 %v3340
    %4075 = vmatprep.subr.bf16.mxu0 %v3349
    %4076 = vmatpush1.bf16.msra.mxu0 %v3348
    %4077 = vmatprep.subr.bf16.mxu0 %v3357
    %4078 = vmatpush1.bf16.msra.mxu0 %v3356
    %4079 = vmatprep.subr.bf16.mxu0 %v3365
    %4080 = vmatpush1.bf16.msra.mxu0 %v3364
    %4081 = vmatprep.subr.bf16.mxu0 %v3373
    %4082 = vmatpush1.bf16.msra.mxu0 %v3372
    %4083 = vmatprep.subr.bf16.mxu0 %v3381
    %4084 = vmatpush1.bf16.msra.mxu0 %v3380
    %4085 = vmatprep.subr.bf16.mxu0 %v3389
    %4086 = vmatpush1.bf16.msra.mxu0 %v3388
    %4087 = vmatprep.subr.bf16.mxu0 %v3397
    %4088 = vmatpush1.bf16.msra.mxu0 %v3396
    %4089 = vmatprep.subr.bf16.mxu0 %v3405
    %4090 = vmatpush1.bf16.msra.mxu0 %v3404
    %4091 = vmatprep.subr.bf16.mxu0 %v3413
    %4092 = vmatpush1.bf16.msra.mxu0 %v3412
    %4093 = vmatprep.mubr.bf16.mxu0 %v817
    %4094 = vmatmul.mubr.bf16.gmra.mrb[0].mxu0 %v816
    %v4095 = vpop.f32.mrb[0].mxu0
    %v4096 = vadd.f32 %v4053, %v4095
    %v4097 = vpop.f32.mrb[0].mxu0
    %v4098 = vadd.f32 %v4055, %v4097
    %v4099 = vpop.f32.mrb[0].mxu0
    %v4100 = vadd.f32 %v4057, %v4099
    %v4101 = vpop.f32.mrb[0].mxu0
    %v4102 = vadd.f32 %v4059, %v4101
    %4103 = vdwg.mxu0
    %4104 = vmatprep.subr.bf16.mxu0 %v2911
    %4105 = vmatpush1.bf16.msra.mxu0 %v2910
    %4106 = vmatprep.subr.bf16.mxu0 %v2919
    %4107 = vmatpush1.bf16.msra.mxu0 %v2918
    %4108 = vmatprep.subr.bf16.mxu0 %v2927
    %4109 = vmatpush1.bf16.msra.mxu0 %v2926
    %4110 = vmatprep.subr.bf16.mxu0 %v2935
    %4111 = vmatpush1.bf16.msra.mxu0 %v2934
    %4112 = vmatprep.subr.bf16.mxu0 %v2943
    %4113 = vmatpush1.bf16.msra.mxu0 %v2942
    %4114 = vmatprep.subr.bf16.mxu0 %v2951
    %4115 = vmatpush1.bf16.msra.mxu0 %v2950
    %4116 = vmatprep.subr.bf16.mxu0 %v2959
    %4117 = vmatpush1.bf16.msra.mxu0 %v2958
    %4118 = vmatprep.subr.bf16.mxu0 %v2967
    %4119 = vmatpush1.bf16.msra.mxu0 %v2966
    %4120 = vmatprep.subr.bf16.mxu0 %v2975
    %4121 = vmatpush1.bf16.msra.mxu0 %v2974
    %4122 = vmatprep.subr.bf16.mxu0 %v2983
    %4123 = vmatpush1.bf16.msra.mxu0 %v2982
    %4124 = vmatprep.subr.bf16.mxu0 %v2991
    %4125 = vmatpush1.bf16.msra.mxu0 %v2990
    %4126 = vmatprep.subr.bf16.mxu0 %v2999
    %4127 = vmatpush1.bf16.msra.mxu0 %v2998
    %4128 = vmatprep.subr.bf16.mxu0 %v3007
    %4129 = vmatpush1.bf16.msra.mxu0 %v3006
    %4130 = vmatprep.subr.bf16.mxu0 %v3015
    %4131 = vmatpush1.bf16.msra.mxu0 %v3014
    %4132 = vmatprep.subr.bf16.mxu0 %v3023
    %4133 = vmatpush1.bf16.msra.mxu0 %v3022
    %4134 = vmatprep.subr.bf16.mxu0 %v3031
    %4135 = vmatpush1.bf16.msra.mxu0 %v3030
    %4136 = vmatprep.mubr.bf16.mxu0 %v811
    %4137 = vmatmul.mubr.bf16.gmra.mrb[0].mxu0 %v810
    %v4138 = vpop.f32.mrb[0].mxu0
    %v4139 = vadd.f32 %v1343, %v4138
    %v4140 = vpop.f32.mrb[0].mxu0
    %v4141 = vadd.f32 %v1347, %v4140
    %v4142 = vpop.f32.mrb[0].mxu0
    %v4143 = vadd.f32 %v1343, %v4142
    %v4144 = vpop.f32.mrb[0].mxu0
    %v4145 = vadd.f32 %v1347, %v4144
    %4146 = vdwg.mxu0
    %4147 = vmatprep.subr.bf16.mxu0 %v3039
    %4148 = vmatpush1.bf16.msra.mxu0 %v3038
    %4149 = vmatprep.subr.bf16.mxu0 %v3047
    %4150 = vmatpush1.bf16.msra.mxu0 %v3046
    %4151 = vmatprep.subr.bf16.mxu0 %v3055
    %4152 = vmatpush1.bf16.msra.mxu0 %v3054
    %4153 = vmatprep.subr.bf16.mxu0 %v3063
    %4154 = vmatpush1.bf16.msra.mxu0 %v3062
    %4155 = vmatprep.subr.bf16.mxu0 %v3071
    %4156 = vmatpush1.bf16.msra.mxu0 %v3070
    %4157 = vmatprep.subr.bf16.mxu0 %v3079
    %4158 = vmatpush1.bf16.msra.mxu0 %v3078
    %4159 = vmatprep.subr.bf16.mxu0 %v3087
    %4160 = vmatpush1.bf16.msra.mxu0 %v3086
    %4161 = vmatprep.subr.bf16.mxu0 %v3095
    %4162 = vmatpush1.bf16.msra.mxu0 %v3094
    %4163 = vmatprep.subr.bf16.mxu0 %v3103
    %4164 = vmatpush1.bf16.msra.mxu0 %v3102
    %4165 = vmatprep.subr.bf16.mxu0 %v3111
    %4166 = vmatpush1.bf16.msra.mxu0 %v3110
    %4167 = vmatprep.subr.bf16.mxu0 %v3119
    %4168 = vmatpush1.bf16.msra.mxu0 %v3118
    %4169 = vmatprep.subr.bf16.mxu0 %v3127
    %4170 = vmatpush1.bf16.msra.mxu0 %v3126
    %4171 = vmatprep.subr.bf16.mxu0 %v3135
    %4172 = vmatpush1.bf16.msra.mxu0 %v3134
    %4173 = vmatprep.subr.bf16.mxu0 %v3143
    %4174 = vmatpush1.bf16.msra.mxu0 %v3142
    %4175 = vmatprep.subr.bf16.mxu0 %v3151
    %4176 = vmatpush1.bf16.msra.mxu0 %v3150
    %4177 = vmatprep.subr.bf16.mxu0 %v3159
    %4178 = vmatpush1.bf16.msra.mxu0 %v3158
    %4179 = vmatprep.mubr.bf16.mxu0 %v813
    %4180 = vmatmul.mubr.bf16.gmra.mrb[0].mxu0 %v812
    %v4181 = vpop.f32.mrb[0].mxu0
    %v4182 = vadd.f32 %v4139, %v4181
    %v4183 = vpop.f32.mrb[0].mxu0
    %v4184 = vadd.f32 %v4141, %v4183
    %v4185 = vpop.f32.mrb[0].mxu0
    %v4186 = vadd.f32 %v4143, %v4185
    %v4187 = vpop.f32.mrb[0].mxu0
    %v4188 = vadd.f32 %v4145, %v4187
    %4189 = vdwg.mxu0
    %4190 = vmatprep.subr.bf16.mxu0 %v3167
    %4191 = vmatpush1.bf16.msra.mxu0 %v3166
    %4192 = vmatprep.subr.bf16.mxu0 %v3175
    %4193 = vmatpush1.bf16.msra.mxu0 %v3174
    %4194 = vmatprep.subr.bf16.mxu0 %v3183
    %4195 = vmatpush1.bf16.msra.mxu0 %v3182
    %4196 = vmatprep.subr.bf16.mxu0 %v3191
    %4197 = vmatpush1.bf16.msra.mxu0 %v3190
    %4198 = vmatprep.subr.bf16.mxu0 %v3199
    %4199 = vmatpush1.bf16.msra.mxu0 %v3198
    %4200 = vmatprep.subr.bf16.mxu0 %v3207
    %4201 = vmatpush1.bf16.msra.mxu0 %v3206
    %4202 = vmatprep.subr.bf16.mxu0 %v3215
    %4203 = vmatpush1.bf16.msra.mxu0 %v3214
    %4204 = vmatprep.subr.bf16.mxu0 %v3223
    %4205 = vmatpush1.bf16.msra.mxu0 %v3222
    %4206 = vmatprep.subr.bf16.mxu0 %v3231
    %4207 = vmatpush1.bf16.msra.mxu0 %v3230
    %4208 = vmatprep.subr.bf16.mxu0 %v3239
    %4209 = vmatpush1.bf16.msra.mxu0 %v3238
    %4210 = vmatprep.subr.bf16.mxu0 %v3247
    %4211 = vmatpush1.bf16.msra.mxu0 %v3246
    %4212 = vmatprep.subr.bf16.mxu0 %v3255
    %4213 = vmatpush1.bf16.msra.mxu0 %v3254
    %4214 = vmatprep.subr.bf16.mxu0 %v3263
    %4215 = vmatpush1.bf16.msra.mxu0 %v3262
    %4216 = vmatprep.subr.bf16.mxu0 %v3271
    %4217 = vmatpush1.bf16.msra.mxu0 %v3270
    %4218 = vmatprep.subr.bf16.mxu0 %v3279
    %4219 = vmatpush1.bf16.msra.mxu0 %v3278
    %4220 = vmatprep.subr.bf16.mxu0 %v3287
    %4221 = vmatpush1.bf16.msra.mxu0 %v3286
    %4222 = vmatprep.mubr.bf16.mxu0 %v815
    %4223 = vmatmul.mubr.bf16.gmra.mrb[0].mxu0 %v814
    %v4224 = vpop.f32.mrb[0].mxu0
    %v4225 = vadd.f32 %v4182, %v4224
    %v4226 = vpop.f32.mrb[0].mxu0
    %v4227 = vadd.f32 %v4184, %v4226
    %v4228 = vpop.f32.mrb[0].mxu0
    %v4229 = vadd.f32 %v4186, %v4228
    %v4230 = vpop.f32.mrb[0].mxu0
    %v4231 = vadd.f32 %v4188, %v4230
    %4232 = vdwg.mxu0
    %4233 = vmatprep.subr.bf16.mxu0 %v3295
    %4234 = vmatpush1.bf16.msra.mxu0 %v3294
    %4235 = vmatprep.subr.bf16.mxu0 %v3303
    %4236 = vmatpush1.bf16.msra.mxu0 %v3302
    %4237 = vmatprep.subr.bf16.mxu0 %v3311
    %4238 = vmatpush1.bf16.msra.mxu0 %v3310
    %4239 = vmatprep.subr.bf16.mxu0 %v3319
    %4240 = vmatpush1.bf16.msra.mxu0 %v3318
    %4241 = vmatprep.subr.bf16.mxu0 %v3327
    %4242 = vmatpush1.bf16.msra.mxu0 %v3326
    %4243 = vmatprep.subr.bf16.mxu0 %v3335
    %4244 = vmatpush1.bf16.msra.mxu0 %v3334
    %4245 = vmatprep.subr.bf16.mxu0 %v3343
    %4246 = vmatpush1.bf16.msra.mxu0 %v3342
    %4247 = vmatprep.subr.bf16.mxu0 %v3351
    %4248 = vmatpush1.bf16.msra.mxu0 %v3350
    %4249 = vmatprep.subr.bf16.mxu0 %v3359
    %4250 = vmatpush1.bf16.msra.mxu0 %v3358
    %4251 = vmatprep.subr.bf16.mxu0 %v3367
    %4252 = vmatpush1.bf16.msra.mxu0 %v3366
    %4253 = vmatprep.subr.bf16.mxu0 %v3375
    %4254 = vmatpush1.bf16.msra.mxu0 %v3374
    %4255 = vmatprep.subr.bf16.mxu0 %v3383
    %4256 = vmatpush1.bf16.msra.mxu0 %v3382
    %4257 = vmatprep.subr.bf16.mxu0 %v3391
    %4258 = vmatpush1.bf16.msra.mxu0 %v3390
    %4259 = vmatprep.subr.bf16.mxu0 %v3399
    %4260 = vmatpush1.bf16.msra.mxu0 %v3398
    %4261 = vmatprep.subr.bf16.mxu0 %v3407
    %4262 = vmatpush1.bf16.msra.mxu0 %v3406
    %4263 = vmatprep.subr.bf16.mxu0 %v3415
    %4264 = vmatpush1.bf16.msra.mxu0 %v3414
    %4265 = vmatprep.mubr.bf16.mxu0 %v817
    %4266 = vmatmul.mubr.bf16.gmra.mrb[0].mxu0 %v816
    %v4267 = vpop.f32.mrb[0].mxu0
    %v4268 = vadd.f32 %v4225, %v4267
    %v4269 = vpop.f32.mrb[0].mxu0
    %v4270 = vadd.f32 %v4227, %v4269
    %v4271 = vpop.f32.mrb[0].mxu0
    %v4272 = vadd.f32 %v4229, %v4271
    %v4273 = vpop.f32.mrb[0].mxu0
    %v4274 = vadd.f32 %v4231, %v4273
    %4275 = vdwg.mxu0
    %4276 = vmatprep.subr.bf16.mxu0 %v2913
    %4277 = vmatpush1.bf16.msra.mxu0 %v2912
    %4278 = vmatprep.subr.bf16.mxu0 %v2921
    %4279 = vmatpush1.bf16.msra.mxu0 %v2920
    %4280 = vmatprep.subr.bf16.mxu0 %v2929
    %4281 = vmatpush1.bf16.msra.mxu0 %v2928
    %4282 = vmatprep.subr.bf16.mxu0 %v2937
    %4283 = vmatpush1.bf16.msra.mxu0 %v2936
    %4284 = vmatprep.subr.bf16.mxu0 %v2945
    %4285 = vmatpush1.bf16.msra.mxu0 %v2944
    %4286 = vmatprep.subr.bf16.mxu0 %v2953
    %4287 = vmatpush1.bf16.msra.mxu0 %v2952
    %4288 = vmatprep.subr.bf16.mxu0 %v2961
    %4289 = vmatpush1.bf16.msra.mxu0 %v2960
    %4290 = vmatprep.subr.bf16.mxu0 %v2969
    %4291 = vmatpush1.bf16.msra.mxu0 %v2968
    %4292 = vmatprep.subr.bf16.mxu0 %v2977
    %4293 = vmatpush1.bf16.msra.mxu0 %v2976
    %4294 = vmatprep.subr.bf16.mxu0 %v2985
    %4295 = vmatpush1.bf16.msra.mxu0 %v2984
    %4296 = vmatprep.subr.bf16.mxu0 %v2993
    %4297 = vmatpush1.bf16.msra.mxu0 %v2992
    %4298 = vmatprep.subr.bf16.mxu0 %v3001
    %4299 = vmatpush1.bf16.msra.mxu0 %v3000
    %4300 = vmatprep.subr.bf16.mxu0 %v3009
    %4301 = vmatpush1.bf16.msra.mxu0 %v3008
    %4302 = vmatprep.subr.bf16.mxu0 %v3017
    %4303 = vmatpush1.bf16.msra.mxu0 %v3016
    %4304 = vmatprep.subr.bf16.mxu0 %v3025
    %4305 = vmatpush1.bf16.msra.mxu0 %v3024
    %4306 = vmatprep.subr.bf16.mxu0 %v3033
    %4307 = vmatpush1.bf16.msra.mxu0 %v3032
    %4308 = vmatprep.mubr.bf16.mxu0 %v811
    %4309 = vmatmul.mubr.bf16.gmra.mrb[0].mxu0 %v810
    %v4310 = vpop.f32.mrb[0].mxu0
    %v4311 = vadd.f32 %v1351, %v4310
    %v4312 = vpop.f32.mrb[0].mxu0
    %v4313 = vadd.f32 %v1355, %v4312
    %v4314 = vpop.f32.mrb[0].mxu0
    %v4315 = vadd.f32 %v1351, %v4314
    %v4316 = vpop.f32.mrb[0].mxu0
    %v4317 = vadd.f32 %v1355, %v4316
    %4318 = vdwg.mxu0
    %4319 = vmatprep.subr.bf16.mxu0 %v3041
    %4320 = vmatpush1.bf16.msra.mxu0 %v3040
    %4321 = vmatprep.subr.bf16.mxu0 %v3049
    %4322 = vmatpush1.bf16.msra.mxu0 %v3048
    %4323 = vmatprep.subr.bf16.mxu0 %v3057
    %4324 = vmatpush1.bf16.msra.mxu0 %v3056
    %4325 = vmatprep.subr.bf16.mxu0 %v3065
    %4326 = vmatpush1.bf16.msra.mxu0 %v3064
    %4327 = vmatprep.subr.bf16.mxu0 %v3073
    %4328 = vmatpush1.bf16.msra.mxu0 %v3072
    %4329 = vmatprep.subr.bf16.mxu0 %v3081
    %4330 = vmatpush1.bf16.msra.mxu0 %v3080
    %4331 = vmatprep.subr.bf16.mxu0 %v3089
    %4332 = vmatpush1.bf16.msra.mxu0 %v3088
    %4333 = vmatprep.subr.bf16.mxu0 %v3097
    %4334 = vmatpush1.bf16.msra.mxu0 %v3096
    %4335 = vmatprep.subr.bf16.mxu0 %v3105
    %4336 = vmatpush1.bf16.msra.mxu0 %v3104
    %4337 = vmatprep.subr.bf16.mxu0 %v3113
    %4338 = vmatpush1.bf16.msra.mxu0 %v3112
    %4339 = vmatprep.subr.bf16.mxu0 %v3121
    %4340 = vmatpush1.bf16.msra.mxu0 %v3120
    %4341 = vmatprep.subr.bf16.mxu0 %v3129
    %4342 = vmatpush1.bf16.msra.mxu0 %v3128
    %4343 = vmatprep.subr.bf16.mxu0 %v3137
    %4344 = vmatpush1.bf16.msra.mxu0 %v3136
    %4345 = vmatprep.subr.bf16.mxu0 %v3145
    %4346 = vmatpush1.bf16.msra.mxu0 %v3144
    %4347 = vmatprep.subr.bf16.mxu0 %v3153
    %4348 = vmatpush1.bf16.msra.mxu0 %v3152
    %4349 = vmatprep.subr.bf16.mxu0 %v3161
    %4350 = vmatpush1.bf16.msra.mxu0 %v3160
    %4351 = vmatprep.mubr.bf16.mxu0 %v813
    %4352 = vmatmul.mubr.bf16.gmra.mrb[0].mxu0 %v812
    %v4353 = vpop.f32.mrb[0].mxu0
    %v4354 = vadd.f32 %v4311, %v4353
    %v4355 = vpop.f32.mrb[0].mxu0
    %v4356 = vadd.f32 %v4313, %v4355
    %v4357 = vpop.f32.mrb[0].mxu0
    %v4358 = vadd.f32 %v4315, %v4357
    %v4359 = vpop.f32.mrb[0].mxu0
    %v4360 = vadd.f32 %v4317, %v4359
    %4361 = vdwg.mxu0
    %4362 = vmatprep.subr.bf16.mxu0 %v3169
    %4363 = vmatpush1.bf16.msra.mxu0 %v3168
    %4364 = vmatprep.subr.bf16.mxu0 %v3177
    %4365 = vmatpush1.bf16.msra.mxu0 %v3176
    %4366 = vmatprep.subr.bf16.mxu0 %v3185
    %4367 = vmatpush1.bf16.msra.mxu0 %v3184
    %4368 = vmatprep.subr.bf16.mxu0 %v3193
    %4369 = vmatpush1.bf16.msra.mxu0 %v3192
    %4370 = vmatprep.subr.bf16.mxu0 %v3201
    %4371 = vmatpush1.bf16.msra.mxu0 %v3200
    %4372 = vmatprep.subr.bf16.mxu0 %v3209
    %4373 = vmatpush1.bf16.msra.mxu0 %v3208
    %4374 = vmatprep.subr.bf16.mxu0 %v3217
    %4375 = vmatpush1.bf16.msra.mxu0 %v3216
    %4376 = vmatprep.subr.bf16.mxu0 %v3225
    %4377 = vmatpush1.bf16.msra.mxu0 %v3224
    %4378 = vmatprep.subr.bf16.mxu0 %v3233
    %4379 = vmatpush1.bf16.msra.mxu0 %v3232
    %4380 = vmatprep.subr.bf16.mxu0 %v3241
    %4381 = vmatpush1.bf16.msra.mxu0 %v3240
    %4382 = vmatprep.subr.bf16.mxu0 %v3249
    %4383 = vmatpush1.bf16.msra.mxu0 %v3248
    %4384 = vmatprep.subr.bf16.mxu0 %v3257
    %4385 = vmatpush1.bf16.msra.mxu0 %v3256
    %4386 = vmatprep.subr.bf16.mxu0 %v3265
    %4387 = vmatpush1.bf16.msra.mxu0 %v3264
    %4388 = vmatprep.subr.bf16.mxu0 %v3273
    %4389 = vmatpush1.bf16.msra.mxu0 %v3272
    %4390 = vmatprep.subr.bf16.mxu0 %v3281
    %4391 = vmatpush1.bf16.msra.mxu0 %v3280
    %4392 = vmatprep.subr.bf16.mxu0 %v3289
    %4393 = vmatpush1.bf16.msra.mxu0 %v3288
    %4394 = vmatprep.mubr.bf16.mxu0 %v815
    %4395 = vmatmul.mubr.bf16.gmra.mrb[0].mxu0 %v814
    %v4396 = vpop.f32.mrb[0].mxu0
    %v4397 = vadd.f32 %v4354, %v4396
    %v4398 = vpop.f32.mrb[0].mxu0
    %v4399 = vadd.f32 %v4356, %v4398
    %v4400 = vpop.f32.mrb[0].mxu0
    %v4401 = vadd.f32 %v4358, %v4400
    %v4402 = vpop.f32.mrb[0].mxu0
    %v4403 = vadd.f32 %v4360, %v4402
    %4404 = vdwg.mxu0
    %4405 = vmatprep.subr.bf16.mxu0 %v3297
    %4406 = vmatpush1.bf16.msra.mxu0 %v3296
    %4407 = vmatprep.subr.bf16.mxu0 %v3305
    %4408 = vmatpush1.bf16.msra.mxu0 %v3304
    %4409 = vmatprep.subr.bf16.mxu0 %v3313
    %4410 = vmatpush1.bf16.msra.mxu0 %v3312
    %4411 = vmatprep.subr.bf16.mxu0 %v3321
    %4412 = vmatpush1.bf16.msra.mxu0 %v3320
    %4413 = vmatprep.subr.bf16.mxu0 %v3329
    %4414 = vmatpush1.bf16.msra.mxu0 %v3328
    %4415 = vmatprep.subr.bf16.mxu0 %v3337
    %4416 = vmatpush1.bf16.msra.mxu0 %v3336
    %4417 = vmatprep.subr.bf16.mxu0 %v3345
    %4418 = vmatpush1.bf16.msra.mxu0 %v3344
    %4419 = vmatprep.subr.bf16.mxu0 %v3353
    %4420 = vmatpush1.bf16.msra.mxu0 %v3352
    %4421 = vmatprep.subr.bf16.mxu0 %v3361
    %4422 = vmatpush1.bf16.msra.mxu0 %v3360
    %4423 = vmatprep.subr.bf16.mxu0 %v3369
    %4424 = vmatpush1.bf16.msra.mxu0 %v3368
    %4425 = vmatprep.subr.bf16.mxu0 %v3377
    %4426 = vmatpush1.bf16.msra.mxu0 %v3376
    %4427 = vmatprep.subr.bf16.mxu0 %v3385
    %4428 = vmatpush1.bf16.msra.mxu0 %v3384
    %4429 = vmatprep.subr.bf16.mxu0 %v3393
    %4430 = vmatpush1.bf16.msra.mxu0 %v3392
    %4431 = vmatprep.subr.bf16.mxu0 %v3401
    %4432 = vmatpush1.bf16.msra.mxu0 %v3400
    %4433 = vmatprep.subr.bf16.mxu0 %v3409
    %4434 = vmatpush1.bf16.msra.mxu0 %v3408
    %4435 = vmatprep.subr.bf16.mxu0 %v3417
    %4436 = vmatpush1.bf16.msra.mxu0 %v3416
    %4437 = vmatprep.mubr.bf16.mxu0 %v817
    %4438 = vmatmul.mubr.bf16.gmra.mrb[0].mxu0 %v816
    %v4439 = vpop.f32.mrb[0].mxu0
    %v4440 = vadd.f32 %v4397, %v4439
    %v4441 = vpop.f32.mrb[0].mxu0
    %v4442 = vadd.f32 %v4399, %v4441
    %v4443 = vpop.f32.mrb[0].mxu0
    %v4444 = vadd.f32 %v4401, %v4443
    %v4445 = vpop.f32.mrb[0].mxu0
    %v4446 = vadd.f32 %v4403, %v4445
    %4447 = vdwg.mxu0
    %4448 = vmatprep.subr.bf16.mxu0 %v2915
    %4449 = vmatpush1.bf16.msra.mxu0 %v2914
    %4450 = vmatprep.subr.bf16.mxu0 %v2923
    %4451 = vmatpush1.bf16.msra.mxu0 %v2922
    %4452 = vmatprep.subr.bf16.mxu0 %v2931
    %4453 = vmatpush1.bf16.msra.mxu0 %v2930
    %4454 = vmatprep.subr.bf16.mxu0 %v2939
    %4455 = vmatpush1.bf16.msra.mxu0 %v2938
    %4456 = vmatprep.subr.bf16.mxu0 %v2947
    %4457 = vmatpush1.bf16.msra.mxu0 %v2946
    %4458 = vmatprep.subr.bf16.mxu0 %v2955
    %4459 = vmatpush1.bf16.msra.mxu0 %v2954
    %4460 = vmatprep.subr.bf16.mxu0 %v2963
    %4461 = vmatpush1.bf16.msra.mxu0 %v2962
    %4462 = vmatprep.subr.bf16.mxu0 %v2971
    %4463 = vmatpush1.bf16.msra.mxu0 %v2970
    %4464 = vmatprep.subr.bf16.mxu0 %v2979
    %4465 = vmatpush1.bf16.msra.mxu0 %v2978
    %4466 = vmatprep.subr.bf16.mxu0 %v2987
    %4467 = vmatpush1.bf16.msra.mxu0 %v2986
    %4468 = vmatprep.subr.bf16.mxu0 %v2995
    %4469 = vmatpush1.bf16.msra.mxu0 %v2994
    %4470 = vmatprep.subr.bf16.mxu0 %v3003
    %4471 = vmatpush1.bf16.msra.mxu0 %v3002
    %4472 = vmatprep.subr.bf16.mxu0 %v3011
    %4473 = vmatpush1.bf16.msra.mxu0 %v3010
    %4474 = vmatprep.subr.bf16.mxu0 %v3019
    %4475 = vmatpush1.bf16.msra.mxu0 %v3018
    %4476 = vmatprep.subr.bf16.mxu0 %v3027
    %4477 = vmatpush1.bf16.msra.mxu0 %v3026
    %4478 = vmatprep.subr.bf16.mxu0 %v3035
    %4479 = vmatpush1.bf16.msra.mxu0 %v3034
    %4480 = vmatprep.mubr.bf16.mxu0 %v811
    %4481 = vmatmul.mubr.bf16.gmra.mrb[0].mxu0 %v810
    %v4482 = vpop.f32.mrb[0].mxu0
    %v4483 = vadd.f32 %v1359, %v4482
    %v4484 = vpop.f32.mrb[0].mxu0
    %v4485 = vadd.f32 %v1363, %v4484
    %v4486 = vpop.f32.mrb[0].mxu0
    %v4487 = vadd.f32 %v1359, %v4486
    %v4488 = vpop.f32.mrb[0].mxu0
    %v4489 = vadd.f32 %v1363, %v4488
    %4490 = vdwg.mxu0
    %4491 = vmatprep.subr.bf16.mxu0 %v3043
    %4492 = vmatpush1.bf16.msra.mxu0 %v3042
    %4493 = vmatprep.subr.bf16.mxu0 %v3051
    %4494 = vmatpush1.bf16.msra.mxu0 %v3050
    %4495 = vmatprep.subr.bf16.mxu0 %v3059
    %4496 = vmatpush1.bf16.msra.mxu0 %v3058
    %4497 = vmatprep.subr.bf16.mxu0 %v3067
    %4498 = vmatpush1.bf16.msra.mxu0 %v3066
    %4499 = vmatprep.subr.bf16.mxu0 %v3075
    %4500 = vmatpush1.bf16.msra.mxu0 %v3074
    %4501 = vmatprep.subr.bf16.mxu0 %v3083
    %4502 = vmatpush1.bf16.msra.mxu0 %v3082
    %4503 = vmatprep.subr.bf16.mxu0 %v3091
    %4504 = vmatpush1.bf16.msra.mxu0 %v3090
    %4505 = vmatprep.subr.bf16.mxu0 %v3099
    %4506 = vmatpush1.bf16.msra.mxu0 %v3098
    %4507 = vmatprep.subr.bf16.mxu0 %v3107
    %4508 = vmatpush1.bf16.msra.mxu0 %v3106
    %4509 = vmatprep.subr.bf16.mxu0 %v3115
    %4510 = vmatpush1.bf16.msra.mxu0 %v3114
    %4511 = vmatprep.subr.bf16.mxu0 %v3123
    %4512 = vmatpush1.bf16.msra.mxu0 %v3122
    %4513 = vmatprep.subr.bf16.mxu0 %v3131
    %4514 = vmatpush1.bf16.msra.mxu0 %v3130
    %4515 = vmatprep.subr.bf16.mxu0 %v3139
    %4516 = vmatpush1.bf16.msra.mxu0 %v3138
    %4517 = vmatprep.subr.bf16.mxu0 %v3147
    %4518 = vmatpush1.bf16.msra.mxu0 %v3146
    %4519 = vmatprep.subr.bf16.mxu0 %v3155
    %4520 = vmatpush1.bf16.msra.mxu0 %v3154
    %4521 = vmatprep.subr.bf16.mxu0 %v3163
    %4522 = vmatpush1.bf16.msra.mxu0 %v3162
    %4523 = vmatprep.mubr.bf16.mxu0 %v813
    %4524 = vmatmul.mubr.bf16.gmra.mrb[0].mxu0 %v812
    %v4525 = vpop.f32.mrb[0].mxu0
    %v4526 = vadd.f32 %v4483, %v4525
    %v4527 = vpop.f32.mrb[0].mxu0
    %v4528 = vadd.f32 %v4485, %v4527
    %v4529 = vpop.f32.mrb[0].mxu0
    %v4530 = vadd.f32 %v4487, %v4529
    %v4531 = vpop.f32.mrb[0].mxu0
    %v4532 = vadd.f32 %v4489, %v4531
    %4533 = vdwg.mxu0
    %4534 = vmatprep.subr.bf16.mxu0 %v3171
    %4535 = vmatpush1.bf16.msra.mxu0 %v3170
    %4536 = vmatprep.subr.bf16.mxu0 %v3179
    %4537 = vmatpush1.bf16.msra.mxu0 %v3178
    %4538 = vmatprep.subr.bf16.mxu0 %v3187
    %4539 = vmatpush1.bf16.msra.mxu0 %v3186
    %4540 = vmatprep.subr.bf16.mxu0 %v3195
    %4541 = vmatpush1.bf16.msra.mxu0 %v3194
    %4542 = vmatprep.subr.bf16.mxu0 %v3203
    %4543 = vmatpush1.bf16.msra.mxu0 %v3202
    %4544 = vmatprep.subr.bf16.mxu0 %v3211
    %4545 = vmatpush1.bf16.msra.mxu0 %v3210
    %4546 = vmatprep.subr.bf16.mxu0 %v3219
    %4547 = vmatpush1.bf16.msra.mxu0 %v3218
    %4548 = vmatprep.subr.bf16.mxu0 %v3227
    %4549 = vmatpush1.bf16.msra.mxu0 %v3226
    %4550 = vmatprep.subr.bf16.mxu0 %v3235
    %4551 = vmatpush1.bf16.msra.mxu0 %v3234
    %4552 = vmatprep.subr.bf16.mxu0 %v3243
    %4553 = vmatpush1.bf16.msra.mxu0 %v3242
    %4554 = vmatprep.subr.bf16.mxu0 %v3251
    %4555 = vmatpush1.bf16.msra.mxu0 %v3250
    %4556 = vmatprep.subr.bf16.mxu0 %v3259
    %4557 = vmatpush1.bf16.msra.mxu0 %v3258
    %4558 = vmatprep.subr.bf16.mxu0 %v3267
    %4559 = vmatpush1.bf16.msra.mxu0 %v3266
    %4560 = vmatprep.subr.bf16.mxu0 %v3275
    %4561 = vmatpush1.bf16.msra.mxu0 %v3274
    %4562 = vmatprep.subr.bf16.mxu0 %v3283
    %4563 = vmatpush1.bf16.msra.mxu0 %v3282
    %4564 = vmatprep.subr.bf16.mxu0 %v3291
    %4565 = vmatpush1.bf16.msra.mxu0 %v3290
    %4566 = vmatprep.mubr.bf16.mxu0 %v815
    %4567 = vmatmul.mubr.bf16.gmra.mrb[0].mxu0 %v814
    %v4568 = vpop.f32.mrb[0].mxu0
    %v4569 = vadd.f32 %v4526, %v4568
    %v4570 = vpop.f32.mrb[0].mxu0
    %v4571 = vadd.f32 %v4528, %v4570
    %v4572 = vpop.f32.mrb[0].mxu0
    %v4573 = vadd.f32 %v4530, %v4572
    %v4574 = vpop.f32.mrb[0].mxu0
    %v4575 = vadd.f32 %v4532, %v4574
    %4576 = vdwg.mxu0
    %4577 = vmatprep.subr.bf16.mxu0 %v3299
    %4578 = vmatpush1.bf16.msra.mxu0 %v3298
    %4579 = vmatprep.subr.bf16.mxu0 %v3307
    %4580 = vmatpush1.bf16.msra.mxu0 %v3306
    %4581 = vmatprep.subr.bf16.mxu0 %v3315
    %4582 = vmatpush1.bf16.msra.mxu0 %v3314
    %4583 = vmatprep.subr.bf16.mxu0 %v3323
    %4584 = vmatpush1.bf16.msra.mxu0 %v3322
    %4585 = vmatprep.subr.bf16.mxu0 %v3331
    %4586 = vmatpush1.bf16.msra.mxu0 %v3330
    %4587 = vmatprep.subr.bf16.mxu0 %v3339
    %4588 = vmatpush1.bf16.msra.mxu0 %v3338
    %4589 = vmatprep.subr.bf16.mxu0 %v3347
    %4590 = vmatpush1.bf16.msra.mxu0 %v3346
    %4591 = vmatprep.subr.bf16.mxu0 %v3355
    %4592 = vmatpush1.bf16.msra.mxu0 %v3354
    %4593 = vmatprep.subr.bf16.mxu0 %v3363
    %4594 = vmatpush1.bf16.msra.mxu0 %v3362
    %4595 = vmatprep.subr.bf16.mxu0 %v3371
    %4596 = vmatpush1.bf16.msra.mxu0 %v3370
    %4597 = vmatprep.subr.bf16.mxu0 %v3379
    %4598 = vmatpush1.bf16.msra.mxu0 %v3378
    %4599 = vmatprep.subr.bf16.mxu0 %v3387
    %4600 = vmatpush1.bf16.msra.mxu0 %v3386
    %4601 = vmatprep.subr.bf16.mxu0 %v3395
    %4602 = vmatpush1.bf16.msra.mxu0 %v3394
    %4603 = vmatprep.subr.bf16.mxu0 %v3403
    %4604 = vmatpush1.bf16.msra.mxu0 %v3402
    %4605 = vmatprep.subr.bf16.mxu0 %v3411
    %4606 = vmatpush1.bf16.msra.mxu0 %v3410
    %4607 = vmatprep.subr.bf16.mxu0 %v3419
    %4608 = vmatpush1.bf16.msra.mxu0 %v3418
    %4609 = vmatprep.mubr.bf16.mxu0 %v817
    %4610 = vmatmul.mubr.bf16.gmra.mrb[0].mxu0 %v816
    %v4611 = vpop.f32.mrb[0].mxu0
    %v4612 = vadd.f32 %v4569, %v4611
    %v4613 = vpop.f32.mrb[0].mxu0
    %v4614 = vadd.f32 %v4571, %v4613
    %v4615 = vpop.f32.mrb[0].mxu0
    %v4616 = vadd.f32 %v4573, %v4615
    %v4617 = vpop.f32.mrb[0].mxu0
    %v4618 = vadd.f32 %v4575, %v4617
    %4619 = vdwg.mxu0
    %v4620 = vmul.f32 %v4096, 0.01
    %v4621 = vmul.f32 %v4098, 0.01
    %v4622 = vmul.f32 %v4268, 0.01
    %v4623 = vmul.f32 %v4270, 0.01
    %v4624 = vmul.f32 %v4440, 0.01
    %v4625 = vmul.f32 %v4442, 0.01
    %v4626 = vmul.f32 %v4612, 0.01
    %v4627 = vmul.f32 %v4614, 0.01
    %v4628 = vmul.f32 %v4100, 0.01
    %v4629 = vmul.f32 %v4102, 0.01
    %v4630 = vmul.f32 %v4272, 0.01
    %v4631 = vmul.f32 %v4274, 0.01
    %v4632 = vmul.f32 %v4444, 0.01
    %v4633 = vmul.f32 %v4446, 0.01
    %v4634 = vmul.f32 %v4616, 0.01
    %v4635 = vmul.f32 %v4618, 0.01
    %v4636 = vmax.f32 %v4096, %v4620
    %v4637 = vmax.f32 %v4098, %v4621
    %v4638 = vmax.f32 %v4268, %v4622
    %v4639 = vmax.f32 %v4270, %v4623
    %v4640 = vmax.f32 %v4440, %v4624
    %v4641 = vmax.f32 %v4442, %v4625
    %v4642 = vmax.f32 %v4612, %v4626
    %v4643 = vmax.f32 %v4614, %v4627
    %v4644 = vmax.f32 %v4100, %v4628
    %v4645 = vmax.f32 %v4102, %v4629
    %v4646 = vmax.f32 %v4272, %v4630
    %v4647 = vmax.f32 %v4274, %v4631
    %v4648 = vmax.f32 %v4444, %v4632
    %v4649 = vmax.f32 %v4446, %v4633
    %v4650 = vmax.f32 %v4616, %v4634
    %v4651 = vmax.f32 %v4618, %v4635
    %v4652 = vpack.c.bf16 %v4644, %v4636
    %v4653 = vpack.c.bf16 %v4645, %v4637
    %v4654 = vpack.c.bf16 %v4646, %v4638
    %v4655 = vpack.c.bf16 %v4647, %v4639
    %v4656 = vpack.c.bf16 %v4648, %v4640
    %v4657 = vpack.c.bf16 %v4649, %v4641
    %v4658 = vpack.c.bf16 %v4650, %v4642
    %v4659 = vpack.c.bf16 %v4651, %v4643
    %v4660 = vld [vmem:[#allocation11] sm:$0xff]
    %v4661 = vld [vmem:[#allocation11 + $0x8] sm:$0xff]
    %v4662 = vld [vmem:[#allocation11 + $0x10] sm:$0xff]
    %v4663 = vld [vmem:[#allocation11 + $0x18] sm:$0xff]
    %v4664 = vld [vmem:[#allocation11 + $0x20] sm:$0xff]
    %v4665 = vld [vmem:[#allocation11 + $0x28] sm:$0xff]
    %v4666 = vld [vmem:[#allocation11 + $0x30] sm:$0xff]
    %v4667 = vld [vmem:[#allocation11 + $0x38] sm:$0xff]
    %v4668 = vld [vmem:[#allocation11 + $0x40] sm:$0xff]
    %v4669 = vld [vmem:[#allocation11 + $0x48] sm:$0xff]
    %v4670 = vld [vmem:[#allocation11 + $0x50] sm:$0xff]
    %v4671 = vld [vmem:[#allocation11 + $0x58] sm:$0xff]
    %v4672 = vld [vmem:[#allocation11 + $0x60] sm:$0xff]
    %v4673 = vld [vmem:[#allocation11 + $0x68] sm:$0xff]
    %v4674 = vld [vmem:[#allocation11 + $0x70] sm:$0xff]
    %v4675 = vld [vmem:[#allocation11 + $0x78] sm:$0xff]
    %v4676 = vld [vmem:[#allocation11 + $0x80] sm:$0xff]
    %v4677 = vld [vmem:[#allocation11 + $0x88] sm:$0xff]
    %v4678 = vld [vmem:[#allocation11 + $0x90] sm:$0xff]
    %v4679 = vld [vmem:[#allocation11 + $0x98] sm:$0xff]
    %v4680 = vld [vmem:[#allocation11 + $0xa0] sm:$0xff]
    %v4681 = vld [vmem:[#allocation11 + $0xa8] sm:$0xff]
    %v4682 = vld [vmem:[#allocation11 + $0xb0] sm:$0xff]
    %v4683 = vld [vmem:[#allocation11 + $0xb8] sm:$0xff]
    %v4684 = vld [vmem:[#allocation11 + $0xc0] sm:$0xff]
    %v4685 = vld [vmem:[#allocation11 + $0xc8] sm:$0xff]
    %v4686 = vld [vmem:[#allocation11 + $0xd0] sm:$0xff]
    %v4687 = vld [vmem:[#allocation11 + $0xd8] sm:$0xff]
    %v4688 = vld [vmem:[#allocation11 + $0xe0] sm:$0xff]
    %v4689 = vld [vmem:[#allocation11 + $0xe8] sm:$0xff]
    %v4690 = vld [vmem:[#allocation11 + $0xf0] sm:$0xff]
    %v4691 = vld [vmem:[#allocation11 + $0xf8] sm:$0xff]
    %v4692 = vld [vmem:[#allocation11 + $0x100] sm:$0xff]
    %v4693 = vld [vmem:[#allocation11 + $0x108] sm:$0xff]
    %v4694 = vld [vmem:[#allocation11 + $0x110] sm:$0xff]
    %v4695 = vld [vmem:[#allocation11 + $0x118] sm:$0xff]
    %v4696 = vld [vmem:[#allocation11 + $0x120] sm:$0xff]
    %v4697 = vld [vmem:[#allocation11 + $0x128] sm:$0xff]
    %v4698 = vld [vmem:[#allocation11 + $0x130] sm:$0xff]
    %v4699 = vld [vmem:[#allocation11 + $0x138] sm:$0xff]
    %v4700 = vld [vmem:[#allocation11 + $0x140] sm:$0xff]
    %v4701 = vld [vmem:[#allocation11 + $0x148] sm:$0xff]
    %v4702 = vld [vmem:[#allocation11 + $0x150] sm:$0xff]
    %v4703 = vld [vmem:[#allocation11 + $0x158] sm:$0xff]
    %v4704 = vld [vmem:[#allocation11 + $0x160] sm:$0xff]
    %v4705 = vld [vmem:[#allocation11 + $0x168] sm:$0xff]
    %v4706 = vld [vmem:[#allocation11 + $0x170] sm:$0xff]
    %v4707 = vld [vmem:[#allocation11 + $0x178] sm:$0xff]
    %v4708 = vld [vmem:[#allocation11 + $0x180] sm:$0xff]
    %v4709 = vld [vmem:[#allocation11 + $0x188] sm:$0xff]
    %v4710 = vld [vmem:[#allocation11 + $0x190] sm:$0xff]
    %v4711 = vld [vmem:[#allocation11 + $0x198] sm:$0xff]
    %v4712 = vld [vmem:[#allocation11 + $0x1a0] sm:$0xff]
    %v4713 = vld [vmem:[#allocation11 + $0x1a8] sm:$0xff]
    %v4714 = vld [vmem:[#allocation11 + $0x1b0] sm:$0xff]
    %v4715 = vld [vmem:[#allocation11 + $0x1b8] sm:$0xff]
    %v4716 = vld [vmem:[#allocation11 + $0x1c0] sm:$0xff]
    %v4717 = vld [vmem:[#allocation11 + $0x1c8] sm:$0xff]
    %v4718 = vld [vmem:[#allocation11 + $0x1d0] sm:$0xff]
    %v4719 = vld [vmem:[#allocation11 + $0x1d8] sm:$0xff]
    %v4720 = vld [vmem:[#allocation11 + $0x1e0] sm:$0xff]
    %v4721 = vld [vmem:[#allocation11 + $0x1e8] sm:$0xff]
    %v4722 = vld [vmem:[#allocation11 + $0x1f0] sm:$0xff]
    %v4723 = vld [vmem:[#allocation11 + $0x1f8] sm:$0xff]
    %v4724 = vld [vmem:[#allocation11 + $0x200] sm:$0xff]
    %v4725 = vld [vmem:[#allocation11 + $0x208] sm:$0xff]
    %v4726 = vld [vmem:[#allocation11 + $0x210] sm:$0xff]
    %v4727 = vld [vmem:[#allocation11 + $0x218] sm:$0xff]
    %v4728 = vld [vmem:[#allocation11 + $0x220] sm:$0xff]
    %v4729 = vld [vmem:[#allocation11 + $0x228] sm:$0xff]
    %v4730 = vld [vmem:[#allocation11 + $0x230] sm:$0xff]
    %v4731 = vld [vmem:[#allocation11 + $0x238] sm:$0xff]
    %v4732 = vld [vmem:[#allocation11 + $0x240] sm:$0xff]
    %v4733 = vld [vmem:[#allocation11 + $0x248] sm:$0xff]
    %v4734 = vld [vmem:[#allocation11 + $0x250] sm:$0xff]
    %v4735 = vld [vmem:[#allocation11 + $0x258] sm:$0xff]
    %v4736 = vld [vmem:[#allocation11 + $0x260] sm:$0xff]
    %v4737 = vld [vmem:[#allocation11 + $0x268] sm:$0xff]
    %v4738 = vld [vmem:[#allocation11 + $0x270] sm:$0xff]
    %v4739 = vld [vmem:[#allocation11 + $0x278] sm:$0xff]
    %v4740 = vld [vmem:[#allocation11 + $0x280] sm:$0xff]
    %v4741 = vld [vmem:[#allocation11 + $0x288] sm:$0xff]
    %v4742 = vld [vmem:[#allocation11 + $0x290] sm:$0xff]
    %v4743 = vld [vmem:[#allocation11 + $0x298] sm:$0xff]
    %v4744 = vld [vmem:[#allocation11 + $0x2a0] sm:$0xff]
    %v4745 = vld [vmem:[#allocation11 + $0x2a8] sm:$0xff]
    %v4746 = vld [vmem:[#allocation11 + $0x2b0] sm:$0xff]
    %v4747 = vld [vmem:[#allocation11 + $0x2b8] sm:$0xff]
    %v4748 = vld [vmem:[#allocation11 + $0x2c0] sm:$0xff]
    %v4749 = vld [vmem:[#allocation11 + $0x2c8] sm:$0xff]
    %v4750 = vld [vmem:[#allocation11 + $0x2d0] sm:$0xff]
    %v4751 = vld [vmem:[#allocation11 + $0x2d8] sm:$0xff]
    %v4752 = vld [vmem:[#allocation11 + $0x2e0] sm:$0xff]
    %v4753 = vld [vmem:[#allocation11 + $0x2e8] sm:$0xff]
    %v4754 = vld [vmem:[#allocation11 + $0x2f0] sm:$0xff]
    %v4755 = vld [vmem:[#allocation11 + $0x2f8] sm:$0xff]
    %v4756 = vld [vmem:[#allocation11 + $0x300] sm:$0xff]
    %v4757 = vld [vmem:[#allocation11 + $0x308] sm:$0xff]
    %v4758 = vld [vmem:[#allocation11 + $0x310] sm:$0xff]
    %v4759 = vld [vmem:[#allocation11 + $0x318] sm:$0xff]
    %v4760 = vld [vmem:[#allocation11 + $0x320] sm:$0xff]
    %v4761 = vld [vmem:[#allocation11 + $0x328] sm:$0xff]
    %v4762 = vld [vmem:[#allocation11 + $0x330] sm:$0xff]
    %v4763 = vld [vmem:[#allocation11 + $0x338] sm:$0xff]
    %v4764 = vld [vmem:[#allocation11 + $0x340] sm:$0xff]
    %v4765 = vld [vmem:[#allocation11 + $0x348] sm:$0xff]
    %v4766 = vld [vmem:[#allocation11 + $0x350] sm:$0xff]
    %v4767 = vld [vmem:[#allocation11 + $0x358] sm:$0xff]
    %v4768 = vld [vmem:[#allocation11 + $0x360] sm:$0xff]
    %v4769 = vld [vmem:[#allocation11 + $0x368] sm:$0xff]
    %v4770 = vld [vmem:[#allocation11 + $0x370] sm:$0xff]
    %v4771 = vld [vmem:[#allocation11 + $0x378] sm:$0xff]
    %v4772 = vld [vmem:[#allocation11 + $0x380] sm:$0xff]
    %v4773 = vld [vmem:[#allocation11 + $0x388] sm:$0xff]
    %v4774 = vld [vmem:[#allocation11 + $0x390] sm:$0xff]
    %v4775 = vld [vmem:[#allocation11 + $0x398] sm:$0xff]
    %v4776 = vld [vmem:[#allocation11 + $0x3a0] sm:$0xff]
    %v4777 = vld [vmem:[#allocation11 + $0x3a8] sm:$0xff]
    %v4778 = vld [vmem:[#allocation11 + $0x3b0] sm:$0xff]
    %v4779 = vld [vmem:[#allocation11 + $0x3b8] sm:$0xff]
    %v4780 = vld [vmem:[#allocation11 + $0x3c0] sm:$0xff]
    %v4781 = vld [vmem:[#allocation11 + $0x3c8] sm:$0xff]
    %v4782 = vld [vmem:[#allocation11 + $0x3d0] sm:$0xff]
    %v4783 = vld [vmem:[#allocation11 + $0x3d8] sm:$0xff]
    %v4784 = vld [vmem:[#allocation11 + $0x3e0] sm:$0xff]
    %v4785 = vld [vmem:[#allocation11 + $0x3e8] sm:$0xff]
    %v4786 = vld [vmem:[#allocation11 + $0x3f0] sm:$0xff]
    %v4787 = vld [vmem:[#allocation11 + $0x3f8] sm:$0xff]
    %v4788 = vld [vmem:[#allocation11 + $0x400] sm:$0xff]
    %v4789 = vld [vmem:[#allocation11 + $0x408] sm:$0xff]
    %v4790 = vld [vmem:[#allocation11 + $0x410] sm:$0xff]
    %v4791 = vld [vmem:[#allocation11 + $0x418] sm:$0xff]
    %v4792 = vld [vmem:[#allocation11 + $0x420] sm:$0xff]
    %v4793 = vld [vmem:[#allocation11 + $0x428] sm:$0xff]
    %v4794 = vld [vmem:[#allocation11 + $0x430] sm:$0xff]
    %v4795 = vld [vmem:[#allocation11 + $0x438] sm:$0xff]
    %v4796 = vld [vmem:[#allocation11 + $0x440] sm:$0xff]
    %v4797 = vld [vmem:[#allocation11 + $0x448] sm:$0xff]
    %v4798 = vld [vmem:[#allocation11 + $0x450] sm:$0xff]
    %v4799 = vld [vmem:[#allocation11 + $0x458] sm:$0xff]
    %v4800 = vld [vmem:[#allocation11 + $0x460] sm:$0xff]
    %v4801 = vld [vmem:[#allocation11 + $0x468] sm:$0xff]
    %v4802 = vld [vmem:[#allocation11 + $0x470] sm:$0xff]
    %v4803 = vld [vmem:[#allocation11 + $0x478] sm:$0xff]
    %v4804 = vld [vmem:[#allocation11 + $0x480] sm:$0xff]
    %v4805 = vld [vmem:[#allocation11 + $0x488] sm:$0xff]
    %v4806 = vld [vmem:[#allocation11 + $0x490] sm:$0xff]
    %v4807 = vld [vmem:[#allocation11 + $0x498] sm:$0xff]
    %v4808 = vld [vmem:[#allocation11 + $0x4a0] sm:$0xff]
    %v4809 = vld [vmem:[#allocation11 + $0x4a8] sm:$0xff]
    %v4810 = vld [vmem:[#allocation11 + $0x4b0] sm:$0xff]
    %v4811 = vld [vmem:[#allocation11 + $0x4b8] sm:$0xff]
    %v4812 = vld [vmem:[#allocation11 + $0x4c0] sm:$0xff]
    %v4813 = vld [vmem:[#allocation11 + $0x4c8] sm:$0xff]
    %v4814 = vld [vmem:[#allocation11 + $0x4d0] sm:$0xff]
    %v4815 = vld [vmem:[#allocation11 + $0x4d8] sm:$0xff]
    %v4816 = vld [vmem:[#allocation11 + $0x4e0] sm:$0xff]
    %v4817 = vld [vmem:[#allocation11 + $0x4e8] sm:$0xff]
    %v4818 = vld [vmem:[#allocation11 + $0x4f0] sm:$0xff]
    %v4819 = vld [vmem:[#allocation11 + $0x4f8] sm:$0xff]
    %v4820 = vld [vmem:[#allocation11 + $0x500] sm:$0xff]
    %v4821 = vld [vmem:[#allocation11 + $0x508] sm:$0xff]
    %v4822 = vld [vmem:[#allocation11 + $0x510] sm:$0xff]
    %v4823 = vld [vmem:[#allocation11 + $0x518] sm:$0xff]
    %v4824 = vld [vmem:[#allocation11 + $0x520] sm:$0xff]
    %v4825 = vld [vmem:[#allocation11 + $0x528] sm:$0xff]
    %v4826 = vld [vmem:[#allocation11 + $0x530] sm:$0xff]
    %v4827 = vld [vmem:[#allocation11 + $0x538] sm:$0xff]
    %v4828 = vld [vmem:[#allocation11 + $0x540] sm:$0xff]
    %v4829 = vld [vmem:[#allocation11 + $0x548] sm:$0xff]
    %v4830 = vld [vmem:[#allocation11 + $0x550] sm:$0xff]
    %v4831 = vld [vmem:[#allocation11 + $0x558] sm:$0xff]
    %v4832 = vld [vmem:[#allocation11 + $0x560] sm:$0xff]
    %v4833 = vld [vmem:[#allocation11 + $0x568] sm:$0xff]
    %v4834 = vld [vmem:[#allocation11 + $0x570] sm:$0xff]
    %v4835 = vld [vmem:[#allocation11 + $0x578] sm:$0xff]
    %v4836 = vld [vmem:[#allocation11 + $0x580] sm:$0xff]
    %v4837 = vld [vmem:[#allocation11 + $0x588] sm:$0xff]
    %v4838 = vld [vmem:[#allocation11 + $0x590] sm:$0xff]
    %v4839 = vld [vmem:[#allocation11 + $0x598] sm:$0xff]
    %v4840 = vld [vmem:[#allocation11 + $0x5a0] sm:$0xff]
    %v4841 = vld [vmem:[#allocation11 + $0x5a8] sm:$0xff]
    %v4842 = vld [vmem:[#allocation11 + $0x5b0] sm:$0xff]
    %v4843 = vld [vmem:[#allocation11 + $0x5b8] sm:$0xff]
    %v4844 = vld [vmem:[#allocation11 + $0x5c0] sm:$0xff]
    %v4845 = vld [vmem:[#allocation11 + $0x5c8] sm:$0xff]
    %v4846 = vld [vmem:[#allocation11 + $0x5d0] sm:$0xff]
    %v4847 = vld [vmem:[#allocation11 + $0x5d8] sm:$0xff]
    %v4848 = vld [vmem:[#allocation11 + $0x5e0] sm:$0xff]
    %v4849 = vld [vmem:[#allocation11 + $0x5e8] sm:$0xff]
    %v4850 = vld [vmem:[#allocation11 + $0x5f0] sm:$0xff]
    %v4851 = vld [vmem:[#allocation11 + $0x5f8] sm:$0xff]
    %v4852 = vld [vmem:[#allocation11 + $0x600] sm:$0xff]
    %v4853 = vld [vmem:[#allocation11 + $0x608] sm:$0xff]
    %v4854 = vld [vmem:[#allocation11 + $0x610] sm:$0xff]
    %v4855 = vld [vmem:[#allocation11 + $0x618] sm:$0xff]
    %v4856 = vld [vmem:[#allocation11 + $0x620] sm:$0xff]
    %v4857 = vld [vmem:[#allocation11 + $0x628] sm:$0xff]
    %v4858 = vld [vmem:[#allocation11 + $0x630] sm:$0xff]
    %v4859 = vld [vmem:[#allocation11 + $0x638] sm:$0xff]
    %v4860 = vld [vmem:[#allocation11 + $0x640] sm:$0xff]
    %v4861 = vld [vmem:[#allocation11 + $0x648] sm:$0xff]
    %v4862 = vld [vmem:[#allocation11 + $0x650] sm:$0xff]
    %v4863 = vld [vmem:[#allocation11 + $0x658] sm:$0xff]
    %v4864 = vld [vmem:[#allocation11 + $0x660] sm:$0xff]
    %v4865 = vld [vmem:[#allocation11 + $0x668] sm:$0xff]
    %v4866 = vld [vmem:[#allocation11 + $0x670] sm:$0xff]
    %v4867 = vld [vmem:[#allocation11 + $0x678] sm:$0xff]
    %v4868 = vld [vmem:[#allocation11 + $0x680] sm:$0xff]
    %v4869 = vld [vmem:[#allocation11 + $0x688] sm:$0xff]
    %v4870 = vld [vmem:[#allocation11 + $0x690] sm:$0xff]
    %v4871 = vld [vmem:[#allocation11 + $0x698] sm:$0xff]
    %v4872 = vld [vmem:[#allocation11 + $0x6a0] sm:$0xff]
    %v4873 = vld [vmem:[#allocation11 + $0x6a8] sm:$0xff]
    %v4874 = vld [vmem:[#allocation11 + $0x6b0] sm:$0xff]
    %v4875 = vld [vmem:[#allocation11 + $0x6b8] sm:$0xff]
    %v4876 = vld [vmem:[#allocation11 + $0x6c0] sm:$0xff]
    %v4877 = vld [vmem:[#allocation11 + $0x6c8] sm:$0xff]
    %v4878 = vld [vmem:[#allocation11 + $0x6d0] sm:$0xff]
    %v4879 = vld [vmem:[#allocation11 + $0x6d8] sm:$0xff]
    %v4880 = vld [vmem:[#allocation11 + $0x6e0] sm:$0xff]
    %v4881 = vld [vmem:[#allocation11 + $0x6e8] sm:$0xff]
    %v4882 = vld [vmem:[#allocation11 + $0x6f0] sm:$0xff]
    %v4883 = vld [vmem:[#allocation11 + $0x6f8] sm:$0xff]
    %v4884 = vld [vmem:[#allocation11 + $0x700] sm:$0xff]
    %v4885 = vld [vmem:[#allocation11 + $0x708] sm:$0xff]
    %v4886 = vld [vmem:[#allocation11 + $0x710] sm:$0xff]
    %v4887 = vld [vmem:[#allocation11 + $0x718] sm:$0xff]
    %v4888 = vld [vmem:[#allocation11 + $0x720] sm:$0xff]
    %v4889 = vld [vmem:[#allocation11 + $0x728] sm:$0xff]
    %v4890 = vld [vmem:[#allocation11 + $0x730] sm:$0xff]
    %v4891 = vld [vmem:[#allocation11 + $0x738] sm:$0xff]
    %v4892 = vld [vmem:[#allocation11 + $0x740] sm:$0xff]
    %v4893 = vld [vmem:[#allocation11 + $0x748] sm:$0xff]
    %v4894 = vld [vmem:[#allocation11 + $0x750] sm:$0xff]
    %v4895 = vld [vmem:[#allocation11 + $0x758] sm:$0xff]
    %v4896 = vld [vmem:[#allocation11 + $0x760] sm:$0xff]
    %v4897 = vld [vmem:[#allocation11 + $0x768] sm:$0xff]
    %v4898 = vld [vmem:[#allocation11 + $0x770] sm:$0xff]
    %v4899 = vld [vmem:[#allocation11 + $0x778] sm:$0xff]
    %v4900 = vld [vmem:[#allocation11 + $0x780] sm:$0xff]
    %v4901 = vld [vmem:[#allocation11 + $0x788] sm:$0xff]
    %v4902 = vld [vmem:[#allocation11 + $0x790] sm:$0xff]
    %v4903 = vld [vmem:[#allocation11 + $0x798] sm:$0xff]
    %v4904 = vld [vmem:[#allocation11 + $0x7a0] sm:$0xff]
    %v4905 = vld [vmem:[#allocation11 + $0x7a8] sm:$0xff]
    %v4906 = vld [vmem:[#allocation11 + $0x7b0] sm:$0xff]
    %v4907 = vld [vmem:[#allocation11 + $0x7b8] sm:$0xff]
    %v4908 = vld [vmem:[#allocation11 + $0x7c0] sm:$0xff]
    %v4909 = vld [vmem:[#allocation11 + $0x7c8] sm:$0xff]
    %v4910 = vld [vmem:[#allocation11 + $0x7d0] sm:$0xff]
    %v4911 = vld [vmem:[#allocation11 + $0x7d8] sm:$0xff]
    %v4912 = vld [vmem:[#allocation11 + $0x7e0] sm:$0xff]
    %v4913 = vld [vmem:[#allocation11 + $0x7e8] sm:$0xff]
    %v4914 = vld [vmem:[#allocation11 + $0x7f0] sm:$0xff]
    %v4915 = vld [vmem:[#allocation11 + $0x7f8] sm:$0xff]
    %v4916 = vld [vmem:[#allocation13] sm:$0xf]
    %v4918 = vlaneseq
    %v4919 = vshrl.u32 %v4918, 7
    %v4920 = vsub.s32 0, %v4919
    %v4921 = vrot.slane %v4916, %v4920
    %v4922 = vlaneseq
    %v4923 = vshrl.u32 %v4922, 7
    %v4924 = vsub.s32 1, %v4923
    %v4925 = vrot.slane %v4916, %v4924
    %v4926 = vlaneseq
    %v4927 = vshrl.u32 %v4926, 7
    %v4928 = vsub.s32 2, %v4927
    %v4929 = vrot.slane %v4916, %v4928
    %v4930 = vlaneseq
    %v4931 = vshrl.u32 %v4930, 7
    %v4932 = vsub.s32 3, %v4931
    %v4933 = vrot.slane %v4916, %v4932
    %v5194 = vunpack.c.l.b16 %v4660
    %v5195 = vunpack.c.h.b16 %v4660
    %v5196 = vunpack.c.l.b16 %v4661
    %v5197 = vunpack.c.h.b16 %v4661
    %v5198 = vunpack.c.l.b16 %v4662
    %v5199 = vunpack.c.h.b16 %v4662
    %v5200 = vunpack.c.l.b16 %v4663
    %v5201 = vunpack.c.h.b16 %v4663
    %v5202 = vunpack.c.l.b16 %v4664
    %v5203 = vunpack.c.h.b16 %v4664
    %v5204 = vunpack.c.l.b16 %v4665
    %v5205 = vunpack.c.h.b16 %v4665
    %v5206 = vunpack.c.l.b16 %v4666
    %v5207 = vunpack.c.h.b16 %v4666
    %v5208 = vunpack.c.l.b16 %v4667
    %v5209 = vunpack.c.h.b16 %v4667
    %v5210 = vunpack.c.l.b16 %v4668
    %v5211 = vunpack.c.h.b16 %v4668
    %v5212 = vunpack.c.l.b16 %v4669
    %v5213 = vunpack.c.h.b16 %v4669
    %v5214 = vunpack.c.l.b16 %v4670
    %v5215 = vunpack.c.h.b16 %v4670
    %v5216 = vunpack.c.l.b16 %v4671
    %v5217 = vunpack.c.h.b16 %v4671
    %v5218 = vunpack.c.l.b16 %v4672
    %v5219 = vunpack.c.h.b16 %v4672
    %v5220 = vunpack.c.l.b16 %v4673
    %v5221 = vunpack.c.h.b16 %v4673
    %v5222 = vunpack.c.l.b16 %v4674
    %v5223 = vunpack.c.h.b16 %v4674
    %v5224 = vunpack.c.l.b16 %v4675
    %v5225 = vunpack.c.h.b16 %v4675
    %v5226 = vunpack.c.l.b16 %v4676
    %v5227 = vunpack.c.h.b16 %v4676
    %v5228 = vunpack.c.l.b16 %v4677
    %v5229 = vunpack.c.h.b16 %v4677
    %v5230 = vunpack.c.l.b16 %v4678
    %v5231 = vunpack.c.h.b16 %v4678
    %v5232 = vunpack.c.l.b16 %v4679
    %v5233 = vunpack.c.h.b16 %v4679
    %v5234 = vunpack.c.l.b16 %v4680
    %v5235 = vunpack.c.h.b16 %v4680
    %v5236 = vunpack.c.l.b16 %v4681
    %v5237 = vunpack.c.h.b16 %v4681
    %v5238 = vunpack.c.l.b16 %v4682
    %v5239 = vunpack.c.h.b16 %v4682
    %v5240 = vunpack.c.l.b16 %v4683
    %v5241 = vunpack.c.h.b16 %v4683
    %v5242 = vunpack.c.l.b16 %v4684
    %v5243 = vunpack.c.h.b16 %v4684
    %v5244 = vunpack.c.l.b16 %v4685
    %v5245 = vunpack.c.h.b16 %v4685
    %v5246 = vunpack.c.l.b16 %v4686
    %v5247 = vunpack.c.h.b16 %v4686
    %v5248 = vunpack.c.l.b16 %v4687
    %v5249 = vunpack.c.h.b16 %v4687
    %v5250 = vunpack.c.l.b16 %v4688
    %v5251 = vunpack.c.h.b16 %v4688
    %v5252 = vunpack.c.l.b16 %v4689
    %v5253 = vunpack.c.h.b16 %v4689
    %v5254 = vunpack.c.l.b16 %v4690
    %v5255 = vunpack.c.h.b16 %v4690
    %v5256 = vunpack.c.l.b16 %v4691
    %v5257 = vunpack.c.h.b16 %v4691
    %v5258 = vunpack.c.l.b16 %v4692
    %v5259 = vunpack.c.h.b16 %v4692
    %v5260 = vunpack.c.l.b16 %v4693
    %v5261 = vunpack.c.h.b16 %v4693
    %v5262 = vunpack.c.l.b16 %v4694
    %v5263 = vunpack.c.h.b16 %v4694
    %v5264 = vunpack.c.l.b16 %v4695
    %v5265 = vunpack.c.h.b16 %v4695
    %v5266 = vunpack.c.l.b16 %v4696
    %v5267 = vunpack.c.h.b16 %v4696
    %v5268 = vunpack.c.l.b16 %v4697
    %v5269 = vunpack.c.h.b16 %v4697
    %v5270 = vunpack.c.l.b16 %v4698
    %v5271 = vunpack.c.h.b16 %v4698
    %v5272 = vunpack.c.l.b16 %v4699
    %v5273 = vunpack.c.h.b16 %v4699
    %v5274 = vunpack.c.l.b16 %v4700
    %v5275 = vunpack.c.h.b16 %v4700
    %v5276 = vunpack.c.l.b16 %v4701
    %v5277 = vunpack.c.h.b16 %v4701
    %v5278 = vunpack.c.l.b16 %v4702
    %v5279 = vunpack.c.h.b16 %v4702
    %v5280 = vunpack.c.l.b16 %v4703
    %v5281 = vunpack.c.h.b16 %v4703
    %v5282 = vunpack.c.l.b16 %v4704
    %v5283 = vunpack.c.h.b16 %v4704
    %v5284 = vunpack.c.l.b16 %v4705
    %v5285 = vunpack.c.h.b16 %v4705
    %v5286 = vunpack.c.l.b16 %v4706
    %v5287 = vunpack.c.h.b16 %v4706
    %v5288 = vunpack.c.l.b16 %v4707
    %v5289 = vunpack.c.h.b16 %v4707
    %v5290 = vunpack.c.l.b16 %v4708
    %v5291 = vunpack.c.h.b16 %v4708
    %v5292 = vunpack.c.l.b16 %v4709
    %v5293 = vunpack.c.h.b16 %v4709
    %v5294 = vunpack.c.l.b16 %v4710
    %v5295 = vunpack.c.h.b16 %v4710
    %v5296 = vunpack.c.l.b16 %v4711
    %v5297 = vunpack.c.h.b16 %v4711
    %v5298 = vunpack.c.l.b16 %v4712
    %v5299 = vunpack.c.h.b16 %v4712
    %v5300 = vunpack.c.l.b16 %v4713
    %v5301 = vunpack.c.h.b16 %v4713
    %v5302 = vunpack.c.l.b16 %v4714
    %v5303 = vunpack.c.h.b16 %v4714
    %v5304 = vunpack.c.l.b16 %v4715
    %v5305 = vunpack.c.h.b16 %v4715
    %v5306 = vunpack.c.l.b16 %v4716
    %v5307 = vunpack.c.h.b16 %v4716
    %v5308 = vunpack.c.l.b16 %v4717
    %v5309 = vunpack.c.h.b16 %v4717
    %v5310 = vunpack.c.l.b16 %v4718
    %v5311 = vunpack.c.h.b16 %v4718
    %v5312 = vunpack.c.l.b16 %v4719
    %v5313 = vunpack.c.h.b16 %v4719
    %v5314 = vunpack.c.l.b16 %v4720
    %v5315 = vunpack.c.h.b16 %v4720
    %v5316 = vunpack.c.l.b16 %v4721
    %v5317 = vunpack.c.h.b16 %v4721
    %v5318 = vunpack.c.l.b16 %v4722
    %v5319 = vunpack.c.h.b16 %v4722
    %v5320 = vunpack.c.l.b16 %v4723
    %v5321 = vunpack.c.h.b16 %v4723
    %v5322 = vunpack.c.l.b16 %v4724
    %v5323 = vunpack.c.h.b16 %v4724
    %v5324 = vunpack.c.l.b16 %v4725
    %v5325 = vunpack.c.h.b16 %v4725
    %v5326 = vunpack.c.l.b16 %v4726
    %v5327 = vunpack.c.h.b16 %v4726
    %v5328 = vunpack.c.l.b16 %v4727
    %v5329 = vunpack.c.h.b16 %v4727
    %v5330 = vunpack.c.l.b16 %v4728
    %v5331 = vunpack.c.h.b16 %v4728
    %v5332 = vunpack.c.l.b16 %v4729
    %v5333 = vunpack.c.h.b16 %v4729
    %v5334 = vunpack.c.l.b16 %v4730
    %v5335 = vunpack.c.h.b16 %v4730
    %v5336 = vunpack.c.l.b16 %v4731
    %v5337 = vunpack.c.h.b16 %v4731
    %v5338 = vunpack.c.l.b16 %v4732
    %v5339 = vunpack.c.h.b16 %v4732
    %v5340 = vunpack.c.l.b16 %v4733
    %v5341 = vunpack.c.h.b16 %v4733
    %v5342 = vunpack.c.l.b16 %v4734
    %v5343 = vunpack.c.h.b16 %v4734
    %v5344 = vunpack.c.l.b16 %v4735
    %v5345 = vunpack.c.h.b16 %v4735
    %v5346 = vunpack.c.l.b16 %v4736
    %v5347 = vunpack.c.h.b16 %v4736
    %v5348 = vunpack.c.l.b16 %v4737
    %v5349 = vunpack.c.h.b16 %v4737
    %v5350 = vunpack.c.l.b16 %v4738
    %v5351 = vunpack.c.h.b16 %v4738
    %v5352 = vunpack.c.l.b16 %v4739
    %v5353 = vunpack.c.h.b16 %v4739
    %v5354 = vunpack.c.l.b16 %v4740
    %v5355 = vunpack.c.h.b16 %v4740
    %v5356 = vunpack.c.l.b16 %v4741
    %v5357 = vunpack.c.h.b16 %v4741
    %v5358 = vunpack.c.l.b16 %v4742
    %v5359 = vunpack.c.h.b16 %v4742
    %v5360 = vunpack.c.l.b16 %v4743
    %v5361 = vunpack.c.h.b16 %v4743
    %v5362 = vunpack.c.l.b16 %v4744
    %v5363 = vunpack.c.h.b16 %v4744
    %v5364 = vunpack.c.l.b16 %v4745
    %v5365 = vunpack.c.h.b16 %v4745
    %v5366 = vunpack.c.l.b16 %v4746
    %v5367 = vunpack.c.h.b16 %v4746
    %v5368 = vunpack.c.l.b16 %v4747
    %v5369 = vunpack.c.h.b16 %v4747
    %v5370 = vunpack.c.l.b16 %v4748
    %v5371 = vunpack.c.h.b16 %v4748
    %v5372 = vunpack.c.l.b16 %v4749
    %v5373 = vunpack.c.h.b16 %v4749
    %v5374 = vunpack.c.l.b16 %v4750
    %v5375 = vunpack.c.h.b16 %v4750
    %v5376 = vunpack.c.l.b16 %v4751
    %v5377 = vunpack.c.h.b16 %v4751
    %v5378 = vunpack.c.l.b16 %v4752
    %v5379 = vunpack.c.h.b16 %v4752
    %v5380 = vunpack.c.l.b16 %v4753
    %v5381 = vunpack.c.h.b16 %v4753
    %v5382 = vunpack.c.l.b16 %v4754
    %v5383 = vunpack.c.h.b16 %v4754
    %v5384 = vunpack.c.l.b16 %v4755
    %v5385 = vunpack.c.h.b16 %v4755
    %v5386 = vunpack.c.l.b16 %v4756
    %v5387 = vunpack.c.h.b16 %v4756
    %v5388 = vunpack.c.l.b16 %v4757
    %v5389 = vunpack.c.h.b16 %v4757
    %v5390 = vunpack.c.l.b16 %v4758
    %v5391 = vunpack.c.h.b16 %v4758
    %v5392 = vunpack.c.l.b16 %v4759
    %v5393 = vunpack.c.h.b16 %v4759
    %v5394 = vunpack.c.l.b16 %v4760
    %v5395 = vunpack.c.h.b16 %v4760
    %v5396 = vunpack.c.l.b16 %v4761
    %v5397 = vunpack.c.h.b16 %v4761
    %v5398 = vunpack.c.l.b16 %v4762
    %v5399 = vunpack.c.h.b16 %v4762
    %v5400 = vunpack.c.l.b16 %v4763
    %v5401 = vunpack.c.h.b16 %v4763
    %v5402 = vunpack.c.l.b16 %v4764
    %v5403 = vunpack.c.h.b16 %v4764
    %v5404 = vunpack.c.l.b16 %v4765
    %v5405 = vunpack.c.h.b16 %v4765
    %v5406 = vunpack.c.l.b16 %v4766
    %v5407 = vunpack.c.h.b16 %v4766
    %v5408 = vunpack.c.l.b16 %v4767
    %v5409 = vunpack.c.h.b16 %v4767
    %v5410 = vunpack.c.l.b16 %v4768
    %v5411 = vunpack.c.h.b16 %v4768
    %v5412 = vunpack.c.l.b16 %v4769
    %v5413 = vunpack.c.h.b16 %v4769
    %v5414 = vunpack.c.l.b16 %v4770
    %v5415 = vunpack.c.h.b16 %v4770
    %v5416 = vunpack.c.l.b16 %v4771
    %v5417 = vunpack.c.h.b16 %v4771
    %v5418 = vunpack.c.l.b16 %v4772
    %v5419 = vunpack.c.h.b16 %v4772
    %v5420 = vunpack.c.l.b16 %v4773
    %v5421 = vunpack.c.h.b16 %v4773
    %v5422 = vunpack.c.l.b16 %v4774
    %v5423 = vunpack.c.h.b16 %v4774
    %v5424 = vunpack.c.l.b16 %v4775
    %v5425 = vunpack.c.h.b16 %v4775
    %v5426 = vunpack.c.l.b16 %v4776
    %v5427 = vunpack.c.h.b16 %v4776
    %v5428 = vunpack.c.l.b16 %v4777
    %v5429 = vunpack.c.h.b16 %v4777
    %v5430 = vunpack.c.l.b16 %v4778
    %v5431 = vunpack.c.h.b16 %v4778
    %v5432 = vunpack.c.l.b16 %v4779
    %v5433 = vunpack.c.h.b16 %v4779
    %v5434 = vunpack.c.l.b16 %v4780
    %v5435 = vunpack.c.h.b16 %v4780
    %v5436 = vunpack.c.l.b16 %v4781
    %v5437 = vunpack.c.h.b16 %v4781
    %v5438 = vunpack.c.l.b16 %v4782
    %v5439 = vunpack.c.h.b16 %v4782
    %v5440 = vunpack.c.l.b16 %v4783
    %v5441 = vunpack.c.h.b16 %v4783
    %v5442 = vunpack.c.l.b16 %v4784
    %v5443 = vunpack.c.h.b16 %v4784
    %v5444 = vunpack.c.l.b16 %v4785
    %v5445 = vunpack.c.h.b16 %v4785
    %v5446 = vunpack.c.l.b16 %v4786
    %v5447 = vunpack.c.h.b16 %v4786
    %v5448 = vunpack.c.l.b16 %v4787
    %v5449 = vunpack.c.h.b16 %v4787
    %v5450 = vunpack.c.l.b16 %v4788
    %v5451 = vunpack.c.h.b16 %v4788
    %v5452 = vunpack.c.l.b16 %v4789
    %v5453 = vunpack.c.h.b16 %v4789
    %v5454 = vunpack.c.l.b16 %v4790
    %v5455 = vunpack.c.h.b16 %v4790
    %v5456 = vunpack.c.l.b16 %v4791
    %v5457 = vunpack.c.h.b16 %v4791
    %v5458 = vunpack.c.l.b16 %v4792
    %v5459 = vunpack.c.h.b16 %v4792
    %v5460 = vunpack.c.l.b16 %v4793
    %v5461 = vunpack.c.h.b16 %v4793
    %v5462 = vunpack.c.l.b16 %v4794
    %v5463 = vunpack.c.h.b16 %v4794
    %v5464 = vunpack.c.l.b16 %v4795
    %v5465 = vunpack.c.h.b16 %v4795
    %v5466 = vunpack.c.l.b16 %v4796
    %v5467 = vunpack.c.h.b16 %v4796
    %v5468 = vunpack.c.l.b16 %v4797
    %v5469 = vunpack.c.h.b16 %v4797
    %v5470 = vunpack.c.l.b16 %v4798
    %v5471 = vunpack.c.h.b16 %v4798
    %v5472 = vunpack.c.l.b16 %v4799
    %v5473 = vunpack.c.h.b16 %v4799
    %v5474 = vunpack.c.l.b16 %v4800
    %v5475 = vunpack.c.h.b16 %v4800
    %v5476 = vunpack.c.l.b16 %v4801
    %v5477 = vunpack.c.h.b16 %v4801
    %v5478 = vunpack.c.l.b16 %v4802
    %v5479 = vunpack.c.h.b16 %v4802
    %v5480 = vunpack.c.l.b16 %v4803
    %v5481 = vunpack.c.h.b16 %v4803
    %v5482 = vunpack.c.l.b16 %v4804
    %v5483 = vunpack.c.h.b16 %v4804
    %v5484 = vunpack.c.l.b16 %v4805
    %v5485 = vunpack.c.h.b16 %v4805
    %v5486 = vunpack.c.l.b16 %v4806
    %v5487 = vunpack.c.h.b16 %v4806
    %v5488 = vunpack.c.l.b16 %v4807
    %v5489 = vunpack.c.h.b16 %v4807
    %v5490 = vunpack.c.l.b16 %v4808
    %v5491 = vunpack.c.h.b16 %v4808
    %v5492 = vunpack.c.l.b16 %v4809
    %v5493 = vunpack.c.h.b16 %v4809
    %v5494 = vunpack.c.l.b16 %v4810
    %v5495 = vunpack.c.h.b16 %v4810
    %v5496 = vunpack.c.l.b16 %v4811
    %v5497 = vunpack.c.h.b16 %v4811
    %v5498 = vunpack.c.l.b16 %v4812
    %v5499 = vunpack.c.h.b16 %v4812
    %v5500 = vunpack.c.l.b16 %v4813
    %v5501 = vunpack.c.h.b16 %v4813
    %v5502 = vunpack.c.l.b16 %v4814
    %v5503 = vunpack.c.h.b16 %v4814
    %v5504 = vunpack.c.l.b16 %v4815
    %v5505 = vunpack.c.h.b16 %v4815
    %v5506 = vunpack.c.l.b16 %v4816
    %v5507 = vunpack.c.h.b16 %v4816
    %v5508 = vunpack.c.l.b16 %v4817
    %v5509 = vunpack.c.h.b16 %v4817
    %v5510 = vunpack.c.l.b16 %v4818
    %v5511 = vunpack.c.h.b16 %v4818
    %v5512 = vunpack.c.l.b16 %v4819
    %v5513 = vunpack.c.h.b16 %v4819
    %v5514 = vunpack.c.l.b16 %v4820
    %v5515 = vunpack.c.h.b16 %v4820
    %v5516 = vunpack.c.l.b16 %v4821
    %v5517 = vunpack.c.h.b16 %v4821
    %v5518 = vunpack.c.l.b16 %v4822
    %v5519 = vunpack.c.h.b16 %v4822
    %v5520 = vunpack.c.l.b16 %v4823
    %v5521 = vunpack.c.h.b16 %v4823
    %v5522 = vunpack.c.l.b16 %v4824
    %v5523 = vunpack.c.h.b16 %v4824
    %v5524 = vunpack.c.l.b16 %v4825
    %v5525 = vunpack.c.h.b16 %v4825
    %v5526 = vunpack.c.l.b16 %v4826
    %v5527 = vunpack.c.h.b16 %v4826
    %v5528 = vunpack.c.l.b16 %v4827
    %v5529 = vunpack.c.h.b16 %v4827
    %v5530 = vunpack.c.l.b16 %v4828
    %v5531 = vunpack.c.h.b16 %v4828
    %v5532 = vunpack.c.l.b16 %v4829
    %v5533 = vunpack.c.h.b16 %v4829
    %v5534 = vunpack.c.l.b16 %v4830
    %v5535 = vunpack.c.h.b16 %v4830
    %v5536 = vunpack.c.l.b16 %v4831
    %v5537 = vunpack.c.h.b16 %v4831
    %v5538 = vunpack.c.l.b16 %v4832
    %v5539 = vunpack.c.h.b16 %v4832
    %v5540 = vunpack.c.l.b16 %v4833
    %v5541 = vunpack.c.h.b16 %v4833
    %v5542 = vunpack.c.l.b16 %v4834
    %v5543 = vunpack.c.h.b16 %v4834
    %v5544 = vunpack.c.l.b16 %v4835
    %v5545 = vunpack.c.h.b16 %v4835
    %v5546 = vunpack.c.l.b16 %v4836
    %v5547 = vunpack.c.h.b16 %v4836
    %v5548 = vunpack.c.l.b16 %v4837
    %v5549 = vunpack.c.h.b16 %v4837
    %v5550 = vunpack.c.l.b16 %v4838
    %v5551 = vunpack.c.h.b16 %v4838
    %v5552 = vunpack.c.l.b16 %v4839
    %v5553 = vunpack.c.h.b16 %v4839
    %v5554 = vunpack.c.l.b16 %v4840
    %v5555 = vunpack.c.h.b16 %v4840
    %v5556 = vunpack.c.l.b16 %v4841
    %v5557 = vunpack.c.h.b16 %v4841
    %v5558 = vunpack.c.l.b16 %v4842
    %v5559 = vunpack.c.h.b16 %v4842
    %v5560 = vunpack.c.l.b16 %v4843
    %v5561 = vunpack.c.h.b16 %v4843
    %v5562 = vunpack.c.l.b16 %v4844
    %v5563 = vunpack.c.h.b16 %v4844
    %v5564 = vunpack.c.l.b16 %v4845
    %v5565 = vunpack.c.h.b16 %v4845
    %v5566 = vunpack.c.l.b16 %v4846
    %v5567 = vunpack.c.h.b16 %v4846
    %v5568 = vunpack.c.l.b16 %v4847
    %v5569 = vunpack.c.h.b16 %v4847
    %v5570 = vunpack.c.l.b16 %v4848
    %v5571 = vunpack.c.h.b16 %v4848
    %v5572 = vunpack.c.l.b16 %v4849
    %v5573 = vunpack.c.h.b16 %v4849
    %v5574 = vunpack.c.l.b16 %v4850
    %v5575 = vunpack.c.h.b16 %v4850
    %v5576 = vunpack.c.l.b16 %v4851
    %v5577 = vunpack.c.h.b16 %v4851
    %v5578 = vunpack.c.l.b16 %v4852
    %v5579 = vunpack.c.h.b16 %v4852
    %v5580 = vunpack.c.l.b16 %v4853
    %v5581 = vunpack.c.h.b16 %v4853
    %v5582 = vunpack.c.l.b16 %v4854
    %v5583 = vunpack.c.h.b16 %v4854
    %v5584 = vunpack.c.l.b16 %v4855
    %v5585 = vunpack.c.h.b16 %v4855
    %v5586 = vunpack.c.l.b16 %v4856
    %v5587 = vunpack.c.h.b16 %v4856
    %v5588 = vunpack.c.l.b16 %v4857
    %v5589 = vunpack.c.h.b16 %v4857
    %v5590 = vunpack.c.l.b16 %v4858
    %v5591 = vunpack.c.h.b16 %v4858
    %v5592 = vunpack.c.l.b16 %v4859
    %v5593 = vunpack.c.h.b16 %v4859
    %v5594 = vunpack.c.l.b16 %v4860
    %v5595 = vunpack.c.h.b16 %v4860
    %v5596 = vunpack.c.l.b16 %v4861
    %v5597 = vunpack.c.h.b16 %v4861
    %v5598 = vunpack.c.l.b16 %v4862
    %v5599 = vunpack.c.h.b16 %v4862
    %v5600 = vunpack.c.l.b16 %v4863
    %v5601 = vunpack.c.h.b16 %v4863
    %v5602 = vunpack.c.l.b16 %v4864
    %v5603 = vunpack.c.h.b16 %v4864
    %v5604 = vunpack.c.l.b16 %v4865
    %v5605 = vunpack.c.h.b16 %v4865
    %v5606 = vunpack.c.l.b16 %v4866
    %v5607 = vunpack.c.h.b16 %v4866
    %v5608 = vunpack.c.l.b16 %v4867
    %v5609 = vunpack.c.h.b16 %v4867
    %v5610 = vunpack.c.l.b16 %v4868
    %v5611 = vunpack.c.h.b16 %v4868
    %v5612 = vunpack.c.l.b16 %v4869
    %v5613 = vunpack.c.h.b16 %v4869
    %v5614 = vunpack.c.l.b16 %v4870
    %v5615 = vunpack.c.h.b16 %v4870
    %v5616 = vunpack.c.l.b16 %v4871
    %v5617 = vunpack.c.h.b16 %v4871
    %v5618 = vunpack.c.l.b16 %v4872
    %v5619 = vunpack.c.h.b16 %v4872
    %v5620 = vunpack.c.l.b16 %v4873
    %v5621 = vunpack.c.h.b16 %v4873
    %v5622 = vunpack.c.l.b16 %v4874
    %v5623 = vunpack.c.h.b16 %v4874
    %v5624 = vunpack.c.l.b16 %v4875
    %v5625 = vunpack.c.h.b16 %v4875
    %v5626 = vunpack.c.l.b16 %v4876
    %v5627 = vunpack.c.h.b16 %v4876
    %v5628 = vunpack.c.l.b16 %v4877
    %v5629 = vunpack.c.h.b16 %v4877
    %v5630 = vunpack.c.l.b16 %v4878
    %v5631 = vunpack.c.h.b16 %v4878
    %v5632 = vunpack.c.l.b16 %v4879
    %v5633 = vunpack.c.h.b16 %v4879
    %v5634 = vunpack.c.l.b16 %v4880
    %v5635 = vunpack.c.h.b16 %v4880
    %v5636 = vunpack.c.l.b16 %v4881
    %v5637 = vunpack.c.h.b16 %v4881
    %v5638 = vunpack.c.l.b16 %v4882
    %v5639 = vunpack.c.h.b16 %v4882
    %v5640 = vunpack.c.l.b16 %v4883
    %v5641 = vunpack.c.h.b16 %v4883
    %v5642 = vunpack.c.l.b16 %v4884
    %v5643 = vunpack.c.h.b16 %v4884
    %v5644 = vunpack.c.l.b16 %v4885
    %v5645 = vunpack.c.h.b16 %v4885
    %v5646 = vunpack.c.l.b16 %v4886
    %v5647 = vunpack.c.h.b16 %v4886
    %v5648 = vunpack.c.l.b16 %v4887
    %v5649 = vunpack.c.h.b16 %v4887
    %v5650 = vunpack.c.l.b16 %v4888
    %v5651 = vunpack.c.h.b16 %v4888
    %v5652 = vunpack.c.l.b16 %v4889
    %v5653 = vunpack.c.h.b16 %v4889
    %v5654 = vunpack.c.l.b16 %v4890
    %v5655 = vunpack.c.h.b16 %v4890
    %v5656 = vunpack.c.l.b16 %v4891
    %v5657 = vunpack.c.h.b16 %v4891
    %v5658 = vunpack.c.l.b16 %v4892
    %v5659 = vunpack.c.h.b16 %v4892
    %v5660 = vunpack.c.l.b16 %v4893
    %v5661 = vunpack.c.h.b16 %v4893
    %v5662 = vunpack.c.l.b16 %v4894
    %v5663 = vunpack.c.h.b16 %v4894
    %v5664 = vunpack.c.l.b16 %v4895
    %v5665 = vunpack.c.h.b16 %v4895
    %v5666 = vunpack.c.l.b16 %v4896
    %v5667 = vunpack.c.h.b16 %v4896
    %v5668 = vunpack.c.l.b16 %v4897
    %v5669 = vunpack.c.h.b16 %v4897
    %v5670 = vunpack.c.l.b16 %v4898
    %v5671 = vunpack.c.h.b16 %v4898
    %v5672 = vunpack.c.l.b16 %v4899
    %v5673 = vunpack.c.h.b16 %v4899
    %v5674 = vunpack.c.l.b16 %v4900
    %v5675 = vunpack.c.h.b16 %v4900
    %v5676 = vunpack.c.l.b16 %v4901
    %v5677 = vunpack.c.h.b16 %v4901
    %v5678 = vunpack.c.l.b16 %v4902
    %v5679 = vunpack.c.h.b16 %v4902
    %v5680 = vunpack.c.l.b16 %v4903
    %v5681 = vunpack.c.h.b16 %v4903
    %v5682 = vunpack.c.l.b16 %v4904
    %v5683 = vunpack.c.h.b16 %v4904
    %v5684 = vunpack.c.l.b16 %v4905
    %v5685 = vunpack.c.h.b16 %v4905
    %v5686 = vunpack.c.l.b16 %v4906
    %v5687 = vunpack.c.h.b16 %v4906
    %v5688 = vunpack.c.l.b16 %v4907
    %v5689 = vunpack.c.h.b16 %v4907
    %v5690 = vunpack.c.l.b16 %v4908
    %v5691 = vunpack.c.h.b16 %v4908
    %v5692 = vunpack.c.l.b16 %v4909
    %v5693 = vunpack.c.h.b16 %v4909
    %v5694 = vunpack.c.l.b16 %v4910
    %v5695 = vunpack.c.h.b16 %v4910
    %v5696 = vunpack.c.l.b16 %v4911
    %v5697 = vunpack.c.h.b16 %v4911
    %v5698 = vunpack.c.l.b16 %v4912
    %v5699 = vunpack.c.h.b16 %v4912
    %v5700 = vunpack.c.l.b16 %v4913
    %v5701 = vunpack.c.h.b16 %v4913
    %v5702 = vunpack.c.l.b16 %v4914
    %v5703 = vunpack.c.h.b16 %v4914
    %v5704 = vunpack.c.l.b16 %v4915
    %v5705 = vunpack.c.h.b16 %v4915
    %v5706 = vpack.c.b16 %v5198, %v5194
    %v5707 = vpack.c.b16 %v5199, %v5195
    %v5708 = vpack.c.b16 %v5200, %v5196
    %v5709 = vpack.c.b16 %v5201, %v5197
    %v5710 = vpack.c.b16 %v5206, %v5202
    %v5711 = vpack.c.b16 %v5207, %v5203
    %v5712 = vpack.c.b16 %v5208, %v5204
    %v5713 = vpack.c.b16 %v5209, %v5205
    %v5714 = vpack.c.b16 %v5214, %v5210
    %v5715 = vpack.c.b16 %v5215, %v5211
    %v5716 = vpack.c.b16 %v5216, %v5212
    %v5717 = vpack.c.b16 %v5217, %v5213
    %v5718 = vpack.c.b16 %v5222, %v5218
    %v5719 = vpack.c.b16 %v5223, %v5219
    %v5720 = vpack.c.b16 %v5224, %v5220
    %v5721 = vpack.c.b16 %v5225, %v5221
    %v5722 = vpack.c.b16 %v5230, %v5226
    %v5723 = vpack.c.b16 %v5231, %v5227
    %v5724 = vpack.c.b16 %v5232, %v5228
    %v5725 = vpack.c.b16 %v5233, %v5229
    %v5726 = vpack.c.b16 %v5238, %v5234
    %v5727 = vpack.c.b16 %v5239, %v5235
    %v5728 = vpack.c.b16 %v5240, %v5236
    %v5729 = vpack.c.b16 %v5241, %v5237
    %v5730 = vpack.c.b16 %v5246, %v5242
    %v5731 = vpack.c.b16 %v5247, %v5243
    %v5732 = vpack.c.b16 %v5248, %v5244
    %v5733 = vpack.c.b16 %v5249, %v5245
    %v5734 = vpack.c.b16 %v5254, %v5250
    %v5735 = vpack.c.b16 %v5255, %v5251
    %v5736 = vpack.c.b16 %v5256, %v5252
    %v5737 = vpack.c.b16 %v5257, %v5253
    %v5738 = vpack.c.b16 %v5262, %v5258
    %v5739 = vpack.c.b16 %v5263, %v5259
    %v5740 = vpack.c.b16 %v5264, %v5260
    %v5741 = vpack.c.b16 %v5265, %v5261
    %v5742 = vpack.c.b16 %v5270, %v5266
    %v5743 = vpack.c.b16 %v5271, %v5267
    %v5744 = vpack.c.b16 %v5272, %v5268
    %v5745 = vpack.c.b16 %v5273, %v5269
    %v5746 = vpack.c.b16 %v5278, %v5274
    %v5747 = vpack.c.b16 %v5279, %v5275
    %v5748 = vpack.c.b16 %v5280, %v5276
    %v5749 = vpack.c.b16 %v5281, %v5277
    %v5750 = vpack.c.b16 %v5286, %v5282
    %v5751 = vpack.c.b16 %v5287, %v5283
    %v5752 = vpack.c.b16 %v5288, %v5284
    %v5753 = vpack.c.b16 %v5289, %v5285
    %v5754 = vpack.c.b16 %v5294, %v5290
    %v5755 = vpack.c.b16 %v5295, %v5291
    %v5756 = vpack.c.b16 %v5296, %v5292
    %v5757 = vpack.c.b16 %v5297, %v5293
    %v5758 = vpack.c.b16 %v5302, %v5298
    %v5759 = vpack.c.b16 %v5303, %v5299
    %v5760 = vpack.c.b16 %v5304, %v5300
    %v5761 = vpack.c.b16 %v5305, %v5301
    %v5762 = vpack.c.b16 %v5310, %v5306
    %v5763 = vpack.c.b16 %v5311, %v5307
    %v5764 = vpack.c.b16 %v5312, %v5308
    %v5765 = vpack.c.b16 %v5313, %v5309
    %v5766 = vpack.c.b16 %v5318, %v5314
    %v5767 = vpack.c.b16 %v5319, %v5315
    %v5768 = vpack.c.b16 %v5320, %v5316
    %v5769 = vpack.c.b16 %v5321, %v5317
    %v5770 = vpack.c.b16 %v5326, %v5322
    %v5771 = vpack.c.b16 %v5327, %v5323
    %v5772 = vpack.c.b16 %v5328, %v5324
    %v5773 = vpack.c.b16 %v5329, %v5325
    %v5774 = vpack.c.b16 %v5334, %v5330
    %v5775 = vpack.c.b16 %v5335, %v5331
    %v5776 = vpack.c.b16 %v5336, %v5332
    %v5777 = vpack.c.b16 %v5337, %v5333
    %v5778 = vpack.c.b16 %v5342, %v5338
    %v5779 = vpack.c.b16 %v5343, %v5339
    %v5780 = vpack.c.b16 %v5344, %v5340
    %v5781 = vpack.c.b16 %v5345, %v5341
    %v5782 = vpack.c.b16 %v5350, %v5346
    %v5783 = vpack.c.b16 %v5351, %v5347
    %v5784 = vpack.c.b16 %v5352, %v5348
    %v5785 = vpack.c.b16 %v5353, %v5349
    %v5786 = vpack.c.b16 %v5358, %v5354
    %v5787 = vpack.c.b16 %v5359, %v5355
    %v5788 = vpack.c.b16 %v5360, %v5356
    %v5789 = vpack.c.b16 %v5361, %v5357
    %v5790 = vpack.c.b16 %v5366, %v5362
    %v5791 = vpack.c.b16 %v5367, %v5363
    %v5792 = vpack.c.b16 %v5368, %v5364
    %v5793 = vpack.c.b16 %v5369, %v5365
    %v5794 = vpack.c.b16 %v5374, %v5370
    %v5795 = vpack.c.b16 %v5375, %v5371
    %v5796 = vpack.c.b16 %v5376, %v5372
    %v5797 = vpack.c.b16 %v5377, %v5373
    %v5798 = vpack.c.b16 %v5382, %v5378
    %v5799 = vpack.c.b16 %v5383, %v5379
    %v5800 = vpack.c.b16 %v5384, %v5380
    %v5801 = vpack.c.b16 %v5385, %v5381
    %v5802 = vpack.c.b16 %v5390, %v5386
    %v5803 = vpack.c.b16 %v5391, %v5387
    %v5804 = vpack.c.b16 %v5392, %v5388
    %v5805 = vpack.c.b16 %v5393, %v5389
    %v5806 = vpack.c.b16 %v5398, %v5394
    %v5807 = vpack.c.b16 %v5399, %v5395
    %v5808 = vpack.c.b16 %v5400, %v5396
    %v5809 = vpack.c.b16 %v5401, %v5397
    %v5810 = vpack.c.b16 %v5406, %v5402
    %v5811 = vpack.c.b16 %v5407, %v5403
    %v5812 = vpack.c.b16 %v5408, %v5404
    %v5813 = vpack.c.b16 %v5409, %v5405
    %v5814 = vpack.c.b16 %v5414, %v5410
    %v5815 = vpack.c.b16 %v5415, %v5411
    %v5816 = vpack.c.b16 %v5416, %v5412
    %v5817 = vpack.c.b16 %v5417, %v5413
    %v5818 = vpack.c.b16 %v5422, %v5418
    %v5819 = vpack.c.b16 %v5423, %v5419
    %v5820 = vpack.c.b16 %v5424, %v5420
    %v5821 = vpack.c.b16 %v5425, %v5421
    %v5822 = vpack.c.b16 %v5430, %v5426
    %v5823 = vpack.c.b16 %v5431, %v5427
    %v5824 = vpack.c.b16 %v5432, %v5428
    %v5825 = vpack.c.b16 %v5433, %v5429
    %v5826 = vpack.c.b16 %v5438, %v5434
    %v5827 = vpack.c.b16 %v5439, %v5435
    %v5828 = vpack.c.b16 %v5440, %v5436
    %v5829 = vpack.c.b16 %v5441, %v5437
    %v5830 = vpack.c.b16 %v5446, %v5442
    %v5831 = vpack.c.b16 %v5447, %v5443
    %v5832 = vpack.c.b16 %v5448, %v5444
    %v5833 = vpack.c.b16 %v5449, %v5445
    %v5834 = vpack.c.b16 %v5454, %v5450
    %v5835 = vpack.c.b16 %v5455, %v5451
    %v5836 = vpack.c.b16 %v5456, %v5452
    %v5837 = vpack.c.b16 %v5457, %v5453
    %v5838 = vpack.c.b16 %v5462, %v5458
    %v5839 = vpack.c.b16 %v5463, %v5459
    %v5840 = vpack.c.b16 %v5464, %v5460
    %v5841 = vpack.c.b16 %v5465, %v5461
    %v5842 = vpack.c.b16 %v5470, %v5466
    %v5843 = vpack.c.b16 %v5471, %v5467
    %v5844 = vpack.c.b16 %v5472, %v5468
    %v5845 = vpack.c.b16 %v5473, %v5469
    %v5846 = vpack.c.b16 %v5478, %v5474
    %v5847 = vpack.c.b16 %v5479, %v5475
    %v5848 = vpack.c.b16 %v5480, %v5476
    %v5849 = vpack.c.b16 %v5481, %v5477
    %v5850 = vpack.c.b16 %v5486, %v5482
    %v5851 = vpack.c.b16 %v5487, %v5483
    %v5852 = vpack.c.b16 %v5488, %v5484
    %v5853 = vpack.c.b16 %v5489, %v5485
    %v5854 = vpack.c.b16 %v5494, %v5490
    %v5855 = vpack.c.b16 %v5495, %v5491
    %v5856 = vpack.c.b16 %v5496, %v5492
    %v5857 = vpack.c.b16 %v5497, %v5493
    %v5858 = vpack.c.b16 %v5502, %v5498
    %v5859 = vpack.c.b16 %v5503, %v5499
    %v5860 = vpack.c.b16 %v5504, %v5500
    %v5861 = vpack.c.b16 %v5505, %v5501
    %v5862 = vpack.c.b16 %v5510, %v5506
    %v5863 = vpack.c.b16 %v5511, %v5507
    %v5864 = vpack.c.b16 %v5512, %v5508
    %v5865 = vpack.c.b16 %v5513, %v5509
    %v5866 = vpack.c.b16 %v5518, %v5514
    %v5867 = vpack.c.b16 %v5519, %v5515
    %v5868 = vpack.c.b16 %v5520, %v5516
    %v5869 = vpack.c.b16 %v5521, %v5517
    %v5870 = vpack.c.b16 %v5526, %v5522
    %v5871 = vpack.c.b16 %v5527, %v5523
    %v5872 = vpack.c.b16 %v5528, %v5524
    %v5873 = vpack.c.b16 %v5529, %v5525
    %v5874 = vpack.c.b16 %v5534, %v5530
    %v5875 = vpack.c.b16 %v5535, %v5531
    %v5876 = vpack.c.b16 %v5536, %v5532
    %v5877 = vpack.c.b16 %v5537, %v5533
    %v5878 = vpack.c.b16 %v5542, %v5538
    %v5879 = vpack.c.b16 %v5543, %v5539
    %v5880 = vpack.c.b16 %v5544, %v5540
    %v5881 = vpack.c.b16 %v5545, %v5541
    %v5882 = vpack.c.b16 %v5550, %v5546
    %v5883 = vpack.c.b16 %v5551, %v5547
    %v5884 = vpack.c.b16 %v5552, %v5548
    %v5885 = vpack.c.b16 %v5553, %v5549
    %v5886 = vpack.c.b16 %v5558, %v5554
    %v5887 = vpack.c.b16 %v5559, %v5555
    %v5888 = vpack.c.b16 %v5560, %v5556
    %v5889 = vpack.c.b16 %v5561, %v5557
    %v5890 = vpack.c.b16 %v5566, %v5562
    %v5891 = vpack.c.b16 %v5567, %v5563
    %v5892 = vpack.c.b16 %v5568, %v5564
    %v5893 = vpack.c.b16 %v5569, %v5565
    %v5894 = vpack.c.b16 %v5574, %v5570
    %v5895 = vpack.c.b16 %v5575, %v5571
    %v5896 = vpack.c.b16 %v5576, %v5572
    %v5897 = vpack.c.b16 %v5577, %v5573
    %v5898 = vpack.c.b16 %v5582, %v5578
    %v5899 = vpack.c.b16 %v5583, %v5579
    %v5900 = vpack.c.b16 %v5584, %v5580
    %v5901 = vpack.c.b16 %v5585, %v5581
    %v5902 = vpack.c.b16 %v5590, %v5586
    %v5903 = vpack.c.b16 %v5591, %v5587
    %v5904 = vpack.c.b16 %v5592, %v5588
    %v5905 = vpack.c.b16 %v5593, %v5589
    %v5906 = vpack.c.b16 %v5598, %v5594
    %v5907 = vpack.c.b16 %v5599, %v5595
    %v5908 = vpack.c.b16 %v5600, %v5596
    %v5909 = vpack.c.b16 %v5601, %v5597
    %v5910 = vpack.c.b16 %v5606, %v5602
    %v5911 = vpack.c.b16 %v5607, %v5603
    %v5912 = vpack.c.b16 %v5608, %v5604
    %v5913 = vpack.c.b16 %v5609, %v5605
    %v5914 = vpack.c.b16 %v5614, %v5610
    %v5915 = vpack.c.b16 %v5615, %v5611
    %v5916 = vpack.c.b16 %v5616, %v5612
    %v5917 = vpack.c.b16 %v5617, %v5613
    %v5918 = vpack.c.b16 %v5622, %v5618
    %v5919 = vpack.c.b16 %v5623, %v5619
    %v5920 = vpack.c.b16 %v5624, %v5620
    %v5921 = vpack.c.b16 %v5625, %v5621
    %v5922 = vpack.c.b16 %v5630, %v5626
    %v5923 = vpack.c.b16 %v5631, %v5627
    %v5924 = vpack.c.b16 %v5632, %v5628
    %v5925 = vpack.c.b16 %v5633, %v5629
    %v5926 = vpack.c.b16 %v5638, %v5634
    %v5927 = vpack.c.b16 %v5639, %v5635
    %v5928 = vpack.c.b16 %v5640, %v5636
    %v5929 = vpack.c.b16 %v5641, %v5637
    %v5930 = vpack.c.b16 %v5646, %v5642
    %v5931 = vpack.c.b16 %v5647, %v5643
    %v5932 = vpack.c.b16 %v5648, %v5644
    %v5933 = vpack.c.b16 %v5649, %v5645
    %v5934 = vpack.c.b16 %v5654, %v5650
    %v5935 = vpack.c.b16 %v5655, %v5651
    %v5936 = vpack.c.b16 %v5656, %v5652
    %v5937 = vpack.c.b16 %v5657, %v5653
    %v5938 = vpack.c.b16 %v5662, %v5658
    %v5939 = vpack.c.b16 %v5663, %v5659
    %v5940 = vpack.c.b16 %v5664, %v5660
    %v5941 = vpack.c.b16 %v5665, %v5661
    %v5942 = vpack.c.b16 %v5670, %v5666
    %v5943 = vpack.c.b16 %v5671, %v5667
    %v5944 = vpack.c.b16 %v5672, %v5668
    %v5945 = vpack.c.b16 %v5673, %v5669
    %v5946 = vpack.c.b16 %v5678, %v5674
    %v5947 = vpack.c.b16 %v5679, %v5675
    %v5948 = vpack.c.b16 %v5680, %v5676
    %v5949 = vpack.c.b16 %v5681, %v5677
    %v5950 = vpack.c.b16 %v5686, %v5682
    %v5951 = vpack.c.b16 %v5687, %v5683
    %v5952 = vpack.c.b16 %v5688, %v5684
    %v5953 = vpack.c.b16 %v5689, %v5685
    %v5954 = vpack.c.b16 %v5694, %v5690
    %v5955 = vpack.c.b16 %v5695, %v5691
    %v5956 = vpack.c.b16 %v5696, %v5692
    %v5957 = vpack.c.b16 %v5697, %v5693
    %v5958 = vpack.c.b16 %v5702, %v5698
    %v5959 = vpack.c.b16 %v5703, %v5699
    %v5960 = vpack.c.b16 %v5704, %v5700
    %v5961 = vpack.c.b16 %v5705, %v5701
    %6218 = vmatprep.subr.bf16.mxu0 %v5707
    %6219 = vmatpush1.bf16.msra.mxu0 %v5706
    %6220 = vmatprep.subr.bf16.mxu0 %v5711
    %6221 = vmatpush1.bf16.msra.mxu0 %v5710
    %6222 = vmatprep.subr.bf16.mxu0 %v5715
    %6223 = vmatpush1.bf16.msra.mxu0 %v5714
    %6224 = vmatprep.subr.bf16.mxu0 %v5719
    %6225 = vmatpush1.bf16.msra.mxu0 %v5718
    %6226 = vmatprep.subr.bf16.mxu0 %v5723
    %6227 = vmatpush1.bf16.msra.mxu0 %v5722
    %6228 = vmatprep.subr.bf16.mxu0 %v5727
    %6229 = vmatpush1.bf16.msra.mxu0 %v5726
    %6230 = vmatprep.subr.bf16.mxu0 %v5731
    %6231 = vmatpush1.bf16.msra.mxu0 %v5730
    %6232 = vmatprep.subr.bf16.mxu0 %v5735
    %6233 = vmatpush1.bf16.msra.mxu0 %v5734
    %6234 = vmatprep.subr.bf16.mxu0 %v5739
    %6235 = vmatpush1.bf16.msra.mxu0 %v5738
    %6236 = vmatprep.subr.bf16.mxu0 %v5743
    %6237 = vmatpush1.bf16.msra.mxu0 %v5742
    %6238 = vmatprep.subr.bf16.mxu0 %v5747
    %6239 = vmatpush1.bf16.msra.mxu0 %v5746
    %6240 = vmatprep.subr.bf16.mxu0 %v5751
    %6241 = vmatpush1.bf16.msra.mxu0 %v5750
    %6242 = vmatprep.subr.bf16.mxu0 %v5755
    %6243 = vmatpush1.bf16.msra.mxu0 %v5754
    %6244 = vmatprep.subr.bf16.mxu0 %v5759
    %6245 = vmatpush1.bf16.msra.mxu0 %v5758
    %6246 = vmatprep.subr.bf16.mxu0 %v5763
    %6247 = vmatpush1.bf16.msra.mxu0 %v5762
    %6248 = vmatprep.subr.bf16.mxu0 %v5767
    %6249 = vmatpush1.bf16.msra.mxu0 %v5766
    %6250 = vmatprep.mubr.bf16.mxu0 %v4653
    %6251 = vmatmul.mubr.bf16.gmra.mrb[0].mxu0 %v4652
    %v6252 = vpop.f32.mrb[0].mxu0
    %v6253 = vadd.f32 %v4921, %v6252
    %v6254 = vpop.f32.mrb[0].mxu0
    %v6255 = vadd.f32 %v4925, %v6254
    %v6256 = vpop.f32.mrb[0].mxu0
    %v6257 = vadd.f32 %v4921, %v6256
    %v6258 = vpop.f32.mrb[0].mxu0
    %v6259 = vadd.f32 %v4925, %v6258
    %6260 = vdwg.mxu0
    %6261 = vmatprep.subr.bf16.mxu0 %v5771
    %6262 = vmatpush1.bf16.msra.mxu0 %v5770
    %6263 = vmatprep.subr.bf16.mxu0 %v5775
    %6264 = vmatpush1.bf16.msra.mxu0 %v5774
    %6265 = vmatprep.subr.bf16.mxu0 %v5779
    %6266 = vmatpush1.bf16.msra.mxu0 %v5778
    %6267 = vmatprep.subr.bf16.mxu0 %v5783
    %6268 = vmatpush1.bf16.msra.mxu0 %v5782
    %6269 = vmatprep.subr.bf16.mxu0 %v5787
    %6270 = vmatpush1.bf16.msra.mxu0 %v5786
    %6271 = vmatprep.subr.bf16.mxu0 %v5791
    %6272 = vmatpush1.bf16.msra.mxu0 %v5790
    %6273 = vmatprep.subr.bf16.mxu0 %v5795
    %6274 = vmatpush1.bf16.msra.mxu0 %v5794
    %6275 = vmatprep.subr.bf16.mxu0 %v5799
    %6276 = vmatpush1.bf16.msra.mxu0 %v5798
    %6277 = vmatprep.subr.bf16.mxu0 %v5803
    %6278 = vmatpush1.bf16.msra.mxu0 %v5802
    %6279 = vmatprep.subr.bf16.mxu0 %v5807
    %6280 = vmatpush1.bf16.msra.mxu0 %v5806
    %6281 = vmatprep.subr.bf16.mxu0 %v5811
    %6282 = vmatpush1.bf16.msra.mxu0 %v5810
    %6283 = vmatprep.subr.bf16.mxu0 %v5815
    %6284 = vmatpush1.bf16.msra.mxu0 %v5814
    %6285 = vmatprep.subr.bf16.mxu0 %v5819
    %6286 = vmatpush1.bf16.msra.mxu0 %v5818
    %6287 = vmatprep.subr.bf16.mxu0 %v5823
    %6288 = vmatpush1.bf16.msra.mxu0 %v5822
    %6289 = vmatprep.subr.bf16.mxu0 %v5827
    %6290 = vmatpush1.bf16.msra.mxu0 %v5826
    %6291 = vmatprep.subr.bf16.mxu0 %v5831
    %6292 = vmatpush1.bf16.msra.mxu0 %v5830
    %6293 = vmatprep.mubr.bf16.mxu0 %v4655
    %6294 = vmatmul.mubr.bf16.gmra.mrb[0].mxu0 %v4654
    %v6295 = vpop.f32.mrb[0].mxu0
    %v6296 = vadd.f32 %v6253, %v6295
    %v6297 = vpop.f32.mrb[0].mxu0
    %v6298 = vadd.f32 %v6255, %v6297
    %v6299 = vpop.f32.mrb[0].mxu0
    %v6300 = vadd.f32 %v6257, %v6299
    %v6301 = vpop.f32.mrb[0].mxu0
    %v6302 = vadd.f32 %v6259, %v6301
    %6303 = vdwg.mxu0
    %6304 = vmatprep.subr.bf16.mxu0 %v5835
    %6305 = vmatpush1.bf16.msra.mxu0 %v5834
    %6306 = vmatprep.subr.bf16.mxu0 %v5839
    %6307 = vmatpush1.bf16.msra.mxu0 %v5838
    %6308 = vmatprep.subr.bf16.mxu0 %v5843
    %6309 = vmatpush1.bf16.msra.mxu0 %v5842
    %6310 = vmatprep.subr.bf16.mxu0 %v5847
    %6311 = vmatpush1.bf16.msra.mxu0 %v5846
    %6312 = vmatprep.subr.bf16.mxu0 %v5851
    %6313 = vmatpush1.bf16.msra.mxu0 %v5850
    %6314 = vmatprep.subr.bf16.mxu0 %v5855
    %6315 = vmatpush1.bf16.msra.mxu0 %v5854
    %6316 = vmatprep.subr.bf16.mxu0 %v5859
    %6317 = vmatpush1.bf16.msra.mxu0 %v5858
    %6318 = vmatprep.subr.bf16.mxu0 %v5863
    %6319 = vmatpush1.bf16.msra.mxu0 %v5862
    %6320 = vmatprep.subr.bf16.mxu0 %v5867
    %6321 = vmatpush1.bf16.msra.mxu0 %v5866
    %6322 = vmatprep.subr.bf16.mxu0 %v5871
    %6323 = vmatpush1.bf16.msra.mxu0 %v5870
    %6324 = vmatprep.subr.bf16.mxu0 %v5875
    %6325 = vmatpush1.bf16.msra.mxu0 %v5874
    %6326 = vmatprep.subr.bf16.mxu0 %v5879
    %6327 = vmatpush1.bf16.msra.mxu0 %v5878
    %6328 = vmatprep.subr.bf16.mxu0 %v5883
    %6329 = vmatpush1.bf16.msra.mxu0 %v5882
    %6330 = vmatprep.subr.bf16.mxu0 %v5887
    %6331 = vmatpush1.bf16.msra.mxu0 %v5886
    %6332 = vmatprep.subr.bf16.mxu0 %v5891
    %6333 = vmatpush1.bf16.msra.mxu0 %v5890
    %6334 = vmatprep.subr.bf16.mxu0 %v5895
    %6335 = vmatpush1.bf16.msra.mxu0 %v5894
    %6336 = vmatprep.mubr.bf16.mxu0 %v4657
    %6337 = vmatmul.mubr.bf16.gmra.mrb[0].mxu0 %v4656
    %v6338 = vpop.f32.mrb[0].mxu0
    %v6339 = vadd.f32 %v6296, %v6338
    %v6340 = vpop.f32.mrb[0].mxu0
    %v6341 = vadd.f32 %v6298, %v6340
    %v6342 = vpop.f32.mrb[0].mxu0
    %v6343 = vadd.f32 %v6300, %v6342
    %v6344 = vpop.f32.mrb[0].mxu0
    %v6345 = vadd.f32 %v6302, %v6344
    %6346 = vdwg.mxu0
    %6347 = vmatprep.subr.bf16.mxu0 %v5899
    %6348 = vmatpush1.bf16.msra.mxu0 %v5898
    %6349 = vmatprep.subr.bf16.mxu0 %v5903
    %6350 = vmatpush1.bf16.msra.mxu0 %v5902
    %6351 = vmatprep.subr.bf16.mxu0 %v5907
    %6352 = vmatpush1.bf16.msra.mxu0 %v5906
    %6353 = vmatprep.subr.bf16.mxu0 %v5911
    %6354 = vmatpush1.bf16.msra.mxu0 %v5910
    %6355 = vmatprep.subr.bf16.mxu0 %v5915
    %6356 = vmatpush1.bf16.msra.mxu0 %v5914
    %6357 = vmatprep.subr.bf16.mxu0 %v5919
    %6358 = vmatpush1.bf16.msra.mxu0 %v5918
    %6359 = vmatprep.subr.bf16.mxu0 %v5923
    %6360 = vmatpush1.bf16.msra.mxu0 %v5922
    %6361 = vmatprep.subr.bf16.mxu0 %v5927
    %6362 = vmatpush1.bf16.msra.mxu0 %v5926
    %6363 = vmatprep.subr.bf16.mxu0 %v5931
    %6364 = vmatpush1.bf16.msra.mxu0 %v5930
    %6365 = vmatprep.subr.bf16.mxu0 %v5935
    %6366 = vmatpush1.bf16.msra.mxu0 %v5934
    %6367 = vmatprep.subr.bf16.mxu0 %v5939
    %6368 = vmatpush1.bf16.msra.mxu0 %v5938
    %6369 = vmatprep.subr.bf16.mxu0 %v5943
    %6370 = vmatpush1.bf16.msra.mxu0 %v5942
    %6371 = vmatprep.subr.bf16.mxu0 %v5947
    %6372 = vmatpush1.bf16.msra.mxu0 %v5946
    %6373 = vmatprep.subr.bf16.mxu0 %v5951
    %6374 = vmatpush1.bf16.msra.mxu0 %v5950
    %6375 = vmatprep.subr.bf16.mxu0 %v5955
    %6376 = vmatpush1.bf16.msra.mxu0 %v5954
    %6377 = vmatprep.subr.bf16.mxu0 %v5959
    %6378 = vmatpush1.bf16.msra.mxu0 %v5958
    %6379 = vmatprep.mubr.bf16.mxu0 %v4659
    %6380 = vmatmul.mubr.bf16.gmra.mrb[0].mxu0 %v4658
    %v6381 = vpop.f32.mrb[0].mxu0
    %v6382 = vadd.f32 %v6339, %v6381
    %v6383 = vpop.f32.mrb[0].mxu0
    %v6384 = vadd.f32 %v6341, %v6383
    %v6385 = vpop.f32.mrb[0].mxu0
    %v6386 = vadd.f32 %v6343, %v6385
    %v6387 = vpop.f32.mrb[0].mxu0
    %v6388 = vadd.f32 %v6345, %v6387
    %6389 = vdwg.mxu0
    %6390 = vmatprep.subr.bf16.mxu0 %v5709
    %6391 = vmatpush1.bf16.msra.mxu0 %v5708
    %6392 = vmatprep.subr.bf16.mxu0 %v5713
    %6393 = vmatpush1.bf16.msra.mxu0 %v5712
    %6394 = vmatprep.subr.bf16.mxu0 %v5717
    %6395 = vmatpush1.bf16.msra.mxu0 %v5716
    %6396 = vmatprep.subr.bf16.mxu0 %v5721
    %6397 = vmatpush1.bf16.msra.mxu0 %v5720
    %6398 = vmatprep.subr.bf16.mxu0 %v5725
    %6399 = vmatpush1.bf16.msra.mxu0 %v5724
    %6400 = vmatprep.subr.bf16.mxu0 %v5729
    %6401 = vmatpush1.bf16.msra.mxu0 %v5728
    %6402 = vmatprep.subr.bf16.mxu0 %v5733
    %6403 = vmatpush1.bf16.msra.mxu0 %v5732
    %6404 = vmatprep.subr.bf16.mxu0 %v5737
    %6405 = vmatpush1.bf16.msra.mxu0 %v5736
    %6406 = vmatprep.subr.bf16.mxu0 %v5741
    %6407 = vmatpush1.bf16.msra.mxu0 %v5740
    %6408 = vmatprep.subr.bf16.mxu0 %v5745
    %6409 = vmatpush1.bf16.msra.mxu0 %v5744
    %6410 = vmatprep.subr.bf16.mxu0 %v5749
    %6411 = vmatpush1.bf16.msra.mxu0 %v5748
    %6412 = vmatprep.subr.bf16.mxu0 %v5753
    %6413 = vmatpush1.bf16.msra.mxu0 %v5752
    %6414 = vmatprep.subr.bf16.mxu0 %v5757
    %6415 = vmatpush1.bf16.msra.mxu0 %v5756
    %6416 = vmatprep.subr.bf16.mxu0 %v5761
    %6417 = vmatpush1.bf16.msra.mxu0 %v5760
    %6418 = vmatprep.subr.bf16.mxu0 %v5765
    %6419 = vmatpush1.bf16.msra.mxu0 %v5764
    %6420 = vmatprep.subr.bf16.mxu0 %v5769
    %6421 = vmatpush1.bf16.msra.mxu0 %v5768
    %6422 = vmatprep.mubr.bf16.mxu0 %v4653
    %6423 = vmatmul.mubr.bf16.gmra.mrb[0].mxu0 %v4652
    %v6424 = vpop.f32.mrb[0].mxu0
    %v6425 = vadd.f32 %v4929, %v6424
    %v6426 = vpop.f32.mrb[0].mxu0
    %v6427 = vadd.f32 %v4933, %v6426
    %v6428 = vpop.f32.mrb[0].mxu0
    %v6429 = vadd.f32 %v4929, %v6428
    %v6430 = vpop.f32.mrb[0].mxu0
    %v6431 = vadd.f32 %v4933, %v6430
    %6432 = vdwg.mxu0
    %6433 = vmatprep.subr.bf16.mxu0 %v5773
    %6434 = vmatpush1.bf16.msra.mxu0 %v5772
    %6435 = vmatprep.subr.bf16.mxu0 %v5777
    %6436 = vmatpush1.bf16.msra.mxu0 %v5776
    %6437 = vmatprep.subr.bf16.mxu0 %v5781
    %6438 = vmatpush1.bf16.msra.mxu0 %v5780
    %6439 = vmatprep.subr.bf16.mxu0 %v5785
    %6440 = vmatpush1.bf16.msra.mxu0 %v5784
    %6441 = vmatprep.subr.bf16.mxu0 %v5789
    %6442 = vmatpush1.bf16.msra.mxu0 %v5788
    %6443 = vmatprep.subr.bf16.mxu0 %v5793
    %6444 = vmatpush1.bf16.msra.mxu0 %v5792
    %6445 = vmatprep.subr.bf16.mxu0 %v5797
    %6446 = vmatpush1.bf16.msra.mxu0 %v5796
    %6447 = vmatprep.subr.bf16.mxu0 %v5801
    %6448 = vmatpush1.bf16.msra.mxu0 %v5800
    %6449 = vmatprep.subr.bf16.mxu0 %v5805
    %6450 = vmatpush1.bf16.msra.mxu0 %v5804
    %6451 = vmatprep.subr.bf16.mxu0 %v5809
    %6452 = vmatpush1.bf16.msra.mxu0 %v5808
    %6453 = vmatprep.subr.bf16.mxu0 %v5813
    %6454 = vmatpush1.bf16.msra.mxu0 %v5812
    %6455 = vmatprep.subr.bf16.mxu0 %v5817
    %6456 = vmatpush1.bf16.msra.mxu0 %v5816
    %6457 = vmatprep.subr.bf16.mxu0 %v5821
    %6458 = vmatpush1.bf16.msra.mxu0 %v5820
    %6459 = vmatprep.subr.bf16.mxu0 %v5825
    %6460 = vmatpush1.bf16.msra.mxu0 %v5824
    %6461 = vmatprep.subr.bf16.mxu0 %v5829
    %6462 = vmatpush1.bf16.msra.mxu0 %v5828
    %6463 = vmatprep.subr.bf16.mxu0 %v5833
    %6464 = vmatpush1.bf16.msra.mxu0 %v5832
    %6465 = vmatprep.mubr.bf16.mxu0 %v4655
    %6466 = vmatmul.mubr.bf16.gmra.mrb[0].mxu0 %v4654
    %v6467 = vpop.f32.mrb[0].mxu0
    %v6468 = vadd.f32 %v6425, %v6467
    %v6469 = vpop.f32.mrb[0].mxu0
    %v6470 = vadd.f32 %v6427, %v6469
    %v6471 = vpop.f32.mrb[0].mxu0
    %v6472 = vadd.f32 %v6429, %v6471
    %v6473 = vpop.f32.mrb[0].mxu0
    %v6474 = vadd.f32 %v6431, %v6473
    %6475 = vdwg.mxu0
    %6476 = vmatprep.subr.bf16.mxu0 %v5837
    %6477 = vmatpush1.bf16.msra.mxu0 %v5836
    %6478 = vmatprep.subr.bf16.mxu0 %v5841
    %6479 = vmatpush1.bf16.msra.mxu0 %v5840
    %6480 = vmatprep.subr.bf16.mxu0 %v5845
    %6481 = vmatpush1.bf16.msra.mxu0 %v5844
    %6482 = vmatprep.subr.bf16.mxu0 %v5849
    %6483 = vmatpush1.bf16.msra.mxu0 %v5848
    %6484 = vmatprep.subr.bf16.mxu0 %v5853
    %6485 = vmatpush1.bf16.msra.mxu0 %v5852
    %6486 = vmatprep.subr.bf16.mxu0 %v5857
    %6487 = vmatpush1.bf16.msra.mxu0 %v5856
    %6488 = vmatprep.subr.bf16.mxu0 %v5861
    %6489 = vmatpush1.bf16.msra.mxu0 %v5860
    %6490 = vmatprep.subr.bf16.mxu0 %v5865
    %6491 = vmatpush1.bf16.msra.mxu0 %v5864
    %6492 = vmatprep.subr.bf16.mxu0 %v5869
    %6493 = vmatpush1.bf16.msra.mxu0 %v5868
    %6494 = vmatprep.subr.bf16.mxu0 %v5873
    %6495 = vmatpush1.bf16.msra.mxu0 %v5872
    %6496 = vmatprep.subr.bf16.mxu0 %v5877
    %6497 = vmatpush1.bf16.msra.mxu0 %v5876
    %6498 = vmatprep.subr.bf16.mxu0 %v5881
    %6499 = vmatpush1.bf16.msra.mxu0 %v5880
    %6500 = vmatprep.subr.bf16.mxu0 %v5885
    %6501 = vmatpush1.bf16.msra.mxu0 %v5884
    %6502 = vmatprep.subr.bf16.mxu0 %v5889
    %6503 = vmatpush1.bf16.msra.mxu0 %v5888
    %6504 = vmatprep.subr.bf16.mxu0 %v5893
    %6505 = vmatpush1.bf16.msra.mxu0 %v5892
    %6506 = vmatprep.subr.bf16.mxu0 %v5897
    %6507 = vmatpush1.bf16.msra.mxu0 %v5896
    %6508 = vmatprep.mubr.bf16.mxu0 %v4657
    %6509 = vmatmul.mubr.bf16.gmra.mrb[0].mxu0 %v4656
    %v6510 = vpop.f32.mrb[0].mxu0
    %v6511 = vadd.f32 %v6468, %v6510
    %v6512 = vpop.f32.mrb[0].mxu0
    %v6513 = vadd.f32 %v6470, %v6512
    %v6514 = vpop.f32.mrb[0].mxu0
    %v6515 = vadd.f32 %v6472, %v6514
    %v6516 = vpop.f32.mrb[0].mxu0
    %v6517 = vadd.f32 %v6474, %v6516
    %6518 = vdwg.mxu0
    %6519 = vmatprep.subr.bf16.mxu0 %v5901
    %6520 = vmatpush1.bf16.msra.mxu0 %v5900
    %6521 = vmatprep.subr.bf16.mxu0 %v5905
    %6522 = vmatpush1.bf16.msra.mxu0 %v5904
    %6523 = vmatprep.subr.bf16.mxu0 %v5909
    %6524 = vmatpush1.bf16.msra.mxu0 %v5908
    %6525 = vmatprep.subr.bf16.mxu0 %v5913
    %6526 = vmatpush1.bf16.msra.mxu0 %v5912
    %6527 = vmatprep.subr.bf16.mxu0 %v5917
    %6528 = vmatpush1.bf16.msra.mxu0 %v5916
    %6529 = vmatprep.subr.bf16.mxu0 %v5921
    %6530 = vmatpush1.bf16.msra.mxu0 %v5920
    %6531 = vmatprep.subr.bf16.mxu0 %v5925
    %6532 = vmatpush1.bf16.msra.mxu0 %v5924
    %6533 = vmatprep.subr.bf16.mxu0 %v5929
    %6534 = vmatpush1.bf16.msra.mxu0 %v5928
    %6535 = vmatprep.subr.bf16.mxu0 %v5933
    %6536 = vmatpush1.bf16.msra.mxu0 %v5932
    %6537 = vmatprep.subr.bf16.mxu0 %v5937
    %6538 = vmatpush1.bf16.msra.mxu0 %v5936
    %6539 = vmatprep.subr.bf16.mxu0 %v5941
    %6540 = vmatpush1.bf16.msra.mxu0 %v5940
    %6541 = vmatprep.subr.bf16.mxu0 %v5945
    %6542 = vmatpush1.bf16.msra.mxu0 %v5944
    %6543 = vmatprep.subr.bf16.mxu0 %v5949
    %6544 = vmatpush1.bf16.msra.mxu0 %v5948
    %6545 = vmatprep.subr.bf16.mxu0 %v5953
    %6546 = vmatpush1.bf16.msra.mxu0 %v5952
    %6547 = vmatprep.subr.bf16.mxu0 %v5957
    %6548 = vmatpush1.bf16.msra.mxu0 %v5956
    %6549 = vmatprep.subr.bf16.mxu0 %v5961
    %6550 = vmatpush1.bf16.msra.mxu0 %v5960
    %6551 = vmatprep.mubr.bf16.mxu0 %v4659
    %6552 = vmatmul.mubr.bf16.gmra.mrb[0].mxu0 %v4658
    %v6553 = vpop.f32.mrb[0].mxu0
    %v6554 = vadd.f32 %v6511, %v6553
    %v6555 = vpop.f32.mrb[0].mxu0
    %v6556 = vadd.f32 %v6513, %v6555
    %v6557 = vpop.f32.mrb[0].mxu0
    %v6558 = vadd.f32 %v6515, %v6557
    %v6559 = vpop.f32.mrb[0].mxu0
    %v6560 = vadd.f32 %v6517, %v6559
    %6561 = vdwg.mxu0
    %v6562 = vtanh.pop %v6382
    %v6563 = vtanh.pop %v6384
    %v6564 = vtanh.pop %v6554
    %v6565 = vtanh.pop %v6556
    %v6566 = vtanh.pop %v6386
    %v6567 = vtanh.pop %v6388
    %v6568 = vtanh.pop %v6558
    %v6569 = vtanh.pop %v6560
    %6570 = vst [vmem:[#allocation14] sm:$0xff] %v6562
    %6571 = vst [vmem:[#allocation14 + $0x8] sm:$0xff] %v6563
    %6572 = vst [vmem:[#allocation14 + $0x10] sm:$0xff] %v6564
    %6573 = vst [vmem:[#allocation14 + $0x18] sm:$0xff] %v6565
    %6574 = vst [vmem:[#allocation14 + $0x20] sm:$0xff] %v6566
    %6575 = vst [vmem:[#allocation14 + $0x28] sm:$0xff] %v6567
    %6576 = vst [vmem:[#allocation14 + $0x30] sm:$0xff] %v6568
    %6577 = vst [vmem:[#allocation14 + $0x38] sm:$0xff] %v6569
    // Predicated region
    $region58: #{tpu_custom_call.1} parent=1 // pred_check
      _
    $region59: #{tpu_custom_call.1} parent=1 // pred_check_branch
      %6579 = sbr.rel (0) target = $region61
    $region60: #{tpu_custom_call.1} parent=1 // pred_region
      %s6581 = ssub.s32 1024, 1024
      %6582 = vsyncadd [#allocation4], %s6581
      %s6583 = sshll.u32 [#allocation14], 4
      %s6584 = int_to_ptr.vmem [resolvable:$true] %s6583
      %6589 = dma.vmem_to_hbm [thread:$0]  %s6584, 1024, %s7, [#allocation4], 512, 512, 32
    $region61: #{tpu_custom_call.1} parent=1 // pred_fallthru
      _
    // Predicated region
    $region62: #{tpu_custom_call.1} parent=1 // pred_check
      _
    $region63: #{tpu_custom_call.1} parent=1 // pred_check_branch
      %6591 = sbr.rel (0) target = $region65
    $region64: #{tpu_custom_call.1} parent=1 // pred_region
      %6592 = dma.done [#allocation4], 1024
    $region65: #{tpu_custom_call.1} parent=1 // pred_fallthru
      _
    %6593 = vsyncpa [#allocation3], 1
    %6594 = vsyncpa [#allocation6], 1
    %6595 = vsyncpa [#allocation9], 1
    %6596 = vsyncpa [#allocation12], 1
    %6597 = vsyncpa [#allocation4], 1

</llo_original>
